<compile_context>
chip_gen: v7x
topology: tpu7x:2x2x1
jax: 0.10.0
libtpu: 0.0.40
codegen_flags: <defaults>
</compile_context>

<pallas_src>
import functools
import math

import jax
import jax.numpy as jnp
from jax import lax
from jax.experimental import pallas as pl
from jax.experimental.pallas import tpu as pltpu


# ----------------------------- tiling helpers ---------------------------------

def _vmem_budget_bytes():
    """Per-generation block working-set budget (v7x has only 64 MiB VMEM/TC)."""
    cap = 64 * 1024 * 1024          # conservative default = v7x physical VMEM
    try:
        cap = int(getattr(pltpu.get_tpu_info(), "vmem_capacity_bytes", cap))
    except Exception:
        pass
    return min(int(cap * 0.6), 96 * 1024 * 1024)


def _vmem_limit_bytes(working_set):
    """Scoped-VMEM limit sized to the double-buffered block working set."""
    return int(min(max(2 * working_set + (4 << 20), 16 << 20), 48 << 20))


def _pick_tile(dim, candidates):
    # Largest MXU/lane-friendly tile that divides dim; full extent as fallback.
    for c in candidates:
        if dim % c == 0:
            return c
    return dim


# ----------------------------- kernels ----------------------------------------

def matmul_bias_kernel(x_ref, w_ref, b_ref, o_ref, acc_ref, *, relu):
    """Tiled o = [relu](x @ w + b); bf16 MXU operands, f32 accumulator.

    Grid = (M/tm, N/tn, K/tk); K (reduction) is the last, "arbitrary" axis.
    Output is bf16 so a f32 VMEM scratch accumulator is kept.
    """
    @pl.when(pl.program_id(2) == 0)
    def _init():
        acc_ref[...] = jnp.zeros_like(acc_ref)

    acc_ref[...] += jnp.dot(x_ref[...].astype(jnp.bfloat16),
                            w_ref[...].astype(jnp.bfloat16),
                            preferred_element_type=jnp.float32)

    @pl.when(pl.program_id(2) == pl.num_programs(2) - 1)
    def _finalize():
        y = acc_ref[...] + b_ref[...].astype(jnp.float32)
        if relu:
            y = jnp.maximum(y, 0.0)
        o_ref[...] = y.astype(o_ref.dtype)


def matmul_bias_res_ln_kernel(x_ref, w_ref, b_ref, r_ref, g_ref, beta_ref,
                              o_ref, *, eps):
    """Tiled o = LayerNorm((x @ w + b) + residual).

    N (feature) is un-tiled so LayerNorm sees full rows; the f32 output block
    is resident across the K axis and doubles as the accumulator (no scratch).
    """
    @pl.when(pl.program_id(1) == 0)
    def _init():
        o_ref[...] = jnp.zeros_like(o_ref)

    o_ref[...] += jnp.dot(x_ref[...].astype(jnp.bfloat16),
                          w_ref[...].astype(jnp.bfloat16),
                          preferred_element_type=jnp.float32)

    @pl.when(pl.program_id(1) == pl.num_programs(1) - 1)
    def _finalize():
        y = o_ref[...] + b_ref[...] + r_ref[...].astype(jnp.float32)
        mean = jnp.mean(y, axis=-1, keepdims=True)
        c = y - mean
        var = jnp.mean(c * c, axis=-1, keepdims=True)
        yn = c * lax.rsqrt(var + eps)
        o_ref[...] = (yn * g_ref[...] + beta_ref[...]).astype(o_ref.dtype)


def mha_flash_kernel(q_ref, kv_ref, o_ref, m_ref, l_ref, acc_ref, *, n_heads):
    """Multi-head SDPA with online softmax over KV blocks.

    q_ref : (1, tq, D)   bf16, already scaled by 1/sqrt(d_k) (folded into W_q)
    kv_ref: (1, ts, 2D)  bf16, K in lanes [0, D), V in lanes [D, 2D)
    o_ref : (1, tq, D)   bf16
    grid  : (B, T/tq, S/ts); KV axis is last ("arbitrary"); the f32 m/l/acc
            scratch carries the online-softmax state across it.
    """
    s_idx = pl.program_id(2)

    @pl.when(s_idx == 0)
    def _init():
        m_ref[...] = jnp.full(m_ref.shape, -jnp.inf, dtype=m_ref.dtype)
        l_ref[...] = jnp.zeros_like(l_ref)
        acc_ref[...] = jnp.zeros_like(acc_ref)

    tq, d_model = q_ref.shape[1], q_ref.shape[2]
    ts = kv_ref.shape[1]
    dk = d_model // n_heads

    # Head-batched operands (H, rows, dk): both matmuls run as single batched
    # MXU ops instead of a per-head Python loop of narrow matmuls.
    q = q_ref[0].astype(jnp.bfloat16)                               # (tq, D)
    kv = kv_ref[0].astype(jnp.bfloat16)                             # (ts, 2D)
    qh = jnp.swapaxes(q.reshape(tq, n_heads, dk), 0, 1)             # (H, tq, dk)
    kh = jnp.swapaxes(kv[:, :d_model].reshape(ts, n_heads, dk), 0, 1)
    vh = jnp.swapaxes(kv[:, d_model:].reshape(ts, n_heads, dk), 0, 1)

    s = jnp.einsum("hqd,hkd->hqk", qh, kh,
                   preferred_element_type=jnp.float32)              # (H, tq, ts)

    m_prev = m_ref[...]                                             # (H, tq, 1)
    m_new = jnp.maximum(m_prev, jnp.max(s, axis=-1, keepdims=True))
    alpha = jnp.exp(m_prev - m_new)
    p = jnp.exp(s - m_new)                                          # (H, tq, ts)
    l_ref[...] = alpha * l_ref[...] + jnp.sum(p, axis=-1, keepdims=True)
    pv = jnp.einsum("hqk,hkd->hqd", p.astype(jnp.bfloat16), vh,
                    preferred_element_type=jnp.float32)             # (H, tq, dk)
    acc_ref[...] = alpha * acc_ref[...] + pv
    m_ref[...] = m_new

    @pl.when(s_idx == pl.num_programs(2) - 1)
    def _finalize():
        inv_l = pl.reciprocal(l_ref[...], approx=True)              # (H, tq, 1)
        out = acc_ref[...] * inv_l                                  # (H, tq, dk)
        # One lane-slice store per head (unmasked when dk % 128 == 0).
        for h in range(n_heads):
            o_ref[0, :, h * dk:(h + 1) * dk] = out[h].astype(o_ref.dtype)


# ----------------------------- wrappers ----------------------------------------

def pallas_matmul_bias(x2d, w, b, relu=False, out_dtype=jnp.bfloat16):
    M, K = x2d.shape
    N = w.shape[1]
    tm = _pick_tile(M, (512, 256, 128))
    tn = _pick_tile(N, (256, 128))
    tk = _pick_tile(K, (256, 128))
    out_isz = jnp.dtype(out_dtype).itemsize

    def ws(tm_, tn_, tk_):
        return (2 * tm_ * tk_ * x2d.dtype.itemsize       # x blocks (double-buffered)
                + 2 * tk_ * tn_ * w.dtype.itemsize        # w blocks
                + 2 * tn_ * 4                             # bias blocks
                + 2 * tm_ * tn_ * out_isz                 # output blocks
                + tm_ * tn_ * 4)                          # f32 accumulator

    budget = _vmem_budget_bytes()
    while ws(tm, tn, tk) > budget and tm >= 256 and tm % 256 == 0:
        tm //= 2
    while ws(tm, tn, tk) > budget and tk >= 256 and tk % 256 == 0:
        tk //= 2
    while ws(tm, tn, tk) > budget and tn >= 256 and tn % 256 == 0:
        tn //= 2

    grid = (M // tm, N // tn, K // tk)
    cost = pl.CostEstimate(
        flops=int(2 * M * N * K), transcendentals=0,
        bytes_accessed=int(M * K * x2d.dtype.itemsize + K * N * w.dtype.itemsize
                           + M * N * out_isz + N * 4))
    return pl.pallas_call(
        functools.partial(matmul_bias_kernel, relu=relu),
        out_shape=jax.ShapeDtypeStruct((M, N), out_dtype),
        grid=grid,
        in_specs=[
            pl.BlockSpec((tm, tk), lambda i, j, k: (i, k)),
            pl.BlockSpec((tk, tn), lambda i, j, k: (k, j)),
            pl.BlockSpec((1, tn), lambda i, j, k: (0, j)),
        ],
        out_specs=pl.BlockSpec((tm, tn), lambda i, j, k: (i, j)),
        scratch_shapes=[pltpu.VMEM((tm, tn), jnp.float32)],
        compiler_params=pltpu.CompilerParams(
            dimension_semantics=("parallel", "parallel", "arbitrary"),
            vmem_limit_bytes=_vmem_limit_bytes(ws(tm, tn, tk))),
        cost_estimate=cost,
    )(x2d, w, b.reshape(1, N))


def pallas_matmul_bias_res_ln(x2d, w, b, residual2d, gamma, beta, eps=1e-5):
    M, K = x2d.shape
    N = w.shape[1]                    # LayerNorm over full feature dim: N un-tiled
    tm = _pick_tile(M, (512, 256, 128))
    tk = _pick_tile(K, (256, 128))

    def ws(tm_, tk_):
        return (2 * tm_ * tk_ * x2d.dtype.itemsize        # x blocks
                + 2 * tk_ * N * w.dtype.itemsize           # w blocks
                + 2 * tm_ * N * 4                          # residual blocks (f32)
                + 2 * tm_ * N * 4                          # f32 output / accumulator
                + 6 * N * 4)                               # bias / gamma / beta

    budget = _vmem_budget_bytes()
    while ws(tm, tk) > budget and tm >= 256 and tm % 256 == 0:
        tm //= 2
    while ws(tm, tk) > budget and tk >= 256 and tk % 256 == 0:
        tk //= 2

    grid = (M // tm, K // tk)
    cost = pl.CostEstimate(
        flops=int(2 * M * N * K + 10 * M * N), transcendentals=int(M),
        bytes_accessed=int(M * K * x2d.dtype.itemsize + K * N * w.dtype.itemsize
                           + 2 * M * N * 4 + 3 * N * 4))
    return pl.pallas_call(
        functools.partial(matmul_bias_res_ln_kernel, eps=eps),
        out_shape=jax.ShapeDtypeStruct((M, N), jnp.float32),
        grid=grid,
        in_specs=[
            pl.BlockSpec((tm, tk), lambda i, k: (i, k)),
            pl.BlockSpec((tk, N), lambda i, k: (k, 0)),
            pl.BlockSpec((1, N), lambda i, k: (0, 0)),
            pl.BlockSpec((tm, N), lambda i, k: (i, 0)),
            pl.BlockSpec((1, N), lambda i, k: (0, 0)),
            pl.BlockSpec((1, N), lambda i, k: (0, 0)),
        ],
        out_specs=pl.BlockSpec((tm, N), lambda i, k: (i, 0)),
        compiler_params=pltpu.CompilerParams(
            dimension_semantics=("parallel", "arbitrary"),
            vmem_limit_bytes=_vmem_limit_bytes(ws(tm, tk))),
        cost_estimate=cost,
    )(x2d, w, b.reshape(1, N), residual2d, gamma.reshape(1, N),
      beta.reshape(1, N))


def pallas_mha(q, kv, n_heads):
    """q: (B, T, D) bf16 (pre-scaled); kv: (B, S, 2D) bf16 -> (B, T, D) bf16."""
    B, T, D = q.shape
    S = kv.shape[1]
    dk = D // n_heads
    tq = _pick_tile(T, (256, 128))
    ts = _pick_tile(S, (512, 256, 128))

    def ws(tq_, ts_):
        return (2 * tq_ * D * 2                       # q blocks (bf16)
                + 2 * ts_ * 2 * D * 2                 # kv blocks (bf16)
                + 2 * tq_ * D * 2                     # output blocks (bf16)
                + n_heads * tq_ * (dk + 2) * 4        # m / l / acc scratch (f32)
                + 3 * n_heads * tq_ * ts_ * 4)        # score / prob intermediates

    budget = _vmem_budget_bytes()
    while ws(tq, ts) > budget and ts >= 256 and ts % 256 == 0:
        ts //= 2
    while ws(tq, ts) > budget and tq >= 256 and tq % 256 == 0:
        tq //= 2

    grid = (B, T // tq, S // ts)
    cost = pl.CostEstimate(
        flops=int(4 * B * T * S * D),
        transcendentals=int(B * n_heads * T * S),
        bytes_accessed=int(2 * (B * T * D + B * S * 2 * D + B * T * D)))
    return pl.pallas_call(
        functools.partial(mha_flash_kernel, n_heads=n_heads),
        out_shape=jax.ShapeDtypeStruct((B, T, D), jnp.bfloat16),
        grid=grid,
        in_specs=[
            pl.BlockSpec((1, tq, D), lambda b, t, s: (b, t, 0)),
            pl.BlockSpec((1, ts, 2 * D), lambda b, t, s: (b, s, 0)),
        ],
        out_specs=pl.BlockSpec((1, tq, D), lambda b, t, s: (b, t, 0)),
        scratch_shapes=[
            pltpu.VMEM((n_heads, tq, 1), jnp.float32),    # running max
            pltpu.VMEM((n_heads, tq, 1), jnp.float32),    # running denominator
            pltpu.VMEM((n_heads, tq, dk), jnp.float32),   # running numerator
        ],
        compiler_params=pltpu.CompilerParams(
            dimension_semantics=("parallel", "parallel", "arbitrary"),
            vmem_limit_bytes=_vmem_limit_bytes(ws(tq, ts))),
        cost_estimate=cost,
    )(q, kv)


# ----------------------------- decoder layer -----------------------------------

def decoder_layer(x, hs, params, *, n_heads):
    """Transformer decoder block (eval mode: dropout=identity, masks=None)."""
    # TODO(synk): mask / source_mask not implemented (None / eval path only).
    B, T, D = x.shape
    S = hs.shape[1]
    x2 = x.reshape(B * T, D)
    hs2 = hs.reshape(B * S, D)

    # ---- self-attention + residual + LayerNorm --------------------------------
    sa = params["self_attn"]
    q = pallas_matmul_bias(x2, sa["wq"], sa["bq"]).reshape(B, T, D)
    kv = pallas_matmul_bias(x2, sa["wkv"], sa["bkv"]).reshape(B, T, 2 * D)
    attn = pallas_mha(q, kv, n_heads).reshape(B * T, D)
    h2 = pallas_matmul_bias_res_ln(attn, sa["wo"], sa["bo"], x2,
                                   params["ln1_g"], params["ln1_b"])

    # ---- source-target (cross) attention + residual + LayerNorm ---------------
    ca = params["src_attn"]
    q = pallas_matmul_bias(h2, ca["wq"], ca["bq"]).reshape(B, T, D)
    kv = pallas_matmul_bias(hs2, ca["wkv"], ca["bkv"]).reshape(B, S, 2 * D)
    attn = pallas_mha(q, kv, n_heads).reshape(B * T, D)
    z2 = pallas_matmul_bias_res_ln(attn, ca["wo"], ca["bo"], h2,
                                   params["ln2_g"], params["ln2_b"])

    # ---- position-wise FFN + residual + LayerNorm ------------------------------
    y1 = pallas_matmul_bias(z2, params["ff_w1"], params["ff_b1"], relu=True)
    y = pallas_matmul_bias_res_ln(y1, params["ff_w2"], params["ff_b2"], z2,
                                  params["ln3_g"], params["ln3_b"])
    return y.reshape(B, T, D)


# ----------------------------- params / main ------------------------------------

def init_params(key, d_model, d_ff):
    """Raw f32 parameters (PyTorch nn.Linear-style init)."""
    def lin(k, din, dout):
        bound = 1.0 / math.sqrt(din)
        kw, kb = jax.random.split(k)
        w = jax.random.uniform(kw, (din, dout), jnp.float32, -bound, bound)
        b = jax.random.uniform(kb, (dout,), jnp.float32, -bound, bound)
        return w, b

    keys = iter(jax.random.split(key, 10))

    def mha():
        wq, bq = lin(next(keys), d_model, d_model)
        wk, bk = lin(next(keys), d_model, d_model)
        wv, bv = lin(next(keys), d_model, d_model)
        wo, bo = lin(next(keys), d_model, d_model)
        return dict(wq=wq, bq=bq, wk=wk, bk=bk, wv=wv, bv=bv, wo=wo, bo=bo)

    p = {"self_attn": mha(), "src_attn": mha()}
    p["ff_w1"], p["ff_b1"] = lin(next(keys), d_model, d_ff)
    p["ff_w2"], p["ff_b2"] = lin(next(keys), d_ff, d_model)
    for i in (1, 2, 3):
        p[f"ln{i}_g"] = jnp.ones((d_model,), jnp.float32)
        p[f"ln{i}_b"] = jnp.zeros((d_model,), jnp.float32)
    return p


def prepare_params(raw, n_heads):
    """One-time device layout: bf16 MXU weights, pre-concatenated W_kv, and the
    1/sqrt(d_k) attention scale folded into W_q / b_q (zero per-step cost)."""
    d_model = raw["ff_w1"].shape[0]
    scale = 1.0 / math.sqrt(d_model // n_heads)

    def attn(a):
        return dict(
            wq=(a["wq"] * scale).astype(jnp.bfloat16),
            bq=a["bq"] * scale,
            wkv=jnp.concatenate([a["wk"], a["wv"]], axis=1).astype(jnp.bfloat16),
            bkv=jnp.concatenate([a["bk"], a["bv"]]),
            wo=a["wo"].astype(jnp.bfloat16),
            bo=a["bo"],
        )

    out = {
        "self_attn": attn(raw["self_attn"]),
        "src_attn": attn(raw["src_attn"]),
        "ff_w1": raw["ff_w1"].astype(jnp.bfloat16), "ff_b1": raw["ff_b1"],
        "ff_w2": raw["ff_w2"].astype(jnp.bfloat16), "ff_b2": raw["ff_b2"],
    }
    for i in (1, 2, 3):
        out[f"ln{i}_g"] = raw[f"ln{i}_g"]
        out[f"ln{i}_b"] = raw[f"ln{i}_b"]
    return out


if __name__ == "__main__":
    # Small shapes consistent with DecoderLayer.forward: decoder input
    # x: (B, T, d_model), encoder output hs: (B, S, d_model).  Feature dims are
    # multiples of 128 and d_k = d_model / h = 128, so every block is lane-dense.
    B, T, S = 2, 16, 16
    H, D_MODEL, D_FF = 2, 256, 512

    key = jax.random.PRNGKey(0)
    kx, khs, kp = jax.random.split(key, 3)
    x = jax.random.normal(kx, (B, T, D_MODEL), jnp.float32)
    hs = jax.random.normal(khs, (B, S, D_MODEL), jnp.float32)
    params = prepare_params(init_params(kp, D_MODEL, D_FF), n_heads=H)

    fwd = jax.jit(functools.partial(decoder_layer, n_heads=H))
    out = fwd(x, hs, params)
    jax.block_until_ready(out)
    assert out.shape == (B, T, D_MODEL)
    assert bool(jnp.all(jnp.isfinite(out)))
    print("KERNEL_OK")
</pallas_src>

<mosaic_0001>
module attributes {stable_mosaic.version = 11 : i64} {
  func.func @matmul_bias_kernel(%arg0: i32, %arg1: i32, %arg2: i32, %arg3: memref<32x256xf32, #tpu.memory_space<vmem>>, %arg4: memref<256x256xbf16, #tpu.memory_space<vmem>>, %arg5: memref<1x256xf32, #tpu.memory_space<vmem>>, %arg6: memref<32x256xbf16, #tpu.memory_space<vmem>>, %arg7: memref<32x256xf32, #tpu.memory_space<vmem>>) attributes {dimension_semantics = [#tpu.dimension_semantics<parallel>, #tpu.dimension_semantics<parallel>, #tpu.dimension_semantics<arbitrary>], iteration_bounds = array<i64: 1, 2, 1>, scalar_prefetch = 0 : i64, scratch_operands = 1 : i64, tpu.core_type = #tpu.core_type<tc>, window_params = [{transform_indices = @transform_0, window_bounds = array<i64: 32, 256>}, {transform_indices = @transform_1, window_bounds = array<i64: 256, 256>}, {transform_indices = @transform_2, window_bounds = array<i64: 1, 256>}, {transform_indices = @transform_3, window_bounds = array<i64: 32, 256>}]} {
    %c0_i32 = arith.constant 0 : i32
    %0 = arith.cmpi eq, %arg2, %c0_i32 : i32
    %1 = arith.extui %0 : i1 to i32
    %c0_i32_0 = arith.constant 0 : i32
    %2 = arith.cmpi ne, %1, %c0_i32_0 : i32
    scf.if %2 {
      %cst_10 = arith.constant 0.000000e+00 : f32
      %13 = vector.broadcast %cst_10 : f32 to vector<32x256xf32>
      %c0_11 = arith.constant 0 : index
      %c0_12 = arith.constant 0 : index
      %14 = vector.load %arg7[%c0_11, %c0_12] : memref<32x256xf32, #tpu.memory_space<vmem>>, vector<32x256xf32>
      tpu.vector_store %arg7[%c0_11, %c0_12], %13 {strides = array<i32>} : memref<32x256xf32, #tpu.memory_space<vmem>>, vector<32x256xf32>,
    } else {
    }
    %c0 = arith.constant 0 : index
    %c0_1 = arith.constant 0 : index
    %3 = vector.load %arg7[%c0, %c0_1] : memref<32x256xf32, #tpu.memory_space<vmem>>, vector<32x256xf32>
    %c0_2 = arith.constant 0 : index
    %c0_3 = arith.constant 0 : index
    %4 = vector.load %arg3[%c0_2, %c0_3] : memref<32x256xf32, #tpu.memory_space<vmem>>, vector<32x256xf32>
    %5 = arith.truncf %4 : vector<32x256xf32> to vector<32x256xbf16>
    %c0_4 = arith.constant 0 : index
    %c0_5 = arith.constant 0 : index
    %6 = vector.load %arg4[%c0_4, %c0_5] : memref<256x256xbf16, #tpu.memory_space<vmem>>, vector<256x256xbf16>
    %cst = arith.constant dense<0.000000e+00> : vector<32x256xf32>
    %7 = tpu.matmul %5, %6, %cst {dimension_numbers = #tpu.dot_dimension_numbers<[1], [0], [0], [1], [0, 0, 1, 1], [], []>} : vector<32x256xbf16>, vector<256x256xbf16>, vector<32x256xf32> -> vector<32x256xf32>
    %8 = arith.addf %3, %7 : vector<32x256xf32>
    %c0_6 = arith.constant 0 : index
    %c0_7 = arith.constant 0 : index
    %9 = vector.load %arg7[%c0_6, %c0_7] : memref<32x256xf32, #tpu.memory_space<vmem>>, vector<32x256xf32>
    tpu.vector_store %arg7[%c0_6, %c0_7], %8 {strides = array<i32>} : memref<32x256xf32, #tpu.memory_space<vmem>>, vector<32x256xf32>,
    %c0_i32_8 = arith.constant 0 : i32
    %10 = arith.cmpi eq, %arg2, %c0_i32_8 : i32
    %11 = arith.extui %10 : i1 to i32
    %c0_i32_9 = arith.constant 0 : i32
    %12 = arith.cmpi ne, %11, %c0_i32_9 : i32
    scf.if %12 {
      %c0_10 = arith.constant 0 : index
      %c0_11 = arith.constant 0 : index
      %13 = vector.load %arg7[%c0_10, %c0_11] : memref<32x256xf32, #tpu.memory_space<vmem>>, vector<32x256xf32>
      %c0_12 = arith.constant 0 : index
      %c0_13 = arith.constant 0 : index
      %14 = vector.load %arg5[%c0_12, %c0_13] : memref<1x256xf32, #tpu.memory_space<vmem>>, vector<1x256xf32>
      %15 = vector.broadcast %14 : vector<1x256xf32> to vector<32x256xf32>
      %16 = arith.addf %13, %15 : vector<32x256xf32>
      %17 = arith.truncf %16 : vector<32x256xf32> to vector<32x256xbf16>
      %c0_14 = arith.constant 0 : index
      %c0_15 = arith.constant 0 : index
      %18 = vector.load %arg6[%c0_14, %c0_15] : memref<32x256xbf16, #tpu.memory_space<vmem>>, vector<32x256xbf16>
      tpu.vector_store %arg6[%c0_14, %c0_15], %17 {strides = array<i32>} : memref<32x256xbf16, #tpu.memory_space<vmem>>, vector<32x256xbf16>,
    } else {
    }
    return
  }
  func.func @transform_0(%arg0: i32, %arg1: i32, %arg2: i32) -> (i32, i32) {
    %c0_i32 = arith.constant 0 : i32
    return %arg0, %arg2 : i32, i32
  }
  func.func @transform_1(%arg0: i32, %arg1: i32, %arg2: i32) -> (i32, i32) {
    %c0_i32 = arith.constant 0 : i32
    return %arg2, %arg1 : i32, i32
  }
  func.func @transform_2(%arg0: i32, %arg1: i32, %arg2: i32) -> (i32, i32) {
    %c0_i32 = arith.constant 0 : i32
    %c0_i32_0 = arith.constant 0 : i32
    return %c0_i32, %arg1 : i32, i32
  }
  func.func @transform_3(%arg0: i32, %arg1: i32, %arg2: i32) -> (i32, i32) {
    %c0_i32 = arith.constant 0 : i32
    return %arg0, %arg1 : i32, i32
  }
}

module attributes {stable_mosaic.version = 11 : i64} {
  func.func @matmul_bias_kernel(%arg0: i32, %arg1: i32, %arg2: i32, %arg3: memref<32x256xf32, #tpu.memory_space<vmem>>, %arg4: memref<256x256xbf16, #tpu.memory_space<vmem>>, %arg5: memref<1x256xf32, #tpu.memory_space<vmem>>, %arg6: memref<32x256xbf16, #tpu.memory_space<vmem>>, %arg7: memref<32x256xf32, #tpu.memory_space<vmem>>) attributes {dimension_semantics = [#tpu.dimension_semantics<parallel>, #tpu.dimension_semantics<parallel>, #tpu.dimension_semantics<arbitrary>], iteration_bounds = array<i64: 1, 1, 1>, scalar_prefetch = 0 : i64, scratch_operands = 1 : i64, tpu.core_type = #tpu.core_type<tc>, window_params = [{transform_indices = @transform_0, window_bounds = array<i64: 32, 256>}, {transform_indices = @transform_1, window_bounds = array<i64: 256, 256>}, {transform_indices = @transform_2, window_bounds = array<i64: 1, 256>}, {transform_indices = @transform_3, window_bounds = array<i64: 32, 256>}]} {
    %c0_i32 = arith.constant 0 : i32
    %0 = arith.cmpi eq, %arg2, %c0_i32 : i32
    %1 = arith.extui %0 : i1 to i32
    %c0_i32_0 = arith.constant 0 : i32
    %2 = arith.cmpi ne, %1, %c0_i32_0 : i32
    scf.if %2 {
      %cst_10 = arith.constant 0.000000e+00 : f32
      %13 = vector.broadcast %cst_10 : f32 to vector<32x256xf32>
      %c0_11 = arith.constant 0 : index
      %c0_12 = arith.constant 0 : index
      %14 = vector.load %arg7[%c0_11, %c0_12] : memref<32x256xf32, #tpu.memory_space<vmem>>, vector<32x256xf32>
      tpu.vector_store %arg7[%c0_11, %c0_12], %13 {strides = array<i32>} : memref<32x256xf32, #tpu.memory_space<vmem>>, vector<32x256xf32>,
    } else {
    }
    %c0 = arith.constant 0 : index
    %c0_1 = arith.constant 0 : index
    %3 = vector.load %arg7[%c0, %c0_1] : memref<32x256xf32, #tpu.memory_space<vmem>>, vector<32x256xf32>
    %c0_2 = arith.constant 0 : index
    %c0_3 = arith.constant 0 : index
    %4 = vector.load %arg3[%c0_2, %c0_3] : memref<32x256xf32, #tpu.memory_space<vmem>>, vector<32x256xf32>
    %5 = arith.truncf %4 : vector<32x256xf32> to vector<32x256xbf16>
    %c0_4 = arith.constant 0 : index
    %c0_5 = arith.constant 0 : index
    %6 = vector.load %arg4[%c0_4, %c0_5] : memref<256x256xbf16, #tpu.memory_space<vmem>>, vector<256x256xbf16>
    %cst = arith.constant dense<0.000000e+00> : vector<32x256xf32>
    %7 = tpu.matmul %5, %6, %cst {dimension_numbers = #tpu.dot_dimension_numbers<[1], [0], [0], [1], [0, 0, 1, 1], [], []>} : vector<32x256xbf16>, vector<256x256xbf16>, vector<32x256xf32> -> vector<32x256xf32>
    %8 = arith.addf %3, %7 : vector<32x256xf32>
    %c0_6 = arith.constant 0 : index
    %c0_7 = arith.constant 0 : index
    %9 = vector.load %arg7[%c0_6, %c0_7] : memref<32x256xf32, #tpu.memory_space<vmem>>, vector<32x256xf32>
    tpu.vector_store %arg7[%c0_6, %c0_7], %8 {strides = array<i32>} : memref<32x256xf32, #tpu.memory_space<vmem>>, vector<32x256xf32>,
    %c0_i32_8 = arith.constant 0 : i32
    %10 = arith.cmpi eq, %arg2, %c0_i32_8 : i32
    %11 = arith.extui %10 : i1 to i32
    %c0_i32_9 = arith.constant 0 : i32
    %12 = arith.cmpi ne, %11, %c0_i32_9 : i32
    scf.if %12 {
      %c0_10 = arith.constant 0 : index
      %c0_11 = arith.constant 0 : index
      %13 = vector.load %arg7[%c0_10, %c0_11] : memref<32x256xf32, #tpu.memory_space<vmem>>, vector<32x256xf32>
      %c0_12 = arith.constant 0 : index
      %c0_13 = arith.constant 0 : index
      %14 = vector.load %arg5[%c0_12, %c0_13] : memref<1x256xf32, #tpu.memory_space<vmem>>, vector<1x256xf32>
      %15 = vector.broadcast %14 : vector<1x256xf32> to vector<32x256xf32>
      %16 = arith.addf %13, %15 : vector<32x256xf32>
      %17 = arith.truncf %16 : vector<32x256xf32> to vector<32x256xbf16>
      %c0_14 = arith.constant 0 : index
      %c0_15 = arith.constant 0 : index
      %18 = vector.load %arg6[%c0_14, %c0_15] : memref<32x256xbf16, #tpu.memory_space<vmem>>, vector<32x256xbf16>
      tpu.vector_store %arg6[%c0_14, %c0_15], %17 {strides = array<i32>} : memref<32x256xbf16, #tpu.memory_space<vmem>>, vector<32x256xbf16>,
    } else {
    }
    return
  }
  func.func @transform_0(%arg0: i32, %arg1: i32, %arg2: i32) -> (i32, i32) {
    %c0_i32 = arith.constant 0 : i32
    return %arg0, %arg2 : i32, i32
  }
  func.func @transform_1(%arg0: i32, %arg1: i32, %arg2: i32) -> (i32, i32) {
    %c0_i32 = arith.constant 0 : i32
    return %arg2, %arg1 : i32, i32
  }
  func.func @transform_2(%arg0: i32, %arg1: i32, %arg2: i32) -> (i32, i32) {
    %c0_i32 = arith.constant 0 : i32
    %c0_i32_0 = arith.constant 0 : i32
    return %c0_i32, %arg1 : i32, i32
  }
  func.func @transform_3(%arg0: i32, %arg1: i32, %arg2: i32) -> (i32, i32) {
    %c0_i32 = arith.constant 0 : i32
    return %arg0, %arg1 : i32, i32
  }
}

module attributes {stable_mosaic.version = 11 : i64} {
  func.func @matmul_bias_res_ln_kernel(%arg0: i32, %arg1: i32, %arg2: memref<32x256xbf16, #tpu.memory_space<vmem>>, %arg3: memref<256x256xbf16, #tpu.memory_space<vmem>>, %arg4: memref<1x256xf32, #tpu.memory_space<vmem>>, %arg5: memref<32x256xf32, #tpu.memory_space<vmem>>, %arg6: memref<1x256xf32, #tpu.memory_space<vmem>>, %arg7: memref<1x256xf32, #tpu.memory_space<vmem>>, %arg8: memref<32x256xf32, #tpu.memory_space<vmem>>) attributes {dimension_semantics = [#tpu.dimension_semantics<parallel>, #tpu.dimension_semantics<arbitrary>], iteration_bounds = array<i64: 1, 1>, scalar_prefetch = 0 : i64, scratch_operands = 0 : i64, tpu.core_type = #tpu.core_type<tc>, window_params = [{transform_indices = @transform_0, window_bounds = array<i64: 32, 256>}, {transform_indices = @transform_1, window_bounds = array<i64: 256, 256>}, {pipeline_mode = #tpu.pipeline_mode<synchronous>, transform_indices = @transform_2, window_bounds = array<i64: 1, 256>}, {transform_indices = @transform_3, window_bounds = array<i64: 32, 256>}, {pipeline_mode = #tpu.pipeline_mode<synchronous>, transform_indices = @transform_4, window_bounds = array<i64: 1, 256>}, {pipeline_mode = #tpu.pipeline_mode<synchronous>, transform_indices = @transform_5, window_bounds = array<i64: 1, 256>}, {transform_indices = @transform_6, window_bounds = array<i64: 32, 256>}]} {
    %c0_i32 = arith.constant 0 : i32
    %0 = arith.cmpi eq, %arg1, %c0_i32 : i32
    %1 = arith.extui %0 : i1 to i32
    %c0_i32_0 = arith.constant 0 : i32
    %2 = arith.cmpi ne, %1, %c0_i32_0 : i32
    scf.if %2 {
      %cst_10 = arith.constant 0.000000e+00 : f32
      %12 = vector.broadcast %cst_10 : f32 to vector<32x256xf32>
      %c0_11 = arith.constant 0 : index
      %c0_12 = arith.constant 0 : index
      %13 = vector.load %arg8[%c0_11, %c0_12] : memref<32x256xf32, #tpu.memory_space<vmem>>, vector<32x256xf32>
      tpu.vector_store %arg8[%c0_11, %c0_12], %12 {strides = array<i32>} : memref<32x256xf32, #tpu.memory_space<vmem>>, vector<32x256xf32>,
    } else {
    }
    %c0 = arith.constant 0 : index
    %c0_1 = arith.constant 0 : index
    %3 = vector.load %arg8[%c0, %c0_1] : memref<32x256xf32, #tpu.memory_space<vmem>>, vector<32x256xf32>
    %c0_2 = arith.constant 0 : index
    %c0_3 = arith.constant 0 : index
    %4 = vector.load %arg2[%c0_2, %c0_3] : memref<32x256xbf16, #tpu.memory_space<vmem>>, vector<32x256xbf16>
    %c0_4 = arith.constant 0 : index
    %c0_5 = arith.constant 0 : index
    %5 = vector.load %arg3[%c0_4, %c0_5] : memref<256x256xbf16, #tpu.memory_space<vmem>>, vector<256x256xbf16>
    %cst = arith.constant dense<0.000000e+00> : vector<32x256xf32>
    %6 = tpu.matmul %4, %5, %cst {dimension_numbers = #tpu.dot_dimension_numbers<[1], [0], [0], [1], [0, 0, 1, 1], [], []>} : vector<32x256xbf16>, vector<256x256xbf16>, vector<32x256xf32> -> vector<32x256xf32>
    %7 = arith.addf %3, %6 : vector<32x256xf32>
    %c0_6 = arith.constant 0 : index
    %c0_7 = arith.constant 0 : index
    %8 = vector.load %arg8[%c0_6, %c0_7] : memref<32x256xf32, #tpu.memory_space<vmem>>, vector<32x256xf32>
    tpu.vector_store %arg8[%c0_6, %c0_7], %7 {strides = array<i32>} : memref<32x256xf32, #tpu.memory_space<vmem>>, vector<32x256xf32>,
    %c0_i32_8 = arith.constant 0 : i32
    %9 = arith.cmpi eq, %arg1, %c0_i32_8 : i32
    %10 = arith.extui %9 : i1 to i32
    %c0_i32_9 = arith.constant 0 : i32
    %11 = arith.cmpi ne, %10, %c0_i32_9 : i32
    scf.if %11 {
      %c0_10 = arith.constant 0 : index
      %c0_11 = arith.constant 0 : index
      %12 = vector.load %arg8[%c0_10, %c0_11] : memref<32x256xf32, #tpu.memory_space<vmem>>, vector<32x256xf32>
      %c0_12 = arith.constant 0 : index
      %c0_13 = arith.constant 0 : index
      %13 = vector.load %arg4[%c0_12, %c0_13] : memref<1x256xf32, #tpu.memory_space<vmem>>, vector<1x256xf32>
      %14 = vector.broadcast %13 : vector<1x256xf32> to vector<32x256xf32>
      %15 = arith.addf %12, %14 : vector<32x256xf32>
      %c0_14 = arith.constant 0 : index
      %c0_15 = arith.constant 0 : index
      %16 = vector.load %arg5[%c0_14, %c0_15] : memref<32x256xf32, #tpu.memory_space<vmem>>, vector<32x256xf32>
      %17 = arith.addf %15, %16 : vector<32x256xf32>
      %cst_16 = arith.constant dense<0.000000e+00> : vector<32xf32>
      %18 = vector.multi_reduction <add>, %17, %cst_16 [1] : vector<32x256xf32> to vector<32xf32>
      %19 = vector.shape_cast %18 : vector<32xf32> to vector<32x1xf32>
      %cst_17 = arith.constant 2.560000e+02 : f32
      %20 = vector.broadcast %cst_17 : f32 to vector<32x1xf32>
      %21 = arith.divf %19, %20 : vector<32x1xf32>
      %22 = vector.broadcast %21 : vector<32x1xf32> to vector<32x256xf32>
      %23 = arith.subf %17, %22 : vector<32x256xf32>
      %24 = arith.mulf %23, %23 : vector<32x256xf32>
      %cst_18 = arith.constant dense<0.000000e+00> : vector<32xf32>
      %25 = vector.multi_reduction <add>, %24, %cst_18 [1] : vector<32x256xf32> to vector<32xf32>
      %26 = vector.shape_cast %25 : vector<32xf32> to vector<32x1xf32>
      %cst_19 = arith.constant 2.560000e+02 : f32
      %27 = vector.broadcast %cst_19 : f32 to vector<32x1xf32>
      %28 = arith.divf %26, %27 : vector<32x1xf32>
      %cst_20 = arith.constant 9.99999974E-6 : f32
      %29 = vector.broadcast %cst_20 : f32 to vector<32x1xf32>
      %30 = arith.addf %28, %29 : vector<32x1xf32>
      %31 = math.rsqrt %30 : vector<32x1xf32>
      %32 = vector.broadcast %31 : vector<32x1xf32> to vector<32x256xf32>
      %33 = arith.mulf %23, %32 : vector<32x256xf32>
      %c0_21 = arith.constant 0 : index
      %c0_22 = arith.constant 0 : index
      %34 = vector.load %arg6[%c0_21, %c0_22] : memref<1x256xf32, #tpu.memory_space<vmem>>, vector<1x256xf32>
      %35 = vector.broadcast %34 : vector<1x256xf32> to vector<32x256xf32>
      %36 = arith.mulf %33, %35 : vector<32x256xf32>
      %c0_23 = arith.constant 0 : index
      %c0_24 = arith.constant 0 : index
      %37 = vector.load %arg7[%c0_23, %c0_24] : memref<1x256xf32, #tpu.memory_space<vmem>>, vector<1x256xf32>
      %38 = vector.broadcast %37 : vector<1x256xf32> to vector<32x256xf32>
      %39 = arith.addf %36, %38 : vector<32x256xf32>
      %c0_25 = arith.constant 0 : index
      %c0_26 = arith.constant 0 : index
      %40 = vector.load %arg8[%c0_25, %c0_26] : memref<32x256xf32, #tpu.memory_space<vmem>>, vector<32x256xf32>
      tpu.vector_store %arg8[%c0_25, %c0_26], %39 {strides = array<i32>} : memref<32x256xf32, #tpu.memory_space<vmem>>, vector<32x256xf32>,
    } else {
    }
    return
  }
  func.func @transform_0(%arg0: i32, %arg1: i32) -> (i32, i32) {
    %c0_i32 = arith.constant 0 : i32
    return %arg0, %arg1 : i32, i32
  }
  func.func @transform_1(%arg0: i32, %arg1: i32) -> (i32, i32) {
    %c0_i32 = arith.constant 0 : i32
    %c0_i32_0 = arith.constant 0 : i32
    return %arg1, %c0_i32 : i32, i32
  }
  func.func @transform_2(%arg0: i32, %arg1: i32) -> (i32, i32) {
    %c0_i32 = arith.constant 0 : i32
    %c0_i32_0 = arith.constant 0 : i32
    %c0_i32_1 = arith.constant 0 : i32
    return %c0_i32, %c0_i32_0 : i32, i32
  }
  func.func @transform_3(%arg0: i32, %arg1: i32) -> (i32, i32) {
    %c0_i32 = arith.constant 0 : i32
    %c0_i32_0 = arith.constant 0 : i32
    return %arg0, %c0_i32 : i32, i32
  }
  func.func @transform_4(%arg0: i32, %arg1: i32) -> (i32, i32) {
    %c0_i32 = arith.constant 0 : i32
    %c0_i32_0 = arith.constant 0 : i32
    %c0_i32_1 = arith.constant 0 : i32
    return %c0_i32, %c0_i32_0 : i32, i32
  }
  func.func @transform_5(%arg0: i32, %arg1: i32) -> (i32, i32) {
    %c0_i32 = arith.constant 0 : i32
    %c0_i32_0 = arith.constant 0 : i32
    %c0_i32_1 = arith.constant 0 : i32
    return %c0_i32, %c0_i32_0 : i32, i32
  }
  func.func @transform_6(%arg0: i32, %arg1: i32) -> (i32, i32) {
    %c0_i32 = arith.constant 0 : i32
    %c0_i32_0 = arith.constant 0 : i32
    return %arg0, %c0_i32 : i32, i32
  }
}

module attributes {stable_mosaic.version = 11 : i64} {
  func.func @mha_flash_kernel(%arg0: i32, %arg1: i32, %arg2: i32, %arg3: memref<1x16x256xbf16, #tpu.memory_space<vmem>>, %arg4: memref<1x16x512xbf16, #tpu.memory_space<vmem>>, %arg5: memref<1x16x256xbf16, #tpu.memory_space<vmem>>, %arg6: memref<2x16x1xf32, #tpu.memory_space<vmem>>, %arg7: memref<2x16x1xf32, #tpu.memory_space<vmem>>, %arg8: memref<2x16x128xf32, #tpu.memory_space<vmem>>) attributes {dimension_semantics = [#tpu.dimension_semantics<parallel>, #tpu.dimension_semantics<parallel>, #tpu.dimension_semantics<arbitrary>], iteration_bounds = array<i64: 2, 1, 1>, scalar_prefetch = 0 : i64, scratch_operands = 3 : i64, tpu.core_type = #tpu.core_type<tc>, window_params = [{transform_indices = @transform_0, window_bounds = array<i64: 1, 16, 256>}, {transform_indices = @transform_1, window_bounds = array<i64: 1, 16, 512>}, {transform_indices = @transform_2, window_bounds = array<i64: 1, 16, 256>}]} {
    %c0_i32 = arith.constant 0 : i32
    %0 = arith.cmpi eq, %arg2, %c0_i32 : i32
    %1 = arith.extui %0 : i1 to i32
    %c0_i32_0 = arith.constant 0 : i32
    %2 = arith.cmpi ne, %1, %c0_i32_0 : i32
    scf.if %2 {
      %cst_29 = arith.constant 0xFF800000 : f32
      %42 = vector.broadcast %cst_29 : f32 to vector<2x16x1xf32>
      %c0_30 = arith.constant 0 : index
      %c0_31 = arith.constant 0 : index
      %c0_32 = arith.constant 0 : index
      %43 = vector.load %arg6[%c0_30, %c0_31, %c0_32] : memref<2x16x1xf32, #tpu.memory_space<vmem>>, vector<2x16x1xf32>
      tpu.vector_store %arg6[%c0_30, %c0_31, %c0_32], %42 {strides = array<i32>} : memref<2x16x1xf32, #tpu.memory_space<vmem>>, vector<2x16x1xf32>,
      %cst_33 = arith.constant 0.000000e+00 : f32
      %44 = vector.broadcast %cst_33 : f32 to vector<2x16x1xf32>
      %c0_34 = arith.constant 0 : index
      %c0_35 = arith.constant 0 : index
      %c0_36 = arith.constant 0 : index
      %45 = vector.load %arg7[%c0_34, %c0_35, %c0_36] : memref<2x16x1xf32, #tpu.memory_space<vmem>>, vector<2x16x1xf32>
      tpu.vector_store %arg7[%c0_34, %c0_35, %c0_36], %44 {strides = array<i32>} : memref<2x16x1xf32, #tpu.memory_space<vmem>>, vector<2x16x1xf32>,
      %cst_37 = arith.constant 0.000000e+00 : f32
      %46 = vector.broadcast %cst_37 : f32 to vector<2x16x128xf32>
      %c0_38 = arith.constant 0 : index
      %c0_39 = arith.constant 0 : index
      %c0_40 = arith.constant 0 : index
      %47 = vector.load %arg8[%c0_38, %c0_39, %c0_40] : memref<2x16x128xf32, #tpu.memory_space<vmem>>, vector<2x16x128xf32>
      tpu.vector_store %arg8[%c0_38, %c0_39, %c0_40], %46 {strides = array<i32>} : memref<2x16x128xf32, #tpu.memory_space<vmem>>, vector<2x16x128xf32>,
    } else {
    }
    %c0 = arith.constant 0 : index
    %c0_1 = arith.constant 0 : index
    %c0_2 = arith.constant 0 : index
    %3 = vector.load %arg3[%c0, %c0_1, %c0_2] : memref<1x16x256xbf16, #tpu.memory_space<vmem>>, vector<1x16x256xbf16>
    %4 = vector.shape_cast %3 : vector<1x16x256xbf16> to vector<16x256xbf16>
    %c0_3 = arith.constant 0 : index
    %c0_4 = arith.constant 0 : index
    %c0_5 = arith.constant 0 : index
    %5 = vector.load %arg4[%c0_3, %c0_4, %c0_5] : memref<1x16x512xbf16, #tpu.memory_space<vmem>>, vector<1x16x512xbf16>
    %6 = vector.shape_cast %5 : vector<1x16x512xbf16> to vector<16x512xbf16>
    %7 = vector.shape_cast %4 : vector<16x256xbf16> to vector<16x2x128xbf16>
    %8 = tpu.transpose %7, [1, 0, 2] : vector<16x2x128xbf16> -> vector<2x16x128xbf16>
    %9 = vector.extract_strided_slice %6 {offsets = [0, 0], sizes = [16, 256], strides = [1, 1]} : vector<16x512xbf16> to vector<16x256xbf16>
    %10 = vector.shape_cast %9 : vector<16x256xbf16> to vector<16x2x128xbf16>
    %11 = tpu.transpose %10, [1, 0, 2] : vector<16x2x128xbf16> -> vector<2x16x128xbf16>
    %12 = vector.extract_strided_slice %6 {offsets = [0, 256], sizes = [16, 256], strides = [1, 1]} : vector<16x512xbf16> to vector<16x256xbf16>
    %13 = vector.shape_cast %12 : vector<16x256xbf16> to vector<16x2x128xbf16>
    %14 = tpu.transpose %13, [1, 0, 2] : vector<16x2x128xbf16> -> vector<2x16x128xbf16>
    "tpu.trace_start"() <{level = 10 : i32, message = "hqd,hkd->hqk"}> : () -> ()
    %cst = arith.constant dense<0.000000e+00> : vector<2x16x16xf32>
    %15 = tpu.matmul %8, %11, %cst {dimension_numbers = #tpu.dot_dimension_numbers<[2], [2], [1], [1], [0, 0, 0, 1, 1, 1], [0], [0]>} : vector<2x16x128xbf16>, vector<2x16x128xbf16>, vector<2x16x16xf32> -> vector<2x16x16xf32>
    "tpu.trace_stop"() : () -> ()
    %c0_6 = arith.constant 0 : index
    %c0_7 = arith.constant 0 : index
    %c0_8 = arith.constant 0 : index
    %16 = vector.load %arg6[%c0_6, %c0_7, %c0_8] : memref<2x16x1xf32, #tpu.memory_space<vmem>>, vector<2x16x1xf32>
    %cst_9 = arith.constant dense<0xFF800000> : vector<2x16xf32>
    %17 = vector.multi_reduction <maximumf>, %15, %cst_9 [2] : vector<2x16x16xf32> to vector<2x16xf32>
    %18 = vector.shape_cast %17 : vector<2x16xf32> to vector<2x16x1xf32>
    %19 = arith.maximumf %16, %18 : vector<2x16x1xf32>
    %20 = arith.subf %16, %19 : vector<2x16x1xf32>
    %21 = math.exp %20 : vector<2x16x1xf32>
    %22 = vector.broadcast %19 : vector<2x16x1xf32> to vector<2x16x16xf32>
    %23 = arith.subf %15, %22 : vector<2x16x16xf32>
    %24 = math.exp %23 : vector<2x16x16xf32>
    %c0_10 = arith.constant 0 : index
    %c0_11 = arith.constant 0 : index
    %c0_12 = arith.constant 0 : index
    %25 = vector.load %arg7[%c0_10, %c0_11, %c0_12] : memref<2x16x1xf32, #tpu.memory_space<vmem>>, vector<2x16x1xf32>
    %26 = arith.mulf %21, %25 : vector<2x16x1xf32>
    %cst_13 = arith.constant dense<0.000000e+00> : vector<2x16xf32>
    %27 = vector.multi_reduction <add>, %24, %cst_13 [2] : vector<2x16x16xf32> to vector<2x16xf32>
    %28 = vector.shape_cast %27 : vector<2x16xf32> to vector<2x16x1xf32>
    %29 = arith.addf %26, %28 : vector<2x16x1xf32>
    %c0_14 = arith.constant 0 : index
    %c0_15 = arith.constant 0 : index
    %c0_16 = arith.constant 0 : index
    %30 = vector.load %arg7[%c0_14, %c0_15, %c0_16] : memref<2x16x1xf32, #tpu.memory_space<vmem>>, vector<2x16x1xf32>
    tpu.vector_store %arg7[%c0_14, %c0_15, %c0_16], %29 {strides = array<i32>} : memref<2x16x1xf32, #tpu.memory_space<vmem>>, vector<2x16x1xf32>,
    %31 = arith.truncf %24 : vector<2x16x16xf32> to vector<2x16x16xbf16>
    "tpu.trace_start"() <{level = 10 : i32, message = "hqk,hkd->hqd"}> : () -> ()
    %cst_17 = arith.constant dense<0.000000e+00> : vector<2x16x128xf32>
    %32 = tpu.matmul %31, %14, %cst_17 {dimension_numbers = #tpu.dot_dimension_numbers<[2], [1], [1], [2], [0, 0, 0, 1, 1, 2], [0], [0]>} : vector<2x16x16xbf16>, vector<2x16x128xbf16>, vector<2x16x128xf32> -> vector<2x16x128xf32>
    "tpu.trace_stop"() : () -> ()
    %c0_18 = arith.constant 0 : index
    %c0_19 = arith.constant 0 : index
    %c0_20 = arith.constant 0 : index
    %33 = vector.load %arg8[%c0_18, %c0_19, %c0_20] : memref<2x16x128xf32, #tpu.memory_space<vmem>>, vector<2x16x128xf32>
    %34 = vector.broadcast %21 : vector<2x16x1xf32> to vector<2x16x128xf32>
    %35 = arith.mulf %34, %33 : vector<2x16x128xf32>
    %36 = arith.addf %35, %32 : vector<2x16x128xf32>
    %c0_21 = arith.constant 0 : index
    %c0_22 = arith.constant 0 : index
    %c0_23 = arith.constant 0 : index
    %37 = vector.load %arg8[%c0_21, %c0_22, %c0_23] : memref<2x16x128xf32, #tpu.memory_space<vmem>>, vector<2x16x128xf32>
    tpu.vector_store %arg8[%c0_21, %c0_22, %c0_23], %36 {strides = array<i32>} : memref<2x16x128xf32, #tpu.memory_space<vmem>>, vector<2x16x128xf32>,
    %c0_24 = arith.constant 0 : index
    %c0_25 = arith.constant 0 : index
    %c0_26 = arith.constant 0 : index
    %38 = vector.load %arg6[%c0_24, %c0_25, %c0_26] : memref<2x16x1xf32, #tpu.memory_space<vmem>>, vector<2x16x1xf32>
    tpu.vector_store %arg6[%c0_24, %c0_25, %c0_26], %19 {strides = array<i32>} : memref<2x16x1xf32, #tpu.memory_space<vmem>>, vector<2x16x1xf32>,
    %c0_i32_27 = arith.constant 0 : i32
    %39 = arith.cmpi eq, %arg2, %c0_i32_27 : i32
    %40 = arith.extui %39 : i1 to i32
    %c0_i32_28 = arith.constant 0 : i32
    %41 = arith.cmpi ne, %40, %c0_i32_28 : i32
    scf.if %41 {
      %c0_29 = arith.constant 0 : index
      %c0_30 = arith.constant 0 : index
      %c0_31 = arith.constant 0 : index
      %42 = vector.load %arg7[%c0_29, %c0_30, %c0_31] : memref<2x16x1xf32, #tpu.memory_space<vmem>>, vector<2x16x1xf32>
      %43 = tpu.reciprocal %42 {approx = true} : vector<2x16x1xf32> -> vector<2x16x1xf32>
      %c0_32 = arith.constant 0 : index
      %c0_33 = arith.constant 0 : index
      %c0_34 = arith.constant 0 : index
      %44 = vector.load %arg8[%c0_32, %c0_33, %c0_34] : memref<2x16x128xf32, #tpu.memory_space<vmem>>, vector<2x16x128xf32>
      %45 = vector.broadcast %43 : vector<2x16x1xf32> to vector<2x16x128xf32>
      %46 = arith.mulf %44, %45 : vector<2x16x128xf32>
      %47 = vector.extract_strided_slice %46 {offsets = [0, 0, 0], sizes = [1, 16, 128], strides = [1, 1, 1]} : vector<2x16x128xf32> to vector<1x16x128xf32>
      %48 = vector.shape_cast %47 : vector<1x16x128xf32> to vector<16x128xf32>
      %49 = arith.truncf %48 : vector<16x128xf32> to vector<16x128xbf16>
      %c0_35 = arith.constant 0 : index
      %c0_36 = arith.constant 0 : index
      %c0_37 = arith.constant 0 : index
      %50 = vector.load %arg5[%c0_35, %c0_36, %c0_37] : memref<1x16x256xbf16, #tpu.memory_space<vmem>>, vector<1x16x128xbf16>
      %51 = vector.shape_cast %50 : vector<1x16x128xbf16> to vector<16x128xbf16>
      %52 = vector.shape_cast %49 : vector<16x128xbf16> to vector<1x16x128xbf16>
      tpu.vector_store %arg5[%c0_35, %c0_36, %c0_37], %52 {strides = array<i32>} : memref<1x16x256xbf16, #tpu.memory_space<vmem>>, vector<1x16x128xbf16>,
      %53 = vector.extract_strided_slice %46 {offsets = [1, 0, 0], sizes = [1, 16, 128], strides = [1, 1, 1]} : vector<2x16x128xf32> to vector<1x16x128xf32>
      %54 = vector.shape_cast %53 : vector<1x16x128xf32> to vector<16x128xf32>
      %55 = arith.truncf %54 : vector<16x128xf32> to vector<16x128xbf16>
      %c0_38 = arith.constant 0 : index
      %c0_39 = arith.constant 0 : index
      %c128 = arith.constant 128 : index
      %56 = vector.load %arg5[%c0_38, %c0_39, %c128] : memref<1x16x256xbf16, #tpu.memory_space<vmem>>, vector<1x16x128xbf16>
      %57 = vector.shape_cast %56 : vector<1x16x128xbf16> to vector<16x128xbf16>
      %58 = vector.shape_cast %55 : vector<16x128xbf16> to vector<1x16x128xbf16>
      tpu.vector_store %arg5[%c0_38, %c0_39, %c128], %58 {strides = array<i32>} : memref<1x16x256xbf16, #tpu.memory_space<vmem>>, vector<1x16x128xbf16>,
    } else {
    }
    return
  }
  func.func @transform_0(%arg0: i32, %arg1: i32, %arg2: i32) -> (i32, i32, i32) {
    %c0_i32 = arith.constant 0 : i32
    %c0_i32_0 = arith.constant 0 : i32
    return %arg0, %arg1, %c0_i32 : i32, i32, i32
  }
  func.func @transform_1(%arg0: i32, %arg1: i32, %arg2: i32) -> (i32, i32, i32) {
    %c0_i32 = arith.constant 0 : i32
    %c0_i32_0 = arith.constant 0 : i32
    return %arg0, %arg2, %c0_i32 : i32, i32, i32
  }
  func.func @transform_2(%arg0: i32, %arg1: i32, %arg2: i32) -> (i32, i32, i32) {
    %c0_i32 = arith.constant 0 : i32
    %c0_i32_0 = arith.constant 0 : i32
    return %arg0, %arg1, %c0_i32 : i32, i32, i32
  }
}

module attributes {stable_mosaic.version = 11 : i64} {
  func.func @matmul_bias_kernel(%arg0: i32, %arg1: i32, %arg2: i32, %arg3: memref<32x256xf32, #tpu.memory_space<vmem>>, %arg4: memref<256x256xbf16, #tpu.memory_space<vmem>>, %arg5: memref<1x256xf32, #tpu.memory_space<vmem>>, %arg6: memref<32x256xbf16, #tpu.memory_space<vmem>>, %arg7: memref<32x256xf32, #tpu.memory_space<vmem>>) attributes {dimension_semantics = [#tpu.dimension_semantics<parallel>, #tpu.dimension_semantics<parallel>, #tpu.dimension_semantics<arbitrary>], iteration_bounds = array<i64: 1, 2, 1>, scalar_prefetch = 0 : i64, scratch_operands = 1 : i64, tpu.core_type = #tpu.core_type<tc>, window_params = [{transform_indices = @transform_0, window_bounds = array<i64: 32, 256>}, {transform_indices = @transform_1, window_bounds = array<i64: 256, 256>}, {transform_indices = @transform_2, window_bounds = array<i64: 1, 256>}, {transform_indices = @transform_3, window_bounds = array<i64: 32, 256>}]} {
    %c0_i32 = arith.constant 0 : i32
    %0 = arith.cmpi eq, %arg2, %c0_i32 : i32
    %1 = arith.extui %0 : i1 to i32
    %c0_i32_0 = arith.constant 0 : i32
    %2 = arith.cmpi ne, %1, %c0_i32_0 : i32
    scf.if %2 {
      %cst_10 = arith.constant 0.000000e+00 : f32
      %13 = vector.broadcast %cst_10 : f32 to vector<32x256xf32>
      %c0_11 = arith.constant 0 : index
      %c0_12 = arith.constant 0 : index
      %14 = vector.load %arg7[%c0_11, %c0_12] : memref<32x256xf32, #tpu.memory_space<vmem>>, vector<32x256xf32>
      tpu.vector_store %arg7[%c0_11, %c0_12], %13 {strides = array<i32>} : memref<32x256xf32, #tpu.memory_space<vmem>>, vector<32x256xf32>,
    } else {
    }
    %c0 = arith.constant 0 : index
    %c0_1 = arith.constant 0 : index
    %3 = vector.load %arg7[%c0, %c0_1] : memref<32x256xf32, #tpu.memory_space<vmem>>, vector<32x256xf32>
    %c0_2 = arith.constant 0 : index
    %c0_3 = arith.constant 0 : index
    %4 = vector.load %arg3[%c0_2, %c0_3] : memref<32x256xf32, #tpu.memory_space<vmem>>, vector<32x256xf32>
    %5 = arith.truncf %4 : vector<32x256xf32> to vector<32x256xbf16>
    %c0_4 = arith.constant 0 : index
    %c0_5 = arith.constant 0 : index
    %6 = vector.load %arg4[%c0_4, %c0_5] : memref<256x256xbf16, #tpu.memory_space<vmem>>, vector<256x256xbf16>
    %cst = arith.constant dense<0.000000e+00> : vector<32x256xf32>
    %7 = tpu.matmul %5, %6, %cst {dimension_numbers = #tpu.dot_dimension_numbers<[1], [0], [0], [1], [0, 0, 1, 1], [], []>} : vector<32x256xbf16>, vector<256x256xbf16>, vector<32x256xf32> -> vector<32x256xf32>
    %8 = arith.addf %3, %7 : vector<32x256xf32>
    %c0_6 = arith.constant 0 : index
    %c0_7 = arith.constant 0 : index
    %9 = vector.load %arg7[%c0_6, %c0_7] : memref<32x256xf32, #tpu.memory_space<vmem>>, vector<32x256xf32>
    tpu.vector_store %arg7[%c0_6, %c0_7], %8 {strides = array<i32>} : memref<32x256xf32, #tpu.memory_space<vmem>>, vector<32x256xf32>,
    %c0_i32_8 = arith.constant 0 : i32
    %10 = arith.cmpi eq, %arg2, %c0_i32_8 : i32
    %11 = arith.extui %10 : i1 to i32
    %c0_i32_9 = arith.constant 0 : i32
    %12 = arith.cmpi ne, %11, %c0_i32_9 : i32
    scf.if %12 {
      %c0_10 = arith.constant 0 : index
      %c0_11 = arith.constant 0 : index
      %13 = vector.load %arg7[%c0_10, %c0_11] : memref<32x256xf32, #tpu.memory_space<vmem>>, vector<32x256xf32>
      %c0_12 = arith.constant 0 : index
      %c0_13 = arith.constant 0 : index
      %14 = vector.load %arg5[%c0_12, %c0_13] : memref<1x256xf32, #tpu.memory_space<vmem>>, vector<1x256xf32>
      %15 = vector.broadcast %14 : vector<1x256xf32> to vector<32x256xf32>
      %16 = arith.addf %13, %15 : vector<32x256xf32>
      %17 = arith.truncf %16 : vector<32x256xf32> to vector<32x256xbf16>
      %c0_14 = arith.constant 0 : index
      %c0_15 = arith.constant 0 : index
      %18 = vector.load %arg6[%c0_14, %c0_15] : memref<32x256xbf16, #tpu.memory_space<vmem>>, vector<32x256xbf16>
      tpu.vector_store %arg6[%c0_14, %c0_15], %17 {strides = array<i32>} : memref<32x256xbf16, #tpu.memory_space<vmem>>, vector<32x256xbf16>,
    } else {
    }
    return
  }
  func.func @transform_0(%arg0: i32, %arg1: i32, %arg2: i32) -> (i32, i32) {
    %c0_i32 = arith.constant 0 : i32
    return %arg0, %arg2 : i32, i32
  }
  func.func @transform_1(%arg0: i32, %arg1: i32, %arg2: i32) -> (i32, i32) {
    %c0_i32 = arith.constant 0 : i32
    return %arg2, %arg1 : i32, i32
  }
  func.func @transform_2(%arg0: i32, %arg1: i32, %arg2: i32) -> (i32, i32) {
    %c0_i32 = arith.constant 0 : i32
    %c0_i32_0 = arith.constant 0 : i32
    return %c0_i32, %arg1 : i32, i32
  }
  func.func @transform_3(%arg0: i32, %arg1: i32, %arg2: i32) -> (i32, i32) {
    %c0_i32 = arith.constant 0 : i32
    return %arg0, %arg1 : i32, i32
  }
}

module attributes {stable_mosaic.version = 11 : i64} {
  func.func @matmul_bias_kernel(%arg0: i32, %arg1: i32, %arg2: i32, %arg3: memref<32x256xf32, #tpu.memory_space<vmem>>, %arg4: memref<256x256xbf16, #tpu.memory_space<vmem>>, %arg5: memref<1x256xf32, #tpu.memory_space<vmem>>, %arg6: memref<32x256xbf16, #tpu.memory_space<vmem>>, %arg7: memref<32x256xf32, #tpu.memory_space<vmem>>) attributes {dimension_semantics = [#tpu.dimension_semantics<parallel>, #tpu.dimension_semantics<parallel>, #tpu.dimension_semantics<arbitrary>], iteration_bounds = array<i64: 1, 1, 1>, scalar_prefetch = 0 : i64, scratch_operands = 1 : i64, tpu.core_type = #tpu.core_type<tc>, window_params = [{transform_indices = @transform_0, window_bounds = array<i64: 32, 256>}, {transform_indices = @transform_1, window_bounds = array<i64: 256, 256>}, {transform_indices = @transform_2, window_bounds = array<i64: 1, 256>}, {transform_indices = @transform_3, window_bounds = array<i64: 32, 256>}]} {
    %c0_i32 = arith.constant 0 : i32
    %0 = arith.cmpi eq, %arg2, %c0_i32 : i32
    %1 = arith.extui %0 : i1 to i32
    %c0_i32_0 = arith.constant 0 : i32
    %2 = arith.cmpi ne, %1, %c0_i32_0 : i32
    scf.if %2 {
      %cst_10 = arith.constant 0.000000e+00 : f32
      %13 = vector.broadcast %cst_10 : f32 to vector<32x256xf32>
      %c0_11 = arith.constant 0 : index
      %c0_12 = arith.constant 0 : index
      %14 = vector.load %arg7[%c0_11, %c0_12] : memref<32x256xf32, #tpu.memory_space<vmem>>, vector<32x256xf32>
      tpu.vector_store %arg7[%c0_11, %c0_12], %13 {strides = array<i32>} : memref<32x256xf32, #tpu.memory_space<vmem>>, vector<32x256xf32>,
    } else {
    }
    %c0 = arith.constant 0 : index
    %c0_1 = arith.constant 0 : index
    %3 = vector.load %arg7[%c0, %c0_1] : memref<32x256xf32, #tpu.memory_space<vmem>>, vector<32x256xf32>
    %c0_2 = arith.constant 0 : index
    %c0_3 = arith.constant 0 : index
    %4 = vector.load %arg3[%c0_2, %c0_3] : memref<32x256xf32, #tpu.memory_space<vmem>>, vector<32x256xf32>
    %5 = arith.truncf %4 : vector<32x256xf32> to vector<32x256xbf16>
    %c0_4 = arith.constant 0 : index
    %c0_5 = arith.constant 0 : index
    %6 = vector.load %arg4[%c0_4, %c0_5] : memref<256x256xbf16, #tpu.memory_space<vmem>>, vector<256x256xbf16>
    %cst = arith.constant dense<0.000000e+00> : vector<32x256xf32>
    %7 = tpu.matmul %5, %6, %cst {dimension_numbers = #tpu.dot_dimension_numbers<[1], [0], [0], [1], [0, 0, 1, 1], [], []>} : vector<32x256xbf16>, vector<256x256xbf16>, vector<32x256xf32> -> vector<32x256xf32>
    %8 = arith.addf %3, %7 : vector<32x256xf32>
    %c0_6 = arith.constant 0 : index
    %c0_7 = arith.constant 0 : index
    %9 = vector.load %arg7[%c0_6, %c0_7] : memref<32x256xf32, #tpu.memory_space<vmem>>, vector<32x256xf32>
    tpu.vector_store %arg7[%c0_6, %c0_7], %8 {strides = array<i32>} : memref<32x256xf32, #tpu.memory_space<vmem>>, vector<32x256xf32>,
    %c0_i32_8 = arith.constant 0 : i32
    %10 = arith.cmpi eq, %arg2, %c0_i32_8 : i32
    %11 = arith.extui %10 : i1 to i32
    %c0_i32_9 = arith.constant 0 : i32
    %12 = arith.cmpi ne, %11, %c0_i32_9 : i32
    scf.if %12 {
      %c0_10 = arith.constant 0 : index
      %c0_11 = arith.constant 0 : index
      %13 = vector.load %arg7[%c0_10, %c0_11] : memref<32x256xf32, #tpu.memory_space<vmem>>, vector<32x256xf32>
      %c0_12 = arith.constant 0 : index
      %c0_13 = arith.constant 0 : index
      %14 = vector.load %arg5[%c0_12, %c0_13] : memref<1x256xf32, #tpu.memory_space<vmem>>, vector<1x256xf32>
      %15 = vector.broadcast %14 : vector<1x256xf32> to vector<32x256xf32>
      %16 = arith.addf %13, %15 : vector<32x256xf32>
      %17 = arith.truncf %16 : vector<32x256xf32> to vector<32x256xbf16>
      %c0_14 = arith.constant 0 : index
      %c0_15 = arith.constant 0 : index
      %18 = vector.load %arg6[%c0_14, %c0_15] : memref<32x256xbf16, #tpu.memory_space<vmem>>, vector<32x256xbf16>
      tpu.vector_store %arg6[%c0_14, %c0_15], %17 {strides = array<i32>} : memref<32x256xbf16, #tpu.memory_space<vmem>>, vector<32x256xbf16>,
    } else {
    }
    return
  }
  func.func @transform_0(%arg0: i32, %arg1: i32, %arg2: i32) -> (i32, i32) {
    %c0_i32 = arith.constant 0 : i32
    return %arg0, %arg2 : i32, i32
  }
  func.func @transform_1(%arg0: i32, %arg1: i32, %arg2: i32) -> (i32, i32) {
    %c0_i32 = arith.constant 0 : i32
    return %arg2, %arg1 : i32, i32
  }
  func.func @transform_2(%arg0: i32, %arg1: i32, %arg2: i32) -> (i32, i32) {
    %c0_i32 = arith.constant 0 : i32
    %c0_i32_0 = arith.constant 0 : i32
    return %c0_i32, %arg1 : i32, i32
  }
  func.func @transform_3(%arg0: i32, %arg1: i32, %arg2: i32) -> (i32, i32) {
    %c0_i32 = arith.constant 0 : i32
    return %arg0, %arg1 : i32, i32
  }
}

module attributes {stable_mosaic.version = 11 : i64} {
  func.func @matmul_bias_kernel(%arg0: i32, %arg1: i32, %arg2: i32, %arg3: memref<32x256xf32, #tpu.memory_space<vmem>>, %arg4: memref<256x256xbf16, #tpu.memory_space<vmem>>, %arg5: memref<1x256xf32, #tpu.memory_space<vmem>>, %arg6: memref<32x256xbf16, #tpu.memory_space<vmem>>, %arg7: memref<32x256xf32, #tpu.memory_space<vmem>>) attributes {dimension_semantics = [#tpu.dimension_semantics<parallel>, #tpu.dimension_semantics<parallel>, #tpu.dimension_semantics<arbitrary>], iteration_bounds = array<i64: 1, 2, 1>, scalar_prefetch = 0 : i64, scratch_operands = 1 : i64, tpu.core_type = #tpu.core_type<tc>, window_params = [{transform_indices = @transform_0, window_bounds = array<i64: 32, 256>}, {transform_indices = @transform_1, window_bounds = array<i64: 256, 256>}, {transform_indices = @transform_2, window_bounds = array<i64: 1, 256>}, {transform_indices = @transform_3, window_bounds = array<i64: 32, 256>}]} {
    %c0_i32 = arith.constant 0 : i32
    %0 = arith.cmpi eq, %arg2, %c0_i32 : i32
    %1 = arith.extui %0 : i1 to i32
    %c0_i32_0 = arith.constant 0 : i32
    %2 = arith.cmpi ne, %1, %c0_i32_0 : i32
    scf.if %2 {
      %cst_10 = arith.constant 0.000000e+00 : f32
      %13 = vector.broadcast %cst_10 : f32 to vector<32x256xf32>
      %c0_11 = arith.constant 0 : index
      %c0_12 = arith.constant 0 : index
      %14 = vector.load %arg7[%c0_11, %c0_12] : memref<32x256xf32, #tpu.memory_space<vmem>>, vector<32x256xf32>
      tpu.vector_store %arg7[%c0_11, %c0_12], %13 {strides = array<i32>} : memref<32x256xf32, #tpu.memory_space<vmem>>, vector<32x256xf32>,
    } else {
    }
    %c0 = arith.constant 0 : index
    %c0_1 = arith.constant 0 : index
    %3 = vector.load %arg7[%c0, %c0_1] : memref<32x256xf32, #tpu.memory_space<vmem>>, vector<32x256xf32>
    %c0_2 = arith.constant 0 : index
    %c0_3 = arith.constant 0 : index
    %4 = vector.load %arg3[%c0_2, %c0_3] : memref<32x256xf32, #tpu.memory_space<vmem>>, vector<32x256xf32>
    %5 = arith.truncf %4 : vector<32x256xf32> to vector<32x256xbf16>
    %c0_4 = arith.constant 0 : index
    %c0_5 = arith.constant 0 : index
    %6 = vector.load %arg4[%c0_4, %c0_5] : memref<256x256xbf16, #tpu.memory_space<vmem>>, vector<256x256xbf16>
    %cst = arith.constant dense<0.000000e+00> : vector<32x256xf32>
    %7 = tpu.matmul %5, %6, %cst {dimension_numbers = #tpu.dot_dimension_numbers<[1], [0], [0], [1], [0, 0, 1, 1], [], []>} : vector<32x256xbf16>, vector<256x256xbf16>, vector<32x256xf32> -> vector<32x256xf32>
    %8 = arith.addf %3, %7 : vector<32x256xf32>
    %c0_6 = arith.constant 0 : index
    %c0_7 = arith.constant 0 : index
    %9 = vector.load %arg7[%c0_6, %c0_7] : memref<32x256xf32, #tpu.memory_space<vmem>>, vector<32x256xf32>
    tpu.vector_store %arg7[%c0_6, %c0_7], %8 {strides = array<i32>} : memref<32x256xf32, #tpu.memory_space<vmem>>, vector<32x256xf32>,
    %c0_i32_8 = arith.constant 0 : i32
    %10 = arith.cmpi eq, %arg2, %c0_i32_8 : i32
    %11 = arith.extui %10 : i1 to i32
    %c0_i32_9 = arith.constant 0 : i32
    %12 = arith.cmpi ne, %11, %c0_i32_9 : i32
    scf.if %12 {
      %c0_10 = arith.constant 0 : index
      %c0_11 = arith.constant 0 : index
      %13 = vector.load %arg7[%c0_10, %c0_11] : memref<32x256xf32, #tpu.memory_space<vmem>>, vector<32x256xf32>
      %c0_12 = arith.constant 0 : index
      %c0_13 = arith.constant 0 : index
      %14 = vector.load %arg5[%c0_12, %c0_13] : memref<1x256xf32, #tpu.memory_space<vmem>>, vector<1x256xf32>
      %15 = vector.broadcast %14 : vector<1x256xf32> to vector<32x256xf32>
      %16 = arith.addf %13, %15 : vector<32x256xf32>
      %cst_14 = arith.constant 0.000000e+00 : f32
      %17 = vector.broadcast %cst_14 : f32 to vector<32x256xf32>
      %18 = arith.maximumf %16, %17 : vector<32x256xf32>
      %19 = arith.truncf %18 : vector<32x256xf32> to vector<32x256xbf16>
      %c0_15 = arith.constant 0 : index
      %c0_16 = arith.constant 0 : index
      %20 = vector.load %arg6[%c0_15, %c0_16] : memref<32x256xbf16, #tpu.memory_space<vmem>>, vector<32x256xbf16>
      tpu.vector_store %arg6[%c0_15, %c0_16], %19 {strides = array<i32>} : memref<32x256xbf16, #tpu.memory_space<vmem>>, vector<32x256xbf16>,
    } else {
    }
    return
  }
  func.func @transform_0(%arg0: i32, %arg1: i32, %arg2: i32) -> (i32, i32) {
    %c0_i32 = arith.constant 0 : i32
    return %arg0, %arg2 : i32, i32
  }
  func.func @transform_1(%arg0: i32, %arg1: i32, %arg2: i32) -> (i32, i32) {
    %c0_i32 = arith.constant 0 : i32
    return %arg2, %arg1 : i32, i32
  }
  func.func @transform_2(%arg0: i32, %arg1: i32, %arg2: i32) -> (i32, i32) {
    %c0_i32 = arith.constant 0 : i32
    %c0_i32_0 = arith.constant 0 : i32
    return %c0_i32, %arg1 : i32, i32
  }
  func.func @transform_3(%arg0: i32, %arg1: i32, %arg2: i32) -> (i32, i32) {
    %c0_i32 = arith.constant 0 : i32
    return %arg0, %arg1 : i32, i32
  }
}

module attributes {stable_mosaic.version = 11 : i64} {
  func.func @matmul_bias_res_ln_kernel(%arg0: i32, %arg1: i32, %arg2: memref<32x256xbf16, #tpu.memory_space<vmem>>, %arg3: memref<256x256xbf16, #tpu.memory_space<vmem>>, %arg4: memref<1x256xf32, #tpu.memory_space<vmem>>, %arg5: memref<32x256xf32, #tpu.memory_space<vmem>>, %arg6: memref<1x256xf32, #tpu.memory_space<vmem>>, %arg7: memref<1x256xf32, #tpu.memory_space<vmem>>, %arg8: memref<32x256xf32, #tpu.memory_space<vmem>>) attributes {dimension_semantics = [#tpu.dimension_semantics<parallel>, #tpu.dimension_semantics<arbitrary>], iteration_bounds = array<i64: 1, 2>, scalar_prefetch = 0 : i64, scratch_operands = 0 : i64, tpu.core_type = #tpu.core_type<tc>, window_params = [{transform_indices = @transform_0, window_bounds = array<i64: 32, 256>}, {transform_indices = @transform_1, window_bounds = array<i64: 256, 256>}, {pipeline_mode = #tpu.pipeline_mode<synchronous>, transform_indices = @transform_2, window_bounds = array<i64: 1, 256>}, {transform_indices = @transform_3, window_bounds = array<i64: 32, 256>}, {pipeline_mode = #tpu.pipeline_mode<synchronous>, transform_indices = @transform_4, window_bounds = array<i64: 1, 256>}, {pipeline_mode = #tpu.pipeline_mode<synchronous>, transform_indices = @transform_5, window_bounds = array<i64: 1, 256>}, {transform_indices = @transform_6, window_bounds = array<i64: 32, 256>}]} {
    %c0_i32 = arith.constant 0 : i32
    %0 = arith.cmpi eq, %arg1, %c0_i32 : i32
    %1 = arith.extui %0 : i1 to i32
    %c0_i32_0 = arith.constant 0 : i32
    %2 = arith.cmpi ne, %1, %c0_i32_0 : i32
    scf.if %2 {
      %cst_9 = arith.constant 0.000000e+00 : f32
      %12 = vector.broadcast %cst_9 : f32 to vector<32x256xf32>
      %c0_10 = arith.constant 0 : index
      %c0_11 = arith.constant 0 : index
      %13 = vector.load %arg8[%c0_10, %c0_11] : memref<32x256xf32, #tpu.memory_space<vmem>>, vector<32x256xf32>
      tpu.vector_store %arg8[%c0_10, %c0_11], %12 {strides = array<i32>} : memref<32x256xf32, #tpu.memory_space<vmem>>, vector<32x256xf32>,
    } else {
    }
    %c0 = arith.constant 0 : index
    %c0_1 = arith.constant 0 : index
    %3 = vector.load %arg8[%c0, %c0_1] : memref<32x256xf32, #tpu.memory_space<vmem>>, vector<32x256xf32>
    %c0_2 = arith.constant 0 : index
    %c0_3 = arith.constant 0 : index
    %4 = vector.load %arg2[%c0_2, %c0_3] : memref<32x256xbf16, #tpu.memory_space<vmem>>, vector<32x256xbf16>
    %c0_4 = arith.constant 0 : index
    %c0_5 = arith.constant 0 : index
    %5 = vector.load %arg3[%c0_4, %c0_5] : memref<256x256xbf16, #tpu.memory_space<vmem>>, vector<256x256xbf16>
    %cst = arith.constant dense<0.000000e+00> : vector<32x256xf32>
    %6 = tpu.matmul %4, %5, %cst {dimension_numbers = #tpu.dot_dimension_numbers<[1], [0], [0], [1], [0, 0, 1, 1], [], []>} : vector<32x256xbf16>, vector<256x256xbf16>, vector<32x256xf32> -> vector<32x256xf32>
    %7 = arith.addf %3, %6 : vector<32x256xf32>
    %c0_6 = arith.constant 0 : index
    %c0_7 = arith.constant 0 : index
    %8 = vector.load %arg8[%c0_6, %c0_7] : memref<32x256xf32, #tpu.memory_space<vmem>>, vector<32x256xf32>
    tpu.vector_store %arg8[%c0_6, %c0_7], %7 {strides = array<i32>} : memref<32x256xf32, #tpu.memory_space<vmem>>, vector<32x256xf32>,
    %c1_i32 = arith.constant 1 : i32
    %9 = arith.cmpi eq, %arg1, %c1_i32 : i32
    %10 = arith.extui %9 : i1 to i32
    %c0_i32_8 = arith.constant 0 : i32
    %11 = arith.cmpi ne, %10, %c0_i32_8 : i32
    scf.if %11 {
      %c0_9 = arith.constant 0 : index
      %c0_10 = arith.constant 0 : index
      %12 = vector.load %arg8[%c0_9, %c0_10] : memref<32x256xf32, #tpu.memory_space<vmem>>, vector<32x256xf32>
      %c0_11 = arith.constant 0 : index
      %c0_12 = arith.constant 0 : index
      %13 = vector.load %arg4[%c0_11, %c0_12] : memref<1x256xf32, #tpu.memory_space<vmem>>, vector<1x256xf32>
      %14 = vector.broadcast %13 : vector<1x256xf32> to vector<32x256xf32>
      %15 = arith.addf %12, %14 : vector<32x256xf32>
      %c0_13 = arith.constant 0 : index
      %c0_14 = arith.constant 0 : index
      %16 = vector.load %arg5[%c0_13, %c0_14] : memref<32x256xf32, #tpu.memory_space<vmem>>, vector<32x256xf32>
      %17 = arith.addf %15, %16 : vector<32x256xf32>
      %cst_15 = arith.constant dense<0.000000e+00> : vector<32xf32>
      %18 = vector.multi_reduction <add>, %17, %cst_15 [1] : vector<32x256xf32> to vector<32xf32>
      %19 = vector.shape_cast %18 : vector<32xf32> to vector<32x1xf32>
      %cst_16 = arith.constant 2.560000e+02 : f32
      %20 = vector.broadcast %cst_16 : f32 to vector<32x1xf32>
      %21 = arith.divf %19, %20 : vector<32x1xf32>
      %22 = vector.broadcast %21 : vector<32x1xf32> to vector<32x256xf32>
      %23 = arith.subf %17, %22 : vector<32x256xf32>
      %24 = arith.mulf %23, %23 : vector<32x256xf32>
      %cst_17 = arith.constant dense<0.000000e+00> : vector<32xf32>
      %25 = vector.multi_reduction <add>, %24, %cst_17 [1] : vector<32x256xf32> to vector<32xf32>
      %26 = vector.shape_cast %25 : vector<32xf32> to vector<32x1xf32>
      %cst_18 = arith.constant 2.560000e+02 : f32
      %27 = vector.broadcast %cst_18 : f32 to vector<32x1xf32>
      %28 = arith.divf %26, %27 : vector<32x1xf32>
      %cst_19 = arith.constant 9.99999974E-6 : f32
      %29 = vector.broadcast %cst_19 : f32 to vector<32x1xf32>
      %30 = arith.addf %28, %29 : vector<32x1xf32>
      %31 = math.rsqrt %30 : vector<32x1xf32>
      %32 = vector.broadcast %31 : vector<32x1xf32> to vector<32x256xf32>
      %33 = arith.mulf %23, %32 : vector<32x256xf32>
      %c0_20 = arith.constant 0 : index
      %c0_21 = arith.constant 0 : index
      %34 = vector.load %arg6[%c0_20, %c0_21] : memref<1x256xf32, #tpu.memory_space<vmem>>, vector<1x256xf32>
      %35 = vector.broadcast %34 : vector<1x256xf32> to vector<32x256xf32>
      %36 = arith.mulf %33, %35 : vector<32x256xf32>
      %c0_22 = arith.constant 0 : index
      %c0_23 = arith.constant 0 : index
      %37 = vector.load %arg7[%c0_22, %c0_23] : memref<1x256xf32, #tpu.memory_space<vmem>>, vector<1x256xf32>
      %38 = vector.broadcast %37 : vector<1x256xf32> to vector<32x256xf32>
      %39 = arith.addf %36, %38 : vector<32x256xf32>
      %c0_24 = arith.constant 0 : index
      %c0_25 = arith.constant 0 : index
      %40 = vector.load %arg8[%c0_24, %c0_25] : memref<32x256xf32, #tpu.memory_space<vmem>>, vector<32x256xf32>
      tpu.vector_store %arg8[%c0_24, %c0_25], %39 {strides = array<i32>} : memref<32x256xf32, #tpu.memory_space<vmem>>, vector<32x256xf32>,
    } else {
    }
    return
  }
  func.func @transform_0(%arg0: i32, %arg1: i32) -> (i32, i32) {
    %c0_i32 = arith.constant 0 : i32
    return %arg0, %arg1 : i32, i32
  }
  func.func @transform_1(%arg0: i32, %arg1: i32) -> (i32, i32) {
    %c0_i32 = arith.constant 0 : i32
    %c0_i32_0 = arith.constant 0 : i32
    return %arg1, %c0_i32 : i32, i32
  }
  func.func @transform_2(%arg0: i32, %arg1: i32) -> (i32, i32) {
    %c0_i32 = arith.constant 0 : i32
    %c0_i32_0 = arith.constant 0 : i32
    %c0_i32_1 = arith.constant 0 : i32
    return %c0_i32, %c0_i32_0 : i32, i32
  }
  func.func @transform_3(%arg0: i32, %arg1: i32) -> (i32, i32) {
    %c0_i32 = arith.constant 0 : i32
    %c0_i32_0 = arith.constant 0 : i32
    return %arg0, %c0_i32 : i32, i32
  }
  func.func @transform_4(%arg0: i32, %arg1: i32) -> (i32, i32) {
    %c0_i32 = arith.constant 0 : i32
    %c0_i32_0 = arith.constant 0 : i32
    %c0_i32_1 = arith.constant 0 : i32
    return %c0_i32, %c0_i32_0 : i32, i32
  }
  func.func @transform_5(%arg0: i32, %arg1: i32) -> (i32, i32) {
    %c0_i32 = arith.constant 0 : i32
    %c0_i32_0 = arith.constant 0 : i32
    %c0_i32_1 = arith.constant 0 : i32
    return %c0_i32, %c0_i32_0 : i32, i32
  }
  func.func @transform_6(%arg0: i32, %arg1: i32) -> (i32, i32) {
    %c0_i32 = arith.constant 0 : i32
    %c0_i32_0 = arith.constant 0 : i32
    return %arg0, %c0_i32 : i32, i32
  }
}

</mosaic_0001>

<llo_original>
// kernel: decoder_layer.11
$region0: #{decoder_layer.11}
  #allocation0 [shape = 'u32[]', space=smem, size = 0x4, offset = 0x4, fixed_abs, tag = 'smem constant byte address 0x4 - core index']
  #allocation1 [shape = 'u32[144,128]{1,0:T(1,128)}', space=vmem, size = 0x12000, scoped, tag = 'internal scratch']
  #allocation2 [shape = 'f32[32,256]{1,0:T(8,128)}', space=vmem, size = 0x8000, scoped, tag = 'scratch operand']
  %s0 = inlined_call_operand.vmem [shape: f32[32,256], index: 0, kind: input, shape index: {}]
  %s1 = inlined_call_operand.hbm [shape: bf16[256,512], index: 1, kind: input, shape index: {}]
  %s2 = inlined_call_operand.vmem [shape: f32[1,512], index: 2, kind: input, shape index: {}]
  %s3 = inlined_call_operand.vmem [shape: bf16[32,512], index: 3, kind: output, shape index: {}]
  %s4 = sld [smem:[#allocation0]]
  $region91: #{decoder_layer.11} parent=0
    _
  %s6 = ssub.s32 1, %s4
  %s7 = scalar_select 0, %s6, %s4
  $region1: #{decoder_layer.11} parent=0
    #allocation3 [shape = 'u8[262144]{0}', space=vmem, size = 0x40000, scoped, tag = 'input window, operand 1']
    #allocation4 [shape = 's32[2]{0}', space=sflag, size = 0x8, scoped, tag = 'scoped memory for decoder_layer.11']
    #allocation5 [shape = 'u8[32768]{0}', space=vmem, size = 0x8000, scoped, tag = 'output window, operand 0']
    %8 = vsyncpa [#allocation4], 0
    %s9 = scalar_lea.sflag [#allocation4], 1
    %10 = vsyncpa %s9, 0
    loop: start=0, step=1, limit=4
    $region2: #{decoder_layer.11} parent=1 // loop_pre_header
      _
    $region3: #{decoder_layer.11} parent=1 // loop_header
      %s12 = sphi 0, %s16
      %p13 = scmp.ge.s32.totalorder %s12, 4
      %s19 = sphi 0, %s38
      %s20 = sphi 0, %s34
      %s21 = sphi 0, %s30
      %s22 = sphi 0, %s19
      %s23 = sphi 0, %s20
      %s24 = sphi 0, %s21
      %s25 = sphi 0, %s22
      %s26 = sphi 0, %s23
      %s27 = sphi 0, %s24
      %s43 = sphi 0, %s45
      %s46 = sphi 0, %s43
      %s47 = sphi 0, %s46
      %s63 = sphi 0, %s47
      %s71 = sphi 0, %s73
      %s74 = sphi 0, %s71
      %s75 = sphi 0, %s74
      %s91 = sphi 0, %s75
      %s97 = sphi 0, %s99
      %s100 = sphi 0, %s97
      %s101 = sphi 0, %s100
      %s117 = sphi 0, %s101
      %s125 = sphi 0, %s127
      %s128 = sphi 0, %s125
      %s129 = sphi 0, %s128
      %s145 = sphi 0, %s129
    $region4: #{decoder_layer.11} parent=1 // loop_header_branch
      %15 = sbr.rel (%p13) target = $region8
    $region5: #{decoder_layer.11} parent=1 // loop_body
      %s17 = ssub.s32 %s12, 1
      %s18 = ssub.s32 %s12, 2
      %s28 = sadd.s32 1, %s21
      %p29 = scmp.ge.s32.totalorder %s28, 1
      %s30 = scalar_select %p29, 0, %s28
      %s31 = sadd.s32 1, %s20
      %s32 = scalar_select %p29, %s31, %s20
      %p33 = scmp.ge.s32.totalorder %s32, 2
      %s34 = scalar_select %p33, 0, %s32
      %s35 = sadd.s32 1, %s19
      %s36 = scalar_select %p33, %s35, %s19
      %p37 = scmp.ge.s32.totalorder %s36, 1
      %s38 = scalar_select %p37, 0, %s36
      %s39 = ssub.s32 %s19, %s38
      %s40 = ssub.s32 %s21, %s30
      %s41 = sor.u32 %s39, %s40
      %p42 = scmp.eq.s32.totalorder %s41, 0
      %s44 = sadd.s32 %s43, 1
      %s45 = scalar_select %p42, %s43, %s44
      %p48 = pneg %p42
      %p49 = scmp.eq.s32.totalorder %s12, 1
      %p50 = por %p48, %p49
      %p51 = scmp.ne.s32.totalorder %s43, %s46
      %p52 = scmp.eq.s32.totalorder %s12, 0
      %p53 = por %p51, %p52
      %p54 = scmp.ne.s32.totalorder %s43, %s46
      %p55 = scmp.eq.s32.totalorder %s17, 1
      %p56 = por %p54, %p55
      %p57 = scmp.ne.s32.totalorder %s46, %s47
      %p58 = scmp.eq.s32.totalorder %s17, 0
      %p59 = por %p57, %p58
      %p60 = scmp.ne.s32.totalorder %s46, %s47
      %p61 = scmp.eq.s32.totalorder %s18, 1
      %p62 = por %p60, %p61
      %p64 = scmp.ne.s32.totalorder %s47, %s63
      %p65 = scmp.eq.s32.totalorder %s18, 0
      %p66 = por %p64, %p65
      %s67 = ssub.s32 %s21, %s30
      %s68 = ssub.s32 %s20, %s34
      %s69 = sor.u32 %s67, %s68
      %p70 = scmp.eq.s32.totalorder %s69, 0
      %s72 = sadd.s32 %s71, 1
      %s73 = scalar_select %p70, %s71, %s72
      %p76 = pneg %p70
      %p77 = scmp.eq.s32.totalorder %s12, 1
      %p78 = por %p76, %p77
      %p79 = scmp.ne.s32.totalorder %s71, %s74
      %p80 = scmp.eq.s32.totalorder %s12, 0
      %p81 = por %p79, %p80
      %p82 = scmp.ne.s32.totalorder %s71, %s74
      %p83 = scmp.eq.s32.totalorder %s17, 1
      %p84 = por %p82, %p83
      %p85 = scmp.ne.s32.totalorder %s74, %s75
      %p86 = scmp.eq.s32.totalorder %s17, 0
      %p87 = por %p85, %p86
      %p88 = scmp.ne.s32.totalorder %s74, %s75
      %p89 = scmp.eq.s32.totalorder %s18, 1
      %p90 = por %p88, %p89
      %p92 = scmp.ne.s32.totalorder %s75, %s91
      %p93 = scmp.eq.s32.totalorder %s18, 0
      %p94 = por %p92, %p93
      %s95 = ssub.s32 %s20, %s34
      %p96 = scmp.eq.s32.totalorder %s95, 0
      %s98 = sadd.s32 %s97, 1
      %s99 = scalar_select %p96, %s97, %s98
      %p102 = pneg %p96
      %p103 = scmp.eq.s32.totalorder %s12, 1
      %p104 = por %p102, %p103
      %p105 = scmp.ne.s32.totalorder %s97, %s100
      %p106 = scmp.eq.s32.totalorder %s12, 0
      %p107 = por %p105, %p106
      %p108 = scmp.ne.s32.totalorder %s97, %s100
      %p109 = scmp.eq.s32.totalorder %s17, 1
      %p110 = por %p108, %p109
      %p111 = scmp.ne.s32.totalorder %s100, %s101
      %p112 = scmp.eq.s32.totalorder %s17, 0
      %p113 = por %p111, %p112
      %p114 = scmp.ne.s32.totalorder %s100, %s101
      %p115 = scmp.eq.s32.totalorder %s18, 1
      %p116 = por %p114, %p115
      %p118 = scmp.ne.s32.totalorder %s101, %s117
      %p119 = scmp.eq.s32.totalorder %s18, 0
      %p120 = por %p118, %p119
      %s121 = ssub.s32 %s19, %s38
      %s122 = ssub.s32 %s20, %s34
      %s123 = sor.u32 %s121, %s122
      %p124 = scmp.eq.s32.totalorder %s123, 0
      %s126 = sadd.s32 %s125, 1
      %s127 = scalar_select %p124, %s125, %s126
      %p130 = pneg %p124
      %p131 = scmp.eq.s32.totalorder %s12, 1
      %p132 = por %p130, %p131
      %p133 = scmp.ne.s32.totalorder %s125, %s128
      %p134 = scmp.eq.s32.totalorder %s12, 0
      %p135 = por %p133, %p134
      %p136 = scmp.ne.s32.totalorder %s125, %s128
      %p137 = scmp.eq.s32.totalorder %s17, 1
      %p138 = por %p136, %p137
      %p139 = scmp.ne.s32.totalorder %s128, %s129
      %p140 = scmp.eq.s32.totalorder %s17, 0
      %p141 = por %p139, %p140
      %p142 = scmp.ne.s32.totalorder %s128, %s129
      %p143 = scmp.eq.s32.totalorder %s18, 1
      %p144 = por %p142, %p143
      %p146 = scmp.ne.s32.totalorder %s129, %s145
      %p147 = scmp.eq.s32.totalorder %s18, 0
      %p148 = por %p146, %p147
      %p149 = scmp.le.s32.totalorder 1, %s12
      %p150 = scmp.lt.s32.totalorder %s12, 3
      %p151 = pnand %p149, %p150
      %p152 = pneg %p151
      // Predicated region
      $region9: #{decoder_layer.11} parent=5 // pred_check
        _
      $region10: #{decoder_layer.11} parent=5 // pred_check_branch
        %154 = sbr.rel (%p151) target = $region12
      $region11: #{decoder_layer.11} parent=5 // pred_region
        %s155 = ssub.s32 %s12, 1
        // Predicated region
        $region13: #{decoder_layer.11} parent=11 // pred_check
          %p156 = pneg %p59
        $region14: #{decoder_layer.11} parent=11 // pred_check_branch
          %158 = sbr.rel (%p156) target = $region16
        $region15: #{decoder_layer.11} parent=11 // pred_region
          %s159 = smul.u32 4, %s22
          %s160 = smul.u32 2, %s24
          %p161 = scmp.lt.s32.totalorder %s159, 3
          %s162 = scalar_select %p161, %s159, 3
          %p163 = scmp.lt.s32.totalorder %s160, 1
          %s164 = scalar_select %p163, %s160, 1
          %s165 = smul.addr %s162, 2
          %s166 = sadd.s32 %s164, %s165
          %s167 = smul.addr %s166, 8
          %s168 = scalar_lea.vmem %s0, %s167
          %s169 = smul.u32 4, %s22
          %s170 = smul.u32 2, %s24
        $region16: #{decoder_layer.11} parent=11 // pred_fallthru
          _
      $region12: #{decoder_layer.11} parent=5 // pred_fallthru
        _
      %p171 = scmp.lt.s32.totalorder %s12, 2
      // Predicated region
      $region17: #{decoder_layer.11} parent=5 // pred_check
        %p172 = pneg %p171
      $region18: #{decoder_layer.11} parent=5 // pred_check_branch
        %174 = sbr.rel (%p172) target = $region20
      $region19: #{decoder_layer.11} parent=5 // pred_region
        // Predicated region
        $region21: #{decoder_layer.11} parent=19 // pred_check
          %p175 = pneg %p81
        $region22: #{decoder_layer.11} parent=19 // pred_check_branch
          %177 = sbr.rel (%p175) target = $region24
        $region23: #{decoder_layer.11} parent=19 // pred_region
          %s178 = sand.u32 %s71, 1
          %s179 = scalar_lea.sflag [#allocation4], %s178
          %s180 = sand.u32 %s71, 1
          %s181 = smul.addr %s180, 256
          %s182 = scalar_lea.vmem [#allocation3], %s181
          %s183 = smul.u32 32, %s21
          %s184 = smul.u32 2, %s20
          %s186 = ssub.s32 4096, 4096
          %187 = vsyncadd %s179, %s186
          %s188 = smul.addr %s183, 4
          %s189 = sadd.s32 %s184, %s188
          %s190 = smul.addr %s189, 64
          %s191 = scalar_lea.hbm %s1, %s190
          %s192 = sshll.u32 %s182, 4
          %s193 = int_to_ptr.vmem [resolvable:$true] %s192
          %198 = dma.hbm_to_vmem [thread:$0]  %s191, 4096, %s193, %s179, 256, 128, 8
        $region24: #{decoder_layer.11} parent=19 // pred_fallthru
          _
        // Predicated region
        $region25: #{decoder_layer.11} parent=19 // pred_check
          %p199 = pneg %p107
        $region26: #{decoder_layer.11} parent=19 // pred_check_branch
          %201 = sbr.rel (%p199) target = $region28
        $region27: #{decoder_layer.11} parent=19 // pred_region
          %s202 = smul.u32 2, %s20
          %p203 = scmp.lt.s32.totalorder %s202, 3
          %s204 = scalar_select %p203, %s202, 3
          %s205 = scalar_lea.vmem %s2, %s204
          %s206 = smul.u32 2, %s20
        $region28: #{decoder_layer.11} parent=19 // pred_fallthru
          _
      $region20: #{decoder_layer.11} parent=5 // pred_fallthru
        _
      %p207 = scmp.le.s32.totalorder 1, %s12
      %p208 = scmp.lt.s32.totalorder %s12, 3
      %p209 = pnand %p207, %p208
      %p210 = pneg %p209
      // Predicated region
      $region29: #{decoder_layer.11} parent=5 // pred_check
        _
      $region30: #{decoder_layer.11} parent=5 // pred_check_branch
        %212 = sbr.rel (%p209) target = $region32
      $region31: #{decoder_layer.11} parent=5 // pred_region
        %s213 = ssub.s32 %s12, 1
        %s214 = sand.u32 %s74, 1
        %s215 = scalar_lea.sflag [#allocation4], %s214
        %s216 = sand.u32 %s74, 1
        %s217 = smul.addr %s216, 256
        %s218 = scalar_lea.vmem [#allocation3], %s217
        // Predicated region
        $region33: #{decoder_layer.11} parent=31 // pred_check
          %p219 = pneg %p87
        $region34: #{decoder_layer.11} parent=31 // pred_check_branch
          %221 = sbr.rel (%p219) target = $region36
        $region35: #{decoder_layer.11} parent=31 // pred_region
          %222 = dma.done %s215, 4096
        $region36: #{decoder_layer.11} parent=31 // pred_fallthru
          _
        %s223 = smul.u32 4, %s22
        %s224 = smul.u32 2, %s24
        %p225 = scmp.lt.s32.totalorder %s223, 3
        %s226 = scalar_select %p225, %s223, 3
        %p227 = scmp.lt.s32.totalorder %s224, 1
        %s228 = scalar_select %p227, %s224, 1
        %s229 = smul.addr %s226, 2
        %s230 = sadd.s32 %s228, %s229
        %s231 = smul.addr %s230, 8
        %s232 = scalar_lea.vmem %s0, %s231
        %p233 = pneg %p59
        %p234 = pneg %p56
        %s235 = sand.u32 %s74, 1
        %s236 = scalar_lea.sflag [#allocation4], %s235
        %s237 = sand.u32 %s74, 1
        %s238 = smul.addr %s237, 256
        %s239 = scalar_lea.vmem [#allocation3], %s238
        %p240 = pneg %p87
        %p241 = pneg %p84
        %s242 = smul.u32 2, %s23
        %p243 = scmp.lt.s32.totalorder %s242, 3
        %s244 = scalar_select %p243, %s242, 3
        %s245 = scalar_lea.vmem %s2, %s244
        %p246 = pneg %p113
        %p247 = pneg %p110
        %p248 = pneg %p141
        %p249 = pneg %p138
        %s250 = sand.u32 %s128, 1
        %s251 = sand.u32 %s128, 1
        %s252 = smul.addr %s251, 32
        %s253 = scalar_lea.vmem [#allocation5], %s252
        %s254 = smul.u32 4, %s22
        %s255 = smul.u32 2, %s24
        %p256 = scmp.lt.s32.totalorder %s254, 3
        %s257 = scalar_select %p256, %s254, 3
        %p258 = scmp.lt.s32.totalorder %s255, 1
        %s259 = scalar_select %p258, %s255, 1
        %s260 = smul.addr %s257, 2
        %s261 = sadd.s32 %s259, %s260
        %s262 = smul.addr %s261, 8
        %s263 = scalar_lea.vmem %s0, %s262
        %s264 = smul.u32 4, %s22
        %s265 = smul.u32 2, %s24
        %s266 = smul.u32 32, %s24
        %s267 = smul.u32 2, %s23
        %s268 = smul.u32 2, %s23
        %p269 = scmp.lt.s32.totalorder %s268, 3
        %s270 = scalar_select %p269, %s268, 3
        %s271 = scalar_lea.vmem %s2, %s270
        %s272 = smul.u32 2, %s23
        %s273 = smul.u32 4, %s22
        %s274 = smul.u32 2, %s23
        %p275 = scmp.eq.s32.totalorder %s24, 0
        // Predicated region
        $region37: #{decoder_layer.11} parent=31 // pred_check
          %p276 = pneg %p275
        $region38: #{decoder_layer.11} parent=31 // pred_check_branch
          %278 = sbr.rel (%p276) target = $region40
        $region39: #{decoder_layer.11} parent=31 // pred_region
          %279 = vst [vmem:[#allocation2] sm:$0xff] 0.0
          %280 = vst [vmem:[#allocation2 + $0x8] sm:$0xff] 0.0
          %281 = vst [vmem:[#allocation2 + $0x10] sm:$0xff] 0.0
          %282 = vst [vmem:[#allocation2 + $0x18] sm:$0xff] 0.0
          %283 = vst [vmem:[#allocation2 + $0x20] sm:$0xff] 0.0
          %284 = vst [vmem:[#allocation2 + $0x28] sm:$0xff] 0.0
          %285 = vst [vmem:[#allocation2 + $0x30] sm:$0xff] 0.0
          %286 = vst [vmem:[#allocation2 + $0x38] sm:$0xff] 0.0
        $region40: #{decoder_layer.11} parent=31 // pred_fallthru
          _
        %v287 = vld [vmem:[#allocation2] sm:$0xff]
        %v288 = vld [vmem:[#allocation2 + $0x8] sm:$0xff]
        %v289 = vld [vmem:[#allocation2 + $0x10] sm:$0xff]
        %v290 = vld [vmem:[#allocation2 + $0x18] sm:$0xff]
        %v291 = vld [vmem:[#allocation2 + $0x20] sm:$0xff]
        %v292 = vld [vmem:[#allocation2 + $0x28] sm:$0xff]
        %v293 = vld [vmem:[#allocation2 + $0x30] sm:$0xff]
        %v294 = vld [vmem:[#allocation2 + $0x38] sm:$0xff]
        %v295 = vld [vmem:[%s263] sm:$0xff]
        %v296 = vld [vmem:[%s263 + $0x8] sm:$0xff]
        %v297 = vld [vmem:[%s263 + $0x10] sm:$0xff]
        %v298 = vld [vmem:[%s263 + $0x18] sm:$0xff]
        %v299 = vld [vmem:[%s263 + $0x20] sm:$0xff]
        %v300 = vld [vmem:[%s263 + $0x28] sm:$0xff]
        %v301 = vld [vmem:[%s263 + $0x30] sm:$0xff]
        %v302 = vld [vmem:[%s263 + $0x38] sm:$0xff]
        %v303 = vpack.c.bf16 %v297, %v295
        %v304 = vpack.c.bf16 %v298, %v296
        %v305 = vpack.c.bf16 %v301, %v299
        %v306 = vpack.c.bf16 %v302, %v300
        %v307 = vld [vmem:[%s218] sm:$0xff]
        %v308 = vld [vmem:[%s218 + $0x8] sm:$0xff]
        %v309 = vld [vmem:[%s218 + $0x10] sm:$0xff]
        %v310 = vld [vmem:[%s218 + $0x18] sm:$0xff]
        %v311 = vld [vmem:[%s218 + $0x20] sm:$0xff]
        %v312 = vld [vmem:[%s218 + $0x28] sm:$0xff]
        %v313 = vld [vmem:[%s218 + $0x30] sm:$0xff]
        %v314 = vld [vmem:[%s218 + $0x38] sm:$0xff]
        %v315 = vld [vmem:[%s218 + $0x40] sm:$0xff]
        %v316 = vld [vmem:[%s218 + $0x48] sm:$0xff]
        %v317 = vld [vmem:[%s218 + $0x50] sm:$0xff]
        %v318 = vld [vmem:[%s218 + $0x58] sm:$0xff]
        %v319 = vld [vmem:[%s218 + $0x60] sm:$0xff]
        %v320 = vld [vmem:[%s218 + $0x68] sm:$0xff]
        %v321 = vld [vmem:[%s218 + $0x70] sm:$0xff]
        %v322 = vld [vmem:[%s218 + $0x78] sm:$0xff]
        %v323 = vld [vmem:[%s218 + $0x80] sm:$0xff]
        %v324 = vld [vmem:[%s218 + $0x88] sm:$0xff]
        %v325 = vld [vmem:[%s218 + $0x90] sm:$0xff]
        %v326 = vld [vmem:[%s218 + $0x98] sm:$0xff]
        %v327 = vld [vmem:[%s218 + $0xa0] sm:$0xff]
        %v328 = vld [vmem:[%s218 + $0xa8] sm:$0xff]
        %v329 = vld [vmem:[%s218 + $0xb0] sm:$0xff]
        %v330 = vld [vmem:[%s218 + $0xb8] sm:$0xff]
        %v331 = vld [vmem:[%s218 + $0xc0] sm:$0xff]
        %v332 = vld [vmem:[%s218 + $0xc8] sm:$0xff]
        %v333 = vld [vmem:[%s218 + $0xd0] sm:$0xff]
        %v334 = vld [vmem:[%s218 + $0xd8] sm:$0xff]
        %v335 = vld [vmem:[%s218 + $0xe0] sm:$0xff]
        %v336 = vld [vmem:[%s218 + $0xe8] sm:$0xff]
        %v337 = vld [vmem:[%s218 + $0xf0] sm:$0xff]
        %v338 = vld [vmem:[%s218 + $0xf8] sm:$0xff]
        %v371 = vunpack.c.l.b16 %v307
        %v372 = vunpack.c.h.b16 %v307
        %v373 = vunpack.c.l.b16 %v308
        %v374 = vunpack.c.h.b16 %v308
        %v375 = vunpack.c.l.b16 %v309
        %v376 = vunpack.c.h.b16 %v309
        %v377 = vunpack.c.l.b16 %v310
        %v378 = vunpack.c.h.b16 %v310
        %v379 = vunpack.c.l.b16 %v311
        %v380 = vunpack.c.h.b16 %v311
        %v381 = vunpack.c.l.b16 %v312
        %v382 = vunpack.c.h.b16 %v312
        %v383 = vunpack.c.l.b16 %v313
        %v384 = vunpack.c.h.b16 %v313
        %v385 = vunpack.c.l.b16 %v314
        %v386 = vunpack.c.h.b16 %v314
        %v387 = vunpack.c.l.b16 %v315
        %v388 = vunpack.c.h.b16 %v315
        %v389 = vunpack.c.l.b16 %v316
        %v390 = vunpack.c.h.b16 %v316
        %v391 = vunpack.c.l.b16 %v317
        %v392 = vunpack.c.h.b16 %v317
        %v393 = vunpack.c.l.b16 %v318
        %v394 = vunpack.c.h.b16 %v318
        %v395 = vunpack.c.l.b16 %v319
        %v396 = vunpack.c.h.b16 %v319
        %v397 = vunpack.c.l.b16 %v320
        %v398 = vunpack.c.h.b16 %v320
        %v399 = vunpack.c.l.b16 %v321
        %v400 = vunpack.c.h.b16 %v321
        %v401 = vunpack.c.l.b16 %v322
        %v402 = vunpack.c.h.b16 %v322
        %v403 = vunpack.c.l.b16 %v323
        %v404 = vunpack.c.h.b16 %v323
        %v405 = vunpack.c.l.b16 %v324
        %v406 = vunpack.c.h.b16 %v324
        %v407 = vunpack.c.l.b16 %v325
        %v408 = vunpack.c.h.b16 %v325
        %v409 = vunpack.c.l.b16 %v326
        %v410 = vunpack.c.h.b16 %v326
        %v411 = vunpack.c.l.b16 %v327
        %v412 = vunpack.c.h.b16 %v327
        %v413 = vunpack.c.l.b16 %v328
        %v414 = vunpack.c.h.b16 %v328
        %v415 = vunpack.c.l.b16 %v329
        %v416 = vunpack.c.h.b16 %v329
        %v417 = vunpack.c.l.b16 %v330
        %v418 = vunpack.c.h.b16 %v330
        %v419 = vunpack.c.l.b16 %v331
        %v420 = vunpack.c.h.b16 %v331
        %v421 = vunpack.c.l.b16 %v332
        %v422 = vunpack.c.h.b16 %v332
        %v423 = vunpack.c.l.b16 %v333
        %v424 = vunpack.c.h.b16 %v333
        %v425 = vunpack.c.l.b16 %v334
        %v426 = vunpack.c.h.b16 %v334
        %v427 = vunpack.c.l.b16 %v335
        %v428 = vunpack.c.h.b16 %v335
        %v429 = vunpack.c.l.b16 %v336
        %v430 = vunpack.c.h.b16 %v336
        %v431 = vunpack.c.l.b16 %v337
        %v432 = vunpack.c.h.b16 %v337
        %v433 = vunpack.c.l.b16 %v338
        %v434 = vunpack.c.h.b16 %v338
        %v435 = vpack.c.b16 %v373, %v371
        %v436 = vpack.c.b16 %v374, %v372
        %v437 = vpack.c.b16 %v377, %v375
        %v438 = vpack.c.b16 %v378, %v376
        %v439 = vpack.c.b16 %v381, %v379
        %v440 = vpack.c.b16 %v382, %v380
        %v441 = vpack.c.b16 %v385, %v383
        %v442 = vpack.c.b16 %v386, %v384
        %v443 = vpack.c.b16 %v389, %v387
        %v444 = vpack.c.b16 %v390, %v388
        %v445 = vpack.c.b16 %v393, %v391
        %v446 = vpack.c.b16 %v394, %v392
        %v447 = vpack.c.b16 %v397, %v395
        %v448 = vpack.c.b16 %v398, %v396
        %v449 = vpack.c.b16 %v401, %v399
        %v450 = vpack.c.b16 %v402, %v400
        %v451 = vpack.c.b16 %v405, %v403
        %v452 = vpack.c.b16 %v406, %v404
        %v453 = vpack.c.b16 %v409, %v407
        %v454 = vpack.c.b16 %v410, %v408
        %v455 = vpack.c.b16 %v413, %v411
        %v456 = vpack.c.b16 %v414, %v412
        %v457 = vpack.c.b16 %v417, %v415
        %v458 = vpack.c.b16 %v418, %v416
        %v459 = vpack.c.b16 %v421, %v419
        %v460 = vpack.c.b16 %v422, %v420
        %v461 = vpack.c.b16 %v425, %v423
        %v462 = vpack.c.b16 %v426, %v424
        %v463 = vpack.c.b16 %v429, %v427
        %v464 = vpack.c.b16 %v430, %v428
        %v465 = vpack.c.b16 %v433, %v431
        %v466 = vpack.c.b16 %v434, %v432
        %499 = vmatprep.subr.bf16.mxu0 %v436
        %500 = vmatpush1.bf16.msra.mxu0 %v435
        %501 = vmatprep.subr.bf16.mxu0 %v438
        %502 = vmatpush1.bf16.msra.mxu0 %v437
        %503 = vmatprep.subr.bf16.mxu0 %v440
        %504 = vmatpush1.bf16.msra.mxu0 %v439
        %505 = vmatprep.subr.bf16.mxu0 %v442
        %506 = vmatpush1.bf16.msra.mxu0 %v441
        %507 = vmatprep.subr.bf16.mxu0 %v444
        %508 = vmatpush1.bf16.msra.mxu0 %v443
        %509 = vmatprep.subr.bf16.mxu0 %v446
        %510 = vmatpush1.bf16.msra.mxu0 %v445
        %511 = vmatprep.subr.bf16.mxu0 %v448
        %512 = vmatpush1.bf16.msra.mxu0 %v447
        %513 = vmatprep.subr.bf16.mxu0 %v450
        %514 = vmatpush1.bf16.msra.mxu0 %v449
        %515 = vmatprep.subr.bf16.mxu0 %v452
        %516 = vmatpush1.bf16.msra.mxu0 %v451
        %517 = vmatprep.subr.bf16.mxu0 %v454
        %518 = vmatpush1.bf16.msra.mxu0 %v453
        %519 = vmatprep.subr.bf16.mxu0 %v456
        %520 = vmatpush1.bf16.msra.mxu0 %v455
        %521 = vmatprep.subr.bf16.mxu0 %v458
        %522 = vmatpush1.bf16.msra.mxu0 %v457
        %523 = vmatprep.subr.bf16.mxu0 %v460
        %524 = vmatpush1.bf16.msra.mxu0 %v459
        %525 = vmatprep.subr.bf16.mxu0 %v462
        %526 = vmatpush1.bf16.msra.mxu0 %v461
        %527 = vmatprep.subr.bf16.mxu0 %v464
        %528 = vmatpush1.bf16.msra.mxu0 %v463
        %529 = vmatprep.subr.bf16.mxu0 %v466
        %530 = vmatpush1.bf16.msra.mxu0 %v465
        %531 = vmatprep.mubr.bf16.mxu0 %v304
        %532 = vmatmul.mubr.bf16.gmra.mrb[0].mxu0 %v303
        %v533 = vpop.f32.mrb[0].mxu0
        %v534 = vadd.f32 0.0, %v533
        %v535 = vpop.f32.mrb[0].mxu0
        %v536 = vadd.f32 0.0, %v535
        %v537 = vpop.f32.mrb[0].mxu0
        %v538 = vadd.f32 0.0, %v537
        %v539 = vpop.f32.mrb[0].mxu0
        %v540 = vadd.f32 0.0, %v539
        %541 = vmatprep.mubr.bf16.mxu0 %v306
        %542 = vmatmul.mubr.bf16.gmra.mrb[0].mxu0 %v305
        %v543 = vpop.f32.mrb[0].mxu0
        %v544 = vadd.f32 0.0, %v543
        %v545 = vpop.f32.mrb[0].mxu0
        %v546 = vadd.f32 0.0, %v545
        %v547 = vpop.f32.mrb[0].mxu0
        %v548 = vadd.f32 0.0, %v547
        %v549 = vpop.f32.mrb[0].mxu0
        %v550 = vadd.f32 0.0, %v549
        %551 = vdwg.mxu0
        %v552 = vadd.f32 %v287, %v534
        %v553 = vadd.f32 %v288, %v536
        %v554 = vadd.f32 %v289, %v538
        %v555 = vadd.f32 %v290, %v540
        %v556 = vadd.f32 %v291, %v544
        %v557 = vadd.f32 %v292, %v546
        %v558 = vadd.f32 %v293, %v548
        %v559 = vadd.f32 %v294, %v550
        %560 = vst [vmem:[#allocation2] sm:$0xff] %v552
        %561 = vst [vmem:[#allocation2 + $0x8] sm:$0xff] %v553
        %562 = vst [vmem:[#allocation2 + $0x10] sm:$0xff] %v554
        %563 = vst [vmem:[#allocation2 + $0x18] sm:$0xff] %v555
        %564 = vst [vmem:[#allocation2 + $0x20] sm:$0xff] %v556
        %565 = vst [vmem:[#allocation2 + $0x28] sm:$0xff] %v557
        %566 = vst [vmem:[#allocation2 + $0x30] sm:$0xff] %v558
        %567 = vst [vmem:[#allocation2 + $0x38] sm:$0xff] %v559
        // Predicated region
        $region41: #{decoder_layer.11} parent=31 // pred_check
          %p568 = pneg %p275
        $region42: #{decoder_layer.11} parent=31 // pred_check_branch
          %570 = sbr.rel (%p568) target = $region44
        $region43: #{decoder_layer.11} parent=31 // pred_region
          %v571 = vld [vmem:[#allocation2] sm:$0xff]
          %v572 = vld [vmem:[#allocation2 + $0x8] sm:$0xff]
          %v573 = vld [vmem:[#allocation2 + $0x10] sm:$0xff]
          %v574 = vld [vmem:[#allocation2 + $0x18] sm:$0xff]
          %v575 = vld [vmem:[#allocation2 + $0x20] sm:$0xff]
          %v576 = vld [vmem:[#allocation2 + $0x28] sm:$0xff]
          %v577 = vld [vmem:[#allocation2 + $0x30] sm:$0xff]
          %v578 = vld [vmem:[#allocation2 + $0x38] sm:$0xff]
          %v579 = vld [vmem:[%s271] sm:$0x3]
          %v581 = vlaneseq
          %v582 = vshrl.u32 %v581, 7
          %v583 = vsub.s32 0, %v582
          %v584 = vrot.slane %v579, %v583
          %v585 = vlaneseq
          %v586 = vshrl.u32 %v585, 7
          %v587 = vsub.s32 1, %v586
          %v588 = vrot.slane %v579, %v587
          %v591 = vadd.f32 %v571, %v584
          %v592 = vadd.f32 %v572, %v588
          %v593 = vadd.f32 %v573, %v584
          %v594 = vadd.f32 %v574, %v588
          %v595 = vadd.f32 %v575, %v584
          %v596 = vadd.f32 %v576, %v588
          %v597 = vadd.f32 %v577, %v584
          %v598 = vadd.f32 %v578, %v588
          %v599 = vpack.c.bf16 %v593, %v591
          %v600 = vpack.c.bf16 %v594, %v592
          %v601 = vpack.c.bf16 %v597, %v595
          %v602 = vpack.c.bf16 %v598, %v596
          %v607 = vunpack.c.l.b16 %v599
          %v608 = vunpack.c.l.b16 %v600
          %v609 = vunpack.c.h.b16 %v599
          %v610 = vunpack.c.h.b16 %v600
          %v611 = vunpack.c.l.b16 %v601
          %v612 = vunpack.c.l.b16 %v602
          %v613 = vunpack.c.h.b16 %v601
          %v614 = vunpack.c.h.b16 %v602
          %v615 = vpack.c.b16 %v608, %v607
          %v616 = vpack.c.b16 %v610, %v609
          %v617 = vpack.c.b16 %v612, %v611
          %v618 = vpack.c.b16 %v614, %v613
          %623 = vst [vmem:[%s253] sm:$0xff] %v615
          %624 = vst [vmem:[%s253 + $0x8] sm:$0xff] %v616
          %625 = vst [vmem:[%s253 + $0x10] sm:$0xff] %v617
          %626 = vst [vmem:[%s253 + $0x18] sm:$0xff] %v618
        $region44: #{decoder_layer.11} parent=31 // pred_fallthru
          _
        %s627 = sand.u32 %s128, 1
        %s628 = sand.u32 %s128, 1
        %s629 = smul.addr %s628, 32
        %s630 = scalar_lea.vmem [#allocation5], %s629
        // Predicated region
        $region45: #{decoder_layer.11} parent=31 // pred_check
          %p631 = pneg %p138
        $region46: #{decoder_layer.11} parent=31 // pred_check_branch
          %633 = sbr.rel (%p631) target = $region48
        $region47: #{decoder_layer.11} parent=31 // pred_region
          %s634 = smul.u32 4, %s22
          %s635 = smul.u32 2, %s23
          %s636 = smul.addr %s634, 4
          %s637 = sadd.s32 %s635, %s636
          %s638 = smul.addr %s637, 4
          %s639 = scalar_lea.vmem %s3, %s638
          // Predicated region
          $region49: #{decoder_layer.11} parent=47 // pred_check
            _
          $region50: #{decoder_layer.11} parent=47 // pred_check_branch
            %641 = sbr.rel (0) target = $region52
          $region51: #{decoder_layer.11} parent=47 // pred_region
            // Predicated region
            $region53: #{decoder_layer.11} parent=51 // pred_check
              _
            $region54: #{decoder_layer.11} parent=51 // pred_check_branch
              %643 = sbr.rel (0) target = $region56
            $region55: #{decoder_layer.11} parent=51 // pred_region
              // Predicated region
              $region68: #{decoder_layer.11} parent=55 // pred_check
                _
              $region69: #{decoder_layer.11} parent=55 // pred_check_branch
                %664 = sbr.rel (0) target = $region71
              $region70: #{decoder_layer.11} parent=55 // pred_region
                loop: start=0, step=1, limit=1
                $region72: #{decoder_layer.11} parent=70 // loop_pre_header
                  _
                $region73: #{decoder_layer.11} parent=70 // loop_header
                  %s666 = sphi 0, %s670
                  %p667 = scmp.ge.s32.totalorder %s666, 1
                  %s671 = sphi %s630, %s630
                  %s672 = sphi %s639, %s639
                $region74: #{decoder_layer.11} parent=70 // loop_header_branch
                  %669 = sbr.rel (%p667) target = $region78
                $region75: #{decoder_layer.11} parent=70 // loop_body
                  %v673 = vld [vmem:[%s671] sm:$0xff]
                  %674 = vst [vmem:[%s672] sm:$0xff] %v673
                  %v675 = vld [vmem:[%s671 + $0x8] sm:$0xff]
                  %676 = vst [vmem:[%s672 + $0x10] sm:$0xff] %v675
                  %v677 = vld [vmem:[%s671 + $0x10] sm:$0xff]
                  %678 = vst [vmem:[%s672 + $0x20] sm:$0xff] %v677
                  %v679 = vld [vmem:[%s671 + $0x18] sm:$0xff]
                  %680 = vst [vmem:[%s672 + $0x30] sm:$0xff] %v679
                $region76: #{decoder_layer.11} parent=70 // loop_footer
                  %s670 = sadd.s32 1, %s666
                $region77: #{decoder_layer.11} parent=70 // loop_footer_branch
                  %665 = sbr.rel target = $region73
                $region78: #{decoder_layer.11} parent=70 // loop_exit
                  _
              $region71: #{decoder_layer.11} parent=55 // pred_fallthru
                _
              // Predicated region
              $region79: #{decoder_layer.11} parent=55 // pred_check
                _
              $region80: #{decoder_layer.11} parent=55 // pred_check_branch
                %682 = sbr.rel target = $region82
              $region81: #{decoder_layer.11} parent=55 // pred_region
                _
              $region82: #{decoder_layer.11} parent=55 // pred_fallthru
                _
            $region56: #{decoder_layer.11} parent=51 // pred_fallthru
              _
            // Predicated region
            $region57: #{decoder_layer.11} parent=51 // pred_check
              _
            $region58: #{decoder_layer.11} parent=51 // pred_check_branch
              %645 = sbr.rel target = $region60
            $region59: #{decoder_layer.11} parent=51 // pred_region
              loop: start=0, step=1, limit=1
              $region61: #{decoder_layer.11} parent=59 // loop_pre_header
                _
              $region62: #{decoder_layer.11} parent=59 // loop_header
                %s648 = sphi 0, %s652
                %p649 = scmp.ge.s32.totalorder %s648, 1
                %s653 = sphi %s630, %s630
                %s654 = sphi %s639, %s639
              $region63: #{decoder_layer.11} parent=59 // loop_header_branch
                %651 = sbr.rel (%p649) target = $region67
              $region64: #{decoder_layer.11} parent=59 // loop_body
                %v655 = vld [vmem:[%s653] sm:$0xff]
                %656 = vst [vmem:[%s654] sm:$0xff] %v655
                %v657 = vld [vmem:[%s653 + $0x8] sm:$0xff]
                %658 = vst [vmem:[%s654 + $0x10] sm:$0xff] %v657
                %v659 = vld [vmem:[%s653 + $0x10] sm:$0xff]
                %660 = vst [vmem:[%s654 + $0x20] sm:$0xff] %v659
                %v661 = vld [vmem:[%s653 + $0x18] sm:$0xff]
                %662 = vst [vmem:[%s654 + $0x30] sm:$0xff] %v661
              $region65: #{decoder_layer.11} parent=59 // loop_footer
                %s652 = sadd.s32 1, %s648
              $region66: #{decoder_layer.11} parent=59 // loop_footer_branch
                %647 = sbr.rel target = $region62
              $region67: #{decoder_layer.11} parent=59 // loop_exit
                _
            $region60: #{decoder_layer.11} parent=51 // pred_fallthru
              _
          $region52: #{decoder_layer.11} parent=47 // pred_fallthru
            _
          %683 = vnop
        $region48: #{decoder_layer.11} parent=31 // pred_fallthru
          _
      $region32: #{decoder_layer.11} parent=5 // pred_fallthru
        _
      %p684 = scmp.le.s32.totalorder 2, %s12
      // Predicated region
      $region83: #{decoder_layer.11} parent=5 // pred_check
        %p685 = pneg %p684
      $region84: #{decoder_layer.11} parent=5 // pred_check_branch
        %687 = sbr.rel (%p685) target = $region86
      $region85: #{decoder_layer.11} parent=5 // pred_region
        %s688 = ssub.s32 %s12, 2
        // Predicated region
        $region87: #{decoder_layer.11} parent=85 // pred_check
          %p689 = pneg %p144
        $region88: #{decoder_layer.11} parent=85 // pred_check_branch
          %691 = sbr.rel (%p689) target = $region90
        $region89: #{decoder_layer.11} parent=85 // pred_region
          %s692 = sand.u32 %s129, 1
          %s693 = sand.u32 %s129, 1
          %s694 = smul.addr %s693, 32
          %s695 = scalar_lea.vmem [#allocation5], %s694
        $region90: #{decoder_layer.11} parent=85 // pred_fallthru
          _
      $region86: #{decoder_layer.11} parent=5 // pred_fallthru
        _
    $region6: #{decoder_layer.11} parent=1 // loop_footer
      %s16 = sadd.s32 1, %s12
    $region7: #{decoder_layer.11} parent=1 // loop_footer_branch
      %11 = sbr.rel target = $region3
    $region8: #{decoder_layer.11} parent=1 // loop_exit
      _
    %696 = vsyncpa [#allocation4], 1
    %s697 = scalar_lea.sflag [#allocation4], 1
    %698 = vsyncpa %s697, 1

// kernel: decoder_layer.13
$region0: #{decoder_layer.13}
  #allocation0 [shape = 'u32[]', space=smem, size = 0x4, offset = 0x4, fixed_abs, tag = 'smem constant byte address 0x4 - core index']
  #allocation1 [shape = 'u32[144,128]{1,0:T(1,128)}', space=vmem, size = 0x12000, scoped, tag = 'internal scratch']
  %s0 = inlined_call_operand.vmem [shape: bf16[32,256], index: 0, kind: input, shape index: {}]
  %s1 = inlined_call_operand.vmem [shape: bf16[256,256], index: 1, kind: input, shape index: {}]
  %s2 = inlined_call_operand.vmem [shape: f32[1,256], index: 2, kind: input, shape index: {}]
  %s3 = inlined_call_operand.vmem [shape: f32[32,256], index: 3, kind: input, shape index: {}]
  %s4 = inlined_call_operand.vmem [shape: f32[1,256], index: 4, kind: input, shape index: {}]
  %s5 = inlined_call_operand.vmem [shape: f32[1,256], index: 5, kind: input, shape index: {}]
  %s6 = inlined_call_operand.vmem [shape: f32[32,256], index: 6, kind: output, shape index: {}]
  %s7 = sld [smem:[#allocation0]]
  $region42: #{decoder_layer.13} parent=0
    _
  %s9 = ssub.s32 1, %s7
  %s10 = scalar_select 0, %s9, %s7
  // Predicated region
  $region2: #{decoder_layer.13} parent=0 // pred_check
    _
  $region3: #{decoder_layer.13} parent=0 // pred_check_branch
    %12 = sbr.rel (0) target = $region5
  $region4: #{decoder_layer.13} parent=0 // pred_region
    _
  $region5: #{decoder_layer.13} parent=0 // pred_fallthru
    _
  // Predicated region
  $region6: #{decoder_layer.13} parent=0 // pred_check
    _
  $region7: #{decoder_layer.13} parent=0 // pred_check_branch
    %14 = sbr.rel (0) target = $region9
  $region8: #{decoder_layer.13} parent=0 // pred_region
    _
  $region9: #{decoder_layer.13} parent=0 // pred_fallthru
    _
  // Predicated region
  $region10: #{decoder_layer.13} parent=0 // pred_check
    _
  $region11: #{decoder_layer.13} parent=0 // pred_check_branch
    %16 = sbr.rel (0) target = $region13
  $region12: #{decoder_layer.13} parent=0 // pred_region
    _
  $region13: #{decoder_layer.13} parent=0 // pred_fallthru
    _
  // Predicated region
  $region14: #{decoder_layer.13} parent=0 // pred_check
    _
  $region15: #{decoder_layer.13} parent=0 // pred_check_branch
    %18 = sbr.rel (0) target = $region17
  $region16: #{decoder_layer.13} parent=0 // pred_region
    _
  $region17: #{decoder_layer.13} parent=0 // pred_fallthru
    _
  // Predicated region
  $region18: #{decoder_layer.13} parent=0 // pred_check
    _
  $region19: #{decoder_layer.13} parent=0 // pred_check_branch
    %20 = sbr.rel (0) target = $region21
  $region20: #{decoder_layer.13} parent=0 // pred_region
    _
  $region21: #{decoder_layer.13} parent=0 // pred_fallthru
    _
  // Predicated region
  $region22: #{decoder_layer.13} parent=0 // pred_check
    _
  $region23: #{decoder_layer.13} parent=0 // pred_check_branch
    %22 = sbr.rel (0) target = $region25
  $region24: #{decoder_layer.13} parent=0 // pred_region
    _
  $region25: #{decoder_layer.13} parent=0 // pred_fallthru
    _
  %p23 = scmp.eq.s32.totalorder 0, 0
  // Predicated region
  $region26: #{decoder_layer.13} parent=0 // pred_check
    %p24 = pneg %p23
  $region27: #{decoder_layer.13} parent=0 // pred_check_branch
    %26 = sbr.rel (%p24) target = $region29
  $region28: #{decoder_layer.13} parent=0 // pred_region
    %27 = vst [vmem:[%s6] sm:$0xff] 0.0
    %28 = vst [vmem:[%s6 + $0x8] sm:$0xff] 0.0
    %29 = vst [vmem:[%s6 + $0x10] sm:$0xff] 0.0
    %30 = vst [vmem:[%s6 + $0x18] sm:$0xff] 0.0
    %31 = vst [vmem:[%s6 + $0x20] sm:$0xff] 0.0
    %32 = vst [vmem:[%s6 + $0x28] sm:$0xff] 0.0
    %33 = vst [vmem:[%s6 + $0x30] sm:$0xff] 0.0
    %34 = vst [vmem:[%s6 + $0x38] sm:$0xff] 0.0
  $region29: #{decoder_layer.13} parent=0 // pred_fallthru
    _
  %v35 = vld [vmem:[%s6] sm:$0xff]
  %v36 = vld [vmem:[%s6 + $0x8] sm:$0xff]
  %v37 = vld [vmem:[%s6 + $0x10] sm:$0xff]
  %v38 = vld [vmem:[%s6 + $0x18] sm:$0xff]
  %v39 = vld [vmem:[%s6 + $0x20] sm:$0xff]
  %v40 = vld [vmem:[%s6 + $0x28] sm:$0xff]
  %v41 = vld [vmem:[%s6 + $0x30] sm:$0xff]
  %v42 = vld [vmem:[%s6 + $0x38] sm:$0xff]
  %v43 = vld [vmem:[%s0] sm:$0xff]
  %v44 = vld [vmem:[%s0 + $0x8] sm:$0xff]
  %v45 = vld [vmem:[%s0 + $0x10] sm:$0xff]
  %v46 = vld [vmem:[%s0 + $0x18] sm:$0xff]
  %v47 = vld [vmem:[%s1] sm:$0xff]
  %v48 = vld [vmem:[%s1 + $0x8] sm:$0xff]
  %v49 = vld [vmem:[%s1 + $0x10] sm:$0xff]
  %v50 = vld [vmem:[%s1 + $0x18] sm:$0xff]
  %v51 = vld [vmem:[%s1 + $0x20] sm:$0xff]
  %v52 = vld [vmem:[%s1 + $0x28] sm:$0xff]
  %v53 = vld [vmem:[%s1 + $0x30] sm:$0xff]
  %v54 = vld [vmem:[%s1 + $0x38] sm:$0xff]
  %v55 = vld [vmem:[%s1 + $0x40] sm:$0xff]
  %v56 = vld [vmem:[%s1 + $0x48] sm:$0xff]
  %v57 = vld [vmem:[%s1 + $0x50] sm:$0xff]
  %v58 = vld [vmem:[%s1 + $0x58] sm:$0xff]
  %v59 = vld [vmem:[%s1 + $0x60] sm:$0xff]
  %v60 = vld [vmem:[%s1 + $0x68] sm:$0xff]
  %v61 = vld [vmem:[%s1 + $0x70] sm:$0xff]
  %v62 = vld [vmem:[%s1 + $0x78] sm:$0xff]
  %v63 = vld [vmem:[%s1 + $0x80] sm:$0xff]
  %v64 = vld [vmem:[%s1 + $0x88] sm:$0xff]
  %v65 = vld [vmem:[%s1 + $0x90] sm:$0xff]
  %v66 = vld [vmem:[%s1 + $0x98] sm:$0xff]
  %v67 = vld [vmem:[%s1 + $0xa0] sm:$0xff]
  %v68 = vld [vmem:[%s1 + $0xa8] sm:$0xff]
  %v69 = vld [vmem:[%s1 + $0xb0] sm:$0xff]
  %v70 = vld [vmem:[%s1 + $0xb8] sm:$0xff]
  %v71 = vld [vmem:[%s1 + $0xc0] sm:$0xff]
  %v72 = vld [vmem:[%s1 + $0xc8] sm:$0xff]
  %v73 = vld [vmem:[%s1 + $0xd0] sm:$0xff]
  %v74 = vld [vmem:[%s1 + $0xd8] sm:$0xff]
  %v75 = vld [vmem:[%s1 + $0xe0] sm:$0xff]
  %v76 = vld [vmem:[%s1 + $0xe8] sm:$0xff]
  %v77 = vld [vmem:[%s1 + $0xf0] sm:$0xff]
  %v78 = vld [vmem:[%s1 + $0xf8] sm:$0xff]
  %v83 = vunpack.c.l.b16 %v43
  %v84 = vunpack.c.h.b16 %v43
  %v85 = vunpack.c.l.b16 %v44
  %v86 = vunpack.c.h.b16 %v44
  %v87 = vunpack.c.l.b16 %v45
  %v88 = vunpack.c.h.b16 %v45
  %v89 = vunpack.c.l.b16 %v46
  %v90 = vunpack.c.h.b16 %v46
  %v91 = vpack.c.b16 %v85, %v83
  %v92 = vpack.c.b16 %v86, %v84
  %v93 = vpack.c.b16 %v89, %v87
  %v94 = vpack.c.b16 %v90, %v88
  %v131 = vunpack.c.l.b16 %v47
  %v132 = vunpack.c.h.b16 %v47
  %v133 = vunpack.c.l.b16 %v48
  %v134 = vunpack.c.h.b16 %v48
  %v135 = vunpack.c.l.b16 %v49
  %v136 = vunpack.c.h.b16 %v49
  %v137 = vunpack.c.l.b16 %v50
  %v138 = vunpack.c.h.b16 %v50
  %v139 = vunpack.c.l.b16 %v51
  %v140 = vunpack.c.h.b16 %v51
  %v141 = vunpack.c.l.b16 %v52
  %v142 = vunpack.c.h.b16 %v52
  %v143 = vunpack.c.l.b16 %v53
  %v144 = vunpack.c.h.b16 %v53
  %v145 = vunpack.c.l.b16 %v54
  %v146 = vunpack.c.h.b16 %v54
  %v147 = vunpack.c.l.b16 %v55
  %v148 = vunpack.c.h.b16 %v55
  %v149 = vunpack.c.l.b16 %v56
  %v150 = vunpack.c.h.b16 %v56
  %v151 = vunpack.c.l.b16 %v57
  %v152 = vunpack.c.h.b16 %v57
  %v153 = vunpack.c.l.b16 %v58
  %v154 = vunpack.c.h.b16 %v58
  %v155 = vunpack.c.l.b16 %v59
  %v156 = vunpack.c.h.b16 %v59
  %v157 = vunpack.c.l.b16 %v60
  %v158 = vunpack.c.h.b16 %v60
  %v159 = vunpack.c.l.b16 %v61
  %v160 = vunpack.c.h.b16 %v61
  %v161 = vunpack.c.l.b16 %v62
  %v162 = vunpack.c.h.b16 %v62
  %v163 = vunpack.c.l.b16 %v63
  %v164 = vunpack.c.h.b16 %v63
  %v165 = vunpack.c.l.b16 %v64
  %v166 = vunpack.c.h.b16 %v64
  %v167 = vunpack.c.l.b16 %v65
  %v168 = vunpack.c.h.b16 %v65
  %v169 = vunpack.c.l.b16 %v66
  %v170 = vunpack.c.h.b16 %v66
  %v171 = vunpack.c.l.b16 %v67
  %v172 = vunpack.c.h.b16 %v67
  %v173 = vunpack.c.l.b16 %v68
  %v174 = vunpack.c.h.b16 %v68
  %v175 = vunpack.c.l.b16 %v69
  %v176 = vunpack.c.h.b16 %v69
  %v177 = vunpack.c.l.b16 %v70
  %v178 = vunpack.c.h.b16 %v70
  %v179 = vunpack.c.l.b16 %v71
  %v180 = vunpack.c.h.b16 %v71
  %v181 = vunpack.c.l.b16 %v72
  %v182 = vunpack.c.h.b16 %v72
  %v183 = vunpack.c.l.b16 %v73
  %v184 = vunpack.c.h.b16 %v73
  %v185 = vunpack.c.l.b16 %v74
  %v186 = vunpack.c.h.b16 %v74
  %v187 = vunpack.c.l.b16 %v75
  %v188 = vunpack.c.h.b16 %v75
  %v189 = vunpack.c.l.b16 %v76
  %v190 = vunpack.c.h.b16 %v76
  %v191 = vunpack.c.l.b16 %v77
  %v192 = vunpack.c.h.b16 %v77
  %v193 = vunpack.c.l.b16 %v78
  %v194 = vunpack.c.h.b16 %v78
  %v195 = vpack.c.b16 %v133, %v131
  %v196 = vpack.c.b16 %v134, %v132
  %v197 = vpack.c.b16 %v137, %v135
  %v198 = vpack.c.b16 %v138, %v136
  %v199 = vpack.c.b16 %v141, %v139
  %v200 = vpack.c.b16 %v142, %v140
  %v201 = vpack.c.b16 %v145, %v143
  %v202 = vpack.c.b16 %v146, %v144
  %v203 = vpack.c.b16 %v149, %v147
  %v204 = vpack.c.b16 %v150, %v148
  %v205 = vpack.c.b16 %v153, %v151
  %v206 = vpack.c.b16 %v154, %v152
  %v207 = vpack.c.b16 %v157, %v155
  %v208 = vpack.c.b16 %v158, %v156
  %v209 = vpack.c.b16 %v161, %v159
  %v210 = vpack.c.b16 %v162, %v160
  %v211 = vpack.c.b16 %v165, %v163
  %v212 = vpack.c.b16 %v166, %v164
  %v213 = vpack.c.b16 %v169, %v167
  %v214 = vpack.c.b16 %v170, %v168
  %v215 = vpack.c.b16 %v173, %v171
  %v216 = vpack.c.b16 %v174, %v172
  %v217 = vpack.c.b16 %v177, %v175
  %v218 = vpack.c.b16 %v178, %v176
  %v219 = vpack.c.b16 %v181, %v179
  %v220 = vpack.c.b16 %v182, %v180
  %v221 = vpack.c.b16 %v185, %v183
  %v222 = vpack.c.b16 %v186, %v184
  %v223 = vpack.c.b16 %v189, %v187
  %v224 = vpack.c.b16 %v190, %v188
  %v225 = vpack.c.b16 %v193, %v191
  %v226 = vpack.c.b16 %v194, %v192
  %259 = vmatprep.subr.bf16.mxu0 %v196
  %260 = vmatpush1.bf16.msra.mxu0 %v195
  %261 = vmatprep.subr.bf16.mxu0 %v198
  %262 = vmatpush1.bf16.msra.mxu0 %v197
  %263 = vmatprep.subr.bf16.mxu0 %v200
  %264 = vmatpush1.bf16.msra.mxu0 %v199
  %265 = vmatprep.subr.bf16.mxu0 %v202
  %266 = vmatpush1.bf16.msra.mxu0 %v201
  %267 = vmatprep.subr.bf16.mxu0 %v204
  %268 = vmatpush1.bf16.msra.mxu0 %v203
  %269 = vmatprep.subr.bf16.mxu0 %v206
  %270 = vmatpush1.bf16.msra.mxu0 %v205
  %271 = vmatprep.subr.bf16.mxu0 %v208
  %272 = vmatpush1.bf16.msra.mxu0 %v207
  %273 = vmatprep.subr.bf16.mxu0 %v210
  %274 = vmatpush1.bf16.msra.mxu0 %v209
  %275 = vmatprep.subr.bf16.mxu0 %v212
  %276 = vmatpush1.bf16.msra.mxu0 %v211
  %277 = vmatprep.subr.bf16.mxu0 %v214
  %278 = vmatpush1.bf16.msra.mxu0 %v213
  %279 = vmatprep.subr.bf16.mxu0 %v216
  %280 = vmatpush1.bf16.msra.mxu0 %v215
  %281 = vmatprep.subr.bf16.mxu0 %v218
  %282 = vmatpush1.bf16.msra.mxu0 %v217
  %283 = vmatprep.subr.bf16.mxu0 %v220
  %284 = vmatpush1.bf16.msra.mxu0 %v219
  %285 = vmatprep.subr.bf16.mxu0 %v222
  %286 = vmatpush1.bf16.msra.mxu0 %v221
  %287 = vmatprep.subr.bf16.mxu0 %v224
  %288 = vmatpush1.bf16.msra.mxu0 %v223
  %289 = vmatprep.subr.bf16.mxu0 %v226
  %290 = vmatpush1.bf16.msra.mxu0 %v225
  %291 = vmatprep.mubr.bf16.mxu0 %v92
  %292 = vmatmul.mubr.bf16.gmra.mrb[0].mxu0 %v91
  %v293 = vpop.f32.mrb[0].mxu0
  %v294 = vadd.f32 0.0, %v293
  %v295 = vpop.f32.mrb[0].mxu0
  %v296 = vadd.f32 0.0, %v295
  %v297 = vpop.f32.mrb[0].mxu0
  %v298 = vadd.f32 0.0, %v297
  %v299 = vpop.f32.mrb[0].mxu0
  %v300 = vadd.f32 0.0, %v299
  %301 = vmatprep.mubr.bf16.mxu0 %v94
  %302 = vmatmul.mubr.bf16.gmra.mrb[0].mxu0 %v93
  %v303 = vpop.f32.mrb[0].mxu0
  %v304 = vadd.f32 0.0, %v303
  %v305 = vpop.f32.mrb[0].mxu0
  %v306 = vadd.f32 0.0, %v305
  %v307 = vpop.f32.mrb[0].mxu0
  %v308 = vadd.f32 0.0, %v307
  %v309 = vpop.f32.mrb[0].mxu0
  %v310 = vadd.f32 0.0, %v309
  %311 = vdwg.mxu0
  %v312 = vadd.f32 %v35, %v294
  %v313 = vadd.f32 %v36, %v296
  %v314 = vadd.f32 %v37, %v298
  %v315 = vadd.f32 %v38, %v300
  %v316 = vadd.f32 %v39, %v304
  %v317 = vadd.f32 %v40, %v306
  %v318 = vadd.f32 %v41, %v308
  %v319 = vadd.f32 %v42, %v310
  %320 = vst [vmem:[%s6] sm:$0xff] %v312
  %321 = vst [vmem:[%s6 + $0x8] sm:$0xff] %v313
  %322 = vst [vmem:[%s6 + $0x10] sm:$0xff] %v314
  %323 = vst [vmem:[%s6 + $0x18] sm:$0xff] %v315
  %324 = vst [vmem:[%s6 + $0x20] sm:$0xff] %v316
  %325 = vst [vmem:[%s6 + $0x28] sm:$0xff] %v317
  %326 = vst [vmem:[%s6 + $0x30] sm:$0xff] %v318
  %327 = vst [vmem:[%s6 + $0x38] sm:$0xff] %v319
  // Predicated region
  $region30: #{decoder_layer.13} parent=0 // pred_check
    %p328 = pneg %p23
  $region31: #{decoder_layer.13} parent=0 // pred_check_branch
    %330 = sbr.rel (%p328) target = $region33
  $region32: #{decoder_layer.13} parent=0 // pred_region
    %v331 = vld [vmem:[%s6] sm:$0xff]
    %v332 = vld [vmem:[%s6 + $0x8] sm:$0xff]
    %v333 = vld [vmem:[%s6 + $0x10] sm:$0xff]
    %v334 = vld [vmem:[%s6 + $0x18] sm:$0xff]
    %v335 = vld [vmem:[%s6 + $0x20] sm:$0xff]
    %v336 = vld [vmem:[%s6 + $0x28] sm:$0xff]
    %v337 = vld [vmem:[%s6 + $0x30] sm:$0xff]
    %v338 = vld [vmem:[%s6 + $0x38] sm:$0xff]
    %v339 = vld [vmem:[%s2] sm:$0x3]
    %v341 = vlaneseq
    %v342 = vshrl.u32 %v341, 7
    %v343 = vsub.s32 0, %v342
    %v344 = vrot.slane %v339, %v343
    %v345 = vlaneseq
    %v346 = vshrl.u32 %v345, 7
    %v347 = vsub.s32 1, %v346
    %v348 = vrot.slane %v339, %v347
    %v351 = vadd.f32 %v331, %v344
    %v352 = vadd.f32 %v332, %v348
    %v353 = vadd.f32 %v333, %v344
    %v354 = vadd.f32 %v334, %v348
    %v355 = vadd.f32 %v335, %v344
    %v356 = vadd.f32 %v336, %v348
    %v357 = vadd.f32 %v337, %v344
    %v358 = vadd.f32 %v338, %v348
    %v359 = vld [vmem:[%s3] sm:$0xff]
    %v360 = vld [vmem:[%s3 + $0x8] sm:$0xff]
    %v361 = vld [vmem:[%s3 + $0x10] sm:$0xff]
    %v362 = vld [vmem:[%s3 + $0x18] sm:$0xff]
    %v363 = vld [vmem:[%s3 + $0x20] sm:$0xff]
    %v364 = vld [vmem:[%s3 + $0x28] sm:$0xff]
    %v365 = vld [vmem:[%s3 + $0x30] sm:$0xff]
    %v366 = vld [vmem:[%s3 + $0x38] sm:$0xff]
    %v367 = vadd.f32 %v351, %v359
    %v368 = vadd.f32 %v352, %v360
    %v369 = vadd.f32 %v353, %v361
    %v370 = vadd.f32 %v354, %v362
    %v371 = vadd.f32 %v355, %v363
    %v372 = vadd.f32 %v356, %v364
    %v373 = vadd.f32 %v357, %v365
    %v374 = vadd.f32 %v358, %v366
    %v375 = vadd.f32 %v367, %v368
    %376 = vadd.xlane.f32.xlu0 %v375
    %v377 = vpop.xlane.xlu0 %376
    %v378 = vadd.f32 %v369, %v370
    %379 = vadd.xlane.f32.xlu0 %v378
    %v380 = vpop.xlane.xlu0 %379
    %v381 = vadd.f32 %v371, %v372
    %382 = vadd.xlane.f32.xlu0 %v381
    %v383 = vpop.xlane.xlu0 %382
    %v384 = vadd.f32 %v373, %v374
    %385 = vadd.xlane.f32.xlu0 %v384
    %v386 = vpop.xlane.xlu0 %385
    %v387 = vrcp.pop 256.0
    %v388 = vmul.f32 %v377, %v387
    %v389 = vmul.f32 %v380, %v387
    %v390 = vmul.f32 %v383, %v387
    %v391 = vmul.f32 %v386, %v387
    %v392 = vsub.f32 %v367, %v388
    %v393 = vsub.f32 %v368, %v388
    %v394 = vsub.f32 %v369, %v389
    %v395 = vsub.f32 %v370, %v389
    %v396 = vsub.f32 %v371, %v390
    %v397 = vsub.f32 %v372, %v390
    %v398 = vsub.f32 %v373, %v391
    %v399 = vsub.f32 %v374, %v391
    %v400 = vmul.f32 %v392, %v392
    %v401 = vmul.f32 %v393, %v393
    %v402 = vmul.f32 %v394, %v394
    %v403 = vmul.f32 %v395, %v395
    %v404 = vmul.f32 %v396, %v396
    %v405 = vmul.f32 %v397, %v397
    %v406 = vmul.f32 %v398, %v398
    %v407 = vmul.f32 %v399, %v399
    %v408 = vadd.f32 %v400, %v401
    %409 = vadd.xlane.f32.xlu0 %v408
    %v410 = vpop.xlane.xlu0 %409
    %v411 = vadd.f32 %v402, %v403
    %412 = vadd.xlane.f32.xlu0 %v411
    %v413 = vpop.xlane.xlu0 %412
    %v414 = vadd.f32 %v404, %v405
    %415 = vadd.xlane.f32.xlu0 %v414
    %v416 = vpop.xlane.xlu0 %415
    %v417 = vadd.f32 %v406, %v407
    %418 = vadd.xlane.f32.xlu0 %v417
    %v419 = vpop.xlane.xlu0 %418
    %v420 = vmul.f32 %v410, %v387
    %v421 = vmul.f32 %v413, %v387
    %v422 = vmul.f32 %v416, %v387
    %v423 = vmul.f32 %v419, %v387
    %v424 = vadd.f32 %v420, 1e-05
    %v425 = vadd.f32 %v421, 1e-05
    %v426 = vadd.f32 %v422, 1e-05
    %v427 = vadd.f32 %v423, 1e-05
    %v428 = vrsqrt.pop %v424
    %v429 = vrsqrt.pop %v425
    %v430 = vrsqrt.pop %v426
    %v431 = vrsqrt.pop %v427
    %v432 = vmul.f32 %v392, %v428
    %v433 = vmul.f32 %v393, %v428
    %v434 = vmul.f32 %v394, %v429
    %v435 = vmul.f32 %v395, %v429
    %v436 = vmul.f32 %v396, %v430
    %v437 = vmul.f32 %v397, %v430
    %v438 = vmul.f32 %v398, %v431
    %v439 = vmul.f32 %v399, %v431
    %v440 = vld [vmem:[%s4] sm:$0x3]
    %v442 = vlaneseq
    %v443 = vshrl.u32 %v442, 7
    %v444 = vsub.s32 0, %v443
    %v445 = vrot.slane %v440, %v444
    %v446 = vlaneseq
    %v447 = vshrl.u32 %v446, 7
    %v448 = vsub.s32 1, %v447
    %v449 = vrot.slane %v440, %v448
    %v452 = vmul.f32 %v432, %v445
    %v453 = vmul.f32 %v433, %v449
    %v454 = vmul.f32 %v434, %v445
    %v455 = vmul.f32 %v435, %v449
    %v456 = vmul.f32 %v436, %v445
    %v457 = vmul.f32 %v437, %v449
    %v458 = vmul.f32 %v438, %v445
    %v459 = vmul.f32 %v439, %v449
    %v460 = vld [vmem:[%s5] sm:$0x3]
    %v462 = vlaneseq
    %v463 = vshrl.u32 %v462, 7
    %v464 = vsub.s32 0, %v463
    %v465 = vrot.slane %v460, %v464
    %v466 = vlaneseq
    %v467 = vshrl.u32 %v466, 7
    %v468 = vsub.s32 1, %v467
    %v469 = vrot.slane %v460, %v468
    %v472 = vadd.f32 %v452, %v465
    %v473 = vadd.f32 %v453, %v469
    %v474 = vadd.f32 %v454, %v465
    %v475 = vadd.f32 %v455, %v469
    %v476 = vadd.f32 %v456, %v465
    %v477 = vadd.f32 %v457, %v469
    %v478 = vadd.f32 %v458, %v465
    %v479 = vadd.f32 %v459, %v469
    %480 = vst [vmem:[%s6] sm:$0xff] %v472
    %481 = vst [vmem:[%s6 + $0x8] sm:$0xff] %v473
    %482 = vst [vmem:[%s6 + $0x10] sm:$0xff] %v474
    %483 = vst [vmem:[%s6 + $0x18] sm:$0xff] %v475
    %484 = vst [vmem:[%s6 + $0x20] sm:$0xff] %v476
    %485 = vst [vmem:[%s6 + $0x28] sm:$0xff] %v477
    %486 = vst [vmem:[%s6 + $0x30] sm:$0xff] %v478
    %487 = vst [vmem:[%s6 + $0x38] sm:$0xff] %v479
  $region33: #{decoder_layer.13} parent=0 // pred_fallthru
    _
  // Predicated region
  $region34: #{decoder_layer.13} parent=0 // pred_check
    _
  $region35: #{decoder_layer.13} parent=0 // pred_check_branch
    %489 = sbr.rel (0) target = $region37
  $region36: #{decoder_layer.13} parent=0 // pred_region
    _
  $region37: #{decoder_layer.13} parent=0 // pred_fallthru
    _
  // Predicated region
  $region38: #{decoder_layer.13} parent=0 // pred_check
    _
  $region39: #{decoder_layer.13} parent=0 // pred_check_branch
    %491 = sbr.rel (0) target = $region41
  $region40: #{decoder_layer.13} parent=0 // pred_region
    _
  $region41: #{decoder_layer.13} parent=0 // pred_fallthru
    _

// kernel: decoder_layer.10
$region0: #{decoder_layer.10}
  #allocation0 [shape = 'u32[]', space=smem, size = 0x4, offset = 0x4, fixed_abs, tag = 'smem constant byte address 0x4 - core index']
  #allocation1 [shape = 'u32[144,128]{1,0:T(1,128)}', space=vmem, size = 0x12000, scoped, tag = 'internal scratch']
  #allocation2 [shape = 'f32[32,256]{1,0:T(8,128)}', space=vmem, size = 0x8000, scoped, tag = 'scratch operand']
  %s0 = inlined_call_operand.hbm [shape: f32[32,256], index: 0, kind: input, shape index: {}]
  %s1 = inlined_call_operand.hbm [shape: bf16[256,256], index: 1, kind: input, shape index: {}]
  %s2 = inlined_call_operand.vmem [shape: f32[1,256], index: 2, kind: input, shape index: {}]
  %s3 = inlined_call_operand.vmem [shape: bf16[32,256], index: 3, kind: output, shape index: {}]
  %s4 = sld [smem:[#allocation0]]
  $region38: #{decoder_layer.10} parent=0
    _
  %s6 = ssub.s32 1, %s4
  %s7 = scalar_select 0, %s6, %s4
  $region1: #{decoder_layer.10} parent=0
    #allocation3 [shape = 'u8[32768]{0}', space=vmem, size = 0x8000, scoped, tag = 'input window, operand 0, single buffered']
    #allocation4 [shape = 's32[1]{0}', space=sflag, size = 0x4, scoped, tag = 'scoped memory for decoder_layer.10']
    #allocation5 [shape = 'u8[131072]{0}', space=vmem, size = 0x20000, scoped, tag = 'input window, operand 1, single buffered']
    #allocation6 [shape = 's32[1]{0}', space=sflag, size = 0x4, scoped, tag = 'scoped memory for decoder_layer.10']
    %8 = vsyncpa [#allocation4], 0
    %9 = vsyncpa [#allocation6], 0
    // Predicated region
    $region2: #{decoder_layer.10} parent=1 // pred_check
      _
    $region3: #{decoder_layer.10} parent=1 // pred_check_branch
      %11 = sbr.rel (0) target = $region5
    $region4: #{decoder_layer.10} parent=1 // pred_region
      %s13 = ssub.s32 1024, 1024
      %14 = vsyncadd [#allocation4], %s13
      %s15 = sshll.u32 [#allocation3], 4
      %s16 = int_to_ptr.vmem [resolvable:$true] %s15
      %21 = dma.hbm_to_vmem [thread:$0]  %s0, 1024, %s16, [#allocation4], 256, 256, 16
    $region5: #{decoder_layer.10} parent=1 // pred_fallthru
      _
    // Predicated region
    $region6: #{decoder_layer.10} parent=1 // pred_check
      _
    $region7: #{decoder_layer.10} parent=1 // pred_check_branch
      %23 = sbr.rel (0) target = $region9
    $region8: #{decoder_layer.10} parent=1 // pred_region
      %s25 = ssub.s32 4096, 4096
      %26 = vsyncadd [#allocation6], %s25
      %s27 = sshll.u32 [#allocation5], 4
      %s28 = int_to_ptr.vmem [resolvable:$true] %s27
      %33 = dma.hbm_to_vmem [thread:$0]  %s1, 4096, %s28, [#allocation6], 128, 128, 8
    $region9: #{decoder_layer.10} parent=1 // pred_fallthru
      _
    // Predicated region
    $region10: #{decoder_layer.10} parent=1 // pred_check
      _
    $region11: #{decoder_layer.10} parent=1 // pred_check_branch
      %35 = sbr.rel (0) target = $region13
    $region12: #{decoder_layer.10} parent=1 // pred_region
      _
    $region13: #{decoder_layer.10} parent=1 // pred_fallthru
      _
    // Predicated region
    $region14: #{decoder_layer.10} parent=1 // pred_check
      _
    $region15: #{decoder_layer.10} parent=1 // pred_check_branch
      %37 = sbr.rel (0) target = $region17
    $region16: #{decoder_layer.10} parent=1 // pred_region
      %38 = dma.done [#allocation4], 1024
    $region17: #{decoder_layer.10} parent=1 // pred_fallthru
      _
    // Predicated region
    $region18: #{decoder_layer.10} parent=1 // pred_check
      _
    $region19: #{decoder_layer.10} parent=1 // pred_check_branch
      %40 = sbr.rel (0) target = $region21
    $region20: #{decoder_layer.10} parent=1 // pred_region
      %41 = dma.done [#allocation6], 4096
    $region21: #{decoder_layer.10} parent=1 // pred_fallthru
      _
    %p42 = scmp.eq.s32.totalorder 0, 0
    // Predicated region
    $region22: #{decoder_layer.10} parent=1 // pred_check
      %p43 = pneg %p42
    $region23: #{decoder_layer.10} parent=1 // pred_check_branch
      %45 = sbr.rel (%p43) target = $region25
    $region24: #{decoder_layer.10} parent=1 // pred_region
      %46 = vst [vmem:[#allocation2] sm:$0xff] 0.0
      %47 = vst [vmem:[#allocation2 + $0x8] sm:$0xff] 0.0
      %48 = vst [vmem:[#allocation2 + $0x10] sm:$0xff] 0.0
      %49 = vst [vmem:[#allocation2 + $0x18] sm:$0xff] 0.0
      %50 = vst [vmem:[#allocation2 + $0x20] sm:$0xff] 0.0
      %51 = vst [vmem:[#allocation2 + $0x28] sm:$0xff] 0.0
      %52 = vst [vmem:[#allocation2 + $0x30] sm:$0xff] 0.0
      %53 = vst [vmem:[#allocation2 + $0x38] sm:$0xff] 0.0
    $region25: #{decoder_layer.10} parent=1 // pred_fallthru
      _
    %v54 = vld [vmem:[#allocation2] sm:$0xff]
    %v55 = vld [vmem:[#allocation2 + $0x8] sm:$0xff]
    %v56 = vld [vmem:[#allocation2 + $0x10] sm:$0xff]
    %v57 = vld [vmem:[#allocation2 + $0x18] sm:$0xff]
    %v58 = vld [vmem:[#allocation2 + $0x20] sm:$0xff]
    %v59 = vld [vmem:[#allocation2 + $0x28] sm:$0xff]
    %v60 = vld [vmem:[#allocation2 + $0x30] sm:$0xff]
    %v61 = vld [vmem:[#allocation2 + $0x38] sm:$0xff]
    %v62 = vld [vmem:[#allocation3] sm:$0xff]
    %v63 = vld [vmem:[#allocation3 + $0x8] sm:$0xff]
    %v64 = vld [vmem:[#allocation3 + $0x10] sm:$0xff]
    %v65 = vld [vmem:[#allocation3 + $0x18] sm:$0xff]
    %v66 = vld [vmem:[#allocation3 + $0x20] sm:$0xff]
    %v67 = vld [vmem:[#allocation3 + $0x28] sm:$0xff]
    %v68 = vld [vmem:[#allocation3 + $0x30] sm:$0xff]
    %v69 = vld [vmem:[#allocation3 + $0x38] sm:$0xff]
    %v70 = vpack.c.bf16 %v64, %v62
    %v71 = vpack.c.bf16 %v65, %v63
    %v72 = vpack.c.bf16 %v68, %v66
    %v73 = vpack.c.bf16 %v69, %v67
    %v74 = vld [vmem:[#allocation5] sm:$0xff]
    %v75 = vld [vmem:[#allocation5 + $0x8] sm:$0xff]
    %v76 = vld [vmem:[#allocation5 + $0x10] sm:$0xff]
    %v77 = vld [vmem:[#allocation5 + $0x18] sm:$0xff]
    %v78 = vld [vmem:[#allocation5 + $0x20] sm:$0xff]
    %v79 = vld [vmem:[#allocation5 + $0x28] sm:$0xff]
    %v80 = vld [vmem:[#allocation5 + $0x30] sm:$0xff]
    %v81 = vld [vmem:[#allocation5 + $0x38] sm:$0xff]
    %v82 = vld [vmem:[#allocation5 + $0x40] sm:$0xff]
    %v83 = vld [vmem:[#allocation5 + $0x48] sm:$0xff]
    %v84 = vld [vmem:[#allocation5 + $0x50] sm:$0xff]
    %v85 = vld [vmem:[#allocation5 + $0x58] sm:$0xff]
    %v86 = vld [vmem:[#allocation5 + $0x60] sm:$0xff]
    %v87 = vld [vmem:[#allocation5 + $0x68] sm:$0xff]
    %v88 = vld [vmem:[#allocation5 + $0x70] sm:$0xff]
    %v89 = vld [vmem:[#allocation5 + $0x78] sm:$0xff]
    %v90 = vld [vmem:[#allocation5 + $0x80] sm:$0xff]
    %v91 = vld [vmem:[#allocation5 + $0x88] sm:$0xff]
    %v92 = vld [vmem:[#allocation5 + $0x90] sm:$0xff]
    %v93 = vld [vmem:[#allocation5 + $0x98] sm:$0xff]
    %v94 = vld [vmem:[#allocation5 + $0xa0] sm:$0xff]
    %v95 = vld [vmem:[#allocation5 + $0xa8] sm:$0xff]
    %v96 = vld [vmem:[#allocation5 + $0xb0] sm:$0xff]
    %v97 = vld [vmem:[#allocation5 + $0xb8] sm:$0xff]
    %v98 = vld [vmem:[#allocation5 + $0xc0] sm:$0xff]
    %v99 = vld [vmem:[#allocation5 + $0xc8] sm:$0xff]
    %v100 = vld [vmem:[#allocation5 + $0xd0] sm:$0xff]
    %v101 = vld [vmem:[#allocation5 + $0xd8] sm:$0xff]
    %v102 = vld [vmem:[#allocation5 + $0xe0] sm:$0xff]
    %v103 = vld [vmem:[#allocation5 + $0xe8] sm:$0xff]
    %v104 = vld [vmem:[#allocation5 + $0xf0] sm:$0xff]
    %v105 = vld [vmem:[#allocation5 + $0xf8] sm:$0xff]
    %v138 = vunpack.c.l.b16 %v74
    %v139 = vunpack.c.h.b16 %v74
    %v140 = vunpack.c.l.b16 %v75
    %v141 = vunpack.c.h.b16 %v75
    %v142 = vunpack.c.l.b16 %v76
    %v143 = vunpack.c.h.b16 %v76
    %v144 = vunpack.c.l.b16 %v77
    %v145 = vunpack.c.h.b16 %v77
    %v146 = vunpack.c.l.b16 %v78
    %v147 = vunpack.c.h.b16 %v78
    %v148 = vunpack.c.l.b16 %v79
    %v149 = vunpack.c.h.b16 %v79
    %v150 = vunpack.c.l.b16 %v80
    %v151 = vunpack.c.h.b16 %v80
    %v152 = vunpack.c.l.b16 %v81
    %v153 = vunpack.c.h.b16 %v81
    %v154 = vunpack.c.l.b16 %v82
    %v155 = vunpack.c.h.b16 %v82
    %v156 = vunpack.c.l.b16 %v83
    %v157 = vunpack.c.h.b16 %v83
    %v158 = vunpack.c.l.b16 %v84
    %v159 = vunpack.c.h.b16 %v84
    %v160 = vunpack.c.l.b16 %v85
    %v161 = vunpack.c.h.b16 %v85
    %v162 = vunpack.c.l.b16 %v86
    %v163 = vunpack.c.h.b16 %v86
    %v164 = vunpack.c.l.b16 %v87
    %v165 = vunpack.c.h.b16 %v87
    %v166 = vunpack.c.l.b16 %v88
    %v167 = vunpack.c.h.b16 %v88
    %v168 = vunpack.c.l.b16 %v89
    %v169 = vunpack.c.h.b16 %v89
    %v170 = vunpack.c.l.b16 %v90
    %v171 = vunpack.c.h.b16 %v90
    %v172 = vunpack.c.l.b16 %v91
    %v173 = vunpack.c.h.b16 %v91
    %v174 = vunpack.c.l.b16 %v92
    %v175 = vunpack.c.h.b16 %v92
    %v176 = vunpack.c.l.b16 %v93
    %v177 = vunpack.c.h.b16 %v93
    %v178 = vunpack.c.l.b16 %v94
    %v179 = vunpack.c.h.b16 %v94
    %v180 = vunpack.c.l.b16 %v95
    %v181 = vunpack.c.h.b16 %v95
    %v182 = vunpack.c.l.b16 %v96
    %v183 = vunpack.c.h.b16 %v96
    %v184 = vunpack.c.l.b16 %v97
    %v185 = vunpack.c.h.b16 %v97
    %v186 = vunpack.c.l.b16 %v98
    %v187 = vunpack.c.h.b16 %v98
    %v188 = vunpack.c.l.b16 %v99
    %v189 = vunpack.c.h.b16 %v99
    %v190 = vunpack.c.l.b16 %v100
    %v191 = vunpack.c.h.b16 %v100
    %v192 = vunpack.c.l.b16 %v101
    %v193 = vunpack.c.h.b16 %v101
    %v194 = vunpack.c.l.b16 %v102
    %v195 = vunpack.c.h.b16 %v102
    %v196 = vunpack.c.l.b16 %v103
    %v197 = vunpack.c.h.b16 %v103
    %v198 = vunpack.c.l.b16 %v104
    %v199 = vunpack.c.h.b16 %v104
    %v200 = vunpack.c.l.b16 %v105
    %v201 = vunpack.c.h.b16 %v105
    %v202 = vpack.c.b16 %v140, %v138
    %v203 = vpack.c.b16 %v141, %v139
    %v204 = vpack.c.b16 %v144, %v142
    %v205 = vpack.c.b16 %v145, %v143
    %v206 = vpack.c.b16 %v148, %v146
    %v207 = vpack.c.b16 %v149, %v147
    %v208 = vpack.c.b16 %v152, %v150
    %v209 = vpack.c.b16 %v153, %v151
    %v210 = vpack.c.b16 %v156, %v154
    %v211 = vpack.c.b16 %v157, %v155
    %v212 = vpack.c.b16 %v160, %v158
    %v213 = vpack.c.b16 %v161, %v159
    %v214 = vpack.c.b16 %v164, %v162
    %v215 = vpack.c.b16 %v165, %v163
    %v216 = vpack.c.b16 %v168, %v166
    %v217 = vpack.c.b16 %v169, %v167
    %v218 = vpack.c.b16 %v172, %v170
    %v219 = vpack.c.b16 %v173, %v171
    %v220 = vpack.c.b16 %v176, %v174
    %v221 = vpack.c.b16 %v177, %v175
    %v222 = vpack.c.b16 %v180, %v178
    %v223 = vpack.c.b16 %v181, %v179
    %v224 = vpack.c.b16 %v184, %v182
    %v225 = vpack.c.b16 %v185, %v183
    %v226 = vpack.c.b16 %v188, %v186
    %v227 = vpack.c.b16 %v189, %v187
    %v228 = vpack.c.b16 %v192, %v190
    %v229 = vpack.c.b16 %v193, %v191
    %v230 = vpack.c.b16 %v196, %v194
    %v231 = vpack.c.b16 %v197, %v195
    %v232 = vpack.c.b16 %v200, %v198
    %v233 = vpack.c.b16 %v201, %v199
    %266 = vmatprep.subr.bf16.mxu0 %v203
    %267 = vmatpush1.bf16.msra.mxu0 %v202
    %268 = vmatprep.subr.bf16.mxu0 %v205
    %269 = vmatpush1.bf16.msra.mxu0 %v204
    %270 = vmatprep.subr.bf16.mxu0 %v207
    %271 = vmatpush1.bf16.msra.mxu0 %v206
    %272 = vmatprep.subr.bf16.mxu0 %v209
    %273 = vmatpush1.bf16.msra.mxu0 %v208
    %274 = vmatprep.subr.bf16.mxu0 %v211
    %275 = vmatpush1.bf16.msra.mxu0 %v210
    %276 = vmatprep.subr.bf16.mxu0 %v213
    %277 = vmatpush1.bf16.msra.mxu0 %v212
    %278 = vmatprep.subr.bf16.mxu0 %v215
    %279 = vmatpush1.bf16.msra.mxu0 %v214
    %280 = vmatprep.subr.bf16.mxu0 %v217
    %281 = vmatpush1.bf16.msra.mxu0 %v216
    %282 = vmatprep.subr.bf16.mxu0 %v219
    %283 = vmatpush1.bf16.msra.mxu0 %v218
    %284 = vmatprep.subr.bf16.mxu0 %v221
    %285 = vmatpush1.bf16.msra.mxu0 %v220
    %286 = vmatprep.subr.bf16.mxu0 %v223
    %287 = vmatpush1.bf16.msra.mxu0 %v222
    %288 = vmatprep.subr.bf16.mxu0 %v225
    %289 = vmatpush1.bf16.msra.mxu0 %v224
    %290 = vmatprep.subr.bf16.mxu0 %v227
    %291 = vmatpush1.bf16.msra.mxu0 %v226
    %292 = vmatprep.subr.bf16.mxu0 %v229
    %293 = vmatpush1.bf16.msra.mxu0 %v228
    %294 = vmatprep.subr.bf16.mxu0 %v231
    %295 = vmatpush1.bf16.msra.mxu0 %v230
    %296 = vmatprep.subr.bf16.mxu0 %v233
    %297 = vmatpush1.bf16.msra.mxu0 %v232
    %298 = vmatprep.mubr.bf16.mxu0 %v71
    %299 = vmatmul.mubr.bf16.gmra.mrb[0].mxu0 %v70
    %v300 = vpop.f32.mrb[0].mxu0
    %v301 = vadd.f32 0.0, %v300
    %v302 = vpop.f32.mrb[0].mxu0
    %v303 = vadd.f32 0.0, %v302
    %v304 = vpop.f32.mrb[0].mxu0
    %v305 = vadd.f32 0.0, %v304
    %v306 = vpop.f32.mrb[0].mxu0
    %v307 = vadd.f32 0.0, %v306
    %308 = vmatprep.mubr.bf16.mxu0 %v73
    %309 = vmatmul.mubr.bf16.gmra.mrb[0].mxu0 %v72
    %v310 = vpop.f32.mrb[0].mxu0
    %v311 = vadd.f32 0.0, %v310
    %v312 = vpop.f32.mrb[0].mxu0
    %v313 = vadd.f32 0.0, %v312
    %v314 = vpop.f32.mrb[0].mxu0
    %v315 = vadd.f32 0.0, %v314
    %v316 = vpop.f32.mrb[0].mxu0
    %v317 = vadd.f32 0.0, %v316
    %318 = vdwg.mxu0
    %v319 = vadd.f32 %v54, %v301
    %v320 = vadd.f32 %v55, %v303
    %v321 = vadd.f32 %v56, %v305
    %v322 = vadd.f32 %v57, %v307
    %v323 = vadd.f32 %v58, %v311
    %v324 = vadd.f32 %v59, %v313
    %v325 = vadd.f32 %v60, %v315
    %v326 = vadd.f32 %v61, %v317
    %327 = vst [vmem:[#allocation2] sm:$0xff] %v319
    %328 = vst [vmem:[#allocation2 + $0x8] sm:$0xff] %v320
    %329 = vst [vmem:[#allocation2 + $0x10] sm:$0xff] %v321
    %330 = vst [vmem:[#allocation2 + $0x18] sm:$0xff] %v322
    %331 = vst [vmem:[#allocation2 + $0x20] sm:$0xff] %v323
    %332 = vst [vmem:[#allocation2 + $0x28] sm:$0xff] %v324
    %333 = vst [vmem:[#allocation2 + $0x30] sm:$0xff] %v325
    %334 = vst [vmem:[#allocation2 + $0x38] sm:$0xff] %v326
    // Predicated region
    $region26: #{decoder_layer.10} parent=1 // pred_check
      %p335 = pneg %p42
    $region27: #{decoder_layer.10} parent=1 // pred_check_branch
      %337 = sbr.rel (%p335) target = $region29
    $region28: #{decoder_layer.10} parent=1 // pred_region
      %v338 = vld [vmem:[#allocation2] sm:$0xff]
      %v339 = vld [vmem:[#allocation2 + $0x8] sm:$0xff]
      %v340 = vld [vmem:[#allocation2 + $0x10] sm:$0xff]
      %v341 = vld [vmem:[#allocation2 + $0x18] sm:$0xff]
      %v342 = vld [vmem:[#allocation2 + $0x20] sm:$0xff]
      %v343 = vld [vmem:[#allocation2 + $0x28] sm:$0xff]
      %v344 = vld [vmem:[#allocation2 + $0x30] sm:$0xff]
      %v345 = vld [vmem:[#allocation2 + $0x38] sm:$0xff]
      %v346 = vld [vmem:[%s2] sm:$0x3]
      %v348 = vlaneseq
      %v349 = vshrl.u32 %v348, 7
      %v350 = vsub.s32 0, %v349
      %v351 = vrot.slane %v346, %v350
      %v352 = vlaneseq
      %v353 = vshrl.u32 %v352, 7
      %v354 = vsub.s32 1, %v353
      %v355 = vrot.slane %v346, %v354
      %v358 = vadd.f32 %v338, %v351
      %v359 = vadd.f32 %v339, %v355
      %v360 = vadd.f32 %v340, %v351
      %v361 = vadd.f32 %v341, %v355
      %v362 = vadd.f32 %v342, %v351
      %v363 = vadd.f32 %v343, %v355
      %v364 = vadd.f32 %v344, %v351
      %v365 = vadd.f32 %v345, %v355
      %v366 = vpack.c.bf16 %v360, %v358
      %v367 = vpack.c.bf16 %v361, %v359
      %v368 = vpack.c.bf16 %v364, %v362
      %v369 = vpack.c.bf16 %v365, %v363
      %v374 = vunpack.c.l.b16 %v366
      %v375 = vunpack.c.l.b16 %v367
      %v376 = vunpack.c.h.b16 %v366
      %v377 = vunpack.c.h.b16 %v367
      %v378 = vunpack.c.l.b16 %v368
      %v379 = vunpack.c.l.b16 %v369
      %v380 = vunpack.c.h.b16 %v368
      %v381 = vunpack.c.h.b16 %v369
      %v382 = vpack.c.b16 %v375, %v374
      %v383 = vpack.c.b16 %v377, %v376
      %v384 = vpack.c.b16 %v379, %v378
      %v385 = vpack.c.b16 %v381, %v380
      %390 = vst [vmem:[%s3] sm:$0xff] %v382
      %391 = vst [vmem:[%s3 + $0x8] sm:$0xff] %v383
      %392 = vst [vmem:[%s3 + $0x10] sm:$0xff] %v384
      %393 = vst [vmem:[%s3 + $0x18] sm:$0xff] %v385
    $region29: #{decoder_layer.10} parent=1 // pred_fallthru
      _
    // Predicated region
    $region30: #{decoder_layer.10} parent=1 // pred_check
      _
    $region31: #{decoder_layer.10} parent=1 // pred_check_branch
      %395 = sbr.rel (0) target = $region33
    $region32: #{decoder_layer.10} parent=1 // pred_region
      _
    $region33: #{decoder_layer.10} parent=1 // pred_fallthru
      _
    // Predicated region
    $region34: #{decoder_layer.10} parent=1 // pred_check
      _
    $region35: #{decoder_layer.10} parent=1 // pred_check_branch
      %397 = sbr.rel (0) target = $region37
    $region36: #{decoder_layer.10} parent=1 // pred_region
      _
    $region37: #{decoder_layer.10} parent=1 // pred_fallthru
      _
    %398 = vsyncpa [#allocation4], 1
    %399 = vsyncpa [#allocation6], 1

// kernel: decoder_layer.12
$region0: #{decoder_layer.12}
  #allocation0 [shape = 'u32[]', space=smem, size = 0x4, offset = 0x4, fixed_abs, tag = 'smem constant byte address 0x4 - core index']
  #allocation1 [shape = 'u32[144,128]{1,0:T(1,128)}', space=vmem, size = 0x12000, scoped, tag = 'internal scratch']
  #allocation2 [shape = 'f32[2,16,1]{2,1,0:T(8,128)}', space=vmem, size = 0x4000, scoped, tag = 'scratch operand']
  #allocation3 [shape = 'f32[2,16,1]{2,1,0:T(8,128)}', space=vmem, size = 0x4000, scoped, tag = 'scratch operand']
  #allocation4 [shape = 'f32[2,16,128]{2,1,0:T(8,128)}', space=vmem, size = 0x4000, scoped, tag = 'scratch operand']
  %s0 = inlined_call_operand.vmem [shape: bf16[2,16,256], index: 0, kind: input, shape index: {}]
  %s1 = inlined_call_operand.vmem [shape: bf16[2,16,512], index: 1, kind: input, shape index: {}]
  %s2 = inlined_call_operand.vmem [shape: bf16[2,16,256], index: 2, kind: output, shape index: {}]
  %s3 = sld [smem:[#allocation0]]
  $region49: #{decoder_layer.12} parent=0
    _
  %s5 = ssub.s32 1, %s3
  %s6 = scalar_select 0, %s5, %s3
  loop: start=0, step=1, limit=4
  $region2: #{decoder_layer.12} parent=0 // loop_pre_header
    _
  $region3: #{decoder_layer.12} parent=0 // loop_header
    %s8 = sphi 0, %s12
    %p9 = scmp.ge.s32.totalorder %s8, 4
    %s15 = sphi 0, %s34
    %s16 = sphi 0, %s30
    %s17 = sphi 0, %s26
    %s18 = sphi 0, %s15
    %s19 = sphi 0, %s16
    %s20 = sphi 0, %s17
    %s21 = sphi 0, %s18
    %s22 = sphi 0, %s19
    %s23 = sphi 0, %s20
    %s39 = sphi 0, %s41
    %s42 = sphi 0, %s39
    %s43 = sphi 0, %s42
    %s59 = sphi 0, %s43
    %s67 = sphi 0, %s69
    %s70 = sphi 0, %s67
    %s71 = sphi 0, %s70
    %s87 = sphi 0, %s71
    %s95 = sphi 0, %s97
    %s98 = sphi 0, %s95
    %s99 = sphi 0, %s98
    %s115 = sphi 0, %s99
  $region4: #{decoder_layer.12} parent=0 // loop_header_branch
    %11 = sbr.rel (%p9) target = $region8
  $region5: #{decoder_layer.12} parent=0 // loop_body
    %s13 = ssub.s32 %s8, 1
    %s14 = ssub.s32 %s8, 2
    %s24 = sadd.s32 1, %s17
    %p25 = scmp.ge.s32.totalorder %s24, 1
    %s26 = scalar_select %p25, 0, %s24
    %s27 = sadd.s32 1, %s16
    %s28 = scalar_select %p25, %s27, %s16
    %p29 = scmp.ge.s32.totalorder %s28, 1
    %s30 = scalar_select %p29, 0, %s28
    %s31 = sadd.s32 1, %s15
    %s32 = scalar_select %p29, %s31, %s15
    %p33 = scmp.ge.s32.totalorder %s32, 2
    %s34 = scalar_select %p33, 0, %s32
    %s35 = ssub.s32 %s15, %s34
    %s36 = ssub.s32 %s16, %s30
    %s37 = sor.u32 %s35, %s36
    %p38 = scmp.eq.s32.totalorder %s37, 0
    %s40 = sadd.s32 %s39, 1
    %s41 = scalar_select %p38, %s39, %s40
    %p44 = pneg %p38
    %p45 = scmp.eq.s32.totalorder %s8, 1
    %p46 = por %p44, %p45
    %p47 = scmp.ne.s32.totalorder %s39, %s42
    %p48 = scmp.eq.s32.totalorder %s8, 0
    %p49 = por %p47, %p48
    %p50 = scmp.ne.s32.totalorder %s39, %s42
    %p51 = scmp.eq.s32.totalorder %s13, 1
    %p52 = por %p50, %p51
    %p53 = scmp.ne.s32.totalorder %s42, %s43
    %p54 = scmp.eq.s32.totalorder %s13, 0
    %p55 = por %p53, %p54
    %p56 = scmp.ne.s32.totalorder %s42, %s43
    %p57 = scmp.eq.s32.totalorder %s14, 1
    %p58 = por %p56, %p57
    %p60 = scmp.ne.s32.totalorder %s43, %s59
    %p61 = scmp.eq.s32.totalorder %s14, 0
    %p62 = por %p60, %p61
    %s63 = ssub.s32 %s15, %s34
    %s64 = ssub.s32 %s17, %s26
    %s65 = sor.u32 %s63, %s64
    %p66 = scmp.eq.s32.totalorder %s65, 0
    %s68 = sadd.s32 %s67, 1
    %s69 = scalar_select %p66, %s67, %s68
    %p72 = pneg %p66
    %p73 = scmp.eq.s32.totalorder %s8, 1
    %p74 = por %p72, %p73
    %p75 = scmp.ne.s32.totalorder %s67, %s70
    %p76 = scmp.eq.s32.totalorder %s8, 0
    %p77 = por %p75, %p76
    %p78 = scmp.ne.s32.totalorder %s67, %s70
    %p79 = scmp.eq.s32.totalorder %s13, 1
    %p80 = por %p78, %p79
    %p81 = scmp.ne.s32.totalorder %s70, %s71
    %p82 = scmp.eq.s32.totalorder %s13, 0
    %p83 = por %p81, %p82
    %p84 = scmp.ne.s32.totalorder %s70, %s71
    %p85 = scmp.eq.s32.totalorder %s14, 1
    %p86 = por %p84, %p85
    %p88 = scmp.ne.s32.totalorder %s71, %s87
    %p89 = scmp.eq.s32.totalorder %s14, 0
    %p90 = por %p88, %p89
    %s91 = ssub.s32 %s15, %s34
    %s92 = ssub.s32 %s16, %s30
    %s93 = sor.u32 %s91, %s92
    %p94 = scmp.eq.s32.totalorder %s93, 0
    %s96 = sadd.s32 %s95, 1
    %s97 = scalar_select %p94, %s95, %s96
    %p100 = pneg %p94
    %p101 = scmp.eq.s32.totalorder %s8, 1
    %p102 = por %p100, %p101
    %p103 = scmp.ne.s32.totalorder %s95, %s98
    %p104 = scmp.eq.s32.totalorder %s8, 0
    %p105 = por %p103, %p104
    %p106 = scmp.ne.s32.totalorder %s95, %s98
    %p107 = scmp.eq.s32.totalorder %s13, 1
    %p108 = por %p106, %p107
    %p109 = scmp.ne.s32.totalorder %s98, %s99
    %p110 = scmp.eq.s32.totalorder %s13, 0
    %p111 = por %p109, %p110
    %p112 = scmp.ne.s32.totalorder %s98, %s99
    %p113 = scmp.eq.s32.totalorder %s14, 1
    %p114 = por %p112, %p113
    %p116 = scmp.ne.s32.totalorder %s99, %s115
    %p117 = scmp.eq.s32.totalorder %s14, 0
    %p118 = por %p116, %p117
    %p119 = scmp.le.s32.totalorder 1, %s8
    %p120 = scmp.lt.s32.totalorder %s8, 3
    %p121 = pnand %p119, %p120
    %p122 = pneg %p121
    // Predicated region
    $region9: #{decoder_layer.12} parent=5 // pred_check
      _
    $region10: #{decoder_layer.12} parent=5 // pred_check_branch
      %124 = sbr.rel (%p121) target = $region12
    $region11: #{decoder_layer.12} parent=5 // pred_region
      %s125 = ssub.s32 %s8, 1
    $region12: #{decoder_layer.12} parent=5 // pred_fallthru
      _
    %p126 = scmp.lt.s32.totalorder %s8, 2
    // Predicated region
    $region13: #{decoder_layer.12} parent=5 // pred_check
      %p127 = pneg %p126
    $region14: #{decoder_layer.12} parent=5 // pred_check_branch
      %129 = sbr.rel (%p127) target = $region16
    $region15: #{decoder_layer.12} parent=5 // pred_region
      // Predicated region
      $region17: #{decoder_layer.12} parent=15 // pred_check
        %p130 = pneg %p49
      $region18: #{decoder_layer.12} parent=15 // pred_check_branch
        %132 = sbr.rel (%p130) target = $region20
      $region19: #{decoder_layer.12} parent=15 // pred_region
        %s133 = smul.u32 2, %s16
        %p134 = scmp.lt.s32.totalorder %s15, 1
        %s135 = scalar_select %p134, %s15, 1
        %p136 = scmp.lt.s32.totalorder %s133, 1
        %s137 = scalar_select %p136, %s133, 1
        %s138 = smul.addr %s137, 2
        %s139 = smul.addr %s135, 4
        %s140 = sadd.s32 %s138, %s139
        %s141 = smul.addr %s140, 4
        %s142 = scalar_lea.vmem %s0, %s141
        %s143 = smul.u32 2, %s16
      $region20: #{decoder_layer.12} parent=15 // pred_fallthru
        _
      // Predicated region
      $region21: #{decoder_layer.12} parent=15 // pred_check
        %p144 = pneg %p77
      $region22: #{decoder_layer.12} parent=15 // pred_check_branch
        %146 = sbr.rel (%p144) target = $region24
      $region23: #{decoder_layer.12} parent=15 // pred_region
        %s147 = smul.u32 2, %s17
        %p148 = scmp.lt.s32.totalorder %s15, 1
        %s149 = scalar_select %p148, %s15, 1
        %p150 = scmp.lt.s32.totalorder %s147, 1
        %s151 = scalar_select %p150, %s147, 1
        %s152 = smul.addr %s151, 4
        %s153 = smul.addr %s149, 8
        %s154 = sadd.s32 %s152, %s153
        %s155 = smul.addr %s154, 4
        %s156 = scalar_lea.vmem %s1, %s155
        %s157 = smul.u32 2, %s17
      $region24: #{decoder_layer.12} parent=15 // pred_fallthru
        _
    $region16: #{decoder_layer.12} parent=5 // pred_fallthru
      _
    %p158 = scmp.le.s32.totalorder 1, %s8
    %p159 = scmp.lt.s32.totalorder %s8, 3
    %p160 = pnand %p158, %p159
    %p161 = pneg %p160
    // Predicated region
    $region25: #{decoder_layer.12} parent=5 // pred_check
      _
    $region26: #{decoder_layer.12} parent=5 // pred_check_branch
      %163 = sbr.rel (%p160) target = $region28
    $region27: #{decoder_layer.12} parent=5 // pred_region
      %s164 = ssub.s32 %s8, 1
      %s165 = smul.u32 2, %s19
      %p166 = scmp.lt.s32.totalorder %s18, 1
      %s167 = scalar_select %p166, %s18, 1
      %p168 = scmp.lt.s32.totalorder %s165, 1
      %s169 = scalar_select %p168, %s165, 1
      %s170 = smul.addr %s169, 2
      %s171 = smul.addr %s167, 4
      %s172 = sadd.s32 %s170, %s171
      %s173 = smul.addr %s172, 4
      %s174 = scalar_lea.vmem %s0, %s173
      %p175 = pneg %p55
      %p176 = pneg %p52
      %s177 = smul.u32 2, %s20
      %p178 = scmp.lt.s32.totalorder %s18, 1
      %s179 = scalar_select %p178, %s18, 1
      %p180 = scmp.lt.s32.totalorder %s177, 1
      %s181 = scalar_select %p180, %s177, 1
      %s182 = smul.addr %s181, 4
      %s183 = smul.addr %s179, 8
      %s184 = sadd.s32 %s182, %s183
      %s185 = smul.addr %s184, 4
      %s186 = scalar_lea.vmem %s1, %s185
      %p187 = pneg %p83
      %p188 = pneg %p80
      %p189 = pneg %p111
      %p190 = pneg %p108
      %s191 = smul.u32 2, %s19
      %p192 = scmp.lt.s32.totalorder %s18, 1
      %s193 = scalar_select %p192, %s18, 1
      %p194 = scmp.lt.s32.totalorder %s191, 1
      %s195 = scalar_select %p194, %s191, 1
      %s196 = smul.addr %s195, 2
      %s197 = smul.addr %s193, 4
      %s198 = sadd.s32 %s196, %s197
      %s199 = smul.addr %s198, 4
      %s200 = scalar_lea.vmem %s2, %s199
      %s201 = smul.u32 2, %s19
      %p202 = scmp.lt.s32.totalorder %s18, 1
      %s203 = scalar_select %p202, %s18, 1
      %p204 = scmp.lt.s32.totalorder %s201, 1
      %s205 = scalar_select %p204, %s201, 1
      %s206 = smul.addr %s205, 2
      %s207 = smul.addr %s203, 4
      %s208 = sadd.s32 %s206, %s207
      %s209 = smul.addr %s208, 4
      %s210 = scalar_lea.vmem %s0, %s209
      %s211 = smul.u32 2, %s19
      %s212 = smul.u32 2, %s20
      %p213 = scmp.lt.s32.totalorder %s18, 1
      %s214 = scalar_select %p213, %s18, 1
      %p215 = scmp.lt.s32.totalorder %s212, 1
      %s216 = scalar_select %p215, %s212, 1
      %s217 = smul.addr %s216, 4
      %s218 = smul.addr %s214, 8
      %s219 = sadd.s32 %s217, %s218
      %s220 = smul.addr %s219, 4
      %s221 = scalar_lea.vmem %s1, %s220
      %s222 = smul.u32 2, %s20
      %s223 = smul.u32 2, %s19
      %p224 = scmp.lt.s32.totalorder %s18, 1
      %s225 = scalar_select %p224, %s18, 1
      %p226 = scmp.lt.s32.totalorder %s223, 1
      %s227 = scalar_select %p226, %s223, 1
      %s228 = smul.addr %s227, 2
      %s229 = smul.addr %s225, 4
      %s230 = sadd.s32 %s228, %s229
      %s231 = smul.addr %s230, 4
      %s232 = scalar_lea.vmem %s2, %s231
      %s233 = smul.u32 2, %s19
      %p235 = scmp.eq.s32.totalorder %s20, 0
      // Predicated region
      $region29: #{decoder_layer.12} parent=27 // pred_check
        %p236 = pneg %p235
      $region30: #{decoder_layer.12} parent=27 // pred_check_branch
        %238 = sbr.rel (%p236) target = $region32
      $region31: #{decoder_layer.12} parent=27 // pred_region
        %vm239 = vcmask 7168
        %240 = vst.msk [vmem:[#allocation2] sm:$0xff] %vm239, -inf
        %241 = vst.msk [vmem:[#allocation2 + $0x8] sm:$0xff] %vm239, -inf
        %242 = vst.msk [vmem:[#allocation2 + $0x10] sm:$0xff] %vm239, -inf
        %243 = vst.msk [vmem:[#allocation2 + $0x18] sm:$0xff] %vm239, -inf
        %244 = vst.msk [vmem:[#allocation3] sm:$0xff] %vm239, 0.0
        %245 = vst.msk [vmem:[#allocation3 + $0x8] sm:$0xff] %vm239, 0.0
        %246 = vst.msk [vmem:[#allocation3 + $0x10] sm:$0xff] %vm239, 0.0
        %247 = vst.msk [vmem:[#allocation3 + $0x18] sm:$0xff] %vm239, 0.0
        %248 = vst [vmem:[#allocation4] sm:$0xff] 0.0
        %249 = vst [vmem:[#allocation4 + $0x8] sm:$0xff] 0.0
        %250 = vst [vmem:[#allocation4 + $0x10] sm:$0xff] 0.0
        %251 = vst [vmem:[#allocation4 + $0x18] sm:$0xff] 0.0
      $region32: #{decoder_layer.12} parent=27 // pred_fallthru
        _
      %v252 = vld [vmem:[%s210] sm:$0xff]
      %v253 = vld [vmem:[%s210 + $0x8] sm:$0xff]
      %v254 = vld [vmem:[%s221] sm:$0xff]
      %v255 = vld [vmem:[%s221 + $0x8] sm:$0xff]
      %v256 = vld [vmem:[%s221 + $0x10] sm:$0xff]
      %v257 = vld [vmem:[%s221 + $0x18] sm:$0xff]
      %v260 = vrot.slane %v252, 4
      %v261 = vrot.slane %v253, 4
      %v264 = vpack.i.b16 %v260, %v252
      %v265 = vshrl.u32 %v252, 16
      %v266 = vshrl.u32 %v260, 16
      %v267 = vpack.i.b16 %v266, %v265
      %v270 = vpack.i.b16 %v261, %v253
      %v271 = vshrl.u32 %v253, 16
      %v272 = vshrl.u32 %v261, 16
      %v273 = vpack.i.b16 %v272, %v271
      %v276 = vunpack.c.l.s4 1983009808
      %v277 = vunpack.c.0.s8 %v276
      %v278 = vlaneseq
      %v279 = vshrl.u32 %v278, 7
      %v280 = vsub.s32 %v277, %v279
      %v281 = vrot.slane %v264, %v280
      %v282 = vcombine.high %v281, 0
      %v284 = vunpack.c.l.s4 1934713408
      %v285 = vunpack.c.0.s8 %v284
      %v286 = vlaneseq
      %v287 = vshrl.u32 %v286, 7
      %v288 = vsub.s32 %v285, %v287
      %v289 = vrot.slane %v281, %v288
      %v291 = vunpack.c.l.s4 1934713408
      %v292 = vunpack.c.0.s8 %v291
      %v293 = vlaneseq
      %v294 = vshrl.u32 %v293, 7
      %v295 = vsub.s32 %v292, %v294
      %v296 = vrot.slane %v282, %v295
      %v297 = vcombine.high %v289, 0
      %v298 = vcombine.high %v296, 0
      %v301 = vunpack.c.l.s4 1983009808
      %v302 = vunpack.c.0.s8 %v301
      %v303 = vlaneseq
      %v304 = vshrl.u32 %v303, 7
      %v305 = vsub.s32 %v302, %v304
      %v306 = vrot.slane %v267, %v305
      %v307 = vcombine.high %v306, 0
      %v309 = vunpack.c.l.s4 1934713408
      %v310 = vunpack.c.0.s8 %v309
      %v311 = vlaneseq
      %v312 = vshrl.u32 %v311, 7
      %v313 = vsub.s32 %v310, %v312
      %v314 = vrot.slane %v306, %v313
      %v316 = vunpack.c.l.s4 1934713408
      %v317 = vunpack.c.0.s8 %v316
      %v318 = vlaneseq
      %v319 = vshrl.u32 %v318, 7
      %v320 = vsub.s32 %v317, %v319
      %v321 = vrot.slane %v307, %v320
      %v322 = vcombine.high %v314, 0
      %v323 = vcombine.high %v321, 0
      %v326 = vunpack.c.l.s4 1983009808
      %v327 = vunpack.c.0.s8 %v326
      %v328 = vlaneseq
      %v329 = vshrl.u32 %v328, 7
      %v330 = vsub.s32 %v327, %v329
      %v331 = vrot.slane %v270, %v330
      %v332 = vcombine.high %v331, 0
      %v334 = vunpack.c.l.s4 1934713408
      %v335 = vunpack.c.0.s8 %v334
      %v336 = vlaneseq
      %v337 = vshrl.u32 %v336, 7
      %v338 = vsub.s32 %v335, %v337
      %v339 = vrot.slane %v331, %v338
      %v341 = vunpack.c.l.s4 1934713408
      %v342 = vunpack.c.0.s8 %v341
      %v343 = vlaneseq
      %v344 = vshrl.u32 %v343, 7
      %v345 = vsub.s32 %v342, %v344
      %v346 = vrot.slane %v332, %v345
      %v347 = vcombine.high %v339, 0
      %v348 = vcombine.high %v346, 0
      %v351 = vunpack.c.l.s4 1983009808
      %v352 = vunpack.c.0.s8 %v351
      %v353 = vlaneseq
      %v354 = vshrl.u32 %v353, 7
      %v355 = vsub.s32 %v352, %v354
      %v356 = vrot.slane %v273, %v355
      %v357 = vcombine.high %v356, 0
      %v359 = vunpack.c.l.s4 1934713408
      %v360 = vunpack.c.0.s8 %v359
      %v361 = vlaneseq
      %v362 = vshrl.u32 %v361, 7
      %v363 = vsub.s32 %v360, %v362
      %v364 = vrot.slane %v356, %v363
      %v366 = vunpack.c.l.s4 1934713408
      %v367 = vunpack.c.0.s8 %v366
      %v368 = vlaneseq
      %v369 = vshrl.u32 %v368, 7
      %v370 = vsub.s32 %v367, %v369
      %v371 = vrot.slane %v357, %v370
      %v372 = vcombine.high %v364, 0
      %v373 = vcombine.high %v371, 0
      %v374 = vcombine.low %v289, %v296
      %v376 = vunpack.c.l.s4 1983009808
      %v377 = vunpack.c.0.s8 %v376
      %v378 = vlaneseq
      %v379 = vshrl.u32 %v378, 7
      %v380 = vsub.s32 %v377, %v379
      %v381 = vrot.slane %v374, %v380
      %v382 = vcombine.low %v297, %v298
      %v384 = vunpack.c.l.s4 1983009808
      %v385 = vunpack.c.0.s8 %v384
      %v386 = vlaneseq
      %v387 = vshrl.u32 %v386, 7
      %v388 = vsub.s32 %v385, %v387
      %v389 = vrot.slane %v382, %v388
      %v390 = vcombine.low %v381, %v389
      %v392 = vunpack.c.l.s4 1934713408
      %v393 = vunpack.c.0.s8 %v392
      %v394 = vlaneseq
      %v395 = vshrl.u32 %v394, 7
      %v396 = vsub.s32 %v393, %v395
      %v397 = vrot.slane %v390, %v396
      %v398 = vcombine.low %v314, %v321
      %v400 = vunpack.c.l.s4 1983009808
      %v401 = vunpack.c.0.s8 %v400
      %v402 = vlaneseq
      %v403 = vshrl.u32 %v402, 7
      %v404 = vsub.s32 %v401, %v403
      %v405 = vrot.slane %v398, %v404
      %v406 = vcombine.low %v322, %v323
      %v408 = vunpack.c.l.s4 1983009808
      %v409 = vunpack.c.0.s8 %v408
      %v410 = vlaneseq
      %v411 = vshrl.u32 %v410, 7
      %v412 = vsub.s32 %v409, %v411
      %v413 = vrot.slane %v406, %v412
      %v414 = vcombine.low %v405, %v413
      %v416 = vunpack.c.l.s4 1934713408
      %v417 = vunpack.c.0.s8 %v416
      %v418 = vlaneseq
      %v419 = vshrl.u32 %v418, 7
      %v420 = vsub.s32 %v417, %v419
      %v421 = vrot.slane %v414, %v420
      %v422 = vcombine.low %v339, %v346
      %v424 = vunpack.c.l.s4 1983009808
      %v425 = vunpack.c.0.s8 %v424
      %v426 = vlaneseq
      %v427 = vshrl.u32 %v426, 7
      %v428 = vsub.s32 %v425, %v427
      %v429 = vrot.slane %v422, %v428
      %v430 = vcombine.low %v347, %v348
      %v432 = vunpack.c.l.s4 1983009808
      %v433 = vunpack.c.0.s8 %v432
      %v434 = vlaneseq
      %v435 = vshrl.u32 %v434, 7
      %v436 = vsub.s32 %v433, %v435
      %v437 = vrot.slane %v430, %v436
      %v438 = vcombine.low %v429, %v437
      %v440 = vunpack.c.l.s4 1934713408
      %v441 = vunpack.c.0.s8 %v440
      %v442 = vlaneseq
      %v443 = vshrl.u32 %v442, 7
      %v444 = vsub.s32 %v441, %v443
      %v445 = vrot.slane %v438, %v444
      %v446 = vcombine.low %v364, %v371
      %v448 = vunpack.c.l.s4 1983009808
      %v449 = vunpack.c.0.s8 %v448
      %v450 = vlaneseq
      %v451 = vshrl.u32 %v450, 7
      %v452 = vsub.s32 %v449, %v451
      %v453 = vrot.slane %v446, %v452
      %v454 = vcombine.low %v372, %v373
      %v456 = vunpack.c.l.s4 1983009808
      %v457 = vunpack.c.0.s8 %v456
      %v458 = vlaneseq
      %v459 = vshrl.u32 %v458, 7
      %v460 = vsub.s32 %v457, %v459
      %v461 = vrot.slane %v454, %v460
      %v462 = vcombine.low %v453, %v461
      %v464 = vunpack.c.l.s4 1934713408
      %v465 = vunpack.c.0.s8 %v464
      %v466 = vlaneseq
      %v467 = vshrl.u32 %v466, 7
      %v468 = vsub.s32 %v465, %v467
      %v469 = vrot.slane %v462, %v468
      %v472 = vpack.i.b16 %v421, %v397
      %v473 = vshrl.u32 %v397, 16
      %v474 = vshrl.u32 %v421, 16
      %v475 = vpack.i.b16 %v474, %v473
      %v478 = vpack.i.b16 %v469, %v445
      %v479 = vshrl.u32 %v445, 16
      %v480 = vshrl.u32 %v469, 16
      %v481 = vpack.i.b16 %v480, %v479
      %v484 = vrot.slane %v254, 4
      %v485 = vrot.slane %v256, 4
      %v488 = vpack.i.b16 %v484, %v254
      %v489 = vshrl.u32 %v254, 16
      %v490 = vshrl.u32 %v484, 16
      %v491 = vpack.i.b16 %v490, %v489
      %v494 = vpack.i.b16 %v485, %v256
      %v495 = vshrl.u32 %v256, 16
      %v496 = vshrl.u32 %v485, 16
      %v497 = vpack.i.b16 %v496, %v495
      %v500 = vunpack.c.l.s4 1983009808
      %v501 = vunpack.c.0.s8 %v500
      %v502 = vlaneseq
      %v503 = vshrl.u32 %v502, 7
      %v504 = vsub.s32 %v501, %v503
      %v505 = vrot.slane %v488, %v504
      %v506 = vcombine.high %v505, 0
      %v508 = vunpack.c.l.s4 1934713408
      %v509 = vunpack.c.0.s8 %v508
      %v510 = vlaneseq
      %v511 = vshrl.u32 %v510, 7
      %v512 = vsub.s32 %v509, %v511
      %v513 = vrot.slane %v505, %v512
      %v515 = vunpack.c.l.s4 1934713408
      %v516 = vunpack.c.0.s8 %v515
      %v517 = vlaneseq
      %v518 = vshrl.u32 %v517, 7
      %v519 = vsub.s32 %v516, %v518
      %v520 = vrot.slane %v506, %v519
      %v521 = vcombine.high %v513, 0
      %v522 = vcombine.high %v520, 0
      %v525 = vunpack.c.l.s4 1983009808
      %v526 = vunpack.c.0.s8 %v525
      %v527 = vlaneseq
      %v528 = vshrl.u32 %v527, 7
      %v529 = vsub.s32 %v526, %v528
      %v530 = vrot.slane %v491, %v529
      %v531 = vcombine.high %v530, 0
      %v533 = vunpack.c.l.s4 1934713408
      %v534 = vunpack.c.0.s8 %v533
      %v535 = vlaneseq
      %v536 = vshrl.u32 %v535, 7
      %v537 = vsub.s32 %v534, %v536
      %v538 = vrot.slane %v530, %v537
      %v540 = vunpack.c.l.s4 1934713408
      %v541 = vunpack.c.0.s8 %v540
      %v542 = vlaneseq
      %v543 = vshrl.u32 %v542, 7
      %v544 = vsub.s32 %v541, %v543
      %v545 = vrot.slane %v531, %v544
      %v546 = vcombine.high %v538, 0
      %v547 = vcombine.high %v545, 0
      %v550 = vunpack.c.l.s4 1983009808
      %v551 = vunpack.c.0.s8 %v550
      %v552 = vlaneseq
      %v553 = vshrl.u32 %v552, 7
      %v554 = vsub.s32 %v551, %v553
      %v555 = vrot.slane %v494, %v554
      %v556 = vcombine.high %v555, 0
      %v558 = vunpack.c.l.s4 1934713408
      %v559 = vunpack.c.0.s8 %v558
      %v560 = vlaneseq
      %v561 = vshrl.u32 %v560, 7
      %v562 = vsub.s32 %v559, %v561
      %v563 = vrot.slane %v555, %v562
      %v565 = vunpack.c.l.s4 1934713408
      %v566 = vunpack.c.0.s8 %v565
      %v567 = vlaneseq
      %v568 = vshrl.u32 %v567, 7
      %v569 = vsub.s32 %v566, %v568
      %v570 = vrot.slane %v556, %v569
      %v571 = vcombine.high %v563, 0
      %v572 = vcombine.high %v570, 0
      %v575 = vunpack.c.l.s4 1983009808
      %v576 = vunpack.c.0.s8 %v575
      %v577 = vlaneseq
      %v578 = vshrl.u32 %v577, 7
      %v579 = vsub.s32 %v576, %v578
      %v580 = vrot.slane %v497, %v579
      %v581 = vcombine.high %v580, 0
      %v583 = vunpack.c.l.s4 1934713408
      %v584 = vunpack.c.0.s8 %v583
      %v585 = vlaneseq
      %v586 = vshrl.u32 %v585, 7
      %v587 = vsub.s32 %v584, %v586
      %v588 = vrot.slane %v580, %v587
      %v590 = vunpack.c.l.s4 1934713408
      %v591 = vunpack.c.0.s8 %v590
      %v592 = vlaneseq
      %v593 = vshrl.u32 %v592, 7
      %v594 = vsub.s32 %v591, %v593
      %v595 = vrot.slane %v581, %v594
      %v596 = vcombine.high %v588, 0
      %v597 = vcombine.high %v595, 0
      %v598 = vcombine.low %v513, %v520
      %v600 = vunpack.c.l.s4 1983009808
      %v601 = vunpack.c.0.s8 %v600
      %v602 = vlaneseq
      %v603 = vshrl.u32 %v602, 7
      %v604 = vsub.s32 %v601, %v603
      %v605 = vrot.slane %v598, %v604
      %v606 = vcombine.low %v521, %v522
      %v608 = vunpack.c.l.s4 1983009808
      %v609 = vunpack.c.0.s8 %v608
      %v610 = vlaneseq
      %v611 = vshrl.u32 %v610, 7
      %v612 = vsub.s32 %v609, %v611
      %v613 = vrot.slane %v606, %v612
      %v614 = vcombine.low %v605, %v613
      %v616 = vunpack.c.l.s4 1934713408
      %v617 = vunpack.c.0.s8 %v616
      %v618 = vlaneseq
      %v619 = vshrl.u32 %v618, 7
      %v620 = vsub.s32 %v617, %v619
      %v621 = vrot.slane %v614, %v620
      %v622 = vcombine.low %v538, %v545
      %v624 = vunpack.c.l.s4 1983009808
      %v625 = vunpack.c.0.s8 %v624
      %v626 = vlaneseq
      %v627 = vshrl.u32 %v626, 7
      %v628 = vsub.s32 %v625, %v627
      %v629 = vrot.slane %v622, %v628
      %v630 = vcombine.low %v546, %v547
      %v632 = vunpack.c.l.s4 1983009808
      %v633 = vunpack.c.0.s8 %v632
      %v634 = vlaneseq
      %v635 = vshrl.u32 %v634, 7
      %v636 = vsub.s32 %v633, %v635
      %v637 = vrot.slane %v630, %v636
      %v638 = vcombine.low %v629, %v637
      %v640 = vunpack.c.l.s4 1934713408
      %v641 = vunpack.c.0.s8 %v640
      %v642 = vlaneseq
      %v643 = vshrl.u32 %v642, 7
      %v644 = vsub.s32 %v641, %v643
      %v645 = vrot.slane %v638, %v644
      %v646 = vcombine.low %v563, %v570
      %v648 = vunpack.c.l.s4 1983009808
      %v649 = vunpack.c.0.s8 %v648
      %v650 = vlaneseq
      %v651 = vshrl.u32 %v650, 7
      %v652 = vsub.s32 %v649, %v651
      %v653 = vrot.slane %v646, %v652
      %v654 = vcombine.low %v571, %v572
      %v656 = vunpack.c.l.s4 1983009808
      %v657 = vunpack.c.0.s8 %v656
      %v658 = vlaneseq
      %v659 = vshrl.u32 %v658, 7
      %v660 = vsub.s32 %v657, %v659
      %v661 = vrot.slane %v654, %v660
      %v662 = vcombine.low %v653, %v661
      %v664 = vunpack.c.l.s4 1934713408
      %v665 = vunpack.c.0.s8 %v664
      %v666 = vlaneseq
      %v667 = vshrl.u32 %v666, 7
      %v668 = vsub.s32 %v665, %v667
      %v669 = vrot.slane %v662, %v668
      %v670 = vcombine.low %v588, %v595
      %v672 = vunpack.c.l.s4 1983009808
      %v673 = vunpack.c.0.s8 %v672
      %v674 = vlaneseq
      %v675 = vshrl.u32 %v674, 7
      %v676 = vsub.s32 %v673, %v675
      %v677 = vrot.slane %v670, %v676
      %v678 = vcombine.low %v596, %v597
      %v680 = vunpack.c.l.s4 1983009808
      %v681 = vunpack.c.0.s8 %v680
      %v682 = vlaneseq
      %v683 = vshrl.u32 %v682, 7
      %v684 = vsub.s32 %v681, %v683
      %v685 = vrot.slane %v678, %v684
      %v686 = vcombine.low %v677, %v685
      %v688 = vunpack.c.l.s4 1934713408
      %v689 = vunpack.c.0.s8 %v688
      %v690 = vlaneseq
      %v691 = vshrl.u32 %v690, 7
      %v692 = vsub.s32 %v689, %v691
      %v693 = vrot.slane %v686, %v692
      %v696 = vpack.i.b16 %v645, %v621
      %v697 = vshrl.u32 %v621, 16
      %v698 = vshrl.u32 %v645, 16
      %v699 = vpack.i.b16 %v698, %v697
      %v702 = vpack.i.b16 %v693, %v669
      %v703 = vshrl.u32 %v669, 16
      %v704 = vshrl.u32 %v693, 16
      %v705 = vpack.i.b16 %v704, %v703
      %v708 = vrot.slane %v255, 4
      %v709 = vrot.slane %v257, 4
      %v712 = vpack.i.b16 %v708, %v255
      %v713 = vshrl.u32 %v255, 16
      %v714 = vshrl.u32 %v708, 16
      %v715 = vpack.i.b16 %v714, %v713
      %v718 = vpack.i.b16 %v709, %v257
      %v719 = vshrl.u32 %v257, 16
      %v720 = vshrl.u32 %v709, 16
      %v721 = vpack.i.b16 %v720, %v719
      %v724 = vunpack.c.l.s4 1983009808
      %v725 = vunpack.c.0.s8 %v724
      %v726 = vlaneseq
      %v727 = vshrl.u32 %v726, 7
      %v728 = vsub.s32 %v725, %v727
      %v729 = vrot.slane %v712, %v728
      %v730 = vcombine.high %v729, 0
      %v732 = vunpack.c.l.s4 1934713408
      %v733 = vunpack.c.0.s8 %v732
      %v734 = vlaneseq
      %v735 = vshrl.u32 %v734, 7
      %v736 = vsub.s32 %v733, %v735
      %v737 = vrot.slane %v729, %v736
      %v739 = vunpack.c.l.s4 1934713408
      %v740 = vunpack.c.0.s8 %v739
      %v741 = vlaneseq
      %v742 = vshrl.u32 %v741, 7
      %v743 = vsub.s32 %v740, %v742
      %v744 = vrot.slane %v730, %v743
      %v745 = vcombine.high %v737, 0
      %v746 = vcombine.high %v744, 0
      %v749 = vunpack.c.l.s4 1983009808
      %v750 = vunpack.c.0.s8 %v749
      %v751 = vlaneseq
      %v752 = vshrl.u32 %v751, 7
      %v753 = vsub.s32 %v750, %v752
      %v754 = vrot.slane %v715, %v753
      %v755 = vcombine.high %v754, 0
      %v757 = vunpack.c.l.s4 1934713408
      %v758 = vunpack.c.0.s8 %v757
      %v759 = vlaneseq
      %v760 = vshrl.u32 %v759, 7
      %v761 = vsub.s32 %v758, %v760
      %v762 = vrot.slane %v754, %v761
      %v764 = vunpack.c.l.s4 1934713408
      %v765 = vunpack.c.0.s8 %v764
      %v766 = vlaneseq
      %v767 = vshrl.u32 %v766, 7
      %v768 = vsub.s32 %v765, %v767
      %v769 = vrot.slane %v755, %v768
      %v770 = vcombine.high %v762, 0
      %v771 = vcombine.high %v769, 0
      %v774 = vunpack.c.l.s4 1983009808
      %v775 = vunpack.c.0.s8 %v774
      %v776 = vlaneseq
      %v777 = vshrl.u32 %v776, 7
      %v778 = vsub.s32 %v775, %v777
      %v779 = vrot.slane %v718, %v778
      %v780 = vcombine.high %v779, 0
      %v782 = vunpack.c.l.s4 1934713408
      %v783 = vunpack.c.0.s8 %v782
      %v784 = vlaneseq
      %v785 = vshrl.u32 %v784, 7
      %v786 = vsub.s32 %v783, %v785
      %v787 = vrot.slane %v779, %v786
      %v789 = vunpack.c.l.s4 1934713408
      %v790 = vunpack.c.0.s8 %v789
      %v791 = vlaneseq
      %v792 = vshrl.u32 %v791, 7
      %v793 = vsub.s32 %v790, %v792
      %v794 = vrot.slane %v780, %v793
      %v795 = vcombine.high %v787, 0
      %v796 = vcombine.high %v794, 0
      %v799 = vunpack.c.l.s4 1983009808
      %v800 = vunpack.c.0.s8 %v799
      %v801 = vlaneseq
      %v802 = vshrl.u32 %v801, 7
      %v803 = vsub.s32 %v800, %v802
      %v804 = vrot.slane %v721, %v803
      %v805 = vcombine.high %v804, 0
      %v807 = vunpack.c.l.s4 1934713408
      %v808 = vunpack.c.0.s8 %v807
      %v809 = vlaneseq
      %v810 = vshrl.u32 %v809, 7
      %v811 = vsub.s32 %v808, %v810
      %v812 = vrot.slane %v804, %v811
      %v814 = vunpack.c.l.s4 1934713408
      %v815 = vunpack.c.0.s8 %v814
      %v816 = vlaneseq
      %v817 = vshrl.u32 %v816, 7
      %v818 = vsub.s32 %v815, %v817
      %v819 = vrot.slane %v805, %v818
      %v820 = vcombine.high %v812, 0
      %v821 = vcombine.high %v819, 0
      %v822 = vcombine.low %v737, %v744
      %v824 = vunpack.c.l.s4 1983009808
      %v825 = vunpack.c.0.s8 %v824
      %v826 = vlaneseq
      %v827 = vshrl.u32 %v826, 7
      %v828 = vsub.s32 %v825, %v827
      %v829 = vrot.slane %v822, %v828
      %v830 = vcombine.low %v745, %v746
      %v832 = vunpack.c.l.s4 1983009808
      %v833 = vunpack.c.0.s8 %v832
      %v834 = vlaneseq
      %v835 = vshrl.u32 %v834, 7
      %v836 = vsub.s32 %v833, %v835
      %v837 = vrot.slane %v830, %v836
      %v838 = vcombine.low %v829, %v837
      %v840 = vunpack.c.l.s4 1934713408
      %v841 = vunpack.c.0.s8 %v840
      %v842 = vlaneseq
      %v843 = vshrl.u32 %v842, 7
      %v844 = vsub.s32 %v841, %v843
      %v845 = vrot.slane %v838, %v844
      %v846 = vcombine.low %v762, %v769
      %v848 = vunpack.c.l.s4 1983009808
      %v849 = vunpack.c.0.s8 %v848
      %v850 = vlaneseq
      %v851 = vshrl.u32 %v850, 7
      %v852 = vsub.s32 %v849, %v851
      %v853 = vrot.slane %v846, %v852
      %v854 = vcombine.low %v770, %v771
      %v856 = vunpack.c.l.s4 1983009808
      %v857 = vunpack.c.0.s8 %v856
      %v858 = vlaneseq
      %v859 = vshrl.u32 %v858, 7
      %v860 = vsub.s32 %v857, %v859
      %v861 = vrot.slane %v854, %v860
      %v862 = vcombine.low %v853, %v861
      %v864 = vunpack.c.l.s4 1934713408
      %v865 = vunpack.c.0.s8 %v864
      %v866 = vlaneseq
      %v867 = vshrl.u32 %v866, 7
      %v868 = vsub.s32 %v865, %v867
      %v869 = vrot.slane %v862, %v868
      %v870 = vcombine.low %v787, %v794
      %v872 = vunpack.c.l.s4 1983009808
      %v873 = vunpack.c.0.s8 %v872
      %v874 = vlaneseq
      %v875 = vshrl.u32 %v874, 7
      %v876 = vsub.s32 %v873, %v875
      %v877 = vrot.slane %v870, %v876
      %v878 = vcombine.low %v795, %v796
      %v880 = vunpack.c.l.s4 1983009808
      %v881 = vunpack.c.0.s8 %v880
      %v882 = vlaneseq
      %v883 = vshrl.u32 %v882, 7
      %v884 = vsub.s32 %v881, %v883
      %v885 = vrot.slane %v878, %v884
      %v886 = vcombine.low %v877, %v885
      %v888 = vunpack.c.l.s4 1934713408
      %v889 = vunpack.c.0.s8 %v888
      %v890 = vlaneseq
      %v891 = vshrl.u32 %v890, 7
      %v892 = vsub.s32 %v889, %v891
      %v893 = vrot.slane %v886, %v892
      %v894 = vcombine.low %v812, %v819
      %v896 = vunpack.c.l.s4 1983009808
      %v897 = vunpack.c.0.s8 %v896
      %v898 = vlaneseq
      %v899 = vshrl.u32 %v898, 7
      %v900 = vsub.s32 %v897, %v899
      %v901 = vrot.slane %v894, %v900
      %v902 = vcombine.low %v820, %v821
      %v904 = vunpack.c.l.s4 1983009808
      %v905 = vunpack.c.0.s8 %v904
      %v906 = vlaneseq
      %v907 = vshrl.u32 %v906, 7
      %v908 = vsub.s32 %v905, %v907
      %v909 = vrot.slane %v902, %v908
      %v910 = vcombine.low %v901, %v909
      %v912 = vunpack.c.l.s4 1934713408
      %v913 = vunpack.c.0.s8 %v912
      %v914 = vlaneseq
      %v915 = vshrl.u32 %v914, 7
      %v916 = vsub.s32 %v913, %v915
      %v917 = vrot.slane %v910, %v916
      %v920 = vpack.i.b16 %v869, %v845
      %v921 = vshrl.u32 %v845, 16
      %v922 = vshrl.u32 %v869, 16
      %v923 = vpack.i.b16 %v922, %v921
      %v926 = vpack.i.b16 %v917, %v893
      %v927 = vshrl.u32 %v893, 16
      %v928 = vshrl.u32 %v917, 16
      %v929 = vpack.i.b16 %v928, %v927
      %v930 = vunpack.c.l.b16 %v472
      %v931 = vunpack.c.l.b16 %v478
      %v932 = vpack.c.b16 %v931, %v930
      %v934 = vunpack.c.l.b16 %v696
      %v935 = vunpack.c.l.b16 %v702
      %v936 = vpack.c.b16 %v935, %v934
      %938 = vmatprep.subr.bf16.mxu0 0
      %939 = vmatpush1.bf16.xpose.msra.mxu0 %v936
      %940 = vmatprep.subr.bf16.mxu0 0
      %941 = vmatpush1.bf16.xpose.msra.mxu0 0
      %942 = vmatprep.subr.bf16.mxu0 0
      %943 = vmatpush1.bf16.xpose.msra.mxu0 0
      %944 = vmatprep.subr.bf16.mxu0 0
      %945 = vmatpush1.bf16.xpose.msra.mxu0 0
      %946 = vmatprep.subr.bf16.mxu0 0
      %947 = vmatpush1.bf16.xpose.msra.mxu0 0
      %948 = vmatprep.subr.bf16.mxu0 0
      %949 = vmatpush1.bf16.xpose.msra.mxu0 0
      %950 = vmatprep.subr.bf16.mxu0 0
      %951 = vmatpush1.bf16.xpose.msra.mxu0 0
      %952 = vmatprep.subr.bf16.mxu0 0
      %953 = vmatpush1.bf16.xpose.msra.mxu0 0
      %954 = vmatprep.subr.bf16.mxu0 0
      %955 = vmatpush1.bf16.xpose.msra.mxu0 0
      %956 = vmatprep.subr.bf16.mxu0 0
      %957 = vmatpush1.bf16.xpose.msra.mxu0 0
      %958 = vmatprep.subr.bf16.mxu0 0
      %959 = vmatpush1.bf16.xpose.msra.mxu0 0
      %960 = vmatprep.subr.bf16.mxu0 0
      %961 = vmatpush1.bf16.xpose.msra.mxu0 0
      %962 = vmatprep.subr.bf16.mxu0 0
      %963 = vmatpush1.bf16.xpose.msra.mxu0 0
      %964 = vmatprep.subr.bf16.mxu0 0
      %965 = vmatpush1.bf16.xpose.msra.mxu0 0
      %966 = vmatprep.subr.bf16.mxu0 0
      %967 = vmatpush1.bf16.xpose.msra.mxu0 0
      %968 = vmatprep.subr.bf16.mxu0 0
      %969 = vmatpush1.bf16.xpose.msra.mxu0 0
      %970 = vmatprep.mubr.bf16.mxu0 0
      %971 = vmatmul.mubr.bf16.gmra.mrb[0].mxu0 %v932
      %v972 = vpop.f32.mrb[0].mxu0
      %v973 = vadd.f32 0.0, %v972
      %v974 = vpop.f32.mrb[0].mxu0
      %v975 = vpop.f32.mrb[0].mxu0
      %v976 = vadd.f32 0.0, %v975
      %v977 = vpop.f32.mrb[0].mxu0
      %978 = vdwg.mxu0
      %v979 = vunpack.c.l.b16 %v475
      %v980 = vunpack.c.l.b16 %v481
      %v981 = vpack.c.b16 %v980, %v979
      %v983 = vunpack.c.l.b16 %v699
      %v984 = vunpack.c.l.b16 %v705
      %v985 = vpack.c.b16 %v984, %v983
      %987 = vmatprep.subr.bf16.mxu0 0
      %988 = vmatpush1.bf16.xpose.msra.mxu0 %v985
      %989 = vmatprep.subr.bf16.mxu0 0
      %990 = vmatpush1.bf16.xpose.msra.mxu0 0
      %991 = vmatprep.subr.bf16.mxu0 0
      %992 = vmatpush1.bf16.xpose.msra.mxu0 0
      %993 = vmatprep.subr.bf16.mxu0 0
      %994 = vmatpush1.bf16.xpose.msra.mxu0 0
      %995 = vmatprep.subr.bf16.mxu0 0
      %996 = vmatpush1.bf16.xpose.msra.mxu0 0
      %997 = vmatprep.subr.bf16.mxu0 0
      %998 = vmatpush1.bf16.xpose.msra.mxu0 0
      %999 = vmatprep.subr.bf16.mxu0 0
      %1000 = vmatpush1.bf16.xpose.msra.mxu0 0
      %1001 = vmatprep.subr.bf16.mxu0 0
      %1002 = vmatpush1.bf16.xpose.msra.mxu0 0
      %1003 = vmatprep.subr.bf16.mxu0 0
      %1004 = vmatpush1.bf16.xpose.msra.mxu0 0
      %1005 = vmatprep.subr.bf16.mxu0 0
      %1006 = vmatpush1.bf16.xpose.msra.mxu0 0
      %1007 = vmatprep.subr.bf16.mxu0 0
      %1008 = vmatpush1.bf16.xpose.msra.mxu0 0
      %1009 = vmatprep.subr.bf16.mxu0 0
      %1010 = vmatpush1.bf16.xpose.msra.mxu0 0
      %1011 = vmatprep.subr.bf16.mxu0 0
      %1012 = vmatpush1.bf16.xpose.msra.mxu0 0
      %1013 = vmatprep.subr.bf16.mxu0 0
      %1014 = vmatpush1.bf16.xpose.msra.mxu0 0
      %1015 = vmatprep.subr.bf16.mxu0 0
      %1016 = vmatpush1.bf16.xpose.msra.mxu0 0
      %1017 = vmatprep.subr.bf16.mxu0 0
      %1018 = vmatpush1.bf16.xpose.msra.mxu0 0
      %1019 = vmatprep.mubr.bf16.mxu0 0
      %1020 = vmatmul.mubr.bf16.gmra.mrb[0].mxu0 %v981
      %v1021 = vpop.f32.mrb[0].mxu0
      %v1022 = vadd.f32 0.0, %v1021
      %v1023 = vpop.f32.mrb[0].mxu0
      %v1024 = vpop.f32.mrb[0].mxu0
      %v1025 = vadd.f32 0.0, %v1024
      %v1026 = vpop.f32.mrb[0].mxu0
      %1027 = vdwg.mxu0
      %v1028 = vld [vmem:[#allocation2] sm:$0xff]
      %v1029 = vld [vmem:[#allocation2 + $0x8] sm:$0xff]
      %v1030 = vld [vmem:[#allocation2 + $0x10] sm:$0xff]
      %v1031 = vld [vmem:[#allocation2 + $0x18] sm:$0xff]
      %vm1032 = vcmask 130048
      %v1033 = vsel %vm1032, %v973, -inf
      %1034 = vmax.xlane.f32.xlu0 %v1033
      %v1035 = vpop.xlane.xlu0 %1034
      %v1036 = vsel %vm1032, %v976, -inf
      %1037 = vmax.xlane.f32.xlu0 %v1036
      %v1038 = vpop.xlane.xlu0 %1037
      %v1039 = vsel %vm1032, %v1022, -inf
      %1040 = vmax.xlane.f32.xlu0 %v1039
      %v1041 = vpop.xlane.xlu0 %1040
      %v1042 = vsel %vm1032, %v1025, -inf
      %1043 = vmax.xlane.f32.xlu0 %v1042
      %v1044 = vpop.xlane.xlu0 %1043
      %v1045 = vmax.f32 %v1028, %v1035
      %v1046 = vmax.f32 %v1029, %v1038
      %v1047 = vmax.f32 %v1030, %v1041
      %v1048 = vmax.f32 %v1031, %v1044
      %v1049 = vsub.f32 %v1028, %v1045
      %v1050 = vsub.f32 %v1029, %v1046
      %v1051 = vsub.f32 %v1030, %v1047
      %v1052 = vsub.f32 %v1031, %v1048
      %v1053 = vmul.f32 %v1049, 1.442695
      %v1054 = vpow.pop %v1053
      %v1055 = vmul.f32 %v1050, 1.442695
      %v1056 = vpow.pop %v1055
      %v1057 = vmul.f32 %v1051, 1.442695
      %v1058 = vpow.pop %v1057
      %v1059 = vmul.f32 %v1052, 1.442695
      %v1060 = vpow.pop %v1059
      %1062 = vset.pattern.permute.xlu0 0
      %1063 = vperm.xlu0 %1062, %v1045
      %v1064 = vpop.permute.xlu0 %1063
      %1067 = vset.pattern.permute.xlu0 0
      %1068 = vperm.xlu0 %1067, %v1046
      %v1069 = vpop.permute.xlu0 %1068
      %1072 = vset.pattern.permute.xlu0 0
      %1073 = vperm.xlu0 %1072, %v1047
      %v1074 = vpop.permute.xlu0 %1073
      %1077 = vset.pattern.permute.xlu0 0
      %1078 = vperm.xlu0 %1077, %v1048
      %v1079 = vpop.permute.xlu0 %1078
      %v1081 = vsub.f32 %v973, %v1064
      %v1082 = vsub.f32 %v976, %v1069
      %v1083 = vsub.f32 %v1022, %v1074
      %v1084 = vsub.f32 %v1025, %v1079
      %v1085 = vmul.f32 %v1081, 1.442695
      %v1086 = vpow.pop %v1085
      %v1087 = vmul.f32 %v1082, 1.442695
      %v1088 = vpow.pop %v1087
      %v1089 = vmul.f32 %v1083, 1.442695
      %v1090 = vpow.pop %v1089
      %v1091 = vmul.f32 %v1084, 1.442695
      %v1092 = vpow.pop %v1091
      %v1093 = vld [vmem:[#allocation3] sm:$0xff]
      %v1094 = vld [vmem:[#allocation3 + $0x8] sm:$0xff]
      %v1095 = vld [vmem:[#allocation3 + $0x10] sm:$0xff]
      %v1096 = vld [vmem:[#allocation3 + $0x18] sm:$0xff]
      %v1097 = vmul.f32 %v1054, %v1093
      %v1098 = vmul.f32 %v1056, %v1094
      %v1099 = vmul.f32 %v1058, %v1095
      %v1100 = vmul.f32 %v1060, %v1096
      %v1101 = vsel %vm1032, %v1086, 0.0
      %1102 = vadd.xlane.f32.xlu0 %v1101
      %v1103 = vpop.xlane.xlu0 %1102
      %v1104 = vsel %vm1032, %v1088, 0.0
      %1105 = vadd.xlane.f32.xlu0 %v1104
      %v1106 = vpop.xlane.xlu0 %1105
      %v1107 = vsel %vm1032, %v1090, 0.0
      %1108 = vadd.xlane.f32.xlu0 %v1107
      %v1109 = vpop.xlane.xlu0 %1108
      %v1110 = vsel %vm1032, %v1092, 0.0
      %1111 = vadd.xlane.f32.xlu0 %v1110
      %v1112 = vpop.xlane.xlu0 %1111
      %v1113 = vadd.f32 %v1097, %v1103
      %v1114 = vadd.f32 %v1098, %v1106
      %v1115 = vadd.f32 %v1099, %v1109
      %v1116 = vadd.f32 %v1100, %v1112
      %vm1117 = vcmask 7168
      %1118 = vst.msk [vmem:[#allocation3] sm:$0xff] %vm1117, %v1113
      %1119 = vst.msk [vmem:[#allocation3 + $0x8] sm:$0xff] %vm1117, %v1114
      %1120 = vst.msk [vmem:[#allocation3 + $0x10] sm:$0xff] %vm1117, %v1115
      %1121 = vst.msk [vmem:[#allocation3 + $0x18] sm:$0xff] %vm1117, %v1116
      %v1122 = vpack.c.bf16 %v1088, %v1086
      %v1123 = vpack.c.bf16 %v1092, %v1090
      %v1124 = vunpack.c.l.b16 %v920
      %v1125 = vunpack.c.l.b16 %v926
      %v1126 = vpack.c.b16 %v1125, %v1124
      %v1129 = vsel %vm1032, %v1122, 0
      %1131 = vmatprep.subr.bf16.mxu0 0
      %1132 = vmatpush1.bf16.msra.mxu0 %v1126
      %1133 = vmatprep.subr.bf16.mxu0 0
      %1134 = vmatpush1.bf16.msra.mxu0 0
      %1135 = vmatprep.subr.bf16.mxu0 0
      %1136 = vmatpush1.bf16.msra.mxu0 0
      %1137 = vmatprep.subr.bf16.mxu0 0
      %1138 = vmatpush1.bf16.msra.mxu0 0
      %1139 = vmatprep.subr.bf16.mxu0 0
      %1140 = vmatpush1.bf16.msra.mxu0 0
      %1141 = vmatprep.subr.bf16.mxu0 0
      %1142 = vmatpush1.bf16.msra.mxu0 0
      %1143 = vmatprep.subr.bf16.mxu0 0
      %1144 = vmatpush1.bf16.msra.mxu0 0
      %1145 = vmatprep.subr.bf16.mxu0 0
      %1146 = vmatpush1.bf16.msra.mxu0 0
      %1147 = vmatprep.subr.bf16.mxu0 0
      %1148 = vmatpush1.bf16.msra.mxu0 0
      %1149 = vmatprep.subr.bf16.mxu0 0
      %1150 = vmatpush1.bf16.msra.mxu0 0
      %1151 = vmatprep.subr.bf16.mxu0 0
      %1152 = vmatpush1.bf16.msra.mxu0 0
      %1153 = vmatprep.subr.bf16.mxu0 0
      %1154 = vmatpush1.bf16.msra.mxu0 0
      %1155 = vmatprep.subr.bf16.mxu0 0
      %1156 = vmatpush1.bf16.msra.mxu0 0
      %1157 = vmatprep.subr.bf16.mxu0 0
      %1158 = vmatpush1.bf16.msra.mxu0 0
      %1159 = vmatprep.subr.bf16.mxu0 0
      %1160 = vmatpush1.bf16.msra.mxu0 0
      %1161 = vmatprep.subr.bf16.mxu0 0
      %1162 = vmatpush1.bf16.msra.mxu0 0
      %1163 = vmatprep.mubr.bf16.mxu0 0
      %1164 = vmatmul.mubr.bf16.gmra.mrb[0].mxu0 %v1129
      %v1165 = vpop.f32.mrb[0].mxu0
      %v1166 = vadd.f32 0.0, %v1165
      %v1167 = vpop.f32.mrb[0].mxu0
      %v1168 = vpop.f32.mrb[0].mxu0
      %v1169 = vadd.f32 0.0, %v1168
      %v1170 = vpop.f32.mrb[0].mxu0
      %1171 = vdwg.mxu0
      %v1172 = vunpack.c.l.b16 %v923
      %v1173 = vunpack.c.l.b16 %v929
      %v1174 = vpack.c.b16 %v1173, %v1172
      %v1177 = vsel %vm1032, %v1123, 0
      %1179 = vmatprep.subr.bf16.mxu0 0
      %1180 = vmatpush1.bf16.msra.mxu0 %v1174
      %1181 = vmatprep.subr.bf16.mxu0 0
      %1182 = vmatpush1.bf16.msra.mxu0 0
      %1183 = vmatprep.subr.bf16.mxu0 0
      %1184 = vmatpush1.bf16.msra.mxu0 0
      %1185 = vmatprep.subr.bf16.mxu0 0
      %1186 = vmatpush1.bf16.msra.mxu0 0
      %1187 = vmatprep.subr.bf16.mxu0 0
      %1188 = vmatpush1.bf16.msra.mxu0 0
      %1189 = vmatprep.subr.bf16.mxu0 0
      %1190 = vmatpush1.bf16.msra.mxu0 0
      %1191 = vmatprep.subr.bf16.mxu0 0
      %1192 = vmatpush1.bf16.msra.mxu0 0
      %1193 = vmatprep.subr.bf16.mxu0 0
      %1194 = vmatpush1.bf16.msra.mxu0 0
      %1195 = vmatprep.subr.bf16.mxu0 0
      %1196 = vmatpush1.bf16.msra.mxu0 0
      %1197 = vmatprep.subr.bf16.mxu0 0
      %1198 = vmatpush1.bf16.msra.mxu0 0
      %1199 = vmatprep.subr.bf16.mxu0 0
      %1200 = vmatpush1.bf16.msra.mxu0 0
      %1201 = vmatprep.subr.bf16.mxu0 0
      %1202 = vmatpush1.bf16.msra.mxu0 0
      %1203 = vmatprep.subr.bf16.mxu0 0
      %1204 = vmatpush1.bf16.msra.mxu0 0
      %1205 = vmatprep.subr.bf16.mxu0 0
      %1206 = vmatpush1.bf16.msra.mxu0 0
      %1207 = vmatprep.subr.bf16.mxu0 0
      %1208 = vmatpush1.bf16.msra.mxu0 0
      %1209 = vmatprep.subr.bf16.mxu0 0
      %1210 = vmatpush1.bf16.msra.mxu0 0
      %1211 = vmatprep.mubr.bf16.mxu0 0
      %1212 = vmatmul.mubr.bf16.gmra.mrb[0].mxu0 %v1177
      %v1213 = vpop.f32.mrb[0].mxu0
      %v1214 = vadd.f32 0.0, %v1213
      %v1215 = vpop.f32.mrb[0].mxu0
      %v1216 = vpop.f32.mrb[0].mxu0
      %v1217 = vadd.f32 0.0, %v1216
      %v1218 = vpop.f32.mrb[0].mxu0
      %1219 = vdwg.mxu0
      %v1220 = vld [vmem:[#allocation4] sm:$0xff]
      %v1221 = vld [vmem:[#allocation4 + $0x8] sm:$0xff]
      %v1222 = vld [vmem:[#allocation4 + $0x10] sm:$0xff]
      %v1223 = vld [vmem:[#allocation4 + $0x18] sm:$0xff]
      %1225 = vset.pattern.permute.xlu0 0
      %1226 = vperm.xlu0 %1225, %v1054
      %v1227 = vpop.permute.xlu0 %1226
      %1230 = vset.pattern.permute.xlu0 0
      %1231 = vperm.xlu0 %1230, %v1056
      %v1232 = vpop.permute.xlu0 %1231
      %1235 = vset.pattern.permute.xlu0 0
      %1236 = vperm.xlu0 %1235, %v1058
      %v1237 = vpop.permute.xlu0 %1236
      %1240 = vset.pattern.permute.xlu0 0
      %1241 = vperm.xlu0 %1240, %v1060
      %v1242 = vpop.permute.xlu0 %1241
      %v1244 = vmul.f32 %v1227, %v1220
      %v1245 = vmul.f32 %v1232, %v1221
      %v1246 = vmul.f32 %v1237, %v1222
      %v1247 = vmul.f32 %v1242, %v1223
      %v1248 = vadd.f32 %v1244, %v1166
      %v1249 = vadd.f32 %v1245, %v1169
      %v1250 = vadd.f32 %v1246, %v1214
      %v1251 = vadd.f32 %v1247, %v1217
      %1252 = vst [vmem:[#allocation4] sm:$0xff] %v1248
      %1253 = vst [vmem:[#allocation4 + $0x8] sm:$0xff] %v1249
      %1254 = vst [vmem:[#allocation4 + $0x10] sm:$0xff] %v1250
      %1255 = vst [vmem:[#allocation4 + $0x18] sm:$0xff] %v1251
      %1256 = vst.msk [vmem:[#allocation2] sm:$0xff] %vm1117, %v1045
      %1257 = vst.msk [vmem:[#allocation2 + $0x8] sm:$0xff] %vm1117, %v1046
      %1258 = vst.msk [vmem:[#allocation2 + $0x10] sm:$0xff] %vm1117, %v1047
      %1259 = vst.msk [vmem:[#allocation2 + $0x18] sm:$0xff] %vm1117, %v1048
      // Predicated region
      $region33: #{decoder_layer.12} parent=27 // pred_check
        %p1260 = pneg %p235
      $region34: #{decoder_layer.12} parent=27 // pred_check_branch
        %1262 = sbr.rel (%p1260) target = $region36
      $region35: #{decoder_layer.12} parent=27 // pred_region
        %v1263 = vld [vmem:[#allocation3] sm:$0xff]
        %v1264 = vld [vmem:[#allocation3 + $0x8] sm:$0xff]
        %v1265 = vld [vmem:[#allocation3 + $0x10] sm:$0xff]
        %v1266 = vld [vmem:[#allocation3 + $0x18] sm:$0xff]
        %v1267 = vrcp.pop %v1263
        %v1268 = vrcp.pop %v1264
        %v1269 = vrcp.pop %v1265
        %v1270 = vrcp.pop %v1266
        %v1271 = vld [vmem:[#allocation4] sm:$0xff]
        %v1272 = vld [vmem:[#allocation4 + $0x8] sm:$0xff]
        %v1273 = vld [vmem:[#allocation4 + $0x10] sm:$0xff]
        %v1274 = vld [vmem:[#allocation4 + $0x18] sm:$0xff]
        %1276 = vset.pattern.permute.xlu0 0
        %1277 = vperm.xlu0 %1276, %v1267
        %v1278 = vpop.permute.xlu0 %1277
        %1281 = vset.pattern.permute.xlu0 0
        %1282 = vperm.xlu0 %1281, %v1268
        %v1283 = vpop.permute.xlu0 %1282
        %1286 = vset.pattern.permute.xlu0 0
        %1287 = vperm.xlu0 %1286, %v1269
        %v1288 = vpop.permute.xlu0 %1287
        %1291 = vset.pattern.permute.xlu0 0
        %1292 = vperm.xlu0 %1291, %v1270
        %v1293 = vpop.permute.xlu0 %1292
        %v1295 = vmul.f32 %v1271, %v1278
        %v1296 = vmul.f32 %v1272, %v1283
        %v1297 = vmul.f32 %v1273, %v1288
        %v1298 = vmul.f32 %v1274, %v1293
        %v1299 = vpack.c.bf16 %v1296, %v1295
        %v1301 = vunpack.c.l.b16 %v1299
        %v1302 = vunpack.c.h.b16 %v1299
        %v1303 = vpack.c.b16 %v1301, %v1301
        %v1304 = vpack.c.b16 %v1302, %v1302
        %1307 = vst [vmem:[%s232] sm:$0xf] %v1303
        %1308 = vst [vmem:[%s232 + $0x8] sm:$0xf] %v1304
        %v1309 = vpack.c.bf16 %v1298, %v1297
        %v1311 = vunpack.c.l.b16 %v1309
        %v1312 = vunpack.c.h.b16 %v1309
        %v1313 = vpack.c.b16 %v1311, %v1311
        %v1314 = vpack.c.b16 %v1312, %v1312
        %1317 = vst [vmem:[%s232 + $0x4] sm:$0xf] %v1313
        %1318 = vst [vmem:[%s232 + $0xc] sm:$0xf] %v1314
      $region36: #{decoder_layer.12} parent=27 // pred_fallthru
        _
      %s1319 = smul.u32 2, %s19
      %p1320 = scmp.lt.s32.totalorder %s18, 1
      %s1321 = scalar_select %p1320, %s18, 1
      %p1322 = scmp.lt.s32.totalorder %s1319, 1
      %s1323 = scalar_select %p1322, %s1319, 1
      %s1324 = smul.addr %s1323, 2
      %s1325 = smul.addr %s1321, 4
      %s1326 = sadd.s32 %s1324, %s1325
      %s1327 = smul.addr %s1326, 4
      %s1328 = scalar_lea.vmem %s2, %s1327
      // Predicated region
      $region37: #{decoder_layer.12} parent=27 // pred_check
        %p1329 = pneg %p108
      $region38: #{decoder_layer.12} parent=27 // pred_check_branch
        %1331 = sbr.rel (%p1329) target = $region40
      $region39: #{decoder_layer.12} parent=27 // pred_region
        %s1332 = smul.u32 2, %s19
      $region40: #{decoder_layer.12} parent=27 // pred_fallthru
        _
    $region28: #{decoder_layer.12} parent=5 // pred_fallthru
      _
    %p1333 = scmp.le.s32.totalorder 2, %s8
    // Predicated region
    $region41: #{decoder_layer.12} parent=5 // pred_check
      %p1334 = pneg %p1333
    $region42: #{decoder_layer.12} parent=5 // pred_check_branch
      %1336 = sbr.rel (%p1334) target = $region44
    $region43: #{decoder_layer.12} parent=5 // pred_region
      %s1337 = ssub.s32 %s8, 2
      // Predicated region
      $region45: #{decoder_layer.12} parent=43 // pred_check
        %p1338 = pneg %p114
      $region46: #{decoder_layer.12} parent=43 // pred_check_branch
        %1340 = sbr.rel (%p1338) target = $region48
      $region47: #{decoder_layer.12} parent=43 // pred_region
        %s1341 = smul.u32 2, %s22
        %p1342 = scmp.lt.s32.totalorder %s21, 1
        %s1343 = scalar_select %p1342, %s21, 1
        %p1344 = scmp.lt.s32.totalorder %s1341, 1
        %s1345 = scalar_select %p1344, %s1341, 1
        %s1346 = smul.addr %s1345, 2
        %s1347 = smul.addr %s1343, 4
        %s1348 = sadd.s32 %s1346, %s1347
        %s1349 = smul.addr %s1348, 4
        %s1350 = scalar_lea.vmem %s2, %s1349
      $region48: #{decoder_layer.12} parent=43 // pred_fallthru
        _
    $region44: #{decoder_layer.12} parent=5 // pred_fallthru
      _
  $region6: #{decoder_layer.12} parent=0 // loop_footer
    %s12 = sadd.s32 1, %s8
  $region7: #{decoder_layer.12} parent=0 // loop_footer_branch
    %7 = sbr.rel target = $region3
  $region8: #{decoder_layer.12} parent=0 // loop_exit
    _

// kernel: decoder_layer.15
$region0: #{decoder_layer.15}
  #allocation0 [shape = 'u32[]', space=smem, size = 0x4, offset = 0x4, fixed_abs, tag = 'smem constant byte address 0x4 - core index']
  #allocation1 [shape = 'u32[144,128]{1,0:T(1,128)}', space=vmem, size = 0x12000, scoped, tag = 'internal scratch']
  #allocation2 [shape = 'f32[32,256]{1,0:T(8,128)}', space=vmem, size = 0x8000, scoped, tag = 'scratch operand']
  %s0 = inlined_call_operand.vmem [shape: f32[32,256], index: 0, kind: input, shape index: {}]
  %s1 = inlined_call_operand.vmem [shape: bf16[256,512], index: 1, kind: input, shape index: {}]
  %s2 = inlined_call_operand.vmem [shape: f32[1,512], index: 2, kind: input, shape index: {}]
  %s3 = inlined_call_operand.vmem [shape: bf16[32,512], index: 3, kind: output, shape index: {}]
  %s4 = sld [smem:[#allocation0]]
  $region125: #{decoder_layer.15} parent=0
    _
  %s6 = ssub.s32 1, %s4
  %s7 = scalar_select 0, %s6, %s4
  $region1: #{decoder_layer.15} parent=0
    #allocation3 [shape = 'u8[262144]{0}', space=vmem, size = 0x40000, scoped, tag = 'input window, operand 1']
    #allocation4 [shape = 'u8[32768]{0}', space=vmem, size = 0x8000, scoped, tag = 'output window, operand 0']
    loop: start=0, step=1, limit=4
    $region2: #{decoder_layer.15} parent=1 // loop_pre_header
      _
    $region3: #{decoder_layer.15} parent=1 // loop_header
      %s9 = sphi 0, %s13
      %p10 = scmp.ge.s32.totalorder %s9, 4
      %s16 = sphi 0, %s35
      %s17 = sphi 0, %s31
      %s18 = sphi 0, %s27
      %s19 = sphi 0, %s16
      %s20 = sphi 0, %s17
      %s21 = sphi 0, %s18
      %s22 = sphi 0, %s19
      %s23 = sphi 0, %s20
      %s24 = sphi 0, %s21
      %s40 = sphi 0, %s42
      %s43 = sphi 0, %s40
      %s44 = sphi 0, %s43
      %s60 = sphi 0, %s44
      %s68 = sphi 0, %s70
      %s71 = sphi 0, %s68
      %s72 = sphi 0, %s71
      %s88 = sphi 0, %s72
      %s94 = sphi 0, %s96
      %s97 = sphi 0, %s94
      %s98 = sphi 0, %s97
      %s114 = sphi 0, %s98
      %s122 = sphi 0, %s124
      %s125 = sphi 0, %s122
      %s126 = sphi 0, %s125
      %s142 = sphi 0, %s126
    $region4: #{decoder_layer.15} parent=1 // loop_header_branch
      %12 = sbr.rel (%p10) target = $region8
    $region5: #{decoder_layer.15} parent=1 // loop_body
      %s14 = ssub.s32 %s9, 1
      %s15 = ssub.s32 %s9, 2
      %s25 = sadd.s32 1, %s18
      %p26 = scmp.ge.s32.totalorder %s25, 1
      %s27 = scalar_select %p26, 0, %s25
      %s28 = sadd.s32 1, %s17
      %s29 = scalar_select %p26, %s28, %s17
      %p30 = scmp.ge.s32.totalorder %s29, 2
      %s31 = scalar_select %p30, 0, %s29
      %s32 = sadd.s32 1, %s16
      %s33 = scalar_select %p30, %s32, %s16
      %p34 = scmp.ge.s32.totalorder %s33, 1
      %s35 = scalar_select %p34, 0, %s33
      %s36 = ssub.s32 %s16, %s35
      %s37 = ssub.s32 %s18, %s27
      %s38 = sor.u32 %s36, %s37
      %p39 = scmp.eq.s32.totalorder %s38, 0
      %s41 = sadd.s32 %s40, 1
      %s42 = scalar_select %p39, %s40, %s41
      %p45 = pneg %p39
      %p46 = scmp.eq.s32.totalorder %s9, 1
      %p47 = por %p45, %p46
      %p48 = scmp.ne.s32.totalorder %s40, %s43
      %p49 = scmp.eq.s32.totalorder %s9, 0
      %p50 = por %p48, %p49
      %p51 = scmp.ne.s32.totalorder %s40, %s43
      %p52 = scmp.eq.s32.totalorder %s14, 1
      %p53 = por %p51, %p52
      %p54 = scmp.ne.s32.totalorder %s43, %s44
      %p55 = scmp.eq.s32.totalorder %s14, 0
      %p56 = por %p54, %p55
      %p57 = scmp.ne.s32.totalorder %s43, %s44
      %p58 = scmp.eq.s32.totalorder %s15, 1
      %p59 = por %p57, %p58
      %p61 = scmp.ne.s32.totalorder %s44, %s60
      %p62 = scmp.eq.s32.totalorder %s15, 0
      %p63 = por %p61, %p62
      %s64 = ssub.s32 %s18, %s27
      %s65 = ssub.s32 %s17, %s31
      %s66 = sor.u32 %s64, %s65
      %p67 = scmp.eq.s32.totalorder %s66, 0
      %s69 = sadd.s32 %s68, 1
      %s70 = scalar_select %p67, %s68, %s69
      %p73 = pneg %p67
      %p74 = scmp.eq.s32.totalorder %s9, 1
      %p75 = por %p73, %p74
      %p76 = scmp.ne.s32.totalorder %s68, %s71
      %p77 = scmp.eq.s32.totalorder %s9, 0
      %p78 = por %p76, %p77
      %p79 = scmp.ne.s32.totalorder %s68, %s71
      %p80 = scmp.eq.s32.totalorder %s14, 1
      %p81 = por %p79, %p80
      %p82 = scmp.ne.s32.totalorder %s71, %s72
      %p83 = scmp.eq.s32.totalorder %s14, 0
      %p84 = por %p82, %p83
      %p85 = scmp.ne.s32.totalorder %s71, %s72
      %p86 = scmp.eq.s32.totalorder %s15, 1
      %p87 = por %p85, %p86
      %p89 = scmp.ne.s32.totalorder %s72, %s88
      %p90 = scmp.eq.s32.totalorder %s15, 0
      %p91 = por %p89, %p90
      %s92 = ssub.s32 %s17, %s31
      %p93 = scmp.eq.s32.totalorder %s92, 0
      %s95 = sadd.s32 %s94, 1
      %s96 = scalar_select %p93, %s94, %s95
      %p99 = pneg %p93
      %p100 = scmp.eq.s32.totalorder %s9, 1
      %p101 = por %p99, %p100
      %p102 = scmp.ne.s32.totalorder %s94, %s97
      %p103 = scmp.eq.s32.totalorder %s9, 0
      %p104 = por %p102, %p103
      %p105 = scmp.ne.s32.totalorder %s94, %s97
      %p106 = scmp.eq.s32.totalorder %s14, 1
      %p107 = por %p105, %p106
      %p108 = scmp.ne.s32.totalorder %s97, %s98
      %p109 = scmp.eq.s32.totalorder %s14, 0
      %p110 = por %p108, %p109
      %p111 = scmp.ne.s32.totalorder %s97, %s98
      %p112 = scmp.eq.s32.totalorder %s15, 1
      %p113 = por %p111, %p112
      %p115 = scmp.ne.s32.totalorder %s98, %s114
      %p116 = scmp.eq.s32.totalorder %s15, 0
      %p117 = por %p115, %p116
      %s118 = ssub.s32 %s16, %s35
      %s119 = ssub.s32 %s17, %s31
      %s120 = sor.u32 %s118, %s119
      %p121 = scmp.eq.s32.totalorder %s120, 0
      %s123 = sadd.s32 %s122, 1
      %s124 = scalar_select %p121, %s122, %s123
      %p127 = pneg %p121
      %p128 = scmp.eq.s32.totalorder %s9, 1
      %p129 = por %p127, %p128
      %p130 = scmp.ne.s32.totalorder %s122, %s125
      %p131 = scmp.eq.s32.totalorder %s9, 0
      %p132 = por %p130, %p131
      %p133 = scmp.ne.s32.totalorder %s122, %s125
      %p134 = scmp.eq.s32.totalorder %s14, 1
      %p135 = por %p133, %p134
      %p136 = scmp.ne.s32.totalorder %s125, %s126
      %p137 = scmp.eq.s32.totalorder %s14, 0
      %p138 = por %p136, %p137
      %p139 = scmp.ne.s32.totalorder %s125, %s126
      %p140 = scmp.eq.s32.totalorder %s15, 1
      %p141 = por %p139, %p140
      %p143 = scmp.ne.s32.totalorder %s126, %s142
      %p144 = scmp.eq.s32.totalorder %s15, 0
      %p145 = por %p143, %p144
      %p146 = scmp.le.s32.totalorder 1, %s9
      %p147 = scmp.lt.s32.totalorder %s9, 3
      %p148 = pnand %p146, %p147
      %p149 = pneg %p148
      // Predicated region
      $region9: #{decoder_layer.15} parent=5 // pred_check
        _
      $region10: #{decoder_layer.15} parent=5 // pred_check_branch
        %151 = sbr.rel (%p148) target = $region12
      $region11: #{decoder_layer.15} parent=5 // pred_region
        %s152 = ssub.s32 %s9, 1
        // Predicated region
        $region13: #{decoder_layer.15} parent=11 // pred_check
          %p153 = pneg %p56
        $region14: #{decoder_layer.15} parent=11 // pred_check_branch
          %155 = sbr.rel (%p153) target = $region16
        $region15: #{decoder_layer.15} parent=11 // pred_region
          %s156 = smul.u32 4, %s19
          %s157 = smul.u32 2, %s21
          %p158 = scmp.lt.s32.totalorder %s156, 3
          %s159 = scalar_select %p158, %s156, 3
          %p160 = scmp.lt.s32.totalorder %s157, 1
          %s161 = scalar_select %p160, %s157, 1
          %s162 = smul.addr %s159, 2
          %s163 = sadd.s32 %s161, %s162
          %s164 = smul.addr %s163, 8
          %s165 = scalar_lea.vmem %s0, %s164
          %s166 = smul.u32 4, %s19
          %s167 = smul.u32 2, %s21
        $region16: #{decoder_layer.15} parent=11 // pred_fallthru
          _
      $region12: #{decoder_layer.15} parent=5 // pred_fallthru
        _
      %p168 = scmp.lt.s32.totalorder %s9, 2
      // Predicated region
      $region17: #{decoder_layer.15} parent=5 // pred_check
        %p169 = pneg %p168
      $region18: #{decoder_layer.15} parent=5 // pred_check_branch
        %171 = sbr.rel (%p169) target = $region20
      $region19: #{decoder_layer.15} parent=5 // pred_region
        // Predicated region
        $region21: #{decoder_layer.15} parent=19 // pred_check
          %p172 = pneg %p78
        $region22: #{decoder_layer.15} parent=19 // pred_check_branch
          %174 = sbr.rel (%p172) target = $region24
        $region23: #{decoder_layer.15} parent=19 // pred_region
          %s175 = sand.u32 %s68, 1
          %s176 = sand.u32 %s68, 1
          %s177 = smul.addr %s176, 256
          %s178 = scalar_lea.vmem [#allocation3], %s177
          %s179 = smul.u32 32, %s18
          %s180 = smul.u32 2, %s17
          %s181 = smul.addr %s179, 4
          %s182 = sadd.s32 %s180, %s181
          %s183 = smul.addr %s182, 4
          %s184 = scalar_lea.vmem %s1, %s183
          // Predicated region
          $region25: #{decoder_layer.15} parent=23 // pred_check
            _
          $region26: #{decoder_layer.15} parent=23 // pred_check_branch
            %186 = sbr.rel (0) target = $region28
          $region27: #{decoder_layer.15} parent=23 // pred_region
            // Predicated region
            $region29: #{decoder_layer.15} parent=27 // pred_check
              _
            $region30: #{decoder_layer.15} parent=27 // pred_check_branch
              %188 = sbr.rel (0) target = $region32
            $region31: #{decoder_layer.15} parent=27 // pred_region
              // Predicated region
              $region44: #{decoder_layer.15} parent=31 // pred_check
                _
              $region45: #{decoder_layer.15} parent=31 // pred_check_branch
                %265 = sbr.rel (0) target = $region47
              $region46: #{decoder_layer.15} parent=31 // pred_region
                loop: start=0, step=1, limit=1
                $region48: #{decoder_layer.15} parent=46 // loop_pre_header
                  _
                $region49: #{decoder_layer.15} parent=46 // loop_header
                  %s267 = sphi 0, %s271
                  %p268 = scmp.ge.s32.totalorder %s267, 1
                  %s272 = sphi %s184, %s184
                  %s273 = sphi %s178, %s178
                $region50: #{decoder_layer.15} parent=46 // loop_header_branch
                  %270 = sbr.rel (%p268) target = $region54
                $region51: #{decoder_layer.15} parent=46 // loop_body
                  %v274 = vld [vmem:[%s272] sm:$0xff]
                  %275 = vst [vmem:[%s273] sm:$0xff] %v274
                  %v276 = vld [vmem:[%s272 + $0x10] sm:$0xff]
                  %277 = vst [vmem:[%s273 + $0x8] sm:$0xff] %v276
                  %v278 = vld [vmem:[%s272 + $0x20] sm:$0xff]
                  %279 = vst [vmem:[%s273 + $0x10] sm:$0xff] %v278
                  %v280 = vld [vmem:[%s272 + $0x30] sm:$0xff]
                  %281 = vst [vmem:[%s273 + $0x18] sm:$0xff] %v280
                  %v282 = vld [vmem:[%s272 + $0x40] sm:$0xff]
                  %283 = vst [vmem:[%s273 + $0x20] sm:$0xff] %v282
                  %v284 = vld [vmem:[%s272 + $0x50] sm:$0xff]
                  %285 = vst [vmem:[%s273 + $0x28] sm:$0xff] %v284
                  %v286 = vld [vmem:[%s272 + $0x60] sm:$0xff]
                  %287 = vst [vmem:[%s273 + $0x30] sm:$0xff] %v286
                  %v288 = vld [vmem:[%s272 + $0x70] sm:$0xff]
                  %289 = vst [vmem:[%s273 + $0x38] sm:$0xff] %v288
                  %v290 = vld [vmem:[%s272 + $0x80] sm:$0xff]
                  %291 = vst [vmem:[%s273 + $0x40] sm:$0xff] %v290
                  %v292 = vld [vmem:[%s272 + $0x90] sm:$0xff]
                  %293 = vst [vmem:[%s273 + $0x48] sm:$0xff] %v292
                  %v294 = vld [vmem:[%s272 + $0xa0] sm:$0xff]
                  %295 = vst [vmem:[%s273 + $0x50] sm:$0xff] %v294
                  %v296 = vld [vmem:[%s272 + $0xb0] sm:$0xff]
                  %297 = vst [vmem:[%s273 + $0x58] sm:$0xff] %v296
                  %v298 = vld [vmem:[%s272 + $0xc0] sm:$0xff]
                  %299 = vst [vmem:[%s273 + $0x60] sm:$0xff] %v298
                  %v300 = vld [vmem:[%s272 + $0xd0] sm:$0xff]
                  %301 = vst [vmem:[%s273 + $0x68] sm:$0xff] %v300
                  %v302 = vld [vmem:[%s272 + $0xe0] sm:$0xff]
                  %303 = vst [vmem:[%s273 + $0x70] sm:$0xff] %v302
                  %v304 = vld [vmem:[%s272 + $0xf0] sm:$0xff]
                  %305 = vst [vmem:[%s273 + $0x78] sm:$0xff] %v304
                  %v306 = vld [vmem:[%s272 + $0x100] sm:$0xff]
                  %307 = vst [vmem:[%s273 + $0x80] sm:$0xff] %v306
                  %v308 = vld [vmem:[%s272 + $0x110] sm:$0xff]
                  %309 = vst [vmem:[%s273 + $0x88] sm:$0xff] %v308
                  %v310 = vld [vmem:[%s272 + $0x120] sm:$0xff]
                  %311 = vst [vmem:[%s273 + $0x90] sm:$0xff] %v310
                  %v312 = vld [vmem:[%s272 + $0x130] sm:$0xff]
                  %313 = vst [vmem:[%s273 + $0x98] sm:$0xff] %v312
                  %v314 = vld [vmem:[%s272 + $0x140] sm:$0xff]
                  %315 = vst [vmem:[%s273 + $0xa0] sm:$0xff] %v314
                  %v316 = vld [vmem:[%s272 + $0x150] sm:$0xff]
                  %317 = vst [vmem:[%s273 + $0xa8] sm:$0xff] %v316
                  %v318 = vld [vmem:[%s272 + $0x160] sm:$0xff]
                  %319 = vst [vmem:[%s273 + $0xb0] sm:$0xff] %v318
                  %v320 = vld [vmem:[%s272 + $0x170] sm:$0xff]
                  %321 = vst [vmem:[%s273 + $0xb8] sm:$0xff] %v320
                  %v322 = vld [vmem:[%s272 + $0x180] sm:$0xff]
                  %323 = vst [vmem:[%s273 + $0xc0] sm:$0xff] %v322
                  %v324 = vld [vmem:[%s272 + $0x190] sm:$0xff]
                  %325 = vst [vmem:[%s273 + $0xc8] sm:$0xff] %v324
                  %v326 = vld [vmem:[%s272 + $0x1a0] sm:$0xff]
                  %327 = vst [vmem:[%s273 + $0xd0] sm:$0xff] %v326
                  %v328 = vld [vmem:[%s272 + $0x1b0] sm:$0xff]
                  %329 = vst [vmem:[%s273 + $0xd8] sm:$0xff] %v328
                  %v330 = vld [vmem:[%s272 + $0x1c0] sm:$0xff]
                  %331 = vst [vmem:[%s273 + $0xe0] sm:$0xff] %v330
                  %v332 = vld [vmem:[%s272 + $0x1d0] sm:$0xff]
                  %333 = vst [vmem:[%s273 + $0xe8] sm:$0xff] %v332
                  %v334 = vld [vmem:[%s272 + $0x1e0] sm:$0xff]
                  %335 = vst [vmem:[%s273 + $0xf0] sm:$0xff] %v334
                  %v336 = vld [vmem:[%s272 + $0x1f0] sm:$0xff]
                  %337 = vst [vmem:[%s273 + $0xf8] sm:$0xff] %v336
                $region52: #{decoder_layer.15} parent=46 // loop_footer
                  %s271 = sadd.s32 1, %s267
                $region53: #{decoder_layer.15} parent=46 // loop_footer_branch
                  %266 = sbr.rel target = $region49
                $region54: #{decoder_layer.15} parent=46 // loop_exit
                  _
              $region47: #{decoder_layer.15} parent=31 // pred_fallthru
                _
              // Predicated region
              $region55: #{decoder_layer.15} parent=31 // pred_check
                _
              $region56: #{decoder_layer.15} parent=31 // pred_check_branch
                %339 = sbr.rel target = $region58
              $region57: #{decoder_layer.15} parent=31 // pred_region
                _
              $region58: #{decoder_layer.15} parent=31 // pred_fallthru
                _
            $region32: #{decoder_layer.15} parent=27 // pred_fallthru
              _
            // Predicated region
            $region33: #{decoder_layer.15} parent=27 // pred_check
              _
            $region34: #{decoder_layer.15} parent=27 // pred_check_branch
              %190 = sbr.rel target = $region36
            $region35: #{decoder_layer.15} parent=27 // pred_region
              loop: start=0, step=1, limit=1
              $region37: #{decoder_layer.15} parent=35 // loop_pre_header
                _
              $region38: #{decoder_layer.15} parent=35 // loop_header
                %s193 = sphi 0, %s197
                %p194 = scmp.ge.s32.totalorder %s193, 1
                %s198 = sphi %s184, %s184
                %s199 = sphi %s178, %s178
              $region39: #{decoder_layer.15} parent=35 // loop_header_branch
                %196 = sbr.rel (%p194) target = $region43
              $region40: #{decoder_layer.15} parent=35 // loop_body
                %v200 = vld [vmem:[%s198] sm:$0xff]
                %201 = vst [vmem:[%s199] sm:$0xff] %v200
                %v202 = vld [vmem:[%s198 + $0x10] sm:$0xff]
                %203 = vst [vmem:[%s199 + $0x8] sm:$0xff] %v202
                %v204 = vld [vmem:[%s198 + $0x20] sm:$0xff]
                %205 = vst [vmem:[%s199 + $0x10] sm:$0xff] %v204
                %v206 = vld [vmem:[%s198 + $0x30] sm:$0xff]
                %207 = vst [vmem:[%s199 + $0x18] sm:$0xff] %v206
                %v208 = vld [vmem:[%s198 + $0x40] sm:$0xff]
                %209 = vst [vmem:[%s199 + $0x20] sm:$0xff] %v208
                %v210 = vld [vmem:[%s198 + $0x50] sm:$0xff]
                %211 = vst [vmem:[%s199 + $0x28] sm:$0xff] %v210
                %v212 = vld [vmem:[%s198 + $0x60] sm:$0xff]
                %213 = vst [vmem:[%s199 + $0x30] sm:$0xff] %v212
                %v214 = vld [vmem:[%s198 + $0x70] sm:$0xff]
                %215 = vst [vmem:[%s199 + $0x38] sm:$0xff] %v214
                %v216 = vld [vmem:[%s198 + $0x80] sm:$0xff]
                %217 = vst [vmem:[%s199 + $0x40] sm:$0xff] %v216
                %v218 = vld [vmem:[%s198 + $0x90] sm:$0xff]
                %219 = vst [vmem:[%s199 + $0x48] sm:$0xff] %v218
                %v220 = vld [vmem:[%s198 + $0xa0] sm:$0xff]
                %221 = vst [vmem:[%s199 + $0x50] sm:$0xff] %v220
                %v222 = vld [vmem:[%s198 + $0xb0] sm:$0xff]
                %223 = vst [vmem:[%s199 + $0x58] sm:$0xff] %v222
                %v224 = vld [vmem:[%s198 + $0xc0] sm:$0xff]
                %225 = vst [vmem:[%s199 + $0x60] sm:$0xff] %v224
                %v226 = vld [vmem:[%s198 + $0xd0] sm:$0xff]
                %227 = vst [vmem:[%s199 + $0x68] sm:$0xff] %v226
                %v228 = vld [vmem:[%s198 + $0xe0] sm:$0xff]
                %229 = vst [vmem:[%s199 + $0x70] sm:$0xff] %v228
                %v230 = vld [vmem:[%s198 + $0xf0] sm:$0xff]
                %231 = vst [vmem:[%s199 + $0x78] sm:$0xff] %v230
                %v232 = vld [vmem:[%s198 + $0x100] sm:$0xff]
                %233 = vst [vmem:[%s199 + $0x80] sm:$0xff] %v232
                %v234 = vld [vmem:[%s198 + $0x110] sm:$0xff]
                %235 = vst [vmem:[%s199 + $0x88] sm:$0xff] %v234
                %v236 = vld [vmem:[%s198 + $0x120] sm:$0xff]
                %237 = vst [vmem:[%s199 + $0x90] sm:$0xff] %v236
                %v238 = vld [vmem:[%s198 + $0x130] sm:$0xff]
                %239 = vst [vmem:[%s199 + $0x98] sm:$0xff] %v238
                %v240 = vld [vmem:[%s198 + $0x140] sm:$0xff]
                %241 = vst [vmem:[%s199 + $0xa0] sm:$0xff] %v240
                %v242 = vld [vmem:[%s198 + $0x150] sm:$0xff]
                %243 = vst [vmem:[%s199 + $0xa8] sm:$0xff] %v242
                %v244 = vld [vmem:[%s198 + $0x160] sm:$0xff]
                %245 = vst [vmem:[%s199 + $0xb0] sm:$0xff] %v244
                %v246 = vld [vmem:[%s198 + $0x170] sm:$0xff]
                %247 = vst [vmem:[%s199 + $0xb8] sm:$0xff] %v246
                %v248 = vld [vmem:[%s198 + $0x180] sm:$0xff]
                %249 = vst [vmem:[%s199 + $0xc0] sm:$0xff] %v248
                %v250 = vld [vmem:[%s198 + $0x190] sm:$0xff]
                %251 = vst [vmem:[%s199 + $0xc8] sm:$0xff] %v250
                %v252 = vld [vmem:[%s198 + $0x1a0] sm:$0xff]
                %253 = vst [vmem:[%s199 + $0xd0] sm:$0xff] %v252
                %v254 = vld [vmem:[%s198 + $0x1b0] sm:$0xff]
                %255 = vst [vmem:[%s199 + $0xd8] sm:$0xff] %v254
                %v256 = vld [vmem:[%s198 + $0x1c0] sm:$0xff]
                %257 = vst [vmem:[%s199 + $0xe0] sm:$0xff] %v256
                %v258 = vld [vmem:[%s198 + $0x1d0] sm:$0xff]
                %259 = vst [vmem:[%s199 + $0xe8] sm:$0xff] %v258
                %v260 = vld [vmem:[%s198 + $0x1e0] sm:$0xff]
                %261 = vst [vmem:[%s199 + $0xf0] sm:$0xff] %v260
                %v262 = vld [vmem:[%s198 + $0x1f0] sm:$0xff]
                %263 = vst [vmem:[%s199 + $0xf8] sm:$0xff] %v262
              $region41: #{decoder_layer.15} parent=35 // loop_footer
                %s197 = sadd.s32 1, %s193
              $region42: #{decoder_layer.15} parent=35 // loop_footer_branch
                %192 = sbr.rel target = $region38
              $region43: #{decoder_layer.15} parent=35 // loop_exit
                _
            $region36: #{decoder_layer.15} parent=27 // pred_fallthru
              _
          $region28: #{decoder_layer.15} parent=23 // pred_fallthru
            _
          %340 = vnop
        $region24: #{decoder_layer.15} parent=19 // pred_fallthru
          _
        // Predicated region
        $region59: #{decoder_layer.15} parent=19 // pred_check
          %p341 = pneg %p104
        $region60: #{decoder_layer.15} parent=19 // pred_check_branch
          %343 = sbr.rel (%p341) target = $region62
        $region61: #{decoder_layer.15} parent=19 // pred_region
          %s344 = smul.u32 2, %s17
          %p345 = scmp.lt.s32.totalorder %s344, 3
          %s346 = scalar_select %p345, %s344, 3
          %s347 = scalar_lea.vmem %s2, %s346
          %s348 = smul.u32 2, %s17
        $region62: #{decoder_layer.15} parent=19 // pred_fallthru
          _
      $region20: #{decoder_layer.15} parent=5 // pred_fallthru
        _
      %p349 = scmp.le.s32.totalorder 1, %s9
      %p350 = scmp.lt.s32.totalorder %s9, 3
      %p351 = pnand %p349, %p350
      %p352 = pneg %p351
      // Predicated region
      $region63: #{decoder_layer.15} parent=5 // pred_check
        _
      $region64: #{decoder_layer.15} parent=5 // pred_check_branch
        %354 = sbr.rel (%p351) target = $region66
      $region65: #{decoder_layer.15} parent=5 // pred_region
        %s355 = ssub.s32 %s9, 1
        %s356 = sand.u32 %s71, 1
        %s357 = sand.u32 %s71, 1
        %s358 = smul.addr %s357, 256
        %s359 = scalar_lea.vmem [#allocation3], %s358
        // Predicated region
        $region67: #{decoder_layer.15} parent=65 // pred_check
          %p360 = pneg %p84
        $region68: #{decoder_layer.15} parent=65 // pred_check_branch
          %362 = sbr.rel (%p360) target = $region70
        $region69: #{decoder_layer.15} parent=65 // pred_region
          _
        $region70: #{decoder_layer.15} parent=65 // pred_fallthru
          _
        %s363 = smul.u32 4, %s19
        %s364 = smul.u32 2, %s21
        %p365 = scmp.lt.s32.totalorder %s363, 3
        %s366 = scalar_select %p365, %s363, 3
        %p367 = scmp.lt.s32.totalorder %s364, 1
        %s368 = scalar_select %p367, %s364, 1
        %s369 = smul.addr %s366, 2
        %s370 = sadd.s32 %s368, %s369
        %s371 = smul.addr %s370, 8
        %s372 = scalar_lea.vmem %s0, %s371
        %p373 = pneg %p56
        %p374 = pneg %p53
        %s375 = sand.u32 %s71, 1
        %s376 = sand.u32 %s71, 1
        %s377 = smul.addr %s376, 256
        %s378 = scalar_lea.vmem [#allocation3], %s377
        %p379 = pneg %p84
        %p380 = pneg %p81
        %s381 = smul.u32 2, %s20
        %p382 = scmp.lt.s32.totalorder %s381, 3
        %s383 = scalar_select %p382, %s381, 3
        %s384 = scalar_lea.vmem %s2, %s383
        %p385 = pneg %p110
        %p386 = pneg %p107
        %p387 = pneg %p138
        %p388 = pneg %p135
        %s389 = sand.u32 %s125, 1
        %s390 = sand.u32 %s125, 1
        %s391 = smul.addr %s390, 32
        %s392 = scalar_lea.vmem [#allocation4], %s391
        %s393 = smul.u32 4, %s19
        %s394 = smul.u32 2, %s21
        %p395 = scmp.lt.s32.totalorder %s393, 3
        %s396 = scalar_select %p395, %s393, 3
        %p397 = scmp.lt.s32.totalorder %s394, 1
        %s398 = scalar_select %p397, %s394, 1
        %s399 = smul.addr %s396, 2
        %s400 = sadd.s32 %s398, %s399
        %s401 = smul.addr %s400, 8
        %s402 = scalar_lea.vmem %s0, %s401
        %s403 = smul.u32 4, %s19
        %s404 = smul.u32 2, %s21
        %s405 = smul.u32 32, %s21
        %s406 = smul.u32 2, %s20
        %s407 = smul.u32 2, %s20
        %p408 = scmp.lt.s32.totalorder %s407, 3
        %s409 = scalar_select %p408, %s407, 3
        %s410 = scalar_lea.vmem %s2, %s409
        %s411 = smul.u32 2, %s20
        %s412 = smul.u32 4, %s19
        %s413 = smul.u32 2, %s20
        %p414 = scmp.eq.s32.totalorder %s21, 0
        // Predicated region
        $region71: #{decoder_layer.15} parent=65 // pred_check
          %p415 = pneg %p414
        $region72: #{decoder_layer.15} parent=65 // pred_check_branch
          %417 = sbr.rel (%p415) target = $region74
        $region73: #{decoder_layer.15} parent=65 // pred_region
          %418 = vst [vmem:[#allocation2] sm:$0xff] 0.0
          %419 = vst [vmem:[#allocation2 + $0x8] sm:$0xff] 0.0
          %420 = vst [vmem:[#allocation2 + $0x10] sm:$0xff] 0.0
          %421 = vst [vmem:[#allocation2 + $0x18] sm:$0xff] 0.0
          %422 = vst [vmem:[#allocation2 + $0x20] sm:$0xff] 0.0
          %423 = vst [vmem:[#allocation2 + $0x28] sm:$0xff] 0.0
          %424 = vst [vmem:[#allocation2 + $0x30] sm:$0xff] 0.0
          %425 = vst [vmem:[#allocation2 + $0x38] sm:$0xff] 0.0
        $region74: #{decoder_layer.15} parent=65 // pred_fallthru
          _
        %v426 = vld [vmem:[#allocation2] sm:$0xff]
        %v427 = vld [vmem:[#allocation2 + $0x8] sm:$0xff]
        %v428 = vld [vmem:[#allocation2 + $0x10] sm:$0xff]
        %v429 = vld [vmem:[#allocation2 + $0x18] sm:$0xff]
        %v430 = vld [vmem:[#allocation2 + $0x20] sm:$0xff]
        %v431 = vld [vmem:[#allocation2 + $0x28] sm:$0xff]
        %v432 = vld [vmem:[#allocation2 + $0x30] sm:$0xff]
        %v433 = vld [vmem:[#allocation2 + $0x38] sm:$0xff]
        %v434 = vld [vmem:[%s402] sm:$0xff]
        %v435 = vld [vmem:[%s402 + $0x8] sm:$0xff]
        %v436 = vld [vmem:[%s402 + $0x10] sm:$0xff]
        %v437 = vld [vmem:[%s402 + $0x18] sm:$0xff]
        %v438 = vld [vmem:[%s402 + $0x20] sm:$0xff]
        %v439 = vld [vmem:[%s402 + $0x28] sm:$0xff]
        %v440 = vld [vmem:[%s402 + $0x30] sm:$0xff]
        %v441 = vld [vmem:[%s402 + $0x38] sm:$0xff]
        %v442 = vpack.c.bf16 %v436, %v434
        %v443 = vpack.c.bf16 %v437, %v435
        %v444 = vpack.c.bf16 %v440, %v438
        %v445 = vpack.c.bf16 %v441, %v439
        %v446 = vld [vmem:[%s359] sm:$0xff]
        %v447 = vld [vmem:[%s359 + $0x8] sm:$0xff]
        %v448 = vld [vmem:[%s359 + $0x10] sm:$0xff]
        %v449 = vld [vmem:[%s359 + $0x18] sm:$0xff]
        %v450 = vld [vmem:[%s359 + $0x20] sm:$0xff]
        %v451 = vld [vmem:[%s359 + $0x28] sm:$0xff]
        %v452 = vld [vmem:[%s359 + $0x30] sm:$0xff]
        %v453 = vld [vmem:[%s359 + $0x38] sm:$0xff]
        %v454 = vld [vmem:[%s359 + $0x40] sm:$0xff]
        %v455 = vld [vmem:[%s359 + $0x48] sm:$0xff]
        %v456 = vld [vmem:[%s359 + $0x50] sm:$0xff]
        %v457 = vld [vmem:[%s359 + $0x58] sm:$0xff]
        %v458 = vld [vmem:[%s359 + $0x60] sm:$0xff]
        %v459 = vld [vmem:[%s359 + $0x68] sm:$0xff]
        %v460 = vld [vmem:[%s359 + $0x70] sm:$0xff]
        %v461 = vld [vmem:[%s359 + $0x78] sm:$0xff]
        %v462 = vld [vmem:[%s359 + $0x80] sm:$0xff]
        %v463 = vld [vmem:[%s359 + $0x88] sm:$0xff]
        %v464 = vld [vmem:[%s359 + $0x90] sm:$0xff]
        %v465 = vld [vmem:[%s359 + $0x98] sm:$0xff]
        %v466 = vld [vmem:[%s359 + $0xa0] sm:$0xff]
        %v467 = vld [vmem:[%s359 + $0xa8] sm:$0xff]
        %v468 = vld [vmem:[%s359 + $0xb0] sm:$0xff]
        %v469 = vld [vmem:[%s359 + $0xb8] sm:$0xff]
        %v470 = vld [vmem:[%s359 + $0xc0] sm:$0xff]
        %v471 = vld [vmem:[%s359 + $0xc8] sm:$0xff]
        %v472 = vld [vmem:[%s359 + $0xd0] sm:$0xff]
        %v473 = vld [vmem:[%s359 + $0xd8] sm:$0xff]
        %v474 = vld [vmem:[%s359 + $0xe0] sm:$0xff]
        %v475 = vld [vmem:[%s359 + $0xe8] sm:$0xff]
        %v476 = vld [vmem:[%s359 + $0xf0] sm:$0xff]
        %v477 = vld [vmem:[%s359 + $0xf8] sm:$0xff]
        %v510 = vunpack.c.l.b16 %v446
        %v511 = vunpack.c.h.b16 %v446
        %v512 = vunpack.c.l.b16 %v447
        %v513 = vunpack.c.h.b16 %v447
        %v514 = vunpack.c.l.b16 %v448
        %v515 = vunpack.c.h.b16 %v448
        %v516 = vunpack.c.l.b16 %v449
        %v517 = vunpack.c.h.b16 %v449
        %v518 = vunpack.c.l.b16 %v450
        %v519 = vunpack.c.h.b16 %v450
        %v520 = vunpack.c.l.b16 %v451
        %v521 = vunpack.c.h.b16 %v451
        %v522 = vunpack.c.l.b16 %v452
        %v523 = vunpack.c.h.b16 %v452
        %v524 = vunpack.c.l.b16 %v453
        %v525 = vunpack.c.h.b16 %v453
        %v526 = vunpack.c.l.b16 %v454
        %v527 = vunpack.c.h.b16 %v454
        %v528 = vunpack.c.l.b16 %v455
        %v529 = vunpack.c.h.b16 %v455
        %v530 = vunpack.c.l.b16 %v456
        %v531 = vunpack.c.h.b16 %v456
        %v532 = vunpack.c.l.b16 %v457
        %v533 = vunpack.c.h.b16 %v457
        %v534 = vunpack.c.l.b16 %v458
        %v535 = vunpack.c.h.b16 %v458
        %v536 = vunpack.c.l.b16 %v459
        %v537 = vunpack.c.h.b16 %v459
        %v538 = vunpack.c.l.b16 %v460
        %v539 = vunpack.c.h.b16 %v460
        %v540 = vunpack.c.l.b16 %v461
        %v541 = vunpack.c.h.b16 %v461
        %v542 = vunpack.c.l.b16 %v462
        %v543 = vunpack.c.h.b16 %v462
        %v544 = vunpack.c.l.b16 %v463
        %v545 = vunpack.c.h.b16 %v463
        %v546 = vunpack.c.l.b16 %v464
        %v547 = vunpack.c.h.b16 %v464
        %v548 = vunpack.c.l.b16 %v465
        %v549 = vunpack.c.h.b16 %v465
        %v550 = vunpack.c.l.b16 %v466
        %v551 = vunpack.c.h.b16 %v466
        %v552 = vunpack.c.l.b16 %v467
        %v553 = vunpack.c.h.b16 %v467
        %v554 = vunpack.c.l.b16 %v468
        %v555 = vunpack.c.h.b16 %v468
        %v556 = vunpack.c.l.b16 %v469
        %v557 = vunpack.c.h.b16 %v469
        %v558 = vunpack.c.l.b16 %v470
        %v559 = vunpack.c.h.b16 %v470
        %v560 = vunpack.c.l.b16 %v471
        %v561 = vunpack.c.h.b16 %v471
        %v562 = vunpack.c.l.b16 %v472
        %v563 = vunpack.c.h.b16 %v472
        %v564 = vunpack.c.l.b16 %v473
        %v565 = vunpack.c.h.b16 %v473
        %v566 = vunpack.c.l.b16 %v474
        %v567 = vunpack.c.h.b16 %v474
        %v568 = vunpack.c.l.b16 %v475
        %v569 = vunpack.c.h.b16 %v475
        %v570 = vunpack.c.l.b16 %v476
        %v571 = vunpack.c.h.b16 %v476
        %v572 = vunpack.c.l.b16 %v477
        %v573 = vunpack.c.h.b16 %v477
        %v574 = vpack.c.b16 %v512, %v510
        %v575 = vpack.c.b16 %v513, %v511
        %v576 = vpack.c.b16 %v516, %v514
        %v577 = vpack.c.b16 %v517, %v515
        %v578 = vpack.c.b16 %v520, %v518
        %v579 = vpack.c.b16 %v521, %v519
        %v580 = vpack.c.b16 %v524, %v522
        %v581 = vpack.c.b16 %v525, %v523
        %v582 = vpack.c.b16 %v528, %v526
        %v583 = vpack.c.b16 %v529, %v527
        %v584 = vpack.c.b16 %v532, %v530
        %v585 = vpack.c.b16 %v533, %v531
        %v586 = vpack.c.b16 %v536, %v534
        %v587 = vpack.c.b16 %v537, %v535
        %v588 = vpack.c.b16 %v540, %v538
        %v589 = vpack.c.b16 %v541, %v539
        %v590 = vpack.c.b16 %v544, %v542
        %v591 = vpack.c.b16 %v545, %v543
        %v592 = vpack.c.b16 %v548, %v546
        %v593 = vpack.c.b16 %v549, %v547
        %v594 = vpack.c.b16 %v552, %v550
        %v595 = vpack.c.b16 %v553, %v551
        %v596 = vpack.c.b16 %v556, %v554
        %v597 = vpack.c.b16 %v557, %v555
        %v598 = vpack.c.b16 %v560, %v558
        %v599 = vpack.c.b16 %v561, %v559
        %v600 = vpack.c.b16 %v564, %v562
        %v601 = vpack.c.b16 %v565, %v563
        %v602 = vpack.c.b16 %v568, %v566
        %v603 = vpack.c.b16 %v569, %v567
        %v604 = vpack.c.b16 %v572, %v570
        %v605 = vpack.c.b16 %v573, %v571
        %638 = vmatprep.subr.bf16.mxu0 %v575
        %639 = vmatpush1.bf16.msra.mxu0 %v574
        %640 = vmatprep.subr.bf16.mxu0 %v577
        %641 = vmatpush1.bf16.msra.mxu0 %v576
        %642 = vmatprep.subr.bf16.mxu0 %v579
        %643 = vmatpush1.bf16.msra.mxu0 %v578
        %644 = vmatprep.subr.bf16.mxu0 %v581
        %645 = vmatpush1.bf16.msra.mxu0 %v580
        %646 = vmatprep.subr.bf16.mxu0 %v583
        %647 = vmatpush1.bf16.msra.mxu0 %v582
        %648 = vmatprep.subr.bf16.mxu0 %v585
        %649 = vmatpush1.bf16.msra.mxu0 %v584
        %650 = vmatprep.subr.bf16.mxu0 %v587
        %651 = vmatpush1.bf16.msra.mxu0 %v586
        %652 = vmatprep.subr.bf16.mxu0 %v589
        %653 = vmatpush1.bf16.msra.mxu0 %v588
        %654 = vmatprep.subr.bf16.mxu0 %v591
        %655 = vmatpush1.bf16.msra.mxu0 %v590
        %656 = vmatprep.subr.bf16.mxu0 %v593
        %657 = vmatpush1.bf16.msra.mxu0 %v592
        %658 = vmatprep.subr.bf16.mxu0 %v595
        %659 = vmatpush1.bf16.msra.mxu0 %v594
        %660 = vmatprep.subr.bf16.mxu0 %v597
        %661 = vmatpush1.bf16.msra.mxu0 %v596
        %662 = vmatprep.subr.bf16.mxu0 %v599
        %663 = vmatpush1.bf16.msra.mxu0 %v598
        %664 = vmatprep.subr.bf16.mxu0 %v601
        %665 = vmatpush1.bf16.msra.mxu0 %v600
        %666 = vmatprep.subr.bf16.mxu0 %v603
        %667 = vmatpush1.bf16.msra.mxu0 %v602
        %668 = vmatprep.subr.bf16.mxu0 %v605
        %669 = vmatpush1.bf16.msra.mxu0 %v604
        %670 = vmatprep.mubr.bf16.mxu0 %v443
        %671 = vmatmul.mubr.bf16.gmra.mrb[0].mxu0 %v442
        %v672 = vpop.f32.mrb[0].mxu0
        %v673 = vadd.f32 0.0, %v672
        %v674 = vpop.f32.mrb[0].mxu0
        %v675 = vadd.f32 0.0, %v674
        %v676 = vpop.f32.mrb[0].mxu0
        %v677 = vadd.f32 0.0, %v676
        %v678 = vpop.f32.mrb[0].mxu0
        %v679 = vadd.f32 0.0, %v678
        %680 = vmatprep.mubr.bf16.mxu0 %v445
        %681 = vmatmul.mubr.bf16.gmra.mrb[0].mxu0 %v444
        %v682 = vpop.f32.mrb[0].mxu0
        %v683 = vadd.f32 0.0, %v682
        %v684 = vpop.f32.mrb[0].mxu0
        %v685 = vadd.f32 0.0, %v684
        %v686 = vpop.f32.mrb[0].mxu0
        %v687 = vadd.f32 0.0, %v686
        %v688 = vpop.f32.mrb[0].mxu0
        %v689 = vadd.f32 0.0, %v688
        %690 = vdwg.mxu0
        %v691 = vadd.f32 %v426, %v673
        %v692 = vadd.f32 %v427, %v675
        %v693 = vadd.f32 %v428, %v677
        %v694 = vadd.f32 %v429, %v679
        %v695 = vadd.f32 %v430, %v683
        %v696 = vadd.f32 %v431, %v685
        %v697 = vadd.f32 %v432, %v687
        %v698 = vadd.f32 %v433, %v689
        %699 = vst [vmem:[#allocation2] sm:$0xff] %v691
        %700 = vst [vmem:[#allocation2 + $0x8] sm:$0xff] %v692
        %701 = vst [vmem:[#allocation2 + $0x10] sm:$0xff] %v693
        %702 = vst [vmem:[#allocation2 + $0x18] sm:$0xff] %v694
        %703 = vst [vmem:[#allocation2 + $0x20] sm:$0xff] %v695
        %704 = vst [vmem:[#allocation2 + $0x28] sm:$0xff] %v696
        %705 = vst [vmem:[#allocation2 + $0x30] sm:$0xff] %v697
        %706 = vst [vmem:[#allocation2 + $0x38] sm:$0xff] %v698
        // Predicated region
        $region75: #{decoder_layer.15} parent=65 // pred_check
          %p707 = pneg %p414
        $region76: #{decoder_layer.15} parent=65 // pred_check_branch
          %709 = sbr.rel (%p707) target = $region78
        $region77: #{decoder_layer.15} parent=65 // pred_region
          %v710 = vld [vmem:[#allocation2] sm:$0xff]
          %v711 = vld [vmem:[#allocation2 + $0x8] sm:$0xff]
          %v712 = vld [vmem:[#allocation2 + $0x10] sm:$0xff]
          %v713 = vld [vmem:[#allocation2 + $0x18] sm:$0xff]
          %v714 = vld [vmem:[#allocation2 + $0x20] sm:$0xff]
          %v715 = vld [vmem:[#allocation2 + $0x28] sm:$0xff]
          %v716 = vld [vmem:[#allocation2 + $0x30] sm:$0xff]
          %v717 = vld [vmem:[#allocation2 + $0x38] sm:$0xff]
          %v718 = vld [vmem:[%s410] sm:$0x3]
          %v720 = vlaneseq
          %v721 = vshrl.u32 %v720, 7
          %v722 = vsub.s32 0, %v721
          %v723 = vrot.slane %v718, %v722
          %v724 = vlaneseq
          %v725 = vshrl.u32 %v724, 7
          %v726 = vsub.s32 1, %v725
          %v727 = vrot.slane %v718, %v726
          %v730 = vadd.f32 %v710, %v723
          %v731 = vadd.f32 %v711, %v727
          %v732 = vadd.f32 %v712, %v723
          %v733 = vadd.f32 %v713, %v727
          %v734 = vadd.f32 %v714, %v723
          %v735 = vadd.f32 %v715, %v727
          %v736 = vadd.f32 %v716, %v723
          %v737 = vadd.f32 %v717, %v727
          %v738 = vpack.c.bf16 %v732, %v730
          %v739 = vpack.c.bf16 %v733, %v731
          %v740 = vpack.c.bf16 %v736, %v734
          %v741 = vpack.c.bf16 %v737, %v735
          %v746 = vunpack.c.l.b16 %v738
          %v747 = vunpack.c.l.b16 %v739
          %v748 = vunpack.c.h.b16 %v738
          %v749 = vunpack.c.h.b16 %v739
          %v750 = vunpack.c.l.b16 %v740
          %v751 = vunpack.c.l.b16 %v741
          %v752 = vunpack.c.h.b16 %v740
          %v753 = vunpack.c.h.b16 %v741
          %v754 = vpack.c.b16 %v747, %v746
          %v755 = vpack.c.b16 %v749, %v748
          %v756 = vpack.c.b16 %v751, %v750
          %v757 = vpack.c.b16 %v753, %v752
          %762 = vst [vmem:[%s392] sm:$0xff] %v754
          %763 = vst [vmem:[%s392 + $0x8] sm:$0xff] %v755
          %764 = vst [vmem:[%s392 + $0x10] sm:$0xff] %v756
          %765 = vst [vmem:[%s392 + $0x18] sm:$0xff] %v757
        $region78: #{decoder_layer.15} parent=65 // pred_fallthru
          _
        %s766 = sand.u32 %s125, 1
        %s767 = sand.u32 %s125, 1
        %s768 = smul.addr %s767, 32
        %s769 = scalar_lea.vmem [#allocation4], %s768
        // Predicated region
        $region79: #{decoder_layer.15} parent=65 // pred_check
          %p770 = pneg %p135
        $region80: #{decoder_layer.15} parent=65 // pred_check_branch
          %772 = sbr.rel (%p770) target = $region82
        $region81: #{decoder_layer.15} parent=65 // pred_region
          %s773 = smul.u32 4, %s19
          %s774 = smul.u32 2, %s20
          %s775 = smul.addr %s773, 4
          %s776 = sadd.s32 %s774, %s775
          %s777 = smul.addr %s776, 4
          %s778 = scalar_lea.vmem %s3, %s777
          // Predicated region
          $region83: #{decoder_layer.15} parent=81 // pred_check
            _
          $region84: #{decoder_layer.15} parent=81 // pred_check_branch
            %780 = sbr.rel (0) target = $region86
          $region85: #{decoder_layer.15} parent=81 // pred_region
            // Predicated region
            $region87: #{decoder_layer.15} parent=85 // pred_check
              _
            $region88: #{decoder_layer.15} parent=85 // pred_check_branch
              %782 = sbr.rel (0) target = $region90
            $region89: #{decoder_layer.15} parent=85 // pred_region
              // Predicated region
              $region102: #{decoder_layer.15} parent=89 // pred_check
                _
              $region103: #{decoder_layer.15} parent=89 // pred_check_branch
                %803 = sbr.rel (0) target = $region105
              $region104: #{decoder_layer.15} parent=89 // pred_region
                loop: start=0, step=1, limit=1
                $region106: #{decoder_layer.15} parent=104 // loop_pre_header
                  _
                $region107: #{decoder_layer.15} parent=104 // loop_header
                  %s805 = sphi 0, %s809
                  %p806 = scmp.ge.s32.totalorder %s805, 1
                  %s810 = sphi %s769, %s769
                  %s811 = sphi %s778, %s778
                $region108: #{decoder_layer.15} parent=104 // loop_header_branch
                  %808 = sbr.rel (%p806) target = $region112
                $region109: #{decoder_layer.15} parent=104 // loop_body
                  %v812 = vld [vmem:[%s810] sm:$0xff]
                  %813 = vst [vmem:[%s811] sm:$0xff] %v812
                  %v814 = vld [vmem:[%s810 + $0x8] sm:$0xff]
                  %815 = vst [vmem:[%s811 + $0x10] sm:$0xff] %v814
                  %v816 = vld [vmem:[%s810 + $0x10] sm:$0xff]
                  %817 = vst [vmem:[%s811 + $0x20] sm:$0xff] %v816
                  %v818 = vld [vmem:[%s810 + $0x18] sm:$0xff]
                  %819 = vst [vmem:[%s811 + $0x30] sm:$0xff] %v818
                $region110: #{decoder_layer.15} parent=104 // loop_footer
                  %s809 = sadd.s32 1, %s805
                $region111: #{decoder_layer.15} parent=104 // loop_footer_branch
                  %804 = sbr.rel target = $region107
                $region112: #{decoder_layer.15} parent=104 // loop_exit
                  _
              $region105: #{decoder_layer.15} parent=89 // pred_fallthru
                _
              // Predicated region
              $region113: #{decoder_layer.15} parent=89 // pred_check
                _
              $region114: #{decoder_layer.15} parent=89 // pred_check_branch
                %821 = sbr.rel target = $region116
              $region115: #{decoder_layer.15} parent=89 // pred_region
                _
              $region116: #{decoder_layer.15} parent=89 // pred_fallthru
                _
            $region90: #{decoder_layer.15} parent=85 // pred_fallthru
              _
            // Predicated region
            $region91: #{decoder_layer.15} parent=85 // pred_check
              _
            $region92: #{decoder_layer.15} parent=85 // pred_check_branch
              %784 = sbr.rel target = $region94
            $region93: #{decoder_layer.15} parent=85 // pred_region
              loop: start=0, step=1, limit=1
              $region95: #{decoder_layer.15} parent=93 // loop_pre_header
                _
              $region96: #{decoder_layer.15} parent=93 // loop_header
                %s787 = sphi 0, %s791
                %p788 = scmp.ge.s32.totalorder %s787, 1
                %s792 = sphi %s769, %s769
                %s793 = sphi %s778, %s778
              $region97: #{decoder_layer.15} parent=93 // loop_header_branch
                %790 = sbr.rel (%p788) target = $region101
              $region98: #{decoder_layer.15} parent=93 // loop_body
                %v794 = vld [vmem:[%s792] sm:$0xff]
                %795 = vst [vmem:[%s793] sm:$0xff] %v794
                %v796 = vld [vmem:[%s792 + $0x8] sm:$0xff]
                %797 = vst [vmem:[%s793 + $0x10] sm:$0xff] %v796
                %v798 = vld [vmem:[%s792 + $0x10] sm:$0xff]
                %799 = vst [vmem:[%s793 + $0x20] sm:$0xff] %v798
                %v800 = vld [vmem:[%s792 + $0x18] sm:$0xff]
                %801 = vst [vmem:[%s793 + $0x30] sm:$0xff] %v800
              $region99: #{decoder_layer.15} parent=93 // loop_footer
                %s791 = sadd.s32 1, %s787
              $region100: #{decoder_layer.15} parent=93 // loop_footer_branch
                %786 = sbr.rel target = $region96
              $region101: #{decoder_layer.15} parent=93 // loop_exit
                _
            $region94: #{decoder_layer.15} parent=85 // pred_fallthru
              _
          $region86: #{decoder_layer.15} parent=81 // pred_fallthru
            _
          %822 = vnop
        $region82: #{decoder_layer.15} parent=65 // pred_fallthru
          _
      $region66: #{decoder_layer.15} parent=5 // pred_fallthru
        _
      %p823 = scmp.le.s32.totalorder 2, %s9
      // Predicated region
      $region117: #{decoder_layer.15} parent=5 // pred_check
        %p824 = pneg %p823
      $region118: #{decoder_layer.15} parent=5 // pred_check_branch
        %826 = sbr.rel (%p824) target = $region120
      $region119: #{decoder_layer.15} parent=5 // pred_region
        %s827 = ssub.s32 %s9, 2
        // Predicated region
        $region121: #{decoder_layer.15} parent=119 // pred_check
          %p828 = pneg %p141
        $region122: #{decoder_layer.15} parent=119 // pred_check_branch
          %830 = sbr.rel (%p828) target = $region124
        $region123: #{decoder_layer.15} parent=119 // pred_region
          %s831 = sand.u32 %s126, 1
          %s832 = sand.u32 %s126, 1
          %s833 = smul.addr %s832, 32
          %s834 = scalar_lea.vmem [#allocation4], %s833
        $region124: #{decoder_layer.15} parent=119 // pred_fallthru
          _
      $region120: #{decoder_layer.15} parent=5 // pred_fallthru
        _
    $region6: #{decoder_layer.15} parent=1 // loop_footer
      %s13 = sadd.s32 1, %s9
    $region7: #{decoder_layer.15} parent=1 // loop_footer_branch
      %8 = sbr.rel target = $region3
    $region8: #{decoder_layer.15} parent=1 // loop_exit
      _

// kernel: decoder_layer.14
$region0: #{decoder_layer.14}
  #allocation0 [shape = 'u32[]', space=smem, size = 0x4, offset = 0x4, fixed_abs, tag = 'smem constant byte address 0x4 - core index']
  #allocation1 [shape = 'u32[144,128]{1,0:T(1,128)}', space=vmem, size = 0x12000, scoped, tag = 'internal scratch']
  #allocation2 [shape = 'f32[32,256]{1,0:T(8,128)}', space=vmem, size = 0x8000, scoped, tag = 'scratch operand']
  %s0 = inlined_call_operand.vmem [shape: f32[32,256], index: 0, kind: input, shape index: {}]
  %s1 = inlined_call_operand.vmem [shape: bf16[256,256], index: 1, kind: input, shape index: {}]
  %s2 = inlined_call_operand.vmem [shape: f32[1,256], index: 2, kind: input, shape index: {}]
  %s3 = inlined_call_operand.vmem [shape: bf16[32,256], index: 3, kind: output, shape index: {}]
  %s4 = sld [smem:[#allocation0]]
  $region30: #{decoder_layer.14} parent=0
    _
  %s6 = ssub.s32 1, %s4
  %s7 = scalar_select 0, %s6, %s4
  // Predicated region
  $region2: #{decoder_layer.14} parent=0 // pred_check
    _
  $region3: #{decoder_layer.14} parent=0 // pred_check_branch
    %9 = sbr.rel (0) target = $region5
  $region4: #{decoder_layer.14} parent=0 // pred_region
    _
  $region5: #{decoder_layer.14} parent=0 // pred_fallthru
    _
  // Predicated region
  $region6: #{decoder_layer.14} parent=0 // pred_check
    _
  $region7: #{decoder_layer.14} parent=0 // pred_check_branch
    %11 = sbr.rel (0) target = $region9
  $region8: #{decoder_layer.14} parent=0 // pred_region
    _
  $region9: #{decoder_layer.14} parent=0 // pred_fallthru
    _
  // Predicated region
  $region10: #{decoder_layer.14} parent=0 // pred_check
    _
  $region11: #{decoder_layer.14} parent=0 // pred_check_branch
    %13 = sbr.rel (0) target = $region13
  $region12: #{decoder_layer.14} parent=0 // pred_region
    _
  $region13: #{decoder_layer.14} parent=0 // pred_fallthru
    _
  %p14 = scmp.eq.s32.totalorder 0, 0
  // Predicated region
  $region14: #{decoder_layer.14} parent=0 // pred_check
    %p15 = pneg %p14
  $region15: #{decoder_layer.14} parent=0 // pred_check_branch
    %17 = sbr.rel (%p15) target = $region17
  $region16: #{decoder_layer.14} parent=0 // pred_region
    %18 = vst [vmem:[#allocation2] sm:$0xff] 0.0
    %19 = vst [vmem:[#allocation2 + $0x8] sm:$0xff] 0.0
    %20 = vst [vmem:[#allocation2 + $0x10] sm:$0xff] 0.0
    %21 = vst [vmem:[#allocation2 + $0x18] sm:$0xff] 0.0
    %22 = vst [vmem:[#allocation2 + $0x20] sm:$0xff] 0.0
    %23 = vst [vmem:[#allocation2 + $0x28] sm:$0xff] 0.0
    %24 = vst [vmem:[#allocation2 + $0x30] sm:$0xff] 0.0
    %25 = vst [vmem:[#allocation2 + $0x38] sm:$0xff] 0.0
  $region17: #{decoder_layer.14} parent=0 // pred_fallthru
    _
  %v26 = vld [vmem:[#allocation2] sm:$0xff]
  %v27 = vld [vmem:[#allocation2 + $0x8] sm:$0xff]
  %v28 = vld [vmem:[#allocation2 + $0x10] sm:$0xff]
  %v29 = vld [vmem:[#allocation2 + $0x18] sm:$0xff]
  %v30 = vld [vmem:[#allocation2 + $0x20] sm:$0xff]
  %v31 = vld [vmem:[#allocation2 + $0x28] sm:$0xff]
  %v32 = vld [vmem:[#allocation2 + $0x30] sm:$0xff]
  %v33 = vld [vmem:[#allocation2 + $0x38] sm:$0xff]
  %v34 = vld [vmem:[%s0] sm:$0xff]
  %v35 = vld [vmem:[%s0 + $0x8] sm:$0xff]
  %v36 = vld [vmem:[%s0 + $0x10] sm:$0xff]
  %v37 = vld [vmem:[%s0 + $0x18] sm:$0xff]
  %v38 = vld [vmem:[%s0 + $0x20] sm:$0xff]
  %v39 = vld [vmem:[%s0 + $0x28] sm:$0xff]
  %v40 = vld [vmem:[%s0 + $0x30] sm:$0xff]
  %v41 = vld [vmem:[%s0 + $0x38] sm:$0xff]
  %v42 = vpack.c.bf16 %v36, %v34
  %v43 = vpack.c.bf16 %v37, %v35
  %v44 = vpack.c.bf16 %v40, %v38
  %v45 = vpack.c.bf16 %v41, %v39
  %v46 = vld [vmem:[%s1] sm:$0xff]
  %v47 = vld [vmem:[%s1 + $0x8] sm:$0xff]
  %v48 = vld [vmem:[%s1 + $0x10] sm:$0xff]
  %v49 = vld [vmem:[%s1 + $0x18] sm:$0xff]
  %v50 = vld [vmem:[%s1 + $0x20] sm:$0xff]
  %v51 = vld [vmem:[%s1 + $0x28] sm:$0xff]
  %v52 = vld [vmem:[%s1 + $0x30] sm:$0xff]
  %v53 = vld [vmem:[%s1 + $0x38] sm:$0xff]
  %v54 = vld [vmem:[%s1 + $0x40] sm:$0xff]
  %v55 = vld [vmem:[%s1 + $0x48] sm:$0xff]
  %v56 = vld [vmem:[%s1 + $0x50] sm:$0xff]
  %v57 = vld [vmem:[%s1 + $0x58] sm:$0xff]
  %v58 = vld [vmem:[%s1 + $0x60] sm:$0xff]
  %v59 = vld [vmem:[%s1 + $0x68] sm:$0xff]
  %v60 = vld [vmem:[%s1 + $0x70] sm:$0xff]
  %v61 = vld [vmem:[%s1 + $0x78] sm:$0xff]
  %v62 = vld [vmem:[%s1 + $0x80] sm:$0xff]
  %v63 = vld [vmem:[%s1 + $0x88] sm:$0xff]
  %v64 = vld [vmem:[%s1 + $0x90] sm:$0xff]
  %v65 = vld [vmem:[%s1 + $0x98] sm:$0xff]
  %v66 = vld [vmem:[%s1 + $0xa0] sm:$0xff]
  %v67 = vld [vmem:[%s1 + $0xa8] sm:$0xff]
  %v68 = vld [vmem:[%s1 + $0xb0] sm:$0xff]
  %v69 = vld [vmem:[%s1 + $0xb8] sm:$0xff]
  %v70 = vld [vmem:[%s1 + $0xc0] sm:$0xff]
  %v71 = vld [vmem:[%s1 + $0xc8] sm:$0xff]
  %v72 = vld [vmem:[%s1 + $0xd0] sm:$0xff]
  %v73 = vld [vmem:[%s1 + $0xd8] sm:$0xff]
  %v74 = vld [vmem:[%s1 + $0xe0] sm:$0xff]
  %v75 = vld [vmem:[%s1 + $0xe8] sm:$0xff]
  %v76 = vld [vmem:[%s1 + $0xf0] sm:$0xff]
  %v77 = vld [vmem:[%s1 + $0xf8] sm:$0xff]
  %v110 = vunpack.c.l.b16 %v46
  %v111 = vunpack.c.h.b16 %v46
  %v112 = vunpack.c.l.b16 %v47
  %v113 = vunpack.c.h.b16 %v47
  %v114 = vunpack.c.l.b16 %v48
  %v115 = vunpack.c.h.b16 %v48
  %v116 = vunpack.c.l.b16 %v49
  %v117 = vunpack.c.h.b16 %v49
  %v118 = vunpack.c.l.b16 %v50
  %v119 = vunpack.c.h.b16 %v50
  %v120 = vunpack.c.l.b16 %v51
  %v121 = vunpack.c.h.b16 %v51
  %v122 = vunpack.c.l.b16 %v52
  %v123 = vunpack.c.h.b16 %v52
  %v124 = vunpack.c.l.b16 %v53
  %v125 = vunpack.c.h.b16 %v53
  %v126 = vunpack.c.l.b16 %v54
  %v127 = vunpack.c.h.b16 %v54
  %v128 = vunpack.c.l.b16 %v55
  %v129 = vunpack.c.h.b16 %v55
  %v130 = vunpack.c.l.b16 %v56
  %v131 = vunpack.c.h.b16 %v56
  %v132 = vunpack.c.l.b16 %v57
  %v133 = vunpack.c.h.b16 %v57
  %v134 = vunpack.c.l.b16 %v58
  %v135 = vunpack.c.h.b16 %v58
  %v136 = vunpack.c.l.b16 %v59
  %v137 = vunpack.c.h.b16 %v59
  %v138 = vunpack.c.l.b16 %v60
  %v139 = vunpack.c.h.b16 %v60
  %v140 = vunpack.c.l.b16 %v61
  %v141 = vunpack.c.h.b16 %v61
  %v142 = vunpack.c.l.b16 %v62
  %v143 = vunpack.c.h.b16 %v62
  %v144 = vunpack.c.l.b16 %v63
  %v145 = vunpack.c.h.b16 %v63
  %v146 = vunpack.c.l.b16 %v64
  %v147 = vunpack.c.h.b16 %v64
  %v148 = vunpack.c.l.b16 %v65
  %v149 = vunpack.c.h.b16 %v65
  %v150 = vunpack.c.l.b16 %v66
  %v151 = vunpack.c.h.b16 %v66
  %v152 = vunpack.c.l.b16 %v67
  %v153 = vunpack.c.h.b16 %v67
  %v154 = vunpack.c.l.b16 %v68
  %v155 = vunpack.c.h.b16 %v68
  %v156 = vunpack.c.l.b16 %v69
  %v157 = vunpack.c.h.b16 %v69
  %v158 = vunpack.c.l.b16 %v70
  %v159 = vunpack.c.h.b16 %v70
  %v160 = vunpack.c.l.b16 %v71
  %v161 = vunpack.c.h.b16 %v71
  %v162 = vunpack.c.l.b16 %v72
  %v163 = vunpack.c.h.b16 %v72
  %v164 = vunpack.c.l.b16 %v73
  %v165 = vunpack.c.h.b16 %v73
  %v166 = vunpack.c.l.b16 %v74
  %v167 = vunpack.c.h.b16 %v74
  %v168 = vunpack.c.l.b16 %v75
  %v169 = vunpack.c.h.b16 %v75
  %v170 = vunpack.c.l.b16 %v76
  %v171 = vunpack.c.h.b16 %v76
  %v172 = vunpack.c.l.b16 %v77
  %v173 = vunpack.c.h.b16 %v77
  %v174 = vpack.c.b16 %v112, %v110
  %v175 = vpack.c.b16 %v113, %v111
  %v176 = vpack.c.b16 %v116, %v114
  %v177 = vpack.c.b16 %v117, %v115
  %v178 = vpack.c.b16 %v120, %v118
  %v179 = vpack.c.b16 %v121, %v119
  %v180 = vpack.c.b16 %v124, %v122
  %v181 = vpack.c.b16 %v125, %v123
  %v182 = vpack.c.b16 %v128, %v126
  %v183 = vpack.c.b16 %v129, %v127
  %v184 = vpack.c.b16 %v132, %v130
  %v185 = vpack.c.b16 %v133, %v131
  %v186 = vpack.c.b16 %v136, %v134
  %v187 = vpack.c.b16 %v137, %v135
  %v188 = vpack.c.b16 %v140, %v138
  %v189 = vpack.c.b16 %v141, %v139
  %v190 = vpack.c.b16 %v144, %v142
  %v191 = vpack.c.b16 %v145, %v143
  %v192 = vpack.c.b16 %v148, %v146
  %v193 = vpack.c.b16 %v149, %v147
  %v194 = vpack.c.b16 %v152, %v150
  %v195 = vpack.c.b16 %v153, %v151
  %v196 = vpack.c.b16 %v156, %v154
  %v197 = vpack.c.b16 %v157, %v155
  %v198 = vpack.c.b16 %v160, %v158
  %v199 = vpack.c.b16 %v161, %v159
  %v200 = vpack.c.b16 %v164, %v162
  %v201 = vpack.c.b16 %v165, %v163
  %v202 = vpack.c.b16 %v168, %v166
  %v203 = vpack.c.b16 %v169, %v167
  %v204 = vpack.c.b16 %v172, %v170
  %v205 = vpack.c.b16 %v173, %v171
  %238 = vmatprep.subr.bf16.mxu0 %v175
  %239 = vmatpush1.bf16.msra.mxu0 %v174
  %240 = vmatprep.subr.bf16.mxu0 %v177
  %241 = vmatpush1.bf16.msra.mxu0 %v176
  %242 = vmatprep.subr.bf16.mxu0 %v179
  %243 = vmatpush1.bf16.msra.mxu0 %v178
  %244 = vmatprep.subr.bf16.mxu0 %v181
  %245 = vmatpush1.bf16.msra.mxu0 %v180
  %246 = vmatprep.subr.bf16.mxu0 %v183
  %247 = vmatpush1.bf16.msra.mxu0 %v182
  %248 = vmatprep.subr.bf16.mxu0 %v185
  %249 = vmatpush1.bf16.msra.mxu0 %v184
  %250 = vmatprep.subr.bf16.mxu0 %v187
  %251 = vmatpush1.bf16.msra.mxu0 %v186
  %252 = vmatprep.subr.bf16.mxu0 %v189
  %253 = vmatpush1.bf16.msra.mxu0 %v188
  %254 = vmatprep.subr.bf16.mxu0 %v191
  %255 = vmatpush1.bf16.msra.mxu0 %v190
  %256 = vmatprep.subr.bf16.mxu0 %v193
  %257 = vmatpush1.bf16.msra.mxu0 %v192
  %258 = vmatprep.subr.bf16.mxu0 %v195
  %259 = vmatpush1.bf16.msra.mxu0 %v194
  %260 = vmatprep.subr.bf16.mxu0 %v197
  %261 = vmatpush1.bf16.msra.mxu0 %v196
  %262 = vmatprep.subr.bf16.mxu0 %v199
  %263 = vmatpush1.bf16.msra.mxu0 %v198
  %264 = vmatprep.subr.bf16.mxu0 %v201
  %265 = vmatpush1.bf16.msra.mxu0 %v200
  %266 = vmatprep.subr.bf16.mxu0 %v203
  %267 = vmatpush1.bf16.msra.mxu0 %v202
  %268 = vmatprep.subr.bf16.mxu0 %v205
  %269 = vmatpush1.bf16.msra.mxu0 %v204
  %270 = vmatprep.mubr.bf16.mxu0 %v43
  %271 = vmatmul.mubr.bf16.gmra.mrb[0].mxu0 %v42
  %v272 = vpop.f32.mrb[0].mxu0
  %v273 = vadd.f32 0.0, %v272
  %v274 = vpop.f32.mrb[0].mxu0
  %v275 = vadd.f32 0.0, %v274
  %v276 = vpop.f32.mrb[0].mxu0
  %v277 = vadd.f32 0.0, %v276
  %v278 = vpop.f32.mrb[0].mxu0
  %v279 = vadd.f32 0.0, %v278
  %280 = vmatprep.mubr.bf16.mxu0 %v45
  %281 = vmatmul.mubr.bf16.gmra.mrb[0].mxu0 %v44
  %v282 = vpop.f32.mrb[0].mxu0
  %v283 = vadd.f32 0.0, %v282
  %v284 = vpop.f32.mrb[0].mxu0
  %v285 = vadd.f32 0.0, %v284
  %v286 = vpop.f32.mrb[0].mxu0
  %v287 = vadd.f32 0.0, %v286
  %v288 = vpop.f32.mrb[0].mxu0
  %v289 = vadd.f32 0.0, %v288
  %290 = vdwg.mxu0
  %v291 = vadd.f32 %v26, %v273
  %v292 = vadd.f32 %v27, %v275
  %v293 = vadd.f32 %v28, %v277
  %v294 = vadd.f32 %v29, %v279
  %v295 = vadd.f32 %v30, %v283
  %v296 = vadd.f32 %v31, %v285
  %v297 = vadd.f32 %v32, %v287
  %v298 = vadd.f32 %v33, %v289
  %299 = vst [vmem:[#allocation2] sm:$0xff] %v291
  %300 = vst [vmem:[#allocation2 + $0x8] sm:$0xff] %v292
  %301 = vst [vmem:[#allocation2 + $0x10] sm:$0xff] %v293
  %302 = vst [vmem:[#allocation2 + $0x18] sm:$0xff] %v294
  %303 = vst [vmem:[#allocation2 + $0x20] sm:$0xff] %v295
  %304 = vst [vmem:[#allocation2 + $0x28] sm:$0xff] %v296
  %305 = vst [vmem:[#allocation2 + $0x30] sm:$0xff] %v297
  %306 = vst [vmem:[#allocation2 + $0x38] sm:$0xff] %v298
  // Predicated region
  $region18: #{decoder_layer.14} parent=0 // pred_check
    %p307 = pneg %p14
  $region19: #{decoder_layer.14} parent=0 // pred_check_branch
    %309 = sbr.rel (%p307) target = $region21
  $region20: #{decoder_layer.14} parent=0 // pred_region
    %v310 = vld [vmem:[#allocation2] sm:$0xff]
    %v311 = vld [vmem:[#allocation2 + $0x8] sm:$0xff]
    %v312 = vld [vmem:[#allocation2 + $0x10] sm:$0xff]
    %v313 = vld [vmem:[#allocation2 + $0x18] sm:$0xff]
    %v314 = vld [vmem:[#allocation2 + $0x20] sm:$0xff]
    %v315 = vld [vmem:[#allocation2 + $0x28] sm:$0xff]
    %v316 = vld [vmem:[#allocation2 + $0x30] sm:$0xff]
    %v317 = vld [vmem:[#allocation2 + $0x38] sm:$0xff]
    %v318 = vld [vmem:[%s2] sm:$0x3]
    %v320 = vlaneseq
    %v321 = vshrl.u32 %v320, 7
    %v322 = vsub.s32 0, %v321
    %v323 = vrot.slane %v318, %v322
    %v324 = vlaneseq
    %v325 = vshrl.u32 %v324, 7
    %v326 = vsub.s32 1, %v325
    %v327 = vrot.slane %v318, %v326
    %v330 = vadd.f32 %v310, %v323
    %v331 = vadd.f32 %v311, %v327
    %v332 = vadd.f32 %v312, %v323
    %v333 = vadd.f32 %v313, %v327
    %v334 = vadd.f32 %v314, %v323
    %v335 = vadd.f32 %v315, %v327
    %v336 = vadd.f32 %v316, %v323
    %v337 = vadd.f32 %v317, %v327
    %v338 = vpack.c.bf16 %v332, %v330
    %v339 = vpack.c.bf16 %v333, %v331
    %v340 = vpack.c.bf16 %v336, %v334
    %v341 = vpack.c.bf16 %v337, %v335
    %v346 = vunpack.c.l.b16 %v338
    %v347 = vunpack.c.l.b16 %v339
    %v348 = vunpack.c.h.b16 %v338
    %v349 = vunpack.c.h.b16 %v339
    %v350 = vunpack.c.l.b16 %v340
    %v351 = vunpack.c.l.b16 %v341
    %v352 = vunpack.c.h.b16 %v340
    %v353 = vunpack.c.h.b16 %v341
    %v354 = vpack.c.b16 %v347, %v346
    %v355 = vpack.c.b16 %v349, %v348
    %v356 = vpack.c.b16 %v351, %v350
    %v357 = vpack.c.b16 %v353, %v352
    %362 = vst [vmem:[%s3] sm:$0xff] %v354
    %363 = vst [vmem:[%s3 + $0x8] sm:$0xff] %v355
    %364 = vst [vmem:[%s3 + $0x10] sm:$0xff] %v356
    %365 = vst [vmem:[%s3 + $0x18] sm:$0xff] %v357
  $region21: #{decoder_layer.14} parent=0 // pred_fallthru
    _
  // Predicated region
  $region22: #{decoder_layer.14} parent=0 // pred_check
    _
  $region23: #{decoder_layer.14} parent=0 // pred_check_branch
    %367 = sbr.rel (0) target = $region25
  $region24: #{decoder_layer.14} parent=0 // pred_region
    _
  $region25: #{decoder_layer.14} parent=0 // pred_fallthru
    _
  // Predicated region
  $region26: #{decoder_layer.14} parent=0 // pred_check
    _
  $region27: #{decoder_layer.14} parent=0 // pred_check_branch
    %369 = sbr.rel (0) target = $region29
  $region28: #{decoder_layer.14} parent=0 // pred_region
    _
  $region29: #{decoder_layer.14} parent=0 // pred_fallthru
    _

// kernel: decoder_layer.18
$region0: #{decoder_layer.18}
  #allocation0 [shape = 'u32[]', space=smem, size = 0x4, offset = 0x4, fixed_abs, tag = 'smem constant byte address 0x4 - core index']
  #allocation1 [shape = 'u32[144,128]{1,0:T(1,128)}', space=vmem, size = 0x12000, scoped, tag = 'internal scratch']
  #allocation2 [shape = 'f32[32,256]{1,0:T(8,128)}', space=vmem, size = 0x8000, scoped, tag = 'scratch operand']
  %s0 = inlined_call_operand.vmem [shape: f32[32,256], index: 0, kind: input, shape index: {}]
  %s1 = inlined_call_operand.vmem [shape: bf16[256,512], index: 1, kind: input, shape index: {}]
  %s2 = inlined_call_operand.vmem [shape: f32[1,512], index: 2, kind: input, shape index: {}]
  %s3 = inlined_call_operand.vmem [shape: bf16[32,512], index: 3, kind: output, shape index: {}]
  %s4 = sld [smem:[#allocation0]]
  $region125: #{decoder_layer.18} parent=0
    _
  %s6 = ssub.s32 1, %s4
  %s7 = scalar_select 0, %s6, %s4
  $region1: #{decoder_layer.18} parent=0
    #allocation3 [shape = 'u8[262144]{0}', space=vmem, size = 0x40000, scoped, tag = 'input window, operand 1']
    #allocation4 [shape = 'u8[32768]{0}', space=vmem, size = 0x8000, scoped, tag = 'output window, operand 0']
    loop: start=0, step=1, limit=4
    $region2: #{decoder_layer.18} parent=1 // loop_pre_header
      _
    $region3: #{decoder_layer.18} parent=1 // loop_header
      %s9 = sphi 0, %s13
      %p10 = scmp.ge.s32.totalorder %s9, 4
      %s16 = sphi 0, %s35
      %s17 = sphi 0, %s31
      %s18 = sphi 0, %s27
      %s19 = sphi 0, %s16
      %s20 = sphi 0, %s17
      %s21 = sphi 0, %s18
      %s22 = sphi 0, %s19
      %s23 = sphi 0, %s20
      %s24 = sphi 0, %s21
      %s40 = sphi 0, %s42
      %s43 = sphi 0, %s40
      %s44 = sphi 0, %s43
      %s60 = sphi 0, %s44
      %s68 = sphi 0, %s70
      %s71 = sphi 0, %s68
      %s72 = sphi 0, %s71
      %s88 = sphi 0, %s72
      %s94 = sphi 0, %s96
      %s97 = sphi 0, %s94
      %s98 = sphi 0, %s97
      %s114 = sphi 0, %s98
      %s122 = sphi 0, %s124
      %s125 = sphi 0, %s122
      %s126 = sphi 0, %s125
      %s142 = sphi 0, %s126
    $region4: #{decoder_layer.18} parent=1 // loop_header_branch
      %12 = sbr.rel (%p10) target = $region8
    $region5: #{decoder_layer.18} parent=1 // loop_body
      %s14 = ssub.s32 %s9, 1
      %s15 = ssub.s32 %s9, 2
      %s25 = sadd.s32 1, %s18
      %p26 = scmp.ge.s32.totalorder %s25, 1
      %s27 = scalar_select %p26, 0, %s25
      %s28 = sadd.s32 1, %s17
      %s29 = scalar_select %p26, %s28, %s17
      %p30 = scmp.ge.s32.totalorder %s29, 2
      %s31 = scalar_select %p30, 0, %s29
      %s32 = sadd.s32 1, %s16
      %s33 = scalar_select %p30, %s32, %s16
      %p34 = scmp.ge.s32.totalorder %s33, 1
      %s35 = scalar_select %p34, 0, %s33
      %s36 = ssub.s32 %s16, %s35
      %s37 = ssub.s32 %s18, %s27
      %s38 = sor.u32 %s36, %s37
      %p39 = scmp.eq.s32.totalorder %s38, 0
      %s41 = sadd.s32 %s40, 1
      %s42 = scalar_select %p39, %s40, %s41
      %p45 = pneg %p39
      %p46 = scmp.eq.s32.totalorder %s9, 1
      %p47 = por %p45, %p46
      %p48 = scmp.ne.s32.totalorder %s40, %s43
      %p49 = scmp.eq.s32.totalorder %s9, 0
      %p50 = por %p48, %p49
      %p51 = scmp.ne.s32.totalorder %s40, %s43
      %p52 = scmp.eq.s32.totalorder %s14, 1
      %p53 = por %p51, %p52
      %p54 = scmp.ne.s32.totalorder %s43, %s44
      %p55 = scmp.eq.s32.totalorder %s14, 0
      %p56 = por %p54, %p55
      %p57 = scmp.ne.s32.totalorder %s43, %s44
      %p58 = scmp.eq.s32.totalorder %s15, 1
      %p59 = por %p57, %p58
      %p61 = scmp.ne.s32.totalorder %s44, %s60
      %p62 = scmp.eq.s32.totalorder %s15, 0
      %p63 = por %p61, %p62
      %s64 = ssub.s32 %s18, %s27
      %s65 = ssub.s32 %s17, %s31
      %s66 = sor.u32 %s64, %s65
      %p67 = scmp.eq.s32.totalorder %s66, 0
      %s69 = sadd.s32 %s68, 1
      %s70 = scalar_select %p67, %s68, %s69
      %p73 = pneg %p67
      %p74 = scmp.eq.s32.totalorder %s9, 1
      %p75 = por %p73, %p74
      %p76 = scmp.ne.s32.totalorder %s68, %s71
      %p77 = scmp.eq.s32.totalorder %s9, 0
      %p78 = por %p76, %p77
      %p79 = scmp.ne.s32.totalorder %s68, %s71
      %p80 = scmp.eq.s32.totalorder %s14, 1
      %p81 = por %p79, %p80
      %p82 = scmp.ne.s32.totalorder %s71, %s72
      %p83 = scmp.eq.s32.totalorder %s14, 0
      %p84 = por %p82, %p83
      %p85 = scmp.ne.s32.totalorder %s71, %s72
      %p86 = scmp.eq.s32.totalorder %s15, 1
      %p87 = por %p85, %p86
      %p89 = scmp.ne.s32.totalorder %s72, %s88
      %p90 = scmp.eq.s32.totalorder %s15, 0
      %p91 = por %p89, %p90
      %s92 = ssub.s32 %s17, %s31
      %p93 = scmp.eq.s32.totalorder %s92, 0
      %s95 = sadd.s32 %s94, 1
      %s96 = scalar_select %p93, %s94, %s95
      %p99 = pneg %p93
      %p100 = scmp.eq.s32.totalorder %s9, 1
      %p101 = por %p99, %p100
      %p102 = scmp.ne.s32.totalorder %s94, %s97
      %p103 = scmp.eq.s32.totalorder %s9, 0
      %p104 = por %p102, %p103
      %p105 = scmp.ne.s32.totalorder %s94, %s97
      %p106 = scmp.eq.s32.totalorder %s14, 1
      %p107 = por %p105, %p106
      %p108 = scmp.ne.s32.totalorder %s97, %s98
      %p109 = scmp.eq.s32.totalorder %s14, 0
      %p110 = por %p108, %p109
      %p111 = scmp.ne.s32.totalorder %s97, %s98
      %p112 = scmp.eq.s32.totalorder %s15, 1
      %p113 = por %p111, %p112
      %p115 = scmp.ne.s32.totalorder %s98, %s114
      %p116 = scmp.eq.s32.totalorder %s15, 0
      %p117 = por %p115, %p116
      %s118 = ssub.s32 %s16, %s35
      %s119 = ssub.s32 %s17, %s31
      %s120 = sor.u32 %s118, %s119
      %p121 = scmp.eq.s32.totalorder %s120, 0
      %s123 = sadd.s32 %s122, 1
      %s124 = scalar_select %p121, %s122, %s123
      %p127 = pneg %p121
      %p128 = scmp.eq.s32.totalorder %s9, 1
      %p129 = por %p127, %p128
      %p130 = scmp.ne.s32.totalorder %s122, %s125
      %p131 = scmp.eq.s32.totalorder %s9, 0
      %p132 = por %p130, %p131
      %p133 = scmp.ne.s32.totalorder %s122, %s125
      %p134 = scmp.eq.s32.totalorder %s14, 1
      %p135 = por %p133, %p134
      %p136 = scmp.ne.s32.totalorder %s125, %s126
      %p137 = scmp.eq.s32.totalorder %s14, 0
      %p138 = por %p136, %p137
      %p139 = scmp.ne.s32.totalorder %s125, %s126
      %p140 = scmp.eq.s32.totalorder %s15, 1
      %p141 = por %p139, %p140
      %p143 = scmp.ne.s32.totalorder %s126, %s142
      %p144 = scmp.eq.s32.totalorder %s15, 0
      %p145 = por %p143, %p144
      %p146 = scmp.le.s32.totalorder 1, %s9
      %p147 = scmp.lt.s32.totalorder %s9, 3
      %p148 = pnand %p146, %p147
      %p149 = pneg %p148
      // Predicated region
      $region9: #{decoder_layer.18} parent=5 // pred_check
        _
      $region10: #{decoder_layer.18} parent=5 // pred_check_branch
        %151 = sbr.rel (%p148) target = $region12
      $region11: #{decoder_layer.18} parent=5 // pred_region
        %s152 = ssub.s32 %s9, 1
        // Predicated region
        $region13: #{decoder_layer.18} parent=11 // pred_check
          %p153 = pneg %p56
        $region14: #{decoder_layer.18} parent=11 // pred_check_branch
          %155 = sbr.rel (%p153) target = $region16
        $region15: #{decoder_layer.18} parent=11 // pred_region
          %s156 = smul.u32 4, %s19
          %s157 = smul.u32 2, %s21
          %p158 = scmp.lt.s32.totalorder %s156, 3
          %s159 = scalar_select %p158, %s156, 3
          %p160 = scmp.lt.s32.totalorder %s157, 1
          %s161 = scalar_select %p160, %s157, 1
          %s162 = smul.addr %s159, 2
          %s163 = sadd.s32 %s161, %s162
          %s164 = smul.addr %s163, 8
          %s165 = scalar_lea.vmem %s0, %s164
          %s166 = smul.u32 4, %s19
          %s167 = smul.u32 2, %s21
        $region16: #{decoder_layer.18} parent=11 // pred_fallthru
          _
      $region12: #{decoder_layer.18} parent=5 // pred_fallthru
        _
      %p168 = scmp.lt.s32.totalorder %s9, 2
      // Predicated region
      $region17: #{decoder_layer.18} parent=5 // pred_check
        %p169 = pneg %p168
      $region18: #{decoder_layer.18} parent=5 // pred_check_branch
        %171 = sbr.rel (%p169) target = $region20
      $region19: #{decoder_layer.18} parent=5 // pred_region
        // Predicated region
        $region21: #{decoder_layer.18} parent=19 // pred_check
          %p172 = pneg %p78
        $region22: #{decoder_layer.18} parent=19 // pred_check_branch
          %174 = sbr.rel (%p172) target = $region24
        $region23: #{decoder_layer.18} parent=19 // pred_region
          %s175 = sand.u32 %s68, 1
          %s176 = sand.u32 %s68, 1
          %s177 = smul.addr %s176, 256
          %s178 = scalar_lea.vmem [#allocation3], %s177
          %s179 = smul.u32 32, %s18
          %s180 = smul.u32 2, %s17
          %s181 = smul.addr %s179, 4
          %s182 = sadd.s32 %s180, %s181
          %s183 = smul.addr %s182, 4
          %s184 = scalar_lea.vmem %s1, %s183
          // Predicated region
          $region25: #{decoder_layer.18} parent=23 // pred_check
            _
          $region26: #{decoder_layer.18} parent=23 // pred_check_branch
            %186 = sbr.rel (0) target = $region28
          $region27: #{decoder_layer.18} parent=23 // pred_region
            // Predicated region
            $region29: #{decoder_layer.18} parent=27 // pred_check
              _
            $region30: #{decoder_layer.18} parent=27 // pred_check_branch
              %188 = sbr.rel (0) target = $region32
            $region31: #{decoder_layer.18} parent=27 // pred_region
              // Predicated region
              $region44: #{decoder_layer.18} parent=31 // pred_check
                _
              $region45: #{decoder_layer.18} parent=31 // pred_check_branch
                %265 = sbr.rel (0) target = $region47
              $region46: #{decoder_layer.18} parent=31 // pred_region
                loop: start=0, step=1, limit=1
                $region48: #{decoder_layer.18} parent=46 // loop_pre_header
                  _
                $region49: #{decoder_layer.18} parent=46 // loop_header
                  %s267 = sphi 0, %s271
                  %p268 = scmp.ge.s32.totalorder %s267, 1
                  %s272 = sphi %s184, %s184
                  %s273 = sphi %s178, %s178
                $region50: #{decoder_layer.18} parent=46 // loop_header_branch
                  %270 = sbr.rel (%p268) target = $region54
                $region51: #{decoder_layer.18} parent=46 // loop_body
                  %v274 = vld [vmem:[%s272] sm:$0xff]
                  %275 = vst [vmem:[%s273] sm:$0xff] %v274
                  %v276 = vld [vmem:[%s272 + $0x10] sm:$0xff]
                  %277 = vst [vmem:[%s273 + $0x8] sm:$0xff] %v276
                  %v278 = vld [vmem:[%s272 + $0x20] sm:$0xff]
                  %279 = vst [vmem:[%s273 + $0x10] sm:$0xff] %v278
                  %v280 = vld [vmem:[%s272 + $0x30] sm:$0xff]
                  %281 = vst [vmem:[%s273 + $0x18] sm:$0xff] %v280
                  %v282 = vld [vmem:[%s272 + $0x40] sm:$0xff]
                  %283 = vst [vmem:[%s273 + $0x20] sm:$0xff] %v282
                  %v284 = vld [vmem:[%s272 + $0x50] sm:$0xff]
                  %285 = vst [vmem:[%s273 + $0x28] sm:$0xff] %v284
                  %v286 = vld [vmem:[%s272 + $0x60] sm:$0xff]
                  %287 = vst [vmem:[%s273 + $0x30] sm:$0xff] %v286
                  %v288 = vld [vmem:[%s272 + $0x70] sm:$0xff]
                  %289 = vst [vmem:[%s273 + $0x38] sm:$0xff] %v288
                  %v290 = vld [vmem:[%s272 + $0x80] sm:$0xff]
                  %291 = vst [vmem:[%s273 + $0x40] sm:$0xff] %v290
                  %v292 = vld [vmem:[%s272 + $0x90] sm:$0xff]
                  %293 = vst [vmem:[%s273 + $0x48] sm:$0xff] %v292
                  %v294 = vld [vmem:[%s272 + $0xa0] sm:$0xff]
                  %295 = vst [vmem:[%s273 + $0x50] sm:$0xff] %v294
                  %v296 = vld [vmem:[%s272 + $0xb0] sm:$0xff]
                  %297 = vst [vmem:[%s273 + $0x58] sm:$0xff] %v296
                  %v298 = vld [vmem:[%s272 + $0xc0] sm:$0xff]
                  %299 = vst [vmem:[%s273 + $0x60] sm:$0xff] %v298
                  %v300 = vld [vmem:[%s272 + $0xd0] sm:$0xff]
                  %301 = vst [vmem:[%s273 + $0x68] sm:$0xff] %v300
                  %v302 = vld [vmem:[%s272 + $0xe0] sm:$0xff]
                  %303 = vst [vmem:[%s273 + $0x70] sm:$0xff] %v302
                  %v304 = vld [vmem:[%s272 + $0xf0] sm:$0xff]
                  %305 = vst [vmem:[%s273 + $0x78] sm:$0xff] %v304
                  %v306 = vld [vmem:[%s272 + $0x100] sm:$0xff]
                  %307 = vst [vmem:[%s273 + $0x80] sm:$0xff] %v306
                  %v308 = vld [vmem:[%s272 + $0x110] sm:$0xff]
                  %309 = vst [vmem:[%s273 + $0x88] sm:$0xff] %v308
                  %v310 = vld [vmem:[%s272 + $0x120] sm:$0xff]
                  %311 = vst [vmem:[%s273 + $0x90] sm:$0xff] %v310
                  %v312 = vld [vmem:[%s272 + $0x130] sm:$0xff]
                  %313 = vst [vmem:[%s273 + $0x98] sm:$0xff] %v312
                  %v314 = vld [vmem:[%s272 + $0x140] sm:$0xff]
                  %315 = vst [vmem:[%s273 + $0xa0] sm:$0xff] %v314
                  %v316 = vld [vmem:[%s272 + $0x150] sm:$0xff]
                  %317 = vst [vmem:[%s273 + $0xa8] sm:$0xff] %v316
                  %v318 = vld [vmem:[%s272 + $0x160] sm:$0xff]
                  %319 = vst [vmem:[%s273 + $0xb0] sm:$0xff] %v318
                  %v320 = vld [vmem:[%s272 + $0x170] sm:$0xff]
                  %321 = vst [vmem:[%s273 + $0xb8] sm:$0xff] %v320
                  %v322 = vld [vmem:[%s272 + $0x180] sm:$0xff]
                  %323 = vst [vmem:[%s273 + $0xc0] sm:$0xff] %v322
                  %v324 = vld [vmem:[%s272 + $0x190] sm:$0xff]
                  %325 = vst [vmem:[%s273 + $0xc8] sm:$0xff] %v324
                  %v326 = vld [vmem:[%s272 + $0x1a0] sm:$0xff]
                  %327 = vst [vmem:[%s273 + $0xd0] sm:$0xff] %v326
                  %v328 = vld [vmem:[%s272 + $0x1b0] sm:$0xff]
                  %329 = vst [vmem:[%s273 + $0xd8] sm:$0xff] %v328
                  %v330 = vld [vmem:[%s272 + $0x1c0] sm:$0xff]
                  %331 = vst [vmem:[%s273 + $0xe0] sm:$0xff] %v330
                  %v332 = vld [vmem:[%s272 + $0x1d0] sm:$0xff]
                  %333 = vst [vmem:[%s273 + $0xe8] sm:$0xff] %v332
                  %v334 = vld [vmem:[%s272 + $0x1e0] sm:$0xff]
                  %335 = vst [vmem:[%s273 + $0xf0] sm:$0xff] %v334
                  %v336 = vld [vmem:[%s272 + $0x1f0] sm:$0xff]
                  %337 = vst [vmem:[%s273 + $0xf8] sm:$0xff] %v336
                $region52: #{decoder_layer.18} parent=46 // loop_footer
                  %s271 = sadd.s32 1, %s267
                $region53: #{decoder_layer.18} parent=46 // loop_footer_branch
                  %266 = sbr.rel target = $region49
                $region54: #{decoder_layer.18} parent=46 // loop_exit
                  _
              $region47: #{decoder_layer.18} parent=31 // pred_fallthru
                _
              // Predicated region
              $region55: #{decoder_layer.18} parent=31 // pred_check
                _
              $region56: #{decoder_layer.18} parent=31 // pred_check_branch
                %339 = sbr.rel target = $region58
              $region57: #{decoder_layer.18} parent=31 // pred_region
                _
              $region58: #{decoder_layer.18} parent=31 // pred_fallthru
                _
            $region32: #{decoder_layer.18} parent=27 // pred_fallthru
              _
            // Predicated region
            $region33: #{decoder_layer.18} parent=27 // pred_check
              _
            $region34: #{decoder_layer.18} parent=27 // pred_check_branch
              %190 = sbr.rel target = $region36
            $region35: #{decoder_layer.18} parent=27 // pred_region
              loop: start=0, step=1, limit=1
              $region37: #{decoder_layer.18} parent=35 // loop_pre_header
                _
              $region38: #{decoder_layer.18} parent=35 // loop_header
                %s193 = sphi 0, %s197
                %p194 = scmp.ge.s32.totalorder %s193, 1
                %s198 = sphi %s184, %s184
                %s199 = sphi %s178, %s178
              $region39: #{decoder_layer.18} parent=35 // loop_header_branch
                %196 = sbr.rel (%p194) target = $region43
              $region40: #{decoder_layer.18} parent=35 // loop_body
                %v200 = vld [vmem:[%s198] sm:$0xff]
                %201 = vst [vmem:[%s199] sm:$0xff] %v200
                %v202 = vld [vmem:[%s198 + $0x10] sm:$0xff]
                %203 = vst [vmem:[%s199 + $0x8] sm:$0xff] %v202
                %v204 = vld [vmem:[%s198 + $0x20] sm:$0xff]
                %205 = vst [vmem:[%s199 + $0x10] sm:$0xff] %v204
                %v206 = vld [vmem:[%s198 + $0x30] sm:$0xff]
                %207 = vst [vmem:[%s199 + $0x18] sm:$0xff] %v206
                %v208 = vld [vmem:[%s198 + $0x40] sm:$0xff]
                %209 = vst [vmem:[%s199 + $0x20] sm:$0xff] %v208
                %v210 = vld [vmem:[%s198 + $0x50] sm:$0xff]
                %211 = vst [vmem:[%s199 + $0x28] sm:$0xff] %v210
                %v212 = vld [vmem:[%s198 + $0x60] sm:$0xff]
                %213 = vst [vmem:[%s199 + $0x30] sm:$0xff] %v212
                %v214 = vld [vmem:[%s198 + $0x70] sm:$0xff]
                %215 = vst [vmem:[%s199 + $0x38] sm:$0xff] %v214
                %v216 = vld [vmem:[%s198 + $0x80] sm:$0xff]
                %217 = vst [vmem:[%s199 + $0x40] sm:$0xff] %v216
                %v218 = vld [vmem:[%s198 + $0x90] sm:$0xff]
                %219 = vst [vmem:[%s199 + $0x48] sm:$0xff] %v218
                %v220 = vld [vmem:[%s198 + $0xa0] sm:$0xff]
                %221 = vst [vmem:[%s199 + $0x50] sm:$0xff] %v220
                %v222 = vld [vmem:[%s198 + $0xb0] sm:$0xff]
                %223 = vst [vmem:[%s199 + $0x58] sm:$0xff] %v222
                %v224 = vld [vmem:[%s198 + $0xc0] sm:$0xff]
                %225 = vst [vmem:[%s199 + $0x60] sm:$0xff] %v224
                %v226 = vld [vmem:[%s198 + $0xd0] sm:$0xff]
                %227 = vst [vmem:[%s199 + $0x68] sm:$0xff] %v226
                %v228 = vld [vmem:[%s198 + $0xe0] sm:$0xff]
                %229 = vst [vmem:[%s199 + $0x70] sm:$0xff] %v228
                %v230 = vld [vmem:[%s198 + $0xf0] sm:$0xff]
                %231 = vst [vmem:[%s199 + $0x78] sm:$0xff] %v230
                %v232 = vld [vmem:[%s198 + $0x100] sm:$0xff]
                %233 = vst [vmem:[%s199 + $0x80] sm:$0xff] %v232
                %v234 = vld [vmem:[%s198 + $0x110] sm:$0xff]
                %235 = vst [vmem:[%s199 + $0x88] sm:$0xff] %v234
                %v236 = vld [vmem:[%s198 + $0x120] sm:$0xff]
                %237 = vst [vmem:[%s199 + $0x90] sm:$0xff] %v236
                %v238 = vld [vmem:[%s198 + $0x130] sm:$0xff]
                %239 = vst [vmem:[%s199 + $0x98] sm:$0xff] %v238
                %v240 = vld [vmem:[%s198 + $0x140] sm:$0xff]
                %241 = vst [vmem:[%s199 + $0xa0] sm:$0xff] %v240
                %v242 = vld [vmem:[%s198 + $0x150] sm:$0xff]
                %243 = vst [vmem:[%s199 + $0xa8] sm:$0xff] %v242
                %v244 = vld [vmem:[%s198 + $0x160] sm:$0xff]
                %245 = vst [vmem:[%s199 + $0xb0] sm:$0xff] %v244
                %v246 = vld [vmem:[%s198 + $0x170] sm:$0xff]
                %247 = vst [vmem:[%s199 + $0xb8] sm:$0xff] %v246
                %v248 = vld [vmem:[%s198 + $0x180] sm:$0xff]
                %249 = vst [vmem:[%s199 + $0xc0] sm:$0xff] %v248
                %v250 = vld [vmem:[%s198 + $0x190] sm:$0xff]
                %251 = vst [vmem:[%s199 + $0xc8] sm:$0xff] %v250
                %v252 = vld [vmem:[%s198 + $0x1a0] sm:$0xff]
                %253 = vst [vmem:[%s199 + $0xd0] sm:$0xff] %v252
                %v254 = vld [vmem:[%s198 + $0x1b0] sm:$0xff]
                %255 = vst [vmem:[%s199 + $0xd8] sm:$0xff] %v254
                %v256 = vld [vmem:[%s198 + $0x1c0] sm:$0xff]
                %257 = vst [vmem:[%s199 + $0xe0] sm:$0xff] %v256
                %v258 = vld [vmem:[%s198 + $0x1d0] sm:$0xff]
                %259 = vst [vmem:[%s199 + $0xe8] sm:$0xff] %v258
                %v260 = vld [vmem:[%s198 + $0x1e0] sm:$0xff]
                %261 = vst [vmem:[%s199 + $0xf0] sm:$0xff] %v260
                %v262 = vld [vmem:[%s198 + $0x1f0] sm:$0xff]
                %263 = vst [vmem:[%s199 + $0xf8] sm:$0xff] %v262
              $region41: #{decoder_layer.18} parent=35 // loop_footer
                %s197 = sadd.s32 1, %s193
              $region42: #{decoder_layer.18} parent=35 // loop_footer_branch
                %192 = sbr.rel target = $region38
              $region43: #{decoder_layer.18} parent=35 // loop_exit
                _
            $region36: #{decoder_layer.18} parent=27 // pred_fallthru
              _
          $region28: #{decoder_layer.18} parent=23 // pred_fallthru
            _
          %340 = vnop
        $region24: #{decoder_layer.18} parent=19 // pred_fallthru
          _
        // Predicated region
        $region59: #{decoder_layer.18} parent=19 // pred_check
          %p341 = pneg %p104
        $region60: #{decoder_layer.18} parent=19 // pred_check_branch
          %343 = sbr.rel (%p341) target = $region62
        $region61: #{decoder_layer.18} parent=19 // pred_region
          %s344 = smul.u32 2, %s17
          %p345 = scmp.lt.s32.totalorder %s344, 3
          %s346 = scalar_select %p345, %s344, 3
          %s347 = scalar_lea.vmem %s2, %s346
          %s348 = smul.u32 2, %s17
        $region62: #{decoder_layer.18} parent=19 // pred_fallthru
          _
      $region20: #{decoder_layer.18} parent=5 // pred_fallthru
        _
      %p349 = scmp.le.s32.totalorder 1, %s9
      %p350 = scmp.lt.s32.totalorder %s9, 3
      %p351 = pnand %p349, %p350
      %p352 = pneg %p351
      // Predicated region
      $region63: #{decoder_layer.18} parent=5 // pred_check
        _
      $region64: #{decoder_layer.18} parent=5 // pred_check_branch
        %354 = sbr.rel (%p351) target = $region66
      $region65: #{decoder_layer.18} parent=5 // pred_region
        %s355 = ssub.s32 %s9, 1
        %s356 = sand.u32 %s71, 1
        %s357 = sand.u32 %s71, 1
        %s358 = smul.addr %s357, 256
        %s359 = scalar_lea.vmem [#allocation3], %s358
        // Predicated region
        $region67: #{decoder_layer.18} parent=65 // pred_check
          %p360 = pneg %p84
        $region68: #{decoder_layer.18} parent=65 // pred_check_branch
          %362 = sbr.rel (%p360) target = $region70
        $region69: #{decoder_layer.18} parent=65 // pred_region
          _
        $region70: #{decoder_layer.18} parent=65 // pred_fallthru
          _
        %s363 = smul.u32 4, %s19
        %s364 = smul.u32 2, %s21
        %p365 = scmp.lt.s32.totalorder %s363, 3
        %s366 = scalar_select %p365, %s363, 3
        %p367 = scmp.lt.s32.totalorder %s364, 1
        %s368 = scalar_select %p367, %s364, 1
        %s369 = smul.addr %s366, 2
        %s370 = sadd.s32 %s368, %s369
        %s371 = smul.addr %s370, 8
        %s372 = scalar_lea.vmem %s0, %s371
        %p373 = pneg %p56
        %p374 = pneg %p53
        %s375 = sand.u32 %s71, 1
        %s376 = sand.u32 %s71, 1
        %s377 = smul.addr %s376, 256
        %s378 = scalar_lea.vmem [#allocation3], %s377
        %p379 = pneg %p84
        %p380 = pneg %p81
        %s381 = smul.u32 2, %s20
        %p382 = scmp.lt.s32.totalorder %s381, 3
        %s383 = scalar_select %p382, %s381, 3
        %s384 = scalar_lea.vmem %s2, %s383
        %p385 = pneg %p110
        %p386 = pneg %p107
        %p387 = pneg %p138
        %p388 = pneg %p135
        %s389 = sand.u32 %s125, 1
        %s390 = sand.u32 %s125, 1
        %s391 = smul.addr %s390, 32
        %s392 = scalar_lea.vmem [#allocation4], %s391
        %s393 = smul.u32 4, %s19
        %s394 = smul.u32 2, %s21
        %p395 = scmp.lt.s32.totalorder %s393, 3
        %s396 = scalar_select %p395, %s393, 3
        %p397 = scmp.lt.s32.totalorder %s394, 1
        %s398 = scalar_select %p397, %s394, 1
        %s399 = smul.addr %s396, 2
        %s400 = sadd.s32 %s398, %s399
        %s401 = smul.addr %s400, 8
        %s402 = scalar_lea.vmem %s0, %s401
        %s403 = smul.u32 4, %s19
        %s404 = smul.u32 2, %s21
        %s405 = smul.u32 32, %s21
        %s406 = smul.u32 2, %s20
        %s407 = smul.u32 2, %s20
        %p408 = scmp.lt.s32.totalorder %s407, 3
        %s409 = scalar_select %p408, %s407, 3
        %s410 = scalar_lea.vmem %s2, %s409
        %s411 = smul.u32 2, %s20
        %s412 = smul.u32 4, %s19
        %s413 = smul.u32 2, %s20
        %p414 = scmp.eq.s32.totalorder %s21, 0
        // Predicated region
        $region71: #{decoder_layer.18} parent=65 // pred_check
          %p415 = pneg %p414
        $region72: #{decoder_layer.18} parent=65 // pred_check_branch
          %417 = sbr.rel (%p415) target = $region74
        $region73: #{decoder_layer.18} parent=65 // pred_region
          %418 = vst [vmem:[#allocation2] sm:$0xff] 0.0
          %419 = vst [vmem:[#allocation2 + $0x8] sm:$0xff] 0.0
          %420 = vst [vmem:[#allocation2 + $0x10] sm:$0xff] 0.0
          %421 = vst [vmem:[#allocation2 + $0x18] sm:$0xff] 0.0
          %422 = vst [vmem:[#allocation2 + $0x20] sm:$0xff] 0.0
          %423 = vst [vmem:[#allocation2 + $0x28] sm:$0xff] 0.0
          %424 = vst [vmem:[#allocation2 + $0x30] sm:$0xff] 0.0
          %425 = vst [vmem:[#allocation2 + $0x38] sm:$0xff] 0.0
        $region74: #{decoder_layer.18} parent=65 // pred_fallthru
          _
        %v426 = vld [vmem:[#allocation2] sm:$0xff]
        %v427 = vld [vmem:[#allocation2 + $0x8] sm:$0xff]
        %v428 = vld [vmem:[#allocation2 + $0x10] sm:$0xff]
        %v429 = vld [vmem:[#allocation2 + $0x18] sm:$0xff]
        %v430 = vld [vmem:[#allocation2 + $0x20] sm:$0xff]
        %v431 = vld [vmem:[#allocation2 + $0x28] sm:$0xff]
        %v432 = vld [vmem:[#allocation2 + $0x30] sm:$0xff]
        %v433 = vld [vmem:[#allocation2 + $0x38] sm:$0xff]
        %v434 = vld [vmem:[%s402] sm:$0xff]
        %v435 = vld [vmem:[%s402 + $0x8] sm:$0xff]
        %v436 = vld [vmem:[%s402 + $0x10] sm:$0xff]
        %v437 = vld [vmem:[%s402 + $0x18] sm:$0xff]
        %v438 = vld [vmem:[%s402 + $0x20] sm:$0xff]
        %v439 = vld [vmem:[%s402 + $0x28] sm:$0xff]
        %v440 = vld [vmem:[%s402 + $0x30] sm:$0xff]
        %v441 = vld [vmem:[%s402 + $0x38] sm:$0xff]
        %v442 = vpack.c.bf16 %v436, %v434
        %v443 = vpack.c.bf16 %v437, %v435
        %v444 = vpack.c.bf16 %v440, %v438
        %v445 = vpack.c.bf16 %v441, %v439
        %v446 = vld [vmem:[%s359] sm:$0xff]
        %v447 = vld [vmem:[%s359 + $0x8] sm:$0xff]
        %v448 = vld [vmem:[%s359 + $0x10] sm:$0xff]
        %v449 = vld [vmem:[%s359 + $0x18] sm:$0xff]
        %v450 = vld [vmem:[%s359 + $0x20] sm:$0xff]
        %v451 = vld [vmem:[%s359 + $0x28] sm:$0xff]
        %v452 = vld [vmem:[%s359 + $0x30] sm:$0xff]
        %v453 = vld [vmem:[%s359 + $0x38] sm:$0xff]
        %v454 = vld [vmem:[%s359 + $0x40] sm:$0xff]
        %v455 = vld [vmem:[%s359 + $0x48] sm:$0xff]
        %v456 = vld [vmem:[%s359 + $0x50] sm:$0xff]
        %v457 = vld [vmem:[%s359 + $0x58] sm:$0xff]
        %v458 = vld [vmem:[%s359 + $0x60] sm:$0xff]
        %v459 = vld [vmem:[%s359 + $0x68] sm:$0xff]
        %v460 = vld [vmem:[%s359 + $0x70] sm:$0xff]
        %v461 = vld [vmem:[%s359 + $0x78] sm:$0xff]
        %v462 = vld [vmem:[%s359 + $0x80] sm:$0xff]
        %v463 = vld [vmem:[%s359 + $0x88] sm:$0xff]
        %v464 = vld [vmem:[%s359 + $0x90] sm:$0xff]
        %v465 = vld [vmem:[%s359 + $0x98] sm:$0xff]
        %v466 = vld [vmem:[%s359 + $0xa0] sm:$0xff]
        %v467 = vld [vmem:[%s359 + $0xa8] sm:$0xff]
        %v468 = vld [vmem:[%s359 + $0xb0] sm:$0xff]
        %v469 = vld [vmem:[%s359 + $0xb8] sm:$0xff]
        %v470 = vld [vmem:[%s359 + $0xc0] sm:$0xff]
        %v471 = vld [vmem:[%s359 + $0xc8] sm:$0xff]
        %v472 = vld [vmem:[%s359 + $0xd0] sm:$0xff]
        %v473 = vld [vmem:[%s359 + $0xd8] sm:$0xff]
        %v474 = vld [vmem:[%s359 + $0xe0] sm:$0xff]
        %v475 = vld [vmem:[%s359 + $0xe8] sm:$0xff]
        %v476 = vld [vmem:[%s359 + $0xf0] sm:$0xff]
        %v477 = vld [vmem:[%s359 + $0xf8] sm:$0xff]
        %v510 = vunpack.c.l.b16 %v446
        %v511 = vunpack.c.h.b16 %v446
        %v512 = vunpack.c.l.b16 %v447
        %v513 = vunpack.c.h.b16 %v447
        %v514 = vunpack.c.l.b16 %v448
        %v515 = vunpack.c.h.b16 %v448
        %v516 = vunpack.c.l.b16 %v449
        %v517 = vunpack.c.h.b16 %v449
        %v518 = vunpack.c.l.b16 %v450
        %v519 = vunpack.c.h.b16 %v450
        %v520 = vunpack.c.l.b16 %v451
        %v521 = vunpack.c.h.b16 %v451
        %v522 = vunpack.c.l.b16 %v452
        %v523 = vunpack.c.h.b16 %v452
        %v524 = vunpack.c.l.b16 %v453
        %v525 = vunpack.c.h.b16 %v453
        %v526 = vunpack.c.l.b16 %v454
        %v527 = vunpack.c.h.b16 %v454
        %v528 = vunpack.c.l.b16 %v455
        %v529 = vunpack.c.h.b16 %v455
        %v530 = vunpack.c.l.b16 %v456
        %v531 = vunpack.c.h.b16 %v456
        %v532 = vunpack.c.l.b16 %v457
        %v533 = vunpack.c.h.b16 %v457
        %v534 = vunpack.c.l.b16 %v458
        %v535 = vunpack.c.h.b16 %v458
        %v536 = vunpack.c.l.b16 %v459
        %v537 = vunpack.c.h.b16 %v459
        %v538 = vunpack.c.l.b16 %v460
        %v539 = vunpack.c.h.b16 %v460
        %v540 = vunpack.c.l.b16 %v461
        %v541 = vunpack.c.h.b16 %v461
        %v542 = vunpack.c.l.b16 %v462
        %v543 = vunpack.c.h.b16 %v462
        %v544 = vunpack.c.l.b16 %v463
        %v545 = vunpack.c.h.b16 %v463
        %v546 = vunpack.c.l.b16 %v464
        %v547 = vunpack.c.h.b16 %v464
        %v548 = vunpack.c.l.b16 %v465
        %v549 = vunpack.c.h.b16 %v465
        %v550 = vunpack.c.l.b16 %v466
        %v551 = vunpack.c.h.b16 %v466
        %v552 = vunpack.c.l.b16 %v467
        %v553 = vunpack.c.h.b16 %v467
        %v554 = vunpack.c.l.b16 %v468
        %v555 = vunpack.c.h.b16 %v468
        %v556 = vunpack.c.l.b16 %v469
        %v557 = vunpack.c.h.b16 %v469
        %v558 = vunpack.c.l.b16 %v470
        %v559 = vunpack.c.h.b16 %v470
        %v560 = vunpack.c.l.b16 %v471
        %v561 = vunpack.c.h.b16 %v471
        %v562 = vunpack.c.l.b16 %v472
        %v563 = vunpack.c.h.b16 %v472
        %v564 = vunpack.c.l.b16 %v473
        %v565 = vunpack.c.h.b16 %v473
        %v566 = vunpack.c.l.b16 %v474
        %v567 = vunpack.c.h.b16 %v474
        %v568 = vunpack.c.l.b16 %v475
        %v569 = vunpack.c.h.b16 %v475
        %v570 = vunpack.c.l.b16 %v476
        %v571 = vunpack.c.h.b16 %v476
        %v572 = vunpack.c.l.b16 %v477
        %v573 = vunpack.c.h.b16 %v477
        %v574 = vpack.c.b16 %v512, %v510
        %v575 = vpack.c.b16 %v513, %v511
        %v576 = vpack.c.b16 %v516, %v514
        %v577 = vpack.c.b16 %v517, %v515
        %v578 = vpack.c.b16 %v520, %v518
        %v579 = vpack.c.b16 %v521, %v519
        %v580 = vpack.c.b16 %v524, %v522
        %v581 = vpack.c.b16 %v525, %v523
        %v582 = vpack.c.b16 %v528, %v526
        %v583 = vpack.c.b16 %v529, %v527
        %v584 = vpack.c.b16 %v532, %v530
        %v585 = vpack.c.b16 %v533, %v531
        %v586 = vpack.c.b16 %v536, %v534
        %v587 = vpack.c.b16 %v537, %v535
        %v588 = vpack.c.b16 %v540, %v538
        %v589 = vpack.c.b16 %v541, %v539
        %v590 = vpack.c.b16 %v544, %v542
        %v591 = vpack.c.b16 %v545, %v543
        %v592 = vpack.c.b16 %v548, %v546
        %v593 = vpack.c.b16 %v549, %v547
        %v594 = vpack.c.b16 %v552, %v550
        %v595 = vpack.c.b16 %v553, %v551
        %v596 = vpack.c.b16 %v556, %v554
        %v597 = vpack.c.b16 %v557, %v555
        %v598 = vpack.c.b16 %v560, %v558
        %v599 = vpack.c.b16 %v561, %v559
        %v600 = vpack.c.b16 %v564, %v562
        %v601 = vpack.c.b16 %v565, %v563
        %v602 = vpack.c.b16 %v568, %v566
        %v603 = vpack.c.b16 %v569, %v567
        %v604 = vpack.c.b16 %v572, %v570
        %v605 = vpack.c.b16 %v573, %v571
        %638 = vmatprep.subr.bf16.mxu0 %v575
        %639 = vmatpush1.bf16.msra.mxu0 %v574
        %640 = vmatprep.subr.bf16.mxu0 %v577
        %641 = vmatpush1.bf16.msra.mxu0 %v576
        %642 = vmatprep.subr.bf16.mxu0 %v579
        %643 = vmatpush1.bf16.msra.mxu0 %v578
        %644 = vmatprep.subr.bf16.mxu0 %v581
        %645 = vmatpush1.bf16.msra.mxu0 %v580
        %646 = vmatprep.subr.bf16.mxu0 %v583
        %647 = vmatpush1.bf16.msra.mxu0 %v582
        %648 = vmatprep.subr.bf16.mxu0 %v585
        %649 = vmatpush1.bf16.msra.mxu0 %v584
        %650 = vmatprep.subr.bf16.mxu0 %v587
        %651 = vmatpush1.bf16.msra.mxu0 %v586
        %652 = vmatprep.subr.bf16.mxu0 %v589
        %653 = vmatpush1.bf16.msra.mxu0 %v588
        %654 = vmatprep.subr.bf16.mxu0 %v591
        %655 = vmatpush1.bf16.msra.mxu0 %v590
        %656 = vmatprep.subr.bf16.mxu0 %v593
        %657 = vmatpush1.bf16.msra.mxu0 %v592
        %658 = vmatprep.subr.bf16.mxu0 %v595
        %659 = vmatpush1.bf16.msra.mxu0 %v594
        %660 = vmatprep.subr.bf16.mxu0 %v597
        %661 = vmatpush1.bf16.msra.mxu0 %v596
        %662 = vmatprep.subr.bf16.mxu0 %v599
        %663 = vmatpush1.bf16.msra.mxu0 %v598
        %664 = vmatprep.subr.bf16.mxu0 %v601
        %665 = vmatpush1.bf16.msra.mxu0 %v600
        %666 = vmatprep.subr.bf16.mxu0 %v603
        %667 = vmatpush1.bf16.msra.mxu0 %v602
        %668 = vmatprep.subr.bf16.mxu0 %v605
        %669 = vmatpush1.bf16.msra.mxu0 %v604
        %670 = vmatprep.mubr.bf16.mxu0 %v443
        %671 = vmatmul.mubr.bf16.gmra.mrb[0].mxu0 %v442
        %v672 = vpop.f32.mrb[0].mxu0
        %v673 = vadd.f32 0.0, %v672
        %v674 = vpop.f32.mrb[0].mxu0
        %v675 = vadd.f32 0.0, %v674
        %v676 = vpop.f32.mrb[0].mxu0
        %v677 = vadd.f32 0.0, %v676
        %v678 = vpop.f32.mrb[0].mxu0
        %v679 = vadd.f32 0.0, %v678
        %680 = vmatprep.mubr.bf16.mxu0 %v445
        %681 = vmatmul.mubr.bf16.gmra.mrb[0].mxu0 %v444
        %v682 = vpop.f32.mrb[0].mxu0
        %v683 = vadd.f32 0.0, %v682
        %v684 = vpop.f32.mrb[0].mxu0
        %v685 = vadd.f32 0.0, %v684
        %v686 = vpop.f32.mrb[0].mxu0
        %v687 = vadd.f32 0.0, %v686
        %v688 = vpop.f32.mrb[0].mxu0
        %v689 = vadd.f32 0.0, %v688
        %690 = vdwg.mxu0
        %v691 = vadd.f32 %v426, %v673
        %v692 = vadd.f32 %v427, %v675
        %v693 = vadd.f32 %v428, %v677
        %v694 = vadd.f32 %v429, %v679
        %v695 = vadd.f32 %v430, %v683
        %v696 = vadd.f32 %v431, %v685
        %v697 = vadd.f32 %v432, %v687
        %v698 = vadd.f32 %v433, %v689
        %699 = vst [vmem:[#allocation2] sm:$0xff] %v691
        %700 = vst [vmem:[#allocation2 + $0x8] sm:$0xff] %v692
        %701 = vst [vmem:[#allocation2 + $0x10] sm:$0xff] %v693
        %702 = vst [vmem:[#allocation2 + $0x18] sm:$0xff] %v694
        %703 = vst [vmem:[#allocation2 + $0x20] sm:$0xff] %v695
        %704 = vst [vmem:[#allocation2 + $0x28] sm:$0xff] %v696
        %705 = vst [vmem:[#allocation2 + $0x30] sm:$0xff] %v697
        %706 = vst [vmem:[#allocation2 + $0x38] sm:$0xff] %v698
        // Predicated region
        $region75: #{decoder_layer.18} parent=65 // pred_check
          %p707 = pneg %p414
        $region76: #{decoder_layer.18} parent=65 // pred_check_branch
          %709 = sbr.rel (%p707) target = $region78
        $region77: #{decoder_layer.18} parent=65 // pred_region
          %v710 = vld [vmem:[#allocation2] sm:$0xff]
          %v711 = vld [vmem:[#allocation2 + $0x8] sm:$0xff]
          %v712 = vld [vmem:[#allocation2 + $0x10] sm:$0xff]
          %v713 = vld [vmem:[#allocation2 + $0x18] sm:$0xff]
          %v714 = vld [vmem:[#allocation2 + $0x20] sm:$0xff]
          %v715 = vld [vmem:[#allocation2 + $0x28] sm:$0xff]
          %v716 = vld [vmem:[#allocation2 + $0x30] sm:$0xff]
          %v717 = vld [vmem:[#allocation2 + $0x38] sm:$0xff]
          %v718 = vld [vmem:[%s410] sm:$0x3]
          %v720 = vlaneseq
          %v721 = vshrl.u32 %v720, 7
          %v722 = vsub.s32 0, %v721
          %v723 = vrot.slane %v718, %v722
          %v724 = vlaneseq
          %v725 = vshrl.u32 %v724, 7
          %v726 = vsub.s32 1, %v725
          %v727 = vrot.slane %v718, %v726
          %v730 = vadd.f32 %v710, %v723
          %v731 = vadd.f32 %v711, %v727
          %v732 = vadd.f32 %v712, %v723
          %v733 = vadd.f32 %v713, %v727
          %v734 = vadd.f32 %v714, %v723
          %v735 = vadd.f32 %v715, %v727
          %v736 = vadd.f32 %v716, %v723
          %v737 = vadd.f32 %v717, %v727
          %v738 = vmax.f32 %v730, 0.0
          %v739 = vmax.f32 %v731, 0.0
          %v740 = vmax.f32 %v732, 0.0
          %v741 = vmax.f32 %v733, 0.0
          %v742 = vmax.f32 %v734, 0.0
          %v743 = vmax.f32 %v735, 0.0
          %v744 = vmax.f32 %v736, 0.0
          %v745 = vmax.f32 %v737, 0.0
          %v746 = vpack.c.bf16 %v740, %v738
          %v747 = vpack.c.bf16 %v741, %v739
          %v748 = vpack.c.bf16 %v744, %v742
          %v749 = vpack.c.bf16 %v745, %v743
          %v754 = vunpack.c.l.b16 %v746
          %v755 = vunpack.c.l.b16 %v747
          %v756 = vunpack.c.h.b16 %v746
          %v757 = vunpack.c.h.b16 %v747
          %v758 = vunpack.c.l.b16 %v748
          %v759 = vunpack.c.l.b16 %v749
          %v760 = vunpack.c.h.b16 %v748
          %v761 = vunpack.c.h.b16 %v749
          %v762 = vpack.c.b16 %v755, %v754
          %v763 = vpack.c.b16 %v757, %v756
          %v764 = vpack.c.b16 %v759, %v758
          %v765 = vpack.c.b16 %v761, %v760
          %770 = vst [vmem:[%s392] sm:$0xff] %v762
          %771 = vst [vmem:[%s392 + $0x8] sm:$0xff] %v763
          %772 = vst [vmem:[%s392 + $0x10] sm:$0xff] %v764
          %773 = vst [vmem:[%s392 + $0x18] sm:$0xff] %v765
        $region78: #{decoder_layer.18} parent=65 // pred_fallthru
          _
        %s774 = sand.u32 %s125, 1
        %s775 = sand.u32 %s125, 1
        %s776 = smul.addr %s775, 32
        %s777 = scalar_lea.vmem [#allocation4], %s776
        // Predicated region
        $region79: #{decoder_layer.18} parent=65 // pred_check
          %p778 = pneg %p135
        $region80: #{decoder_layer.18} parent=65 // pred_check_branch
          %780 = sbr.rel (%p778) target = $region82
        $region81: #{decoder_layer.18} parent=65 // pred_region
          %s781 = smul.u32 4, %s19
          %s782 = smul.u32 2, %s20
          %s783 = smul.addr %s781, 4
          %s784 = sadd.s32 %s782, %s783
          %s785 = smul.addr %s784, 4
          %s786 = scalar_lea.vmem %s3, %s785
          // Predicated region
          $region83: #{decoder_layer.18} parent=81 // pred_check
            _
          $region84: #{decoder_layer.18} parent=81 // pred_check_branch
            %788 = sbr.rel (0) target = $region86
          $region85: #{decoder_layer.18} parent=81 // pred_region
            // Predicated region
            $region87: #{decoder_layer.18} parent=85 // pred_check
              _
            $region88: #{decoder_layer.18} parent=85 // pred_check_branch
              %790 = sbr.rel (0) target = $region90
            $region89: #{decoder_layer.18} parent=85 // pred_region
              // Predicated region
              $region102: #{decoder_layer.18} parent=89 // pred_check
                _
              $region103: #{decoder_layer.18} parent=89 // pred_check_branch
                %811 = sbr.rel (0) target = $region105
              $region104: #{decoder_layer.18} parent=89 // pred_region
                loop: start=0, step=1, limit=1
                $region106: #{decoder_layer.18} parent=104 // loop_pre_header
                  _
                $region107: #{decoder_layer.18} parent=104 // loop_header
                  %s813 = sphi 0, %s817
                  %p814 = scmp.ge.s32.totalorder %s813, 1
                  %s818 = sphi %s777, %s777
                  %s819 = sphi %s786, %s786
                $region108: #{decoder_layer.18} parent=104 // loop_header_branch
                  %816 = sbr.rel (%p814) target = $region112
                $region109: #{decoder_layer.18} parent=104 // loop_body
                  %v820 = vld [vmem:[%s818] sm:$0xff]
                  %821 = vst [vmem:[%s819] sm:$0xff] %v820
                  %v822 = vld [vmem:[%s818 + $0x8] sm:$0xff]
                  %823 = vst [vmem:[%s819 + $0x10] sm:$0xff] %v822
                  %v824 = vld [vmem:[%s818 + $0x10] sm:$0xff]
                  %825 = vst [vmem:[%s819 + $0x20] sm:$0xff] %v824
                  %v826 = vld [vmem:[%s818 + $0x18] sm:$0xff]
                  %827 = vst [vmem:[%s819 + $0x30] sm:$0xff] %v826
                $region110: #{decoder_layer.18} parent=104 // loop_footer
                  %s817 = sadd.s32 1, %s813
                $region111: #{decoder_layer.18} parent=104 // loop_footer_branch
                  %812 = sbr.rel target = $region107
                $region112: #{decoder_layer.18} parent=104 // loop_exit
                  _
              $region105: #{decoder_layer.18} parent=89 // pred_fallthru
                _
              // Predicated region
              $region113: #{decoder_layer.18} parent=89 // pred_check
                _
              $region114: #{decoder_layer.18} parent=89 // pred_check_branch
                %829 = sbr.rel target = $region116
              $region115: #{decoder_layer.18} parent=89 // pred_region
                _
              $region116: #{decoder_layer.18} parent=89 // pred_fallthru
                _
            $region90: #{decoder_layer.18} parent=85 // pred_fallthru
              _
            // Predicated region
            $region91: #{decoder_layer.18} parent=85 // pred_check
              _
            $region92: #{decoder_layer.18} parent=85 // pred_check_branch
              %792 = sbr.rel target = $region94
            $region93: #{decoder_layer.18} parent=85 // pred_region
              loop: start=0, step=1, limit=1
              $region95: #{decoder_layer.18} parent=93 // loop_pre_header
                _
              $region96: #{decoder_layer.18} parent=93 // loop_header
                %s795 = sphi 0, %s799
                %p796 = scmp.ge.s32.totalorder %s795, 1
                %s800 = sphi %s777, %s777
                %s801 = sphi %s786, %s786
              $region97: #{decoder_layer.18} parent=93 // loop_header_branch
                %798 = sbr.rel (%p796) target = $region101
              $region98: #{decoder_layer.18} parent=93 // loop_body
                %v802 = vld [vmem:[%s800] sm:$0xff]
                %803 = vst [vmem:[%s801] sm:$0xff] %v802
                %v804 = vld [vmem:[%s800 + $0x8] sm:$0xff]
                %805 = vst [vmem:[%s801 + $0x10] sm:$0xff] %v804
                %v806 = vld [vmem:[%s800 + $0x10] sm:$0xff]
                %807 = vst [vmem:[%s801 + $0x20] sm:$0xff] %v806
                %v808 = vld [vmem:[%s800 + $0x18] sm:$0xff]
                %809 = vst [vmem:[%s801 + $0x30] sm:$0xff] %v808
              $region99: #{decoder_layer.18} parent=93 // loop_footer
                %s799 = sadd.s32 1, %s795
              $region100: #{decoder_layer.18} parent=93 // loop_footer_branch
                %794 = sbr.rel target = $region96
              $region101: #{decoder_layer.18} parent=93 // loop_exit
                _
            $region94: #{decoder_layer.18} parent=85 // pred_fallthru
              _
          $region86: #{decoder_layer.18} parent=81 // pred_fallthru
            _
          %830 = vnop
        $region82: #{decoder_layer.18} parent=65 // pred_fallthru
          _
      $region66: #{decoder_layer.18} parent=5 // pred_fallthru
        _
      %p831 = scmp.le.s32.totalorder 2, %s9
      // Predicated region
      $region117: #{decoder_layer.18} parent=5 // pred_check
        %p832 = pneg %p831
      $region118: #{decoder_layer.18} parent=5 // pred_check_branch
        %834 = sbr.rel (%p832) target = $region120
      $region119: #{decoder_layer.18} parent=5 // pred_region
        %s835 = ssub.s32 %s9, 2
        // Predicated region
        $region121: #{decoder_layer.18} parent=119 // pred_check
          %p836 = pneg %p141
        $region122: #{decoder_layer.18} parent=119 // pred_check_branch
          %838 = sbr.rel (%p836) target = $region124
        $region123: #{decoder_layer.18} parent=119 // pred_region
          %s839 = sand.u32 %s126, 1
          %s840 = sand.u32 %s126, 1
          %s841 = smul.addr %s840, 32
          %s842 = scalar_lea.vmem [#allocation4], %s841
        $region124: #{decoder_layer.18} parent=119 // pred_fallthru
          _
      $region120: #{decoder_layer.18} parent=5 // pred_fallthru
        _
    $region6: #{decoder_layer.18} parent=1 // loop_footer
      %s13 = sadd.s32 1, %s9
    $region7: #{decoder_layer.18} parent=1 // loop_footer_branch
      %8 = sbr.rel target = $region3
    $region8: #{decoder_layer.18} parent=1 // loop_exit
      _

// kernel: decoder_layer.19
$region0: #{decoder_layer.19}
  #allocation0 [shape = 'u32[]', space=smem, size = 0x4, offset = 0x4, fixed_abs, tag = 'smem constant byte address 0x4 - core index']
  #allocation1 [shape = 'u32[144,128]{1,0:T(1,128)}', space=vmem, size = 0x12000, scoped, tag = 'internal scratch']
  %s0 = inlined_call_operand.vmem [shape: bf16[32,512], index: 0, kind: input, shape index: {}]
  %s1 = inlined_call_operand.vmem [shape: bf16[512,256], index: 1, kind: input, shape index: {}]
  %s2 = inlined_call_operand.vmem [shape: f32[1,256], index: 2, kind: input, shape index: {}]
  %s3 = inlined_call_operand.vmem [shape: f32[32,256], index: 3, kind: input, shape index: {}]
  %s4 = inlined_call_operand.vmem [shape: f32[1,256], index: 4, kind: input, shape index: {}]
  %s5 = inlined_call_operand.vmem [shape: f32[1,256], index: 5, kind: input, shape index: {}]
  %s6 = inlined_call_operand.hbm [shape: f32[32,256], index: 6, kind: output, shape index: {}]
  %s7 = sld [smem:[#allocation0]]
  $region103: #{decoder_layer.19} parent=0
    _
  %s9 = ssub.s32 1, %s7
  %s10 = scalar_select 0, %s9, %s7
  $region1: #{decoder_layer.19} parent=0
    #allocation2 [shape = 'u8[32768]{0}', space=vmem, size = 0x8000, scoped, tag = 'input window, operand 0']
    #allocation3 [shape = 'u8[32768]{0}', space=vmem, size = 0x8000, scoped, tag = 'output window, operand 0, single buffered']
    #allocation4 [shape = 's32[2]{0}', space=sflag, size = 0x8, scoped, tag = 'scoped memory for decoder_layer.19']
    %11 = vsyncpa [#allocation4], 0
    loop: start=0, step=1, limit=4
    $region2: #{decoder_layer.19} parent=1 // loop_pre_header
      _
    $region3: #{decoder_layer.19} parent=1 // loop_header
      %s13 = sphi 0, %s17
      %p14 = scmp.ge.s32.totalorder %s13, 4
      %s20 = sphi 0, %s32
      %s21 = sphi 0, %s28
      %s22 = sphi 0, %s20
      %s23 = sphi 0, %s21
      %s24 = sphi 0, %s22
      %s25 = sphi 0, %s23
      %s37 = sphi 0, %s39
      %s40 = sphi 0, %s37
      %s41 = sphi 0, %s40
      %s57 = sphi 0, %s41
      %s63 = sphi 0, %s65
      %s66 = sphi 0, %s63
      %s67 = sphi 0, %s66
      %s83 = sphi 0, %s67
      %s87 = sphi 0, %s87
      %s89 = sphi 0, %s87
      %s90 = sphi 0, %s89
      %s104 = sphi 0, %s90
      %s110 = sphi 0, %s112
      %s113 = sphi 0, %s110
      %s114 = sphi 0, %s113
      %s130 = sphi 0, %s114
      %s134 = sphi 0, %s134
      %s136 = sphi 0, %s134
      %s137 = sphi 0, %s136
      %s151 = sphi 0, %s137
      %s155 = sphi 0, %s155
      %s157 = sphi 0, %s155
      %s158 = sphi 0, %s157
      %s172 = sphi 0, %s158
      %s178 = sphi 0, %s180
      %s181 = sphi 0, %s178
      %s182 = sphi 0, %s181
      %s198 = sphi 0, %s182
    $region4: #{decoder_layer.19} parent=1 // loop_header_branch
      %16 = sbr.rel (%p14) target = $region8
    $region5: #{decoder_layer.19} parent=1 // loop_body
      %s18 = ssub.s32 %s13, 1
      %s19 = ssub.s32 %s13, 2
      %s26 = sadd.s32 1, %s21
      %p27 = scmp.ge.s32.totalorder %s26, 2
      %s28 = scalar_select %p27, 0, %s26
      %s29 = sadd.s32 1, %s20
      %s30 = scalar_select %p27, %s29, %s20
      %p31 = scmp.ge.s32.totalorder %s30, 1
      %s32 = scalar_select %p31, 0, %s30
      %s33 = ssub.s32 %s20, %s32
      %s34 = ssub.s32 %s21, %s28
      %s35 = sor.u32 %s33, %s34
      %p36 = scmp.eq.s32.totalorder %s35, 0
      %s38 = sadd.s32 %s37, 1
      %s39 = scalar_select %p36, %s37, %s38
      %p42 = pneg %p36
      %p43 = scmp.eq.s32.totalorder %s13, 1
      %p44 = por %p42, %p43
      %p45 = scmp.ne.s32.totalorder %s37, %s40
      %p46 = scmp.eq.s32.totalorder %s13, 0
      %p47 = por %p45, %p46
      %p48 = scmp.ne.s32.totalorder %s37, %s40
      %p49 = scmp.eq.s32.totalorder %s18, 1
      %p50 = por %p48, %p49
      %p51 = scmp.ne.s32.totalorder %s40, %s41
      %p52 = scmp.eq.s32.totalorder %s18, 0
      %p53 = por %p51, %p52
      %p54 = scmp.ne.s32.totalorder %s40, %s41
      %p55 = scmp.eq.s32.totalorder %s19, 1
      %p56 = por %p54, %p55
      %p58 = scmp.ne.s32.totalorder %s41, %s57
      %p59 = scmp.eq.s32.totalorder %s19, 0
      %p60 = por %p58, %p59
      %s61 = ssub.s32 %s21, %s28
      %p62 = scmp.eq.s32.totalorder %s61, 0
      %s64 = sadd.s32 %s63, 1
      %s65 = scalar_select %p62, %s63, %s64
      %p68 = pneg %p62
      %p69 = scmp.eq.s32.totalorder %s13, 1
      %p70 = por %p68, %p69
      %p71 = scmp.ne.s32.totalorder %s63, %s66
      %p72 = scmp.eq.s32.totalorder %s13, 0
      %p73 = por %p71, %p72
      %p74 = scmp.ne.s32.totalorder %s63, %s66
      %p75 = scmp.eq.s32.totalorder %s18, 1
      %p76 = por %p74, %p75
      %p77 = scmp.ne.s32.totalorder %s66, %s67
      %p78 = scmp.eq.s32.totalorder %s18, 0
      %p79 = por %p77, %p78
      %p80 = scmp.ne.s32.totalorder %s66, %s67
      %p81 = scmp.eq.s32.totalorder %s19, 1
      %p82 = por %p80, %p81
      %p84 = scmp.ne.s32.totalorder %s67, %s83
      %p85 = scmp.eq.s32.totalorder %s19, 0
      %p86 = por %p84, %p85
      %s88 = sadd.s32 %s87, 1
      %p91 = scmp.eq.s32.totalorder %s13, 1
      %p92 = scmp.ne.s32.totalorder %s87, %s89
      %p93 = scmp.eq.s32.totalorder %s13, 0
      %p94 = por %p92, %p93
      %p95 = scmp.ne.s32.totalorder %s87, %s89
      %p96 = scmp.eq.s32.totalorder %s18, 1
      %p97 = por %p95, %p96
      %p98 = scmp.ne.s32.totalorder %s89, %s90
      %p99 = scmp.eq.s32.totalorder %s18, 0
      %p100 = por %p98, %p99
      %p101 = scmp.ne.s32.totalorder %s89, %s90
      %p102 = scmp.eq.s32.totalorder %s19, 1
      %p103 = por %p101, %p102
      %p105 = scmp.ne.s32.totalorder %s90, %s104
      %p106 = scmp.eq.s32.totalorder %s19, 0
      %p107 = por %p105, %p106
      %s108 = ssub.s32 %s20, %s32
      %p109 = scmp.eq.s32.totalorder %s108, 0
      %s111 = sadd.s32 %s110, 1
      %s112 = scalar_select %p109, %s110, %s111
      %p115 = pneg %p109
      %p116 = scmp.eq.s32.totalorder %s13, 1
      %p117 = por %p115, %p116
      %p118 = scmp.ne.s32.totalorder %s110, %s113
      %p119 = scmp.eq.s32.totalorder %s13, 0
      %p120 = por %p118, %p119
      %p121 = scmp.ne.s32.totalorder %s110, %s113
      %p122 = scmp.eq.s32.totalorder %s18, 1
      %p123 = por %p121, %p122
      %p124 = scmp.ne.s32.totalorder %s113, %s114
      %p125 = scmp.eq.s32.totalorder %s18, 0
      %p126 = por %p124, %p125
      %p127 = scmp.ne.s32.totalorder %s113, %s114
      %p128 = scmp.eq.s32.totalorder %s19, 1
      %p129 = por %p127, %p128
      %p131 = scmp.ne.s32.totalorder %s114, %s130
      %p132 = scmp.eq.s32.totalorder %s19, 0
      %p133 = por %p131, %p132
      %s135 = sadd.s32 %s134, 1
      %p138 = scmp.eq.s32.totalorder %s13, 1
      %p139 = scmp.ne.s32.totalorder %s134, %s136
      %p140 = scmp.eq.s32.totalorder %s13, 0
      %p141 = por %p139, %p140
      %p142 = scmp.ne.s32.totalorder %s134, %s136
      %p143 = scmp.eq.s32.totalorder %s18, 1
      %p144 = por %p142, %p143
      %p145 = scmp.ne.s32.totalorder %s136, %s137
      %p146 = scmp.eq.s32.totalorder %s18, 0
      %p147 = por %p145, %p146
      %p148 = scmp.ne.s32.totalorder %s136, %s137
      %p149 = scmp.eq.s32.totalorder %s19, 1
      %p150 = por %p148, %p149
      %p152 = scmp.ne.s32.totalorder %s137, %s151
      %p153 = scmp.eq.s32.totalorder %s19, 0
      %p154 = por %p152, %p153
      %s156 = sadd.s32 %s155, 1
      %p159 = scmp.eq.s32.totalorder %s13, 1
      %p160 = scmp.ne.s32.totalorder %s155, %s157
      %p161 = scmp.eq.s32.totalorder %s13, 0
      %p162 = por %p160, %p161
      %p163 = scmp.ne.s32.totalorder %s155, %s157
      %p164 = scmp.eq.s32.totalorder %s18, 1
      %p165 = por %p163, %p164
      %p166 = scmp.ne.s32.totalorder %s157, %s158
      %p167 = scmp.eq.s32.totalorder %s18, 0
      %p168 = por %p166, %p167
      %p169 = scmp.ne.s32.totalorder %s157, %s158
      %p170 = scmp.eq.s32.totalorder %s19, 1
      %p171 = por %p169, %p170
      %p173 = scmp.ne.s32.totalorder %s158, %s172
      %p174 = scmp.eq.s32.totalorder %s19, 0
      %p175 = por %p173, %p174
      %s176 = ssub.s32 %s20, %s32
      %p177 = scmp.eq.s32.totalorder %s176, 0
      %s179 = sadd.s32 %s178, 1
      %s180 = scalar_select %p177, %s178, %s179
      %p183 = pneg %p177
      %p184 = scmp.eq.s32.totalorder %s13, 1
      %p185 = por %p183, %p184
      %p186 = scmp.ne.s32.totalorder %s178, %s181
      %p187 = scmp.eq.s32.totalorder %s13, 0
      %p188 = por %p186, %p187
      %p189 = scmp.ne.s32.totalorder %s178, %s181
      %p190 = scmp.eq.s32.totalorder %s18, 1
      %p191 = por %p189, %p190
      %p192 = scmp.ne.s32.totalorder %s181, %s182
      %p193 = scmp.eq.s32.totalorder %s18, 0
      %p194 = por %p192, %p193
      %p195 = scmp.ne.s32.totalorder %s181, %s182
      %p196 = scmp.eq.s32.totalorder %s19, 1
      %p197 = por %p195, %p196
      %p199 = scmp.ne.s32.totalorder %s182, %s198
      %p200 = scmp.eq.s32.totalorder %s19, 0
      %p201 = por %p199, %p200
      %p202 = scmp.le.s32.totalorder 1, %s13
      %p203 = scmp.lt.s32.totalorder %s13, 3
      %p204 = pnand %p202, %p203
      %p205 = pneg %p204
      // Predicated region
      $region9: #{decoder_layer.19} parent=5 // pred_check
        _
      $region10: #{decoder_layer.19} parent=5 // pred_check_branch
        %207 = sbr.rel (%p204) target = $region12
      $region11: #{decoder_layer.19} parent=5 // pred_region
        %s208 = ssub.s32 %s13, 1
        // Predicated region
        $region13: #{decoder_layer.19} parent=11 // pred_check
          %p209 = pneg %p100
        $region14: #{decoder_layer.19} parent=11 // pred_check_branch
          %211 = sbr.rel (%p209) target = $region16
        $region15: #{decoder_layer.19} parent=11 // pred_region
          _
        $region16: #{decoder_layer.19} parent=11 // pred_fallthru
          _
        // Predicated region
        $region17: #{decoder_layer.19} parent=11 // pred_check
          %p212 = pneg %p126
        $region18: #{decoder_layer.19} parent=11 // pred_check_branch
          %214 = sbr.rel (%p212) target = $region20
        $region19: #{decoder_layer.19} parent=11 // pred_region
          %s215 = smul.u32 4, %s22
          %p216 = scmp.lt.s32.totalorder %s215, 3
          %s217 = scalar_select %p216, %s215, 3
          %s218 = smul.addr %s217, 2
          %s219 = smul.addr %s218, 8
          %s220 = scalar_lea.vmem %s3, %s219
          %s221 = smul.u32 4, %s22
        $region20: #{decoder_layer.19} parent=11 // pred_fallthru
          _
        // Predicated region
        $region21: #{decoder_layer.19} parent=11 // pred_check
          %p222 = pneg %p147
        $region22: #{decoder_layer.19} parent=11 // pred_check_branch
          %224 = sbr.rel (%p222) target = $region24
        $region23: #{decoder_layer.19} parent=11 // pred_region
          _
        $region24: #{decoder_layer.19} parent=11 // pred_fallthru
          _
        // Predicated region
        $region25: #{decoder_layer.19} parent=11 // pred_check
          %p225 = pneg %p168
        $region26: #{decoder_layer.19} parent=11 // pred_check_branch
          %227 = sbr.rel (%p225) target = $region28
        $region27: #{decoder_layer.19} parent=11 // pred_region
          _
        $region28: #{decoder_layer.19} parent=11 // pred_fallthru
          _
      $region12: #{decoder_layer.19} parent=5 // pred_fallthru
        _
      %p228 = scmp.lt.s32.totalorder %s13, 2
      // Predicated region
      $region29: #{decoder_layer.19} parent=5 // pred_check
        %p229 = pneg %p228
      $region30: #{decoder_layer.19} parent=5 // pred_check_branch
        %231 = sbr.rel (%p229) target = $region32
      $region31: #{decoder_layer.19} parent=5 // pred_region
        // Predicated region
        $region33: #{decoder_layer.19} parent=31 // pred_check
          %p232 = pneg %p47
        $region34: #{decoder_layer.19} parent=31 // pred_check_branch
          %234 = sbr.rel (%p232) target = $region36
        $region35: #{decoder_layer.19} parent=31 // pred_region
          %s235 = sand.u32 %s37, 1
          %s236 = sand.u32 %s37, 1
          %s237 = smul.addr %s236, 32
          %s238 = scalar_lea.vmem [#allocation2], %s237
          %s239 = smul.u32 4, %s20
          %s240 = smul.u32 2, %s21
          %s241 = smul.addr %s239, 4
          %s242 = sadd.s32 %s240, %s241
          %s243 = smul.addr %s242, 4
          %s244 = scalar_lea.vmem %s0, %s243
          // Predicated region
          $region37: #{decoder_layer.19} parent=35 // pred_check
            _
          $region38: #{decoder_layer.19} parent=35 // pred_check_branch
            %246 = sbr.rel (0) target = $region40
          $region39: #{decoder_layer.19} parent=35 // pred_region
            // Predicated region
            $region41: #{decoder_layer.19} parent=39 // pred_check
              _
            $region42: #{decoder_layer.19} parent=39 // pred_check_branch
              %248 = sbr.rel (0) target = $region44
            $region43: #{decoder_layer.19} parent=39 // pred_region
              // Predicated region
              $region56: #{decoder_layer.19} parent=43 // pred_check
                _
              $region57: #{decoder_layer.19} parent=43 // pred_check_branch
                %269 = sbr.rel (0) target = $region59
              $region58: #{decoder_layer.19} parent=43 // pred_region
                loop: start=0, step=1, limit=1
                $region60: #{decoder_layer.19} parent=58 // loop_pre_header
                  _
                $region61: #{decoder_layer.19} parent=58 // loop_header
                  %s271 = sphi 0, %s275
                  %p272 = scmp.ge.s32.totalorder %s271, 1
                  %s276 = sphi %s244, %s244
                  %s277 = sphi %s238, %s238
                $region62: #{decoder_layer.19} parent=58 // loop_header_branch
                  %274 = sbr.rel (%p272) target = $region66
                $region63: #{decoder_layer.19} parent=58 // loop_body
                  %v278 = vld [vmem:[%s276] sm:$0xff]
                  %279 = vst [vmem:[%s277] sm:$0xff] %v278
                  %v280 = vld [vmem:[%s276 + $0x10] sm:$0xff]
                  %281 = vst [vmem:[%s277 + $0x8] sm:$0xff] %v280
                  %v282 = vld [vmem:[%s276 + $0x20] sm:$0xff]
                  %283 = vst [vmem:[%s277 + $0x10] sm:$0xff] %v282
                  %v284 = vld [vmem:[%s276 + $0x30] sm:$0xff]
                  %285 = vst [vmem:[%s277 + $0x18] sm:$0xff] %v284
                $region64: #{decoder_layer.19} parent=58 // loop_footer
                  %s275 = sadd.s32 1, %s271
                $region65: #{decoder_layer.19} parent=58 // loop_footer_branch
                  %270 = sbr.rel target = $region61
                $region66: #{decoder_layer.19} parent=58 // loop_exit
                  _
              $region59: #{decoder_layer.19} parent=43 // pred_fallthru
                _
              // Predicated region
              $region67: #{decoder_layer.19} parent=43 // pred_check
                _
              $region68: #{decoder_layer.19} parent=43 // pred_check_branch
                %287 = sbr.rel target = $region70
              $region69: #{decoder_layer.19} parent=43 // pred_region
                _
              $region70: #{decoder_layer.19} parent=43 // pred_fallthru
                _
            $region44: #{decoder_layer.19} parent=39 // pred_fallthru
              _
            // Predicated region
            $region45: #{decoder_layer.19} parent=39 // pred_check
              _
            $region46: #{decoder_layer.19} parent=39 // pred_check_branch
              %250 = sbr.rel target = $region48
            $region47: #{decoder_layer.19} parent=39 // pred_region
              loop: start=0, step=1, limit=1
              $region49: #{decoder_layer.19} parent=47 // loop_pre_header
                _
              $region50: #{decoder_layer.19} parent=47 // loop_header
                %s253 = sphi 0, %s257
                %p254 = scmp.ge.s32.totalorder %s253, 1
                %s258 = sphi %s244, %s244
                %s259 = sphi %s238, %s238
              $region51: #{decoder_layer.19} parent=47 // loop_header_branch
                %256 = sbr.rel (%p254) target = $region55
              $region52: #{decoder_layer.19} parent=47 // loop_body
                %v260 = vld [vmem:[%s258] sm:$0xff]
                %261 = vst [vmem:[%s259] sm:$0xff] %v260
                %v262 = vld [vmem:[%s258 + $0x10] sm:$0xff]
                %263 = vst [vmem:[%s259 + $0x8] sm:$0xff] %v262
                %v264 = vld [vmem:[%s258 + $0x20] sm:$0xff]
                %265 = vst [vmem:[%s259 + $0x10] sm:$0xff] %v264
                %v266 = vld [vmem:[%s258 + $0x30] sm:$0xff]
                %267 = vst [vmem:[%s259 + $0x18] sm:$0xff] %v266
              $region53: #{decoder_layer.19} parent=47 // loop_footer
                %s257 = sadd.s32 1, %s253
              $region54: #{decoder_layer.19} parent=47 // loop_footer_branch
                %252 = sbr.rel target = $region50
              $region55: #{decoder_layer.19} parent=47 // loop_exit
                _
            $region48: #{decoder_layer.19} parent=39 // pred_fallthru
              _
          $region40: #{decoder_layer.19} parent=35 // pred_fallthru
            _
          %288 = vnop
        $region36: #{decoder_layer.19} parent=31 // pred_fallthru
          _
        // Predicated region
        $region71: #{decoder_layer.19} parent=31 // pred_check
          %p289 = pneg %p73
        $region72: #{decoder_layer.19} parent=31 // pred_check_branch
          %291 = sbr.rel (%p289) target = $region74
        $region73: #{decoder_layer.19} parent=31 // pred_region
          %s292 = smul.u32 32, %s21
          %p293 = scmp.lt.s32.totalorder %s292, 63
          %s294 = scalar_select %p293, %s292, 63
          %s295 = smul.addr %s294, 2
          %s296 = smul.addr %s295, 4
          %s297 = scalar_lea.vmem %s1, %s296
          %s298 = smul.u32 32, %s21
        $region74: #{decoder_layer.19} parent=31 // pred_fallthru
          _
      $region32: #{decoder_layer.19} parent=5 // pred_fallthru
        _
      %p299 = scmp.le.s32.totalorder 1, %s13
      %p300 = scmp.lt.s32.totalorder %s13, 3
      %p301 = pnand %p299, %p300
      %p302 = pneg %p301
      // Predicated region
      $region75: #{decoder_layer.19} parent=5 // pred_check
        _
      $region76: #{decoder_layer.19} parent=5 // pred_check_branch
        %304 = sbr.rel (%p301) target = $region78
      $region77: #{decoder_layer.19} parent=5 // pred_region
        %s305 = ssub.s32 %s13, 1
        %s306 = sand.u32 %s40, 1
        %s307 = sand.u32 %s40, 1
        %s308 = smul.addr %s307, 32
        %s309 = scalar_lea.vmem [#allocation2], %s308
        // Predicated region
        $region79: #{decoder_layer.19} parent=77 // pred_check
          %p310 = pneg %p53
        $region80: #{decoder_layer.19} parent=77 // pred_check_branch
          %312 = sbr.rel (%p310) target = $region82
        $region81: #{decoder_layer.19} parent=77 // pred_region
          _
        $region82: #{decoder_layer.19} parent=77 // pred_fallthru
          _
        %s313 = sand.u32 %s40, 1
        %s314 = sand.u32 %s40, 1
        %s315 = smul.addr %s314, 32
        %s316 = scalar_lea.vmem [#allocation2], %s315
        %p317 = pneg %p53
        %p318 = pneg %p50
        %s319 = smul.u32 32, %s23
        %p320 = scmp.lt.s32.totalorder %s319, 63
        %s321 = scalar_select %p320, %s319, 63
        %s322 = smul.addr %s321, 2
        %s323 = smul.addr %s322, 4
        %s324 = scalar_lea.vmem %s1, %s323
        %p325 = pneg %p79
        %p326 = pneg %p76
        %p327 = pneg %p100
        %p328 = pneg %p97
        %s329 = smul.u32 4, %s22
        %p330 = scmp.lt.s32.totalorder %s329, 3
        %s331 = scalar_select %p330, %s329, 3
        %s332 = smul.addr %s331, 2
        %s333 = smul.addr %s332, 8
        %s334 = scalar_lea.vmem %s3, %s333
        %p335 = pneg %p126
        %p336 = pneg %p123
        %p337 = pneg %p147
        %p338 = pneg %p144
        %p339 = pneg %p168
        %p340 = pneg %p165
        %p341 = pneg %p194
        %p342 = pneg %p191
        %s343 = smul.u32 4, %s22
        %s344 = smul.u32 2, %s23
        %s345 = smul.u32 32, %s23
        %p346 = scmp.lt.s32.totalorder %s345, 63
        %s347 = scalar_select %p346, %s345, 63
        %s348 = smul.addr %s347, 2
        %s349 = smul.addr %s348, 4
        %s350 = scalar_lea.vmem %s1, %s349
        %s351 = smul.u32 32, %s23
        %s352 = smul.u32 4, %s22
        %p353 = scmp.lt.s32.totalorder %s352, 3
        %s354 = scalar_select %p353, %s352, 3
        %s355 = smul.addr %s354, 2
        %s356 = smul.addr %s355, 8
        %s357 = scalar_lea.vmem %s3, %s356
        %s358 = smul.u32 4, %s22
        %s359 = smul.u32 4, %s22
        %p360 = scmp.eq.s32.totalorder %s23, 0
        // Predicated region
        $region83: #{decoder_layer.19} parent=77 // pred_check
          %p361 = pneg %p360
        $region84: #{decoder_layer.19} parent=77 // pred_check_branch
          %363 = sbr.rel (%p361) target = $region86
        $region85: #{decoder_layer.19} parent=77 // pred_region
          %364 = vst [vmem:[#allocation3] sm:$0xff] 0.0
          %365 = vst [vmem:[#allocation3 + $0x8] sm:$0xff] 0.0
          %366 = vst [vmem:[#allocation3 + $0x10] sm:$0xff] 0.0
          %367 = vst [vmem:[#allocation3 + $0x18] sm:$0xff] 0.0
          %368 = vst [vmem:[#allocation3 + $0x20] sm:$0xff] 0.0
          %369 = vst [vmem:[#allocation3 + $0x28] sm:$0xff] 0.0
          %370 = vst [vmem:[#allocation3 + $0x30] sm:$0xff] 0.0
          %371 = vst [vmem:[#allocation3 + $0x38] sm:$0xff] 0.0
        $region86: #{decoder_layer.19} parent=77 // pred_fallthru
          _
        %v372 = vld [vmem:[#allocation3] sm:$0xff]
        %v373 = vld [vmem:[#allocation3 + $0x8] sm:$0xff]
        %v374 = vld [vmem:[#allocation3 + $0x10] sm:$0xff]
        %v375 = vld [vmem:[#allocation3 + $0x18] sm:$0xff]
        %v376 = vld [vmem:[#allocation3 + $0x20] sm:$0xff]
        %v377 = vld [vmem:[#allocation3 + $0x28] sm:$0xff]
        %v378 = vld [vmem:[#allocation3 + $0x30] sm:$0xff]
        %v379 = vld [vmem:[#allocation3 + $0x38] sm:$0xff]
        %v380 = vld [vmem:[%s309] sm:$0xff]
        %v381 = vld [vmem:[%s309 + $0x8] sm:$0xff]
        %v382 = vld [vmem:[%s309 + $0x10] sm:$0xff]
        %v383 = vld [vmem:[%s309 + $0x18] sm:$0xff]
        %v384 = vld [vmem:[%s350] sm:$0xff]
        %v385 = vld [vmem:[%s350 + $0x8] sm:$0xff]
        %v386 = vld [vmem:[%s350 + $0x10] sm:$0xff]
        %v387 = vld [vmem:[%s350 + $0x18] sm:$0xff]
        %v388 = vld [vmem:[%s350 + $0x20] sm:$0xff]
        %v389 = vld [vmem:[%s350 + $0x28] sm:$0xff]
        %v390 = vld [vmem:[%s350 + $0x30] sm:$0xff]
        %v391 = vld [vmem:[%s350 + $0x38] sm:$0xff]
        %v392 = vld [vmem:[%s350 + $0x40] sm:$0xff]
        %v393 = vld [vmem:[%s350 + $0x48] sm:$0xff]
        %v394 = vld [vmem:[%s350 + $0x50] sm:$0xff]
        %v395 = vld [vmem:[%s350 + $0x58] sm:$0xff]
        %v396 = vld [vmem:[%s350 + $0x60] sm:$0xff]
        %v397 = vld [vmem:[%s350 + $0x68] sm:$0xff]
        %v398 = vld [vmem:[%s350 + $0x70] sm:$0xff]
        %v399 = vld [vmem:[%s350 + $0x78] sm:$0xff]
        %v400 = vld [vmem:[%s350 + $0x80] sm:$0xff]
        %v401 = vld [vmem:[%s350 + $0x88] sm:$0xff]
        %v402 = vld [vmem:[%s350 + $0x90] sm:$0xff]
        %v403 = vld [vmem:[%s350 + $0x98] sm:$0xff]
        %v404 = vld [vmem:[%s350 + $0xa0] sm:$0xff]
        %v405 = vld [vmem:[%s350 + $0xa8] sm:$0xff]
        %v406 = vld [vmem:[%s350 + $0xb0] sm:$0xff]
        %v407 = vld [vmem:[%s350 + $0xb8] sm:$0xff]
        %v408 = vld [vmem:[%s350 + $0xc0] sm:$0xff]
        %v409 = vld [vmem:[%s350 + $0xc8] sm:$0xff]
        %v410 = vld [vmem:[%s350 + $0xd0] sm:$0xff]
        %v411 = vld [vmem:[%s350 + $0xd8] sm:$0xff]
        %v412 = vld [vmem:[%s350 + $0xe0] sm:$0xff]
        %v413 = vld [vmem:[%s350 + $0xe8] sm:$0xff]
        %v414 = vld [vmem:[%s350 + $0xf0] sm:$0xff]
        %v415 = vld [vmem:[%s350 + $0xf8] sm:$0xff]
        %v420 = vunpack.c.l.b16 %v380
        %v421 = vunpack.c.h.b16 %v380
        %v422 = vunpack.c.l.b16 %v381
        %v423 = vunpack.c.h.b16 %v381
        %v424 = vunpack.c.l.b16 %v382
        %v425 = vunpack.c.h.b16 %v382
        %v426 = vunpack.c.l.b16 %v383
        %v427 = vunpack.c.h.b16 %v383
        %v428 = vpack.c.b16 %v422, %v420
        %v429 = vpack.c.b16 %v423, %v421
        %v430 = vpack.c.b16 %v426, %v424
        %v431 = vpack.c.b16 %v427, %v425
        %v468 = vunpack.c.l.b16 %v384
        %v469 = vunpack.c.h.b16 %v384
        %v470 = vunpack.c.l.b16 %v385
        %v471 = vunpack.c.h.b16 %v385
        %v472 = vunpack.c.l.b16 %v386
        %v473 = vunpack.c.h.b16 %v386
        %v474 = vunpack.c.l.b16 %v387
        %v475 = vunpack.c.h.b16 %v387
        %v476 = vunpack.c.l.b16 %v388
        %v477 = vunpack.c.h.b16 %v388
        %v478 = vunpack.c.l.b16 %v389
        %v479 = vunpack.c.h.b16 %v389
        %v480 = vunpack.c.l.b16 %v390
        %v481 = vunpack.c.h.b16 %v390
        %v482 = vunpack.c.l.b16 %v391
        %v483 = vunpack.c.h.b16 %v391
        %v484 = vunpack.c.l.b16 %v392
        %v485 = vunpack.c.h.b16 %v392
        %v486 = vunpack.c.l.b16 %v393
        %v487 = vunpack.c.h.b16 %v393
        %v488 = vunpack.c.l.b16 %v394
        %v489 = vunpack.c.h.b16 %v394
        %v490 = vunpack.c.l.b16 %v395
        %v491 = vunpack.c.h.b16 %v395
        %v492 = vunpack.c.l.b16 %v396
        %v493 = vunpack.c.h.b16 %v396
        %v494 = vunpack.c.l.b16 %v397
        %v495 = vunpack.c.h.b16 %v397
        %v496 = vunpack.c.l.b16 %v398
        %v497 = vunpack.c.h.b16 %v398
        %v498 = vunpack.c.l.b16 %v399
        %v499 = vunpack.c.h.b16 %v399
        %v500 = vunpack.c.l.b16 %v400
        %v501 = vunpack.c.h.b16 %v400
        %v502 = vunpack.c.l.b16 %v401
        %v503 = vunpack.c.h.b16 %v401
        %v504 = vunpack.c.l.b16 %v402
        %v505 = vunpack.c.h.b16 %v402
        %v506 = vunpack.c.l.b16 %v403
        %v507 = vunpack.c.h.b16 %v403
        %v508 = vunpack.c.l.b16 %v404
        %v509 = vunpack.c.h.b16 %v404
        %v510 = vunpack.c.l.b16 %v405
        %v511 = vunpack.c.h.b16 %v405
        %v512 = vunpack.c.l.b16 %v406
        %v513 = vunpack.c.h.b16 %v406
        %v514 = vunpack.c.l.b16 %v407
        %v515 = vunpack.c.h.b16 %v407
        %v516 = vunpack.c.l.b16 %v408
        %v517 = vunpack.c.h.b16 %v408
        %v518 = vunpack.c.l.b16 %v409
        %v519 = vunpack.c.h.b16 %v409
        %v520 = vunpack.c.l.b16 %v410
        %v521 = vunpack.c.h.b16 %v410
        %v522 = vunpack.c.l.b16 %v411
        %v523 = vunpack.c.h.b16 %v411
        %v524 = vunpack.c.l.b16 %v412
        %v525 = vunpack.c.h.b16 %v412
        %v526 = vunpack.c.l.b16 %v413
        %v527 = vunpack.c.h.b16 %v413
        %v528 = vunpack.c.l.b16 %v414
        %v529 = vunpack.c.h.b16 %v414
        %v530 = vunpack.c.l.b16 %v415
        %v531 = vunpack.c.h.b16 %v415
        %v532 = vpack.c.b16 %v470, %v468
        %v533 = vpack.c.b16 %v471, %v469
        %v534 = vpack.c.b16 %v474, %v472
        %v535 = vpack.c.b16 %v475, %v473
        %v536 = vpack.c.b16 %v478, %v476
        %v537 = vpack.c.b16 %v479, %v477
        %v538 = vpack.c.b16 %v482, %v480
        %v539 = vpack.c.b16 %v483, %v481
        %v540 = vpack.c.b16 %v486, %v484
        %v541 = vpack.c.b16 %v487, %v485
        %v542 = vpack.c.b16 %v490, %v488
        %v543 = vpack.c.b16 %v491, %v489
        %v544 = vpack.c.b16 %v494, %v492
        %v545 = vpack.c.b16 %v495, %v493
        %v546 = vpack.c.b16 %v498, %v496
        %v547 = vpack.c.b16 %v499, %v497
        %v548 = vpack.c.b16 %v502, %v500
        %v549 = vpack.c.b16 %v503, %v501
        %v550 = vpack.c.b16 %v506, %v504
        %v551 = vpack.c.b16 %v507, %v505
        %v552 = vpack.c.b16 %v510, %v508
        %v553 = vpack.c.b16 %v511, %v509
        %v554 = vpack.c.b16 %v514, %v512
        %v555 = vpack.c.b16 %v515, %v513
        %v556 = vpack.c.b16 %v518, %v516
        %v557 = vpack.c.b16 %v519, %v517
        %v558 = vpack.c.b16 %v522, %v520
        %v559 = vpack.c.b16 %v523, %v521
        %v560 = vpack.c.b16 %v526, %v524
        %v561 = vpack.c.b16 %v527, %v525
        %v562 = vpack.c.b16 %v530, %v528
        %v563 = vpack.c.b16 %v531, %v529
        %596 = vmatprep.subr.bf16.mxu0 %v533
        %597 = vmatpush1.bf16.msra.mxu0 %v532
        %598 = vmatprep.subr.bf16.mxu0 %v535
        %599 = vmatpush1.bf16.msra.mxu0 %v534
        %600 = vmatprep.subr.bf16.mxu0 %v537
        %601 = vmatpush1.bf16.msra.mxu0 %v536
        %602 = vmatprep.subr.bf16.mxu0 %v539
        %603 = vmatpush1.bf16.msra.mxu0 %v538
        %604 = vmatprep.subr.bf16.mxu0 %v541
        %605 = vmatpush1.bf16.msra.mxu0 %v540
        %606 = vmatprep.subr.bf16.mxu0 %v543
        %607 = vmatpush1.bf16.msra.mxu0 %v542
        %608 = vmatprep.subr.bf16.mxu0 %v545
        %609 = vmatpush1.bf16.msra.mxu0 %v544
        %610 = vmatprep.subr.bf16.mxu0 %v547
        %611 = vmatpush1.bf16.msra.mxu0 %v546
        %612 = vmatprep.subr.bf16.mxu0 %v549
        %613 = vmatpush1.bf16.msra.mxu0 %v548
        %614 = vmatprep.subr.bf16.mxu0 %v551
        %615 = vmatpush1.bf16.msra.mxu0 %v550
        %616 = vmatprep.subr.bf16.mxu0 %v553
        %617 = vmatpush1.bf16.msra.mxu0 %v552
        %618 = vmatprep.subr.bf16.mxu0 %v555
        %619 = vmatpush1.bf16.msra.mxu0 %v554
        %620 = vmatprep.subr.bf16.mxu0 %v557
        %621 = vmatpush1.bf16.msra.mxu0 %v556
        %622 = vmatprep.subr.bf16.mxu0 %v559
        %623 = vmatpush1.bf16.msra.mxu0 %v558
        %624 = vmatprep.subr.bf16.mxu0 %v561
        %625 = vmatpush1.bf16.msra.mxu0 %v560
        %626 = vmatprep.subr.bf16.mxu0 %v563
        %627 = vmatpush1.bf16.msra.mxu0 %v562
        %628 = vmatprep.mubr.bf16.mxu0 %v429
        %629 = vmatmul.mubr.bf16.gmra.mrb[0].mxu0 %v428
        %v630 = vpop.f32.mrb[0].mxu0
        %v631 = vadd.f32 0.0, %v630
        %v632 = vpop.f32.mrb[0].mxu0
        %v633 = vadd.f32 0.0, %v632
        %v634 = vpop.f32.mrb[0].mxu0
        %v635 = vadd.f32 0.0, %v634
        %v636 = vpop.f32.mrb[0].mxu0
        %v637 = vadd.f32 0.0, %v636
        %638 = vmatprep.mubr.bf16.mxu0 %v431
        %639 = vmatmul.mubr.bf16.gmra.mrb[0].mxu0 %v430
        %v640 = vpop.f32.mrb[0].mxu0
        %v641 = vadd.f32 0.0, %v640
        %v642 = vpop.f32.mrb[0].mxu0
        %v643 = vadd.f32 0.0, %v642
        %v644 = vpop.f32.mrb[0].mxu0
        %v645 = vadd.f32 0.0, %v644
        %v646 = vpop.f32.mrb[0].mxu0
        %v647 = vadd.f32 0.0, %v646
        %648 = vdwg.mxu0
        %v649 = vadd.f32 %v372, %v631
        %v650 = vadd.f32 %v373, %v633
        %v651 = vadd.f32 %v374, %v635
        %v652 = vadd.f32 %v375, %v637
        %v653 = vadd.f32 %v376, %v641
        %v654 = vadd.f32 %v377, %v643
        %v655 = vadd.f32 %v378, %v645
        %v656 = vadd.f32 %v379, %v647
        %657 = vst [vmem:[#allocation3] sm:$0xff] %v649
        %658 = vst [vmem:[#allocation3 + $0x8] sm:$0xff] %v650
        %659 = vst [vmem:[#allocation3 + $0x10] sm:$0xff] %v651
        %660 = vst [vmem:[#allocation3 + $0x18] sm:$0xff] %v652
        %661 = vst [vmem:[#allocation3 + $0x20] sm:$0xff] %v653
        %662 = vst [vmem:[#allocation3 + $0x28] sm:$0xff] %v654
        %663 = vst [vmem:[#allocation3 + $0x30] sm:$0xff] %v655
        %664 = vst [vmem:[#allocation3 + $0x38] sm:$0xff] %v656
        %p665 = scmp.eq.s32.totalorder %s23, 1
        // Predicated region
        $region87: #{decoder_layer.19} parent=77 // pred_check
          %p666 = pneg %p665
        $region88: #{decoder_layer.19} parent=77 // pred_check_branch
          %668 = sbr.rel (%p666) target = $region90
        $region89: #{decoder_layer.19} parent=77 // pred_region
          %v669 = vld [vmem:[#allocation3] sm:$0xff]
          %v670 = vld [vmem:[#allocation3 + $0x8] sm:$0xff]
          %v671 = vld [vmem:[#allocation3 + $0x10] sm:$0xff]
          %v672 = vld [vmem:[#allocation3 + $0x18] sm:$0xff]
          %v673 = vld [vmem:[#allocation3 + $0x20] sm:$0xff]
          %v674 = vld [vmem:[#allocation3 + $0x28] sm:$0xff]
          %v675 = vld [vmem:[#allocation3 + $0x30] sm:$0xff]
          %v676 = vld [vmem:[#allocation3 + $0x38] sm:$0xff]
          %v677 = vld [vmem:[%s2] sm:$0x3]
          %v679 = vlaneseq
          %v680 = vshrl.u32 %v679, 7
          %v681 = vsub.s32 0, %v680
          %v682 = vrot.slane %v677, %v681
          %v683 = vlaneseq
          %v684 = vshrl.u32 %v683, 7
          %v685 = vsub.s32 1, %v684
          %v686 = vrot.slane %v677, %v685
          %v689 = vadd.f32 %v669, %v682
          %v690 = vadd.f32 %v670, %v686
          %v691 = vadd.f32 %v671, %v682
          %v692 = vadd.f32 %v672, %v686
          %v693 = vadd.f32 %v673, %v682
          %v694 = vadd.f32 %v674, %v686
          %v695 = vadd.f32 %v675, %v682
          %v696 = vadd.f32 %v676, %v686
          %v697 = vld [vmem:[%s357] sm:$0xff]
          %v698 = vld [vmem:[%s357 + $0x8] sm:$0xff]
          %v699 = vld [vmem:[%s357 + $0x10] sm:$0xff]
          %v700 = vld [vmem:[%s357 + $0x18] sm:$0xff]
          %v701 = vld [vmem:[%s357 + $0x20] sm:$0xff]
          %v702 = vld [vmem:[%s357 + $0x28] sm:$0xff]
          %v703 = vld [vmem:[%s357 + $0x30] sm:$0xff]
          %v704 = vld [vmem:[%s357 + $0x38] sm:$0xff]
          %v705 = vadd.f32 %v689, %v697
          %v706 = vadd.f32 %v690, %v698
          %v707 = vadd.f32 %v691, %v699
          %v708 = vadd.f32 %v692, %v700
          %v709 = vadd.f32 %v693, %v701
          %v710 = vadd.f32 %v694, %v702
          %v711 = vadd.f32 %v695, %v703
          %v712 = vadd.f32 %v696, %v704
          %v713 = vadd.f32 %v705, %v706
          %714 = vadd.xlane.f32.xlu0 %v713
          %v715 = vpop.xlane.xlu0 %714
          %v716 = vadd.f32 %v707, %v708
          %717 = vadd.xlane.f32.xlu0 %v716
          %v718 = vpop.xlane.xlu0 %717
          %v719 = vadd.f32 %v709, %v710
          %720 = vadd.xlane.f32.xlu0 %v719
          %v721 = vpop.xlane.xlu0 %720
          %v722 = vadd.f32 %v711, %v712
          %723 = vadd.xlane.f32.xlu0 %v722
          %v724 = vpop.xlane.xlu0 %723
          %v725 = vrcp.pop 256.0
          %v726 = vmul.f32 %v715, %v725
          %v727 = vmul.f32 %v718, %v725
          %v728 = vmul.f32 %v721, %v725
          %v729 = vmul.f32 %v724, %v725
          %v730 = vsub.f32 %v705, %v726
          %v731 = vsub.f32 %v706, %v726
          %v732 = vsub.f32 %v707, %v727
          %v733 = vsub.f32 %v708, %v727
          %v734 = vsub.f32 %v709, %v728
          %v735 = vsub.f32 %v710, %v728
          %v736 = vsub.f32 %v711, %v729
          %v737 = vsub.f32 %v712, %v729
          %v738 = vmul.f32 %v730, %v730
          %v739 = vmul.f32 %v731, %v731
          %v740 = vmul.f32 %v732, %v732
          %v741 = vmul.f32 %v733, %v733
          %v742 = vmul.f32 %v734, %v734
          %v743 = vmul.f32 %v735, %v735
          %v744 = vmul.f32 %v736, %v736
          %v745 = vmul.f32 %v737, %v737
          %v746 = vadd.f32 %v738, %v739
          %747 = vadd.xlane.f32.xlu0 %v746
          %v748 = vpop.xlane.xlu0 %747
          %v749 = vadd.f32 %v740, %v741
          %750 = vadd.xlane.f32.xlu0 %v749
          %v751 = vpop.xlane.xlu0 %750
          %v752 = vadd.f32 %v742, %v743
          %753 = vadd.xlane.f32.xlu0 %v752
          %v754 = vpop.xlane.xlu0 %753
          %v755 = vadd.f32 %v744, %v745
          %756 = vadd.xlane.f32.xlu0 %v755
          %v757 = vpop.xlane.xlu0 %756
          %v758 = vmul.f32 %v748, %v725
          %v759 = vmul.f32 %v751, %v725
          %v760 = vmul.f32 %v754, %v725
          %v761 = vmul.f32 %v757, %v725
          %v762 = vadd.f32 %v758, 1e-05
          %v763 = vadd.f32 %v759, 1e-05
          %v764 = vadd.f32 %v760, 1e-05
          %v765 = vadd.f32 %v761, 1e-05
          %v766 = vrsqrt.pop %v762
          %v767 = vrsqrt.pop %v763
          %v768 = vrsqrt.pop %v764
          %v769 = vrsqrt.pop %v765
          %v770 = vmul.f32 %v730, %v766
          %v771 = vmul.f32 %v731, %v766
          %v772 = vmul.f32 %v732, %v767
          %v773 = vmul.f32 %v733, %v767
          %v774 = vmul.f32 %v734, %v768
          %v775 = vmul.f32 %v735, %v768
          %v776 = vmul.f32 %v736, %v769
          %v777 = vmul.f32 %v737, %v769
          %v778 = vld [vmem:[%s4] sm:$0x3]
          %v780 = vlaneseq
          %v781 = vshrl.u32 %v780, 7
          %v782 = vsub.s32 0, %v781
          %v783 = vrot.slane %v778, %v782
          %v784 = vlaneseq
          %v785 = vshrl.u32 %v784, 7
          %v786 = vsub.s32 1, %v785
          %v787 = vrot.slane %v778, %v786
          %v790 = vmul.f32 %v770, %v783
          %v791 = vmul.f32 %v771, %v787
          %v792 = vmul.f32 %v772, %v783
          %v793 = vmul.f32 %v773, %v787
          %v794 = vmul.f32 %v774, %v783
          %v795 = vmul.f32 %v775, %v787
          %v796 = vmul.f32 %v776, %v783
          %v797 = vmul.f32 %v777, %v787
          %v798 = vld [vmem:[%s5] sm:$0x3]
          %v800 = vlaneseq
          %v801 = vshrl.u32 %v800, 7
          %v802 = vsub.s32 0, %v801
          %v803 = vrot.slane %v798, %v802
          %v804 = vlaneseq
          %v805 = vshrl.u32 %v804, 7
          %v806 = vsub.s32 1, %v805
          %v807 = vrot.slane %v798, %v806
          %v810 = vadd.f32 %v790, %v803
          %v811 = vadd.f32 %v791, %v807
          %v812 = vadd.f32 %v792, %v803
          %v813 = vadd.f32 %v793, %v807
          %v814 = vadd.f32 %v794, %v803
          %v815 = vadd.f32 %v795, %v807
          %v816 = vadd.f32 %v796, %v803
          %v817 = vadd.f32 %v797, %v807
          %818 = vst [vmem:[#allocation3] sm:$0xff] %v810
          %819 = vst [vmem:[#allocation3 + $0x8] sm:$0xff] %v811
          %820 = vst [vmem:[#allocation3 + $0x10] sm:$0xff] %v812
          %821 = vst [vmem:[#allocation3 + $0x18] sm:$0xff] %v813
          %822 = vst [vmem:[#allocation3 + $0x20] sm:$0xff] %v814
          %823 = vst [vmem:[#allocation3 + $0x28] sm:$0xff] %v815
          %824 = vst [vmem:[#allocation3 + $0x30] sm:$0xff] %v816
          %825 = vst [vmem:[#allocation3 + $0x38] sm:$0xff] %v817
        $region90: #{decoder_layer.19} parent=77 // pred_fallthru
          _
        // Predicated region
        $region91: #{decoder_layer.19} parent=77 // pred_check
          %p826 = pneg %p191
        $region92: #{decoder_layer.19} parent=77 // pred_check_branch
          %828 = sbr.rel (%p826) target = $region94
        $region93: #{decoder_layer.19} parent=77 // pred_region
          %s829 = smul.u32 4, %s22
          %s831 = ssub.s32 1024, 1024
          %832 = vsyncadd [#allocation4], %s831
          %s833 = smul.addr %s829, 2
          %s834 = smul.addr %s833, 128
          %s835 = scalar_lea.hbm %s6, %s834
          %s836 = sshll.u32 [#allocation3], 4
          %s837 = int_to_ptr.vmem [resolvable:$true] %s836
          %842 = dma.vmem_to_hbm [thread:$0]  %s837, 1024, %s835, [#allocation4], 256, 256, 16
        $region94: #{decoder_layer.19} parent=77 // pred_fallthru
          _
        // Predicated region
        $region95: #{decoder_layer.19} parent=77 // pred_check
          %p843 = pneg %p191
        $region96: #{decoder_layer.19} parent=77 // pred_check_branch
          %845 = sbr.rel (%p843) target = $region98
        $region97: #{decoder_layer.19} parent=77 // pred_region
          %846 = dma.done [#allocation4], 1024
        $region98: #{decoder_layer.19} parent=77 // pred_fallthru
          _
      $region78: #{decoder_layer.19} parent=5 // pred_fallthru
        _
      %p847 = scmp.le.s32.totalorder 2, %s13
      // Predicated region
      $region99: #{decoder_layer.19} parent=5 // pred_check
        %p848 = pneg %p847
      $region100: #{decoder_layer.19} parent=5 // pred_check_branch
        %850 = sbr.rel (%p848) target = $region102
      $region101: #{decoder_layer.19} parent=5 // pred_region
        %s851 = ssub.s32 %s13, 2
      $region102: #{decoder_layer.19} parent=5 // pred_fallthru
        _
    $region6: #{decoder_layer.19} parent=1 // loop_footer
      %s17 = sadd.s32 1, %s13
    $region7: #{decoder_layer.19} parent=1 // loop_footer_branch
      %12 = sbr.rel target = $region3
    $region8: #{decoder_layer.19} parent=1 // loop_exit
      _
    %852 = vsyncpa [#allocation4], 1
    %s853 = scalar_lea.sflag [#allocation4], 1
    %854 = vsyncpa %s853, 1

</llo_original>
